<compile_context>
chip_gen: v7x
topology: tpu7x:2x2x1
jax: 0.10.0
libtpu: 0.0.40
codegen_flags: <defaults>
</compile_context>

<pallas_src>
import jax
import jax.numpy as jnp
from jax.experimental import pallas as pl
from jax.experimental.pallas import tpu as pltpu

N_CONFIGS = 64        # batched configurations
N_ATOMS = 8           # atoms per configuration
POS_DIM = 3           # xyz
GNN_DIM = 32          # synthetic GNN descriptor feature dim
NUM_RF = 128          # number of random features (rf.weights has this size)
NUM_SPECIES = 2
CFG_TILE = 32         # configs per grid step -> 32*8 = 256 atoms on lanes


def franken_kernel(pos_t_ref, sp_ref, wg_ref, wg_t_ref, bg_ref,
                   mu_t_ref, sig_t_ref, wrf_t_ref, wrf_bwd_ref, brf_ref,
                   we_ref, out_ref):
    """One tile of atoms, feature-major layout (features on sublanes, atoms on lanes).

    pos_t_ref   : [3, M]   atom positions (transposed)
    sp_ref      : [1, M]   species index per atom (int32)
    wg_ref      : [3, D]   synthetic-GNN weight
    wg_t_ref    : [D, 3]   its transpose (hoisted to trace time)
    bg_ref      : [D, 1]   synthetic-GNN bias
    mu_t_ref    : [D, S]   per-species mean (FeatureScaler, scale_by_Z)
    sig_t_ref   : [D, S]   per-species inverse-std scale
    wrf_t_ref   : [R, D]   random-feature projection, transposed
    wrf_bwd_ref : [D, R]   -rf_scale * (Wrf * weights)   (folded backward matmul)
    brf_ref     : [R, 1]   random-feature phase
    we_ref      : [1, R]   rf_scale * rf.weights          (folded energy row)
    out_ref     : [4, M]   row 0 = per-atom energy contribution, rows 1-3 = forces^T
    """
    pos_t = pos_t_ref[...]                                    # [3, M]
    wg_t = wg_t_ref[...]                                      # [D, 3]

    # --- synthetic GNN descriptors: pre = Wg^T @ pos + bg  (K=3 -> VPU FMAs) --
    pre = (wg_t[:, 0:1] * pos_t[0:1, :]
           + wg_t[:, 1:2] * pos_t[1:2, :]
           + wg_t[:, 2:3] * pos_t[2:3, :]
           + bg_ref[...])                                     # [D, M]
    d = jnp.tanh(pre)                                         # [D, M]

    # --- FeatureScaler (scale_by_Z): per-species stats via short select chain -
    sp = sp_ref[...]                                          # [1, M] int32
    num_species = mu_t_ref.shape[1]
    m0 = (sp == 0).astype(jnp.float32)                        # [1, M]
    mu = mu_t_ref[:, 0:1] * m0                                # [D, M]
    sig = sig_t_ref[:, 0:1] * m0                              # [D, M]
    for s_idx in range(1, num_species):
        m = (sp == s_idx).astype(jnp.float32)
        mu = mu + mu_t_ref[:, s_idx:s_idx + 1] * m
        sig = sig + sig_t_ref[:, s_idx:s_idx + 1] * m
    s = (d - mu) * sig                                        # [D, M]

    # --- Random Fourier features head (MXU, K=D) ------------------------------
    z = jnp.dot(wrf_t_ref[...], s,
                preferred_element_type=jnp.float32) + brf_ref[...]   # [R, M]

    # per-atom energy contribution on the MXU: (rf_scale*w)^T [1,R] @ cos(z) [R,M]
    # (natoms * 1/natoms of the per-config mean cancels, so the config energy is
    #  just the sum of these per-atom contributions)
    out_ref[0:1, :] = jnp.dot(we_ref[...], jnp.cos(z),
                              preferred_element_type=jnp.float32)     # [1, M]

    # --- analytic gradient wrt positions (forces = -grad) ---------------------
    # dEds = Wrf @ (-rf_scale * w * sin(z)) = wrf_bwd @ sin(z)
    dEds = jnp.dot(wrf_bwd_ref[...], jnp.sin(z),
                   preferred_element_type=jnp.float32)        # [D, M]  (K=R)
    dEdpre = dEds * sig * (1.0 - d * d)                       # [D, M]
    out_ref[1:4, :] = -jnp.dot(wg_ref[...], dEdpre,
                               preferred_element_type=jnp.float32)    # [3, M]


def franken_energy_forces(pos, species, params, *, cfg_tile=CFG_TILE):
    """Batched FrankenPotential.energy_and_forces (add_energy_shift=True).

    pos:     [B, n_atoms, 3] float32
    species: [B, n_atoms]    int32 in [0, NUM_SPECIES)
    returns: energy [B] float32, forces [B, n_atoms, 3] float32
    """
    B, n_at, pdim = pos.shape
    D = params["wg"].shape[1]
    R = params["wrf"].shape[1]
    S = params["mu"].shape[0]
    rf_scale = (2.0 / R) ** 0.5
    total = B * n_at

    # Pick cfg_tile so it divides B and the lane dim (cfg_tile * n_at) is a
    # multiple of 128; otherwise fall back to a single full-batch tile.
    cfg_tile = max(1, min(cfg_tile, B))
    while cfg_tile > 1 and (B % cfg_tile != 0 or (cfg_tile * n_at) % 128 != 0):
        cfg_tile -= 1
    if B % cfg_tile != 0 or ((cfg_tile * n_at) % 128 != 0 and cfg_tile != B):
        cfg_tile = B                      # single tile: block == full array dim
    tile = cfg_tile * n_at                # atoms per grid step
    num_tiles = total // tile

    # Feature-major ("transposed") host-side layouts; all weight transposes and
    # rf_scale / rf.weights folds are hoisted to trace time.
    pos_t = pos.reshape(total, pdim).T.astype(jnp.float32)      # [3, total]
    sp_row = species.reshape(1, total).astype(jnp.int32)        # [1, total]
    wg = params["wg"].astype(jnp.float32)                       # [3, D]
    wg_t = wg.T                                                 # [D, 3]
    bg_col = params["bg"].reshape(D, 1).astype(jnp.float32)     # [D, 1]
    mu_t = params["mu"].T.astype(jnp.float32)                   # [D, S]
    sig_t = params["sigma"].T.astype(jnp.float32)               # [D, S]
    wrf = params["wrf"].astype(jnp.float32)                     # [D, R]
    wrf_t = wrf.T                                               # [R, D]
    brf_col = params["brf"].reshape(R, 1).astype(jnp.float32)   # [R, 1]
    w = params["weights"].astype(jnp.float32)                   # [R]
    we_row = (rf_scale * w).reshape(1, R)                       # [1, R]
    wrf_bwd = (-rf_scale) * (wrf * w[None, :])                  # [D, R]

    def const_spec(shape):            # VMEM-resident across all grid steps
        return pl.BlockSpec(shape, lambda i: (0, 0))

    # Advisory cost hint: transcendental-heavy kernel that looks cheap by
    # bytes / flops alone.
    matmul_flops = 2 * total * (R * D + R + D * R + pdim * D)
    const_bytes = 4 * (2 * pdim * D + D + 2 * D * S + 2 * R * D + R + R)
    io_bytes = 4 * (pdim * total + total) + 4 * (4 * total)
    cost = pl.CostEstimate(flops=matmul_flops,
                           transcendentals=(2 * R + D) * total,
                           bytes_accessed=const_bytes + io_bytes)

    packed = pl.pallas_call(
        franken_kernel,
        out_shape=jax.ShapeDtypeStruct((4, total), jnp.float32),
        grid=(num_tiles,),
        in_specs=[
            pl.BlockSpec((pdim, tile), lambda i: (0, i)),   # pos (transposed)
            pl.BlockSpec((1, tile), lambda i: (0, i)),      # species
            const_spec((pdim, D)),                          # Wg
            const_spec((D, pdim)),                          # Wg^T
            const_spec((D, 1)),                             # bg
            const_spec((D, S)),                             # mu per species
            const_spec((D, S)),                             # sigma per species
            const_spec((R, D)),                             # Wrf^T
            const_spec((D, R)),                             # -rf_scale*(Wrf*w)
            const_spec((R, 1)),                             # brf
            const_spec((1, R)),                             # rf_scale * weights
        ],
        out_specs=pl.BlockSpec((4, tile), lambda i: (0, i)),  # [E; forces^T]
        compiler_params=pltpu.CompilerParams(
            # config-tile axis is independent -> shard across v7x's 2 TCs
            dimension_semantics=("parallel",)),
        cost_estimate=cost,
    )(pos_t, sp_row, wg, wg_t, bg_col, mu_t, sig_t, wrf_t, wrf_bwd,
      brf_col, we_row)

    e_atoms = packed[0]                                         # [total]
    forces_t = packed[1:4]                                      # [3, total]

    # per-config energy = sum of per-atom contributions (+ AtomicEnergiesShift)
    energy = e_atoms.reshape(B, n_at).sum(axis=-1)
    energy = energy + jnp.sum(params["atomic_energies"][species], axis=-1)
    forces = forces_t.T.reshape(B, n_at, pdim)
    return energy, forces


# ----------------------- pure-JAX reference (for checking) -----------------
def ref_energy_per_config(pos, species, params):
    """Energy (without shift) per configuration; pos [B, n, 3], species [B, n]."""
    d = jnp.tanh(pos @ params["wg"] + params["bg"])
    s = (d - params["mu"][species]) * params["sigma"][species]
    z = s @ params["wrf"] + params["brf"]
    phi = jnp.sqrt(2.0 / params["wrf"].shape[1]) * jnp.cos(z)
    fmap = jnp.mean(phi, axis=1)                      # [B, R]
    return pos.shape[1] * (fmap @ params["weights"])  # [B]


if __name__ == "__main__":
    key = jax.random.PRNGKey(0)
    ks = jax.random.split(key, 9)
    pos = jax.random.normal(ks[0], (N_CONFIGS, N_ATOMS, POS_DIM), jnp.float32)
    species = jax.random.randint(ks[1], (N_CONFIGS, N_ATOMS), 0, NUM_SPECIES)

    params = dict(
        wg=0.5 * jax.random.normal(ks[2], (POS_DIM, GNN_DIM), jnp.float32),
        bg=0.1 * jax.random.normal(ks[3], (GNN_DIM,), jnp.float32),
        mu=0.05 * jax.random.normal(ks[4], (NUM_SPECIES, GNN_DIM), jnp.float32),
        sigma=1.0 + 0.1 * jax.random.uniform(ks[5], (NUM_SPECIES, GNN_DIM),
                                             jnp.float32),
        wrf=jax.random.normal(ks[6], (GNN_DIM, NUM_RF), jnp.float32),
        brf=jax.random.uniform(ks[7], (NUM_RF,), jnp.float32, 0.0,
                               2.0 * jnp.pi),
        weights=jax.random.normal(ks[8], (NUM_RF,), jnp.float32) / NUM_RF,
        atomic_energies=jnp.array([-1.0, -2.0], jnp.float32),
    )

    energy, forces = franken_energy_forces(pos, species, params)
    jax.block_until_ready((energy, forces))

    # correctness check vs. plain-JAX + autodiff reference
    e_ref = ref_energy_per_config(pos, species, params) + jnp.sum(
        params["atomic_energies"][species], axis=-1)
    e_total = lambda p: jnp.sum(ref_energy_per_config(p, species, params))
    f_ref = -jax.grad(e_total)(pos)

    assert energy.shape == (N_CONFIGS,)
    assert forces.shape == (N_CONFIGS, N_ATOMS, POS_DIM)
    assert jnp.allclose(energy, e_ref, atol=2e-4, rtol=2e-4), (energy[:4],
                                                               e_ref[:4])
    assert jnp.allclose(forces, f_ref, atol=2e-4, rtol=2e-4)

    print("KERNEL_OK")
</pallas_src>

<mosaic_0001>
module attributes {stable_mosaic.version = 11 : i64} {
  func.func @franken_kernel(%arg0: i32, %arg1: memref<3x256xf32, #tpu.memory_space<vmem>>, %arg2: memref<1x256xi32, #tpu.memory_space<vmem>>, %arg3: memref<3x32xf32, #tpu.memory_space<vmem>>, %arg4: memref<32x3xf32, #tpu.memory_space<vmem>>, %arg5: memref<32x1xf32, #tpu.memory_space<vmem>>, %arg6: memref<32x2xf32, #tpu.memory_space<vmem>>, %arg7: memref<32x2xf32, #tpu.memory_space<vmem>>, %arg8: memref<128x32xf32, #tpu.memory_space<vmem>>, %arg9: memref<32x128xf32, #tpu.memory_space<vmem>>, %arg10: memref<128x1xf32, #tpu.memory_space<vmem>>, %arg11: memref<1x128xf32, #tpu.memory_space<vmem>>, %arg12: memref<4x256xf32, #tpu.memory_space<vmem>>) attributes {dimension_semantics = [#tpu.dimension_semantics<parallel>], iteration_bounds = array<i64: 2>, scalar_prefetch = 0 : i64, scratch_operands = 0 : i64, tpu.core_type = #tpu.core_type<tc>, window_params = [{transform_indices = @transform_0, window_bounds = array<i64: 3, 256>}, {transform_indices = @transform_1, window_bounds = array<i64: 1, 256>}, {pipeline_mode = #tpu.pipeline_mode<synchronous>, transform_indices = @transform_2, window_bounds = array<i64: 3, 32>}, {pipeline_mode = #tpu.pipeline_mode<synchronous>, transform_indices = @transform_3, window_bounds = array<i64: 32, 3>}, {pipeline_mode = #tpu.pipeline_mode<synchronous>, transform_indices = @transform_4, window_bounds = array<i64: 32, 1>}, {pipeline_mode = #tpu.pipeline_mode<synchronous>, transform_indices = @transform_5, window_bounds = array<i64: 32, 2>}, {pipeline_mode = #tpu.pipeline_mode<synchronous>, transform_indices = @transform_6, window_bounds = array<i64: 32, 2>}, {pipeline_mode = #tpu.pipeline_mode<synchronous>, transform_indices = @transform_7, window_bounds = array<i64: 128, 32>}, {pipeline_mode = #tpu.pipeline_mode<synchronous>, transform_indices = @transform_8, window_bounds = array<i64: 32, 128>}, {pipeline_mode = #tpu.pipeline_mode<synchronous>, transform_indices = @transform_9, window_bounds = array<i64: 128, 1>}, {pipeline_mode = #tpu.pipeline_mode<synchronous>, transform_indices = @transform_10, window_bounds = array<i64: 1, 128>}, {transform_indices = @transform_11, window_bounds = array<i64: 4, 256>}]} {
    %c0 = arith.constant 0 : index
    %c0_0 = arith.constant 0 : index
    %0 = vector.load %arg1[%c0, %c0_0] : memref<3x256xf32, #tpu.memory_space<vmem>>, vector<3x256xf32>
    %c0_1 = arith.constant 0 : index
    %c0_2 = arith.constant 0 : index
    %1 = vector.load %arg4[%c0_1, %c0_2] : memref<32x3xf32, #tpu.memory_space<vmem>>, vector<32x3xf32>
    %2 = vector.extract_strided_slice %1 {offsets = [0, 0], sizes = [32, 1], strides = [1, 1]} : vector<32x3xf32> to vector<32x1xf32>
    %3 = vector.extract_strided_slice %0 {offsets = [0, 0], sizes = [1, 256], strides = [1, 1]} : vector<3x256xf32> to vector<1x256xf32>
    %4 = vector.broadcast %2 : vector<32x1xf32> to vector<32x256xf32>
    %5 = vector.broadcast %3 : vector<1x256xf32> to vector<32x256xf32>
    %6 = arith.mulf %4, %5 : vector<32x256xf32>
    %7 = vector.extract_strided_slice %1 {offsets = [0, 1], sizes = [32, 1], strides = [1, 1]} : vector<32x3xf32> to vector<32x1xf32>
    %8 = vector.extract_strided_slice %0 {offsets = [1, 0], sizes = [1, 256], strides = [1, 1]} : vector<3x256xf32> to vector<1x256xf32>
    %9 = vector.broadcast %7 : vector<32x1xf32> to vector<32x256xf32>
    %10 = vector.broadcast %8 : vector<1x256xf32> to vector<32x256xf32>
    %11 = arith.mulf %9, %10 : vector<32x256xf32>
    %12 = arith.addf %6, %11 : vector<32x256xf32>
    %13 = vector.extract_strided_slice %1 {offsets = [0, 2], sizes = [32, 1], strides = [1, 1]} : vector<32x3xf32> to vector<32x1xf32>
    %14 = vector.extract_strided_slice %0 {offsets = [2, 0], sizes = [1, 256], strides = [1, 1]} : vector<3x256xf32> to vector<1x256xf32>
    %15 = vector.broadcast %13 : vector<32x1xf32> to vector<32x256xf32>
    %16 = vector.broadcast %14 : vector<1x256xf32> to vector<32x256xf32>
    %17 = arith.mulf %15, %16 : vector<32x256xf32>
    %18 = arith.addf %12, %17 : vector<32x256xf32>
    %c0_3 = arith.constant 0 : index
    %c0_4 = arith.constant 0 : index
    %19 = vector.load %arg5[%c0_3, %c0_4] : memref<32x1xf32, #tpu.memory_space<vmem>>, vector<32x1xf32>
    %20 = vector.broadcast %19 : vector<32x1xf32> to vector<32x256xf32>
    %21 = arith.addf %18, %20 : vector<32x256xf32>
    %22 = math.tanh %21 : vector<32x256xf32>
    %c0_5 = arith.constant 0 : index
    %c0_6 = arith.constant 0 : index
    %23 = vector.load %arg2[%c0_5, %c0_6] : memref<1x256xi32, #tpu.memory_space<vmem>>, vector<1x256xi32>
    %c0_i32 = arith.constant 0 : i32
    %24 = vector.broadcast %c0_i32 : i32 to vector<1x256xi32>
    %25 = arith.cmpi eq, %23, %24 : vector<1x256xi32>
    %26 = arith.extui %25 : vector<1x256xi1> to vector<1x256xi32>
    %27 = arith.sitofp %26 : vector<1x256xi32> to vector<1x256xf32>
    %c0_7 = arith.constant 0 : index
    %c0_8 = arith.constant 0 : index
    %28 = vector.load %arg6[%c0_7, %c0_8] : memref<32x2xf32, #tpu.memory_space<vmem>>, vector<32x1xf32>
    %29 = vector.broadcast %28 : vector<32x1xf32> to vector<32x256xf32>
    %30 = vector.broadcast %27 : vector<1x256xf32> to vector<32x256xf32>
    %31 = arith.mulf %29, %30 : vector<32x256xf32>
    %c0_9 = arith.constant 0 : index
    %c0_10 = arith.constant 0 : index
    %32 = vector.load %arg7[%c0_9, %c0_10] : memref<32x2xf32, #tpu.memory_space<vmem>>, vector<32x1xf32>
    %33 = vector.broadcast %32 : vector<32x1xf32> to vector<32x256xf32>
    %34 = vector.broadcast %27 : vector<1x256xf32> to vector<32x256xf32>
    %35 = arith.mulf %33, %34 : vector<32x256xf32>
    %c1_i32 = arith.constant 1 : i32
    %36 = vector.broadcast %c1_i32 : i32 to vector<1x256xi32>
    %37 = arith.cmpi eq, %23, %36 : vector<1x256xi32>
    %38 = arith.extui %37 : vector<1x256xi1> to vector<1x256xi32>
    %39 = arith.sitofp %38 : vector<1x256xi32> to vector<1x256xf32>
    %c0_11 = arith.constant 0 : index
    %c1 = arith.constant 1 : index
    %40 = vector.load %arg6[%c0_11, %c1] : memref<32x2xf32, #tpu.memory_space<vmem>>, vector<32x1xf32>
    %41 = vector.broadcast %40 : vector<32x1xf32> to vector<32x256xf32>
    %42 = vector.broadcast %39 : vector<1x256xf32> to vector<32x256xf32>
    %43 = arith.mulf %41, %42 : vector<32x256xf32>
    %44 = arith.addf %31, %43 : vector<32x256xf32>
    %c0_12 = arith.constant 0 : index
    %c1_13 = arith.constant 1 : index
    %45 = vector.load %arg7[%c0_12, %c1_13] : memref<32x2xf32, #tpu.memory_space<vmem>>, vector<32x1xf32>
    %46 = vector.broadcast %45 : vector<32x1xf32> to vector<32x256xf32>
    %47 = vector.broadcast %39 : vector<1x256xf32> to vector<32x256xf32>
    %48 = arith.mulf %46, %47 : vector<32x256xf32>
    %49 = arith.addf %35, %48 : vector<32x256xf32>
    %50 = arith.subf %22, %44 : vector<32x256xf32>
    %51 = arith.mulf %50, %49 : vector<32x256xf32>
    %c0_14 = arith.constant 0 : index
    %c0_15 = arith.constant 0 : index
    %52 = vector.load %arg8[%c0_14, %c0_15] : memref<128x32xf32, #tpu.memory_space<vmem>>, vector<128x32xf32>
    %cst = arith.constant dense<0.000000e+00> : vector<128x256xf32>
    %53 = tpu.matmul %52, %51, %cst {dimension_numbers = #tpu.dot_dimension_numbers<[1], [0], [0], [1], [0, 0, 1, 1], [], []>} : vector<128x32xf32>, vector<32x256xf32>, vector<128x256xf32> -> vector<128x256xf32>
    %c0_16 = arith.constant 0 : index
    %c0_17 = arith.constant 0 : index
    %54 = vector.load %arg10[%c0_16, %c0_17] : memref<128x1xf32, #tpu.memory_space<vmem>>, vector<128x1xf32>
    %55 = vector.broadcast %54 : vector<128x1xf32> to vector<128x256xf32>
    %56 = arith.addf %53, %55 : vector<128x256xf32>
    %c0_18 = arith.constant 0 : index
    %c0_19 = arith.constant 0 : index
    %57 = vector.load %arg11[%c0_18, %c0_19] : memref<1x128xf32, #tpu.memory_space<vmem>>, vector<1x128xf32>
    %58 = math.cos %56 : vector<128x256xf32>
    %cst_20 = arith.constant dense<0.000000e+00> : vector<1x256xf32>
    %59 = tpu.matmul %57, %58, %cst_20 {dimension_numbers = #tpu.dot_dimension_numbers<[1], [0], [0], [1], [0, 0, 1, 1], [], []>} : vector<1x128xf32>, vector<128x256xf32>, vector<1x256xf32> -> vector<1x256xf32>
    %c0_21 = arith.constant 0 : index
    %c0_22 = arith.constant 0 : index
    %60 = vector.load %arg12[%c0_21, %c0_22] : memref<4x256xf32, #tpu.memory_space<vmem>>, vector<1x256xf32>
    tpu.vector_store %arg12[%c0_21, %c0_22], %59 {strides = array<i32>} : memref<4x256xf32, #tpu.memory_space<vmem>>, vector<1x256xf32>,
    %c0_23 = arith.constant 0 : index
    %c0_24 = arith.constant 0 : index
    %61 = vector.load %arg9[%c0_23, %c0_24] : memref<32x128xf32, #tpu.memory_space<vmem>>, vector<32x128xf32>
    %62 = math.sin %56 : vector<128x256xf32>
    %cst_25 = arith.constant dense<0.000000e+00> : vector<32x256xf32>
    %63 = tpu.matmul %61, %62, %cst_25 {dimension_numbers = #tpu.dot_dimension_numbers<[1], [0], [0], [1], [0, 0, 1, 1], [], []>} : vector<32x128xf32>, vector<128x256xf32>, vector<32x256xf32> -> vector<32x256xf32>
    %64 = arith.mulf %63, %49 : vector<32x256xf32>
    %65 = arith.mulf %22, %22 : vector<32x256xf32>
    %cst_26 = arith.constant 1.000000e+00 : f32
    %66 = vector.broadcast %cst_26 : f32 to vector<32x256xf32>
    %67 = arith.subf %66, %65 : vector<32x256xf32>
    %68 = arith.mulf %64, %67 : vector<32x256xf32>
    %c0_27 = arith.constant 0 : index
    %c0_28 = arith.constant 0 : index
    %69 = vector.load %arg3[%c0_27, %c0_28] : memref<3x32xf32, #tpu.memory_space<vmem>>, vector<3x32xf32>
    %cst_29 = arith.constant dense<0.000000e+00> : vector<3x256xf32>
    %70 = tpu.matmul %69, %68, %cst_29 {dimension_numbers = #tpu.dot_dimension_numbers<[1], [0], [0], [1], [0, 0, 1, 1], [], []>} : vector<3x32xf32>, vector<32x256xf32>, vector<3x256xf32> -> vector<3x256xf32>
    %cst_30 = arith.constant 0.000000e+00 : f32
    %71 = vector.broadcast %cst_30 : f32 to vector<3x256xf32>
    %72 = arith.subf %71, %70 : vector<3x256xf32>
    %c1_31 = arith.constant 1 : index
    %c0_32 = arith.constant 0 : index
    %73 = vector.load %arg12[%c1_31, %c0_32] : memref<4x256xf32, #tpu.memory_space<vmem>>, vector<3x256xf32>
    tpu.vector_store %arg12[%c1_31, %c0_32], %72 {strides = array<i32>} : memref<4x256xf32, #tpu.memory_space<vmem>>, vector<3x256xf32>,
    return
  }
  func.func @transform_0(%arg0: i32) -> (i32, i32) {
    %c0_i32 = arith.constant 0 : i32
    %c0_i32_0 = arith.constant 0 : i32
    return %c0_i32, %arg0 : i32, i32
  }
  func.func @transform_1(%arg0: i32) -> (i32, i32) {
    %c0_i32 = arith.constant 0 : i32
    %c0_i32_0 = arith.constant 0 : i32
    return %c0_i32, %arg0 : i32, i32
  }
  func.func @transform_2(%arg0: i32) -> (i32, i32) {
    %c0_i32 = arith.constant 0 : i32
    %c0_i32_0 = arith.constant 0 : i32
    %c0_i32_1 = arith.constant 0 : i32
    return %c0_i32, %c0_i32_0 : i32, i32
  }
  func.func @transform_3(%arg0: i32) -> (i32, i32) {
    %c0_i32 = arith.constant 0 : i32
    %c0_i32_0 = arith.constant 0 : i32
    %c0_i32_1 = arith.constant 0 : i32
    return %c0_i32, %c0_i32_0 : i32, i32
  }
  func.func @transform_4(%arg0: i32) -> (i32, i32) {
    %c0_i32 = arith.constant 0 : i32
    %c0_i32_0 = arith.constant 0 : i32
    %c0_i32_1 = arith.constant 0 : i32
    return %c0_i32, %c0_i32_0 : i32, i32
  }
  func.func @transform_5(%arg0: i32) -> (i32, i32) {
    %c0_i32 = arith.constant 0 : i32
    %c0_i32_0 = arith.constant 0 : i32
    %c0_i32_1 = arith.constant 0 : i32
    return %c0_i32, %c0_i32_0 : i32, i32
  }
  func.func @transform_6(%arg0: i32) -> (i32, i32) {
    %c0_i32 = arith.constant 0 : i32
    %c0_i32_0 = arith.constant 0 : i32
    %c0_i32_1 = arith.constant 0 : i32
    return %c0_i32, %c0_i32_0 : i32, i32
  }
  func.func @transform_7(%arg0: i32) -> (i32, i32) {
    %c0_i32 = arith.constant 0 : i32
    %c0_i32_0 = arith.constant 0 : i32
    %c0_i32_1 = arith.constant 0 : i32
    return %c0_i32, %c0_i32_0 : i32, i32
  }
  func.func @transform_8(%arg0: i32) -> (i32, i32) {
    %c0_i32 = arith.constant 0 : i32
    %c0_i32_0 = arith.constant 0 : i32
    %c0_i32_1 = arith.constant 0 : i32
    return %c0_i32, %c0_i32_0 : i32, i32
  }
  func.func @transform_9(%arg0: i32) -> (i32, i32) {
    %c0_i32 = arith.constant 0 : i32
    %c0_i32_0 = arith.constant 0 : i32
    %c0_i32_1 = arith.constant 0 : i32
    return %c0_i32, %c0_i32_0 : i32, i32
  }
  func.func @transform_10(%arg0: i32) -> (i32, i32) {
    %c0_i32 = arith.constant 0 : i32
    %c0_i32_0 = arith.constant 0 : i32
    %c0_i32_1 = arith.constant 0 : i32
    return %c0_i32, %c0_i32_0 : i32, i32
  }
  func.func @transform_11(%arg0: i32) -> (i32, i32) {
    %c0_i32 = arith.constant 0 : i32
    %c0_i32_0 = arith.constant 0 : i32
    return %c0_i32, %arg0 : i32, i32
  }
}

</mosaic_0001>

<llo_original>
// kernel: tpu_custom_call.1
$region0: #{tpu_custom_call.1}
  #allocation0 [shape = 'u32[]', space=smem, size = 0x4, offset = 0x4, fixed_abs, tag = 'smem constant byte address 0x4 - core index']
  #allocation1 [shape = 'u32[144,128]{1,0:T(1,128)}', space=vmem, size = 0x12000, scoped, tag = 'internal scratch']
  %s0 = inlined_call_operand.vmem [shape: f32[3,512], index: 0, kind: input, shape index: {}]
  %s1 = inlined_call_operand.vmem [shape: s32[1,512], index: 1, kind: input, shape index: {}]
  %s2 = inlined_call_operand.vmem [shape: f32[3,32], index: 2, kind: input, shape index: {}]
  %s3 = inlined_call_operand.vmem [shape: f32[32,3], index: 3, kind: input, shape index: {}]
  %s4 = inlined_call_operand.vmem [shape: f32[32,1], index: 4, kind: input, shape index: {}]
  %s5 = inlined_call_operand.vmem [shape: f32[32,2], index: 5, kind: input, shape index: {}]
  %s6 = inlined_call_operand.vmem [shape: f32[32,2], index: 6, kind: input, shape index: {}]
  %s7 = inlined_call_operand.vmem [shape: f32[128,32], index: 7, kind: input, shape index: {}]
  %s8 = inlined_call_operand.vmem [shape: f32[32,128], index: 8, kind: input, shape index: {}]
  %s9 = inlined_call_operand.vmem [shape: f32[128,1], index: 9, kind: input, shape index: {}]
  %s10 = inlined_call_operand.vmem [shape: f32[1,128], index: 10, kind: input, shape index: {}]
  %s11 = inlined_call_operand.hbm [shape: f32[4,512], index: 11, kind: output, shape index: {}]
  %s12 = sld [smem:[#allocation0]]
  $region77: #{tpu_custom_call.1} parent=0
    _
  %s14 = ssub.s32 1, %s12
  %s15 = scalar_select 0, %s14, %s12
  $region1: #{tpu_custom_call.1} parent=0
    #allocation2 [shape = 'u8[8192]{0}', space=vmem, size = 0x2000, scoped, tag = 'output window, operand 0']
    #allocation3 [shape = 's32[2]{0}', space=sflag, size = 0x8, scoped, tag = 'scoped memory for tpu_custom_call.1']
    %16 = vsyncpa [#allocation3], 0
    %s17 = scalar_lea.sflag [#allocation3], 1
    %18 = vsyncpa %s17, 0
    loop: start=0, step=1, limit=4
    $region2: #{tpu_custom_call.1} parent=1 // loop_pre_header
      _
    $region3: #{tpu_custom_call.1} parent=1 // loop_header
      %s20 = sphi 0, %s24
      %p21 = scmp.ge.s32.totalorder %s20, 4
      %s30 = sphi 0, %s32
      %s33 = sphi 0, %s30
      %s34 = sphi 0, %s33
      %s50 = sphi 0, %s34
      %s56 = sphi 0, %s58
      %s59 = sphi 0, %s56
      %s60 = sphi 0, %s59
      %s76 = sphi 0, %s60
      %s80 = sphi 0, %s80
      %s82 = sphi 0, %s80
      %s83 = sphi 0, %s82
      %s97 = sphi 0, %s83
      %s101 = sphi 0, %s101
      %s103 = sphi 0, %s101
      %s104 = sphi 0, %s103
      %s118 = sphi 0, %s104
      %s122 = sphi 0, %s122
      %s124 = sphi 0, %s122
      %s125 = sphi 0, %s124
      %s139 = sphi 0, %s125
      %s143 = sphi 0, %s143
      %s145 = sphi 0, %s143
      %s146 = sphi 0, %s145
      %s160 = sphi 0, %s146
      %s164 = sphi 0, %s164
      %s166 = sphi 0, %s164
      %s167 = sphi 0, %s166
      %s181 = sphi 0, %s167
      %s185 = sphi 0, %s185
      %s187 = sphi 0, %s185
      %s188 = sphi 0, %s187
      %s202 = sphi 0, %s188
      %s206 = sphi 0, %s206
      %s208 = sphi 0, %s206
      %s209 = sphi 0, %s208
      %s223 = sphi 0, %s209
      %s227 = sphi 0, %s227
      %s229 = sphi 0, %s227
      %s230 = sphi 0, %s229
      %s244 = sphi 0, %s230
      %s248 = sphi 0, %s248
      %s250 = sphi 0, %s248
      %s251 = sphi 0, %s250
      %s265 = sphi 0, %s251
      %s271 = sphi 0, %s273
      %s274 = sphi 0, %s271
      %s275 = sphi 0, %s274
      %s291 = sphi 0, %s275
    $region4: #{tpu_custom_call.1} parent=1 // loop_header_branch
      %23 = sbr.rel (%p21) target = $region8
    $region5: #{tpu_custom_call.1} parent=1 // loop_body
      %s25 = ssub.s32 %s20, 1
      %s26 = ssub.s32 %s20, 2
      %s27 = sadd.s32 %s20, 1
      %s28 = ssub.s32 %s20, %s27
      %p29 = scmp.eq.s32.totalorder %s28, 0
      %s31 = sadd.s32 %s30, 1
      %s32 = scalar_select %p29, %s30, %s31
      %p35 = pneg %p29
      %p36 = scmp.eq.s32.totalorder %s20, 1
      %p37 = por %p35, %p36
      %p38 = scmp.ne.s32.totalorder %s30, %s33
      %p39 = scmp.eq.s32.totalorder %s20, 0
      %p40 = por %p38, %p39
      %p41 = scmp.ne.s32.totalorder %s30, %s33
      %p42 = scmp.eq.s32.totalorder %s25, 1
      %p43 = por %p41, %p42
      %p44 = scmp.ne.s32.totalorder %s33, %s34
      %p45 = scmp.eq.s32.totalorder %s25, 0
      %p46 = por %p44, %p45
      %p47 = scmp.ne.s32.totalorder %s33, %s34
      %p48 = scmp.eq.s32.totalorder %s26, 1
      %p49 = por %p47, %p48
      %p51 = scmp.ne.s32.totalorder %s34, %s50
      %p52 = scmp.eq.s32.totalorder %s26, 0
      %p53 = por %p51, %p52
      %s54 = ssub.s32 %s20, %s27
      %p55 = scmp.eq.s32.totalorder %s54, 0
      %s57 = sadd.s32 %s56, 1
      %s58 = scalar_select %p55, %s56, %s57
      %p61 = pneg %p55
      %p62 = scmp.eq.s32.totalorder %s20, 1
      %p63 = por %p61, %p62
      %p64 = scmp.ne.s32.totalorder %s56, %s59
      %p65 = scmp.eq.s32.totalorder %s20, 0
      %p66 = por %p64, %p65
      %p67 = scmp.ne.s32.totalorder %s56, %s59
      %p68 = scmp.eq.s32.totalorder %s25, 1
      %p69 = por %p67, %p68
      %p70 = scmp.ne.s32.totalorder %s59, %s60
      %p71 = scmp.eq.s32.totalorder %s25, 0
      %p72 = por %p70, %p71
      %p73 = scmp.ne.s32.totalorder %s59, %s60
      %p74 = scmp.eq.s32.totalorder %s26, 1
      %p75 = por %p73, %p74
      %p77 = scmp.ne.s32.totalorder %s60, %s76
      %p78 = scmp.eq.s32.totalorder %s26, 0
      %p79 = por %p77, %p78
      %s81 = sadd.s32 %s80, 1
      %p84 = scmp.eq.s32.totalorder %s20, 1
      %p85 = scmp.ne.s32.totalorder %s80, %s82
      %p86 = scmp.eq.s32.totalorder %s20, 0
      %p87 = por %p85, %p86
      %p88 = scmp.ne.s32.totalorder %s80, %s82
      %p89 = scmp.eq.s32.totalorder %s25, 1
      %p90 = por %p88, %p89
      %p91 = scmp.ne.s32.totalorder %s82, %s83
      %p92 = scmp.eq.s32.totalorder %s25, 0
      %p93 = por %p91, %p92
      %p94 = scmp.ne.s32.totalorder %s82, %s83
      %p95 = scmp.eq.s32.totalorder %s26, 1
      %p96 = por %p94, %p95
      %p98 = scmp.ne.s32.totalorder %s83, %s97
      %p99 = scmp.eq.s32.totalorder %s26, 0
      %p100 = por %p98, %p99
      %s102 = sadd.s32 %s101, 1
      %p105 = scmp.eq.s32.totalorder %s20, 1
      %p106 = scmp.ne.s32.totalorder %s101, %s103
      %p107 = scmp.eq.s32.totalorder %s20, 0
      %p108 = por %p106, %p107
      %p109 = scmp.ne.s32.totalorder %s101, %s103
      %p110 = scmp.eq.s32.totalorder %s25, 1
      %p111 = por %p109, %p110
      %p112 = scmp.ne.s32.totalorder %s103, %s104
      %p113 = scmp.eq.s32.totalorder %s25, 0
      %p114 = por %p112, %p113
      %p115 = scmp.ne.s32.totalorder %s103, %s104
      %p116 = scmp.eq.s32.totalorder %s26, 1
      %p117 = por %p115, %p116
      %p119 = scmp.ne.s32.totalorder %s104, %s118
      %p120 = scmp.eq.s32.totalorder %s26, 0
      %p121 = por %p119, %p120
      %s123 = sadd.s32 %s122, 1
      %p126 = scmp.eq.s32.totalorder %s20, 1
      %p127 = scmp.ne.s32.totalorder %s122, %s124
      %p128 = scmp.eq.s32.totalorder %s20, 0
      %p129 = por %p127, %p128
      %p130 = scmp.ne.s32.totalorder %s122, %s124
      %p131 = scmp.eq.s32.totalorder %s25, 1
      %p132 = por %p130, %p131
      %p133 = scmp.ne.s32.totalorder %s124, %s125
      %p134 = scmp.eq.s32.totalorder %s25, 0
      %p135 = por %p133, %p134
      %p136 = scmp.ne.s32.totalorder %s124, %s125
      %p137 = scmp.eq.s32.totalorder %s26, 1
      %p138 = por %p136, %p137
      %p140 = scmp.ne.s32.totalorder %s125, %s139
      %p141 = scmp.eq.s32.totalorder %s26, 0
      %p142 = por %p140, %p141
      %s144 = sadd.s32 %s143, 1
      %p147 = scmp.eq.s32.totalorder %s20, 1
      %p148 = scmp.ne.s32.totalorder %s143, %s145
      %p149 = scmp.eq.s32.totalorder %s20, 0
      %p150 = por %p148, %p149
      %p151 = scmp.ne.s32.totalorder %s143, %s145
      %p152 = scmp.eq.s32.totalorder %s25, 1
      %p153 = por %p151, %p152
      %p154 = scmp.ne.s32.totalorder %s145, %s146
      %p155 = scmp.eq.s32.totalorder %s25, 0
      %p156 = por %p154, %p155
      %p157 = scmp.ne.s32.totalorder %s145, %s146
      %p158 = scmp.eq.s32.totalorder %s26, 1
      %p159 = por %p157, %p158
      %p161 = scmp.ne.s32.totalorder %s146, %s160
      %p162 = scmp.eq.s32.totalorder %s26, 0
      %p163 = por %p161, %p162
      %s165 = sadd.s32 %s164, 1
      %p168 = scmp.eq.s32.totalorder %s20, 1
      %p169 = scmp.ne.s32.totalorder %s164, %s166
      %p170 = scmp.eq.s32.totalorder %s20, 0
      %p171 = por %p169, %p170
      %p172 = scmp.ne.s32.totalorder %s164, %s166
      %p173 = scmp.eq.s32.totalorder %s25, 1
      %p174 = por %p172, %p173
      %p175 = scmp.ne.s32.totalorder %s166, %s167
      %p176 = scmp.eq.s32.totalorder %s25, 0
      %p177 = por %p175, %p176
      %p178 = scmp.ne.s32.totalorder %s166, %s167
      %p179 = scmp.eq.s32.totalorder %s26, 1
      %p180 = por %p178, %p179
      %p182 = scmp.ne.s32.totalorder %s167, %s181
      %p183 = scmp.eq.s32.totalorder %s26, 0
      %p184 = por %p182, %p183
      %s186 = sadd.s32 %s185, 1
      %p189 = scmp.eq.s32.totalorder %s20, 1
      %p190 = scmp.ne.s32.totalorder %s185, %s187
      %p191 = scmp.eq.s32.totalorder %s20, 0
      %p192 = por %p190, %p191
      %p193 = scmp.ne.s32.totalorder %s185, %s187
      %p194 = scmp.eq.s32.totalorder %s25, 1
      %p195 = por %p193, %p194
      %p196 = scmp.ne.s32.totalorder %s187, %s188
      %p197 = scmp.eq.s32.totalorder %s25, 0
      %p198 = por %p196, %p197
      %p199 = scmp.ne.s32.totalorder %s187, %s188
      %p200 = scmp.eq.s32.totalorder %s26, 1
      %p201 = por %p199, %p200
      %p203 = scmp.ne.s32.totalorder %s188, %s202
      %p204 = scmp.eq.s32.totalorder %s26, 0
      %p205 = por %p203, %p204
      %s207 = sadd.s32 %s206, 1
      %p210 = scmp.eq.s32.totalorder %s20, 1
      %p211 = scmp.ne.s32.totalorder %s206, %s208
      %p212 = scmp.eq.s32.totalorder %s20, 0
      %p213 = por %p211, %p212
      %p214 = scmp.ne.s32.totalorder %s206, %s208
      %p215 = scmp.eq.s32.totalorder %s25, 1
      %p216 = por %p214, %p215
      %p217 = scmp.ne.s32.totalorder %s208, %s209
      %p218 = scmp.eq.s32.totalorder %s25, 0
      %p219 = por %p217, %p218
      %p220 = scmp.ne.s32.totalorder %s208, %s209
      %p221 = scmp.eq.s32.totalorder %s26, 1
      %p222 = por %p220, %p221
      %p224 = scmp.ne.s32.totalorder %s209, %s223
      %p225 = scmp.eq.s32.totalorder %s26, 0
      %p226 = por %p224, %p225
      %s228 = sadd.s32 %s227, 1
      %p231 = scmp.eq.s32.totalorder %s20, 1
      %p232 = scmp.ne.s32.totalorder %s227, %s229
      %p233 = scmp.eq.s32.totalorder %s20, 0
      %p234 = por %p232, %p233
      %p235 = scmp.ne.s32.totalorder %s227, %s229
      %p236 = scmp.eq.s32.totalorder %s25, 1
      %p237 = por %p235, %p236
      %p238 = scmp.ne.s32.totalorder %s229, %s230
      %p239 = scmp.eq.s32.totalorder %s25, 0
      %p240 = por %p238, %p239
      %p241 = scmp.ne.s32.totalorder %s229, %s230
      %p242 = scmp.eq.s32.totalorder %s26, 1
      %p243 = por %p241, %p242
      %p245 = scmp.ne.s32.totalorder %s230, %s244
      %p246 = scmp.eq.s32.totalorder %s26, 0
      %p247 = por %p245, %p246
      %s249 = sadd.s32 %s248, 1
      %p252 = scmp.eq.s32.totalorder %s20, 1
      %p253 = scmp.ne.s32.totalorder %s248, %s250
      %p254 = scmp.eq.s32.totalorder %s20, 0
      %p255 = por %p253, %p254
      %p256 = scmp.ne.s32.totalorder %s248, %s250
      %p257 = scmp.eq.s32.totalorder %s25, 1
      %p258 = por %p256, %p257
      %p259 = scmp.ne.s32.totalorder %s250, %s251
      %p260 = scmp.eq.s32.totalorder %s25, 0
      %p261 = por %p259, %p260
      %p262 = scmp.ne.s32.totalorder %s250, %s251
      %p263 = scmp.eq.s32.totalorder %s26, 1
      %p264 = por %p262, %p263
      %p266 = scmp.ne.s32.totalorder %s251, %s265
      %p267 = scmp.eq.s32.totalorder %s26, 0
      %p268 = por %p266, %p267
      %s269 = ssub.s32 %s20, %s27
      %p270 = scmp.eq.s32.totalorder %s269, 0
      %s272 = sadd.s32 %s271, 1
      %s273 = scalar_select %p270, %s271, %s272
      %p276 = pneg %p270
      %p277 = scmp.eq.s32.totalorder %s20, 1
      %p278 = por %p276, %p277
      %p279 = scmp.ne.s32.totalorder %s271, %s274
      %p280 = scmp.eq.s32.totalorder %s20, 0
      %p281 = por %p279, %p280
      %p282 = scmp.ne.s32.totalorder %s271, %s274
      %p283 = scmp.eq.s32.totalorder %s25, 1
      %p284 = por %p282, %p283
      %p285 = scmp.ne.s32.totalorder %s274, %s275
      %p286 = scmp.eq.s32.totalorder %s25, 0
      %p287 = por %p285, %p286
      %p288 = scmp.ne.s32.totalorder %s274, %s275
      %p289 = scmp.eq.s32.totalorder %s26, 1
      %p290 = por %p288, %p289
      %p292 = scmp.ne.s32.totalorder %s275, %s291
      %p293 = scmp.eq.s32.totalorder %s26, 0
      %p294 = por %p292, %p293
      %p295 = scmp.le.s32.totalorder 1, %s20
      %p296 = scmp.lt.s32.totalorder %s20, 3
      %p297 = pnand %p295, %p296
      %p298 = pneg %p297
      // Predicated region
      $region9: #{tpu_custom_call.1} parent=5 // pred_check
        _
      $region10: #{tpu_custom_call.1} parent=5 // pred_check_branch
        %300 = sbr.rel (%p297) target = $region12
      $region11: #{tpu_custom_call.1} parent=5 // pred_region
        %s301 = ssub.s32 %s20, 1
        // Predicated region
        $region13: #{tpu_custom_call.1} parent=11 // pred_check
          %p302 = pneg %p93
        $region14: #{tpu_custom_call.1} parent=11 // pred_check_branch
          %304 = sbr.rel (%p302) target = $region16
        $region15: #{tpu_custom_call.1} parent=11 // pred_region
          _
        $region16: #{tpu_custom_call.1} parent=11 // pred_fallthru
          _
        // Predicated region
        $region17: #{tpu_custom_call.1} parent=11 // pred_check
          %p305 = pneg %p114
        $region18: #{tpu_custom_call.1} parent=11 // pred_check_branch
          %307 = sbr.rel (%p305) target = $region20
        $region19: #{tpu_custom_call.1} parent=11 // pred_region
          _
        $region20: #{tpu_custom_call.1} parent=11 // pred_fallthru
          _
        // Predicated region
        $region21: #{tpu_custom_call.1} parent=11 // pred_check
          %p308 = pneg %p135
        $region22: #{tpu_custom_call.1} parent=11 // pred_check_branch
          %310 = sbr.rel (%p308) target = $region24
        $region23: #{tpu_custom_call.1} parent=11 // pred_region
          _
        $region24: #{tpu_custom_call.1} parent=11 // pred_fallthru
          _
        // Predicated region
        $region25: #{tpu_custom_call.1} parent=11 // pred_check
          %p311 = pneg %p156
        $region26: #{tpu_custom_call.1} parent=11 // pred_check_branch
          %313 = sbr.rel (%p311) target = $region28
        $region27: #{tpu_custom_call.1} parent=11 // pred_region
          _
        $region28: #{tpu_custom_call.1} parent=11 // pred_fallthru
          _
        // Predicated region
        $region29: #{tpu_custom_call.1} parent=11 // pred_check
          %p314 = pneg %p177
        $region30: #{tpu_custom_call.1} parent=11 // pred_check_branch
          %316 = sbr.rel (%p314) target = $region32
        $region31: #{tpu_custom_call.1} parent=11 // pred_region
          _
        $region32: #{tpu_custom_call.1} parent=11 // pred_fallthru
          _
        // Predicated region
        $region33: #{tpu_custom_call.1} parent=11 // pred_check
          %p317 = pneg %p198
        $region34: #{tpu_custom_call.1} parent=11 // pred_check_branch
          %319 = sbr.rel (%p317) target = $region36
        $region35: #{tpu_custom_call.1} parent=11 // pred_region
          _
        $region36: #{tpu_custom_call.1} parent=11 // pred_fallthru
          _
        // Predicated region
        $region37: #{tpu_custom_call.1} parent=11 // pred_check
          %p320 = pneg %p219
        $region38: #{tpu_custom_call.1} parent=11 // pred_check_branch
          %322 = sbr.rel (%p320) target = $region40
        $region39: #{tpu_custom_call.1} parent=11 // pred_region
          _
        $region40: #{tpu_custom_call.1} parent=11 // pred_fallthru
          _
        // Predicated region
        $region41: #{tpu_custom_call.1} parent=11 // pred_check
          %p323 = pneg %p240
        $region42: #{tpu_custom_call.1} parent=11 // pred_check_branch
          %325 = sbr.rel (%p323) target = $region44
        $region43: #{tpu_custom_call.1} parent=11 // pred_region
          _
        $region44: #{tpu_custom_call.1} parent=11 // pred_fallthru
          _
        // Predicated region
        $region45: #{tpu_custom_call.1} parent=11 // pred_check
          %p326 = pneg %p261
        $region46: #{tpu_custom_call.1} parent=11 // pred_check_branch
          %328 = sbr.rel (%p326) target = $region48
        $region47: #{tpu_custom_call.1} parent=11 // pred_region
          _
        $region48: #{tpu_custom_call.1} parent=11 // pred_fallthru
          _
      $region12: #{tpu_custom_call.1} parent=5 // pred_fallthru
        _
      %p329 = scmp.lt.s32.totalorder %s20, 2
      // Predicated region
      $region49: #{tpu_custom_call.1} parent=5 // pred_check
        %p330 = pneg %p329
      $region50: #{tpu_custom_call.1} parent=5 // pred_check_branch
        %332 = sbr.rel (%p330) target = $region52
      $region51: #{tpu_custom_call.1} parent=5 // pred_region
        // Predicated region
        $region53: #{tpu_custom_call.1} parent=51 // pred_check
          %p333 = pneg %p40
        $region54: #{tpu_custom_call.1} parent=51 // pred_check_branch
          %335 = sbr.rel (%p333) target = $region56
        $region55: #{tpu_custom_call.1} parent=51 // pred_region
          %s336 = smul.u32 2, %s20
          %p337 = scmp.lt.s32.totalorder %s336, 3
          %s338 = scalar_select %p337, %s336, 3
          %s339 = smul.addr %s338, 4
          %s340 = scalar_lea.vmem %s0, %s339
          %s341 = smul.u32 2, %s20
        $region56: #{tpu_custom_call.1} parent=51 // pred_fallthru
          _
        // Predicated region
        $region57: #{tpu_custom_call.1} parent=51 // pred_check
          %p342 = pneg %p66
        $region58: #{tpu_custom_call.1} parent=51 // pred_check_branch
          %344 = sbr.rel (%p342) target = $region60
        $region59: #{tpu_custom_call.1} parent=51 // pred_region
          %s345 = smul.u32 2, %s20
          %p346 = scmp.lt.s32.totalorder %s345, 3
          %s347 = scalar_select %p346, %s345, 3
          %s348 = scalar_lea.vmem %s1, %s347
          %s349 = smul.u32 2, %s20
        $region60: #{tpu_custom_call.1} parent=51 // pred_fallthru
          _
      $region52: #{tpu_custom_call.1} parent=5 // pred_fallthru
        _
      %p350 = scmp.le.s32.totalorder 1, %s20
      %p351 = scmp.lt.s32.totalorder %s20, 3
      %p352 = pnand %p350, %p351
      %p353 = pneg %p352
      // Predicated region
      $region61: #{tpu_custom_call.1} parent=5 // pred_check
        _
      $region62: #{tpu_custom_call.1} parent=5 // pred_check_branch
        %355 = sbr.rel (%p352) target = $region64
      $region63: #{tpu_custom_call.1} parent=5 // pred_region
        %s356 = ssub.s32 %s20, 1
        %s357 = smul.u32 2, %s25
        %p358 = scmp.lt.s32.totalorder %s357, 3
        %s359 = scalar_select %p358, %s357, 3
        %s360 = smul.addr %s359, 4
        %s361 = scalar_lea.vmem %s0, %s360
        %p362 = pneg %p46
        %p363 = pneg %p43
        %s364 = smul.u32 2, %s25
        %p365 = scmp.lt.s32.totalorder %s364, 3
        %s366 = scalar_select %p365, %s364, 3
        %s367 = scalar_lea.vmem %s1, %s366
        %p368 = pneg %p72
        %p369 = pneg %p69
        %p370 = pneg %p93
        %p371 = pneg %p90
        %p372 = pneg %p114
        %p373 = pneg %p111
        %p374 = pneg %p135
        %p375 = pneg %p132
        %p376 = pneg %p156
        %p377 = pneg %p153
        %p378 = pneg %p177
        %p379 = pneg %p174
        %p380 = pneg %p198
        %p381 = pneg %p195
        %p382 = pneg %p219
        %p383 = pneg %p216
        %p384 = pneg %p240
        %p385 = pneg %p237
        %p386 = pneg %p261
        %p387 = pneg %p258
        %p388 = pneg %p287
        %p389 = pneg %p284
        %s390 = sand.u32 %s274, 1
        %s391 = scalar_lea.sflag [#allocation3], %s390
        %s392 = sand.u32 %s274, 1
        %s393 = smul.addr %s392, 8
        %s394 = scalar_lea.vmem [#allocation2], %s393
        %s395 = smul.u32 2, %s25
        %p396 = scmp.lt.s32.totalorder %s395, 3
        %s397 = scalar_select %p396, %s395, 3
        %s398 = smul.addr %s397, 4
        %s399 = scalar_lea.vmem %s0, %s398
        %s400 = smul.u32 2, %s25
        %s401 = smul.u32 2, %s25
        %p402 = scmp.lt.s32.totalorder %s401, 3
        %s403 = scalar_select %p402, %s401, 3
        %s404 = scalar_lea.vmem %s1, %s403
        %s405 = smul.u32 2, %s25
        %s406 = smul.u32 2, %s25
        %v407 = vld [vmem:[%s399] sm:$0x77]
        %v408 = vld [vmem:[%s3] sm:$0xff]
        %v409 = vld [vmem:[%s3 + $0x8] sm:$0xff]
        %v410 = vld [vmem:[%s3 + $0x10] sm:$0xff]
        %v411 = vld [vmem:[%s3 + $0x18] sm:$0xff]
        %413 = vset.pattern.permute.xlu0 0
        %414 = vperm.xlu0 %413, %v408
        %v415 = vpop.permute.xlu0 %414
        %418 = vset.pattern.permute.xlu0 0
        %419 = vperm.xlu0 %418, %v409
        %v420 = vpop.permute.xlu0 %419
        %423 = vset.pattern.permute.xlu0 0
        %424 = vperm.xlu0 %423, %v410
        %v425 = vpop.permute.xlu0 %424
        %428 = vset.pattern.permute.xlu0 0
        %429 = vperm.xlu0 %428, %v411
        %v430 = vpop.permute.xlu0 %429
        %v433 = vlaneseq
        %v434 = vshrl.u32 %v433, 7
        %v435 = vsub.s32 0, %v434
        %v436 = vrot.slane %v407, %v435
        %v437 = vlaneseq
        %v438 = vshrl.u32 %v437, 7
        %v439 = vsub.s32 4, %v438
        %v440 = vrot.slane %v407, %v439
        %v443 = vlaneseq
        %v444 = vshrl.u32 %v443, 7
        %v445 = vsub.s32 0, %v444
        %v446 = vrot.slane %v436, %v445
        %v447 = vlaneseq
        %v448 = vshrl.u32 %v447, 7
        %v449 = vsub.s32 0, %v448
        %v450 = vrot.slane %v440, %v449
        %v451 = vmul.f32 %v415, %v446
        %v452 = vmul.f32 %v415, %v450
        %v453 = vmul.f32 %v420, %v446
        %v454 = vmul.f32 %v420, %v450
        %v455 = vmul.f32 %v425, %v446
        %v456 = vmul.f32 %v425, %v450
        %v457 = vmul.f32 %v430, %v446
        %v458 = vmul.f32 %v430, %v450
        %459 = vset.pattern.permute.xlu0 1
        %460 = vperm.xlu0 %459, %v408
        %v461 = vpop.permute.xlu0 %460
        %463 = vset.pattern.permute.xlu0 1
        %464 = vperm.xlu0 %463, %v409
        %v465 = vpop.permute.xlu0 %464
        %467 = vset.pattern.permute.xlu0 1
        %468 = vperm.xlu0 %467, %v410
        %v469 = vpop.permute.xlu0 %468
        %471 = vset.pattern.permute.xlu0 1
        %472 = vperm.xlu0 %471, %v411
        %v473 = vpop.permute.xlu0 %472
        %v475 = vlaneseq
        %v476 = vshrl.u32 %v475, 7
        %v477 = vsub.s32 1, %v476
        %v478 = vrot.slane %v407, %v477
        %v479 = vlaneseq
        %v480 = vshrl.u32 %v479, 7
        %v481 = vsub.s32 5, %v480
        %v482 = vrot.slane %v407, %v481
        %v485 = vlaneseq
        %v486 = vshrl.u32 %v485, 7
        %v487 = vsub.s32 1, %v486
        %v488 = vrot.slane %v478, %v487
        %v489 = vlaneseq
        %v490 = vshrl.u32 %v489, 7
        %v491 = vsub.s32 1, %v490
        %v492 = vrot.slane %v482, %v491
        %v493 = vmul.f32 %v461, %v488
        %v494 = vmul.f32 %v461, %v492
        %v495 = vmul.f32 %v465, %v488
        %v496 = vmul.f32 %v465, %v492
        %v497 = vmul.f32 %v469, %v488
        %v498 = vmul.f32 %v469, %v492
        %v499 = vmul.f32 %v473, %v488
        %v500 = vmul.f32 %v473, %v492
        %v501 = vadd.f32 %v451, %v493
        %v502 = vadd.f32 %v452, %v494
        %v503 = vadd.f32 %v453, %v495
        %v504 = vadd.f32 %v454, %v496
        %v505 = vadd.f32 %v455, %v497
        %v506 = vadd.f32 %v456, %v498
        %v507 = vadd.f32 %v457, %v499
        %v508 = vadd.f32 %v458, %v500
        %509 = vset.pattern.permute.xlu0 2
        %510 = vperm.xlu0 %509, %v408
        %v511 = vpop.permute.xlu0 %510
        %513 = vset.pattern.permute.xlu0 2
        %514 = vperm.xlu0 %513, %v409
        %v515 = vpop.permute.xlu0 %514
        %517 = vset.pattern.permute.xlu0 2
        %518 = vperm.xlu0 %517, %v410
        %v519 = vpop.permute.xlu0 %518
        %521 = vset.pattern.permute.xlu0 2
        %522 = vperm.xlu0 %521, %v411
        %v523 = vpop.permute.xlu0 %522
        %v525 = vlaneseq
        %v526 = vshrl.u32 %v525, 7
        %v527 = vsub.s32 2, %v526
        %v528 = vrot.slane %v407, %v527
        %v529 = vlaneseq
        %v530 = vshrl.u32 %v529, 7
        %v531 = vsub.s32 6, %v530
        %v532 = vrot.slane %v407, %v531
        %v535 = vlaneseq
        %v536 = vshrl.u32 %v535, 7
        %v537 = vsub.s32 2, %v536
        %v538 = vrot.slane %v528, %v537
        %v539 = vlaneseq
        %v540 = vshrl.u32 %v539, 7
        %v541 = vsub.s32 2, %v540
        %v542 = vrot.slane %v532, %v541
        %v543 = vmul.f32 %v511, %v538
        %v544 = vmul.f32 %v511, %v542
        %v545 = vmul.f32 %v515, %v538
        %v546 = vmul.f32 %v515, %v542
        %v547 = vmul.f32 %v519, %v538
        %v548 = vmul.f32 %v519, %v542
        %v549 = vmul.f32 %v523, %v538
        %v550 = vmul.f32 %v523, %v542
        %v551 = vadd.f32 %v501, %v543
        %v552 = vadd.f32 %v502, %v544
        %v553 = vadd.f32 %v503, %v545
        %v554 = vadd.f32 %v504, %v546
        %v555 = vadd.f32 %v505, %v547
        %v556 = vadd.f32 %v506, %v548
        %v557 = vadd.f32 %v507, %v549
        %v558 = vadd.f32 %v508, %v550
        %v559 = vld [vmem:[%s4] sm:$0xff]
        %v560 = vld [vmem:[%s4 + $0x8] sm:$0xff]
        %v561 = vld [vmem:[%s4 + $0x10] sm:$0xff]
        %v562 = vld [vmem:[%s4 + $0x18] sm:$0xff]
        %564 = vset.pattern.permute.xlu0 0
        %565 = vperm.xlu0 %564, %v559
        %v566 = vpop.permute.xlu0 %565
        %569 = vset.pattern.permute.xlu0 0
        %570 = vperm.xlu0 %569, %v560
        %v571 = vpop.permute.xlu0 %570
        %574 = vset.pattern.permute.xlu0 0
        %575 = vperm.xlu0 %574, %v561
        %v576 = vpop.permute.xlu0 %575
        %579 = vset.pattern.permute.xlu0 0
        %580 = vperm.xlu0 %579, %v562
        %v581 = vpop.permute.xlu0 %580
        %v583 = vadd.f32 %v551, %v566
        %v584 = vadd.f32 %v552, %v566
        %v585 = vadd.f32 %v553, %v571
        %v586 = vadd.f32 %v554, %v571
        %v587 = vadd.f32 %v555, %v576
        %v588 = vadd.f32 %v556, %v576
        %v589 = vadd.f32 %v557, %v581
        %v590 = vadd.f32 %v558, %v581
        %v591 = vtanh.pop %v583
        %v592 = vtanh.pop %v584
        %v593 = vtanh.pop %v585
        %v594 = vtanh.pop %v586
        %v595 = vtanh.pop %v587
        %v596 = vtanh.pop %v588
        %v597 = vtanh.pop %v589
        %v598 = vtanh.pop %v590
        %v599 = vld [vmem:[%s404] sm:$0x3]
        %vm600 = vcmp.eq.s32.totalorder %v599, 0
        %v601 = vsel %vm600, 1, 0
        %v602 = vcvt.s32.f32 %v601
        %v603 = vld [vmem:[%s5] sm:$0xff]
        %v604 = vld [vmem:[%s5 + $0x8] sm:$0xff]
        %v605 = vld [vmem:[%s5 + $0x10] sm:$0xff]
        %v606 = vld [vmem:[%s5 + $0x18] sm:$0xff]
        %608 = vset.pattern.permute.xlu0 0
        %609 = vperm.xlu0 %608, %v603
        %v610 = vpop.permute.xlu0 %609
        %613 = vset.pattern.permute.xlu0 0
        %614 = vperm.xlu0 %613, %v604
        %v615 = vpop.permute.xlu0 %614
        %618 = vset.pattern.permute.xlu0 0
        %619 = vperm.xlu0 %618, %v605
        %v620 = vpop.permute.xlu0 %619
        %623 = vset.pattern.permute.xlu0 0
        %624 = vperm.xlu0 %623, %v606
        %v625 = vpop.permute.xlu0 %624
        %v628 = vlaneseq
        %v629 = vshrl.u32 %v628, 7
        %v630 = vsub.s32 0, %v629
        %v631 = vrot.slane %v602, %v630
        %v632 = vlaneseq
        %v633 = vshrl.u32 %v632, 7
        %v634 = vsub.s32 1, %v633
        %v635 = vrot.slane %v602, %v634
        %v638 = vmul.f32 %v610, %v631
        %v639 = vmul.f32 %v610, %v635
        %v640 = vmul.f32 %v615, %v631
        %v641 = vmul.f32 %v615, %v635
        %v642 = vmul.f32 %v620, %v631
        %v643 = vmul.f32 %v620, %v635
        %v644 = vmul.f32 %v625, %v631
        %v645 = vmul.f32 %v625, %v635
        %v646 = vld [vmem:[%s6] sm:$0xff]
        %v647 = vld [vmem:[%s6 + $0x8] sm:$0xff]
        %v648 = vld [vmem:[%s6 + $0x10] sm:$0xff]
        %v649 = vld [vmem:[%s6 + $0x18] sm:$0xff]
        %651 = vset.pattern.permute.xlu0 0
        %652 = vperm.xlu0 %651, %v646
        %v653 = vpop.permute.xlu0 %652
        %656 = vset.pattern.permute.xlu0 0
        %657 = vperm.xlu0 %656, %v647
        %v658 = vpop.permute.xlu0 %657
        %661 = vset.pattern.permute.xlu0 0
        %662 = vperm.xlu0 %661, %v648
        %v663 = vpop.permute.xlu0 %662
        %666 = vset.pattern.permute.xlu0 0
        %667 = vperm.xlu0 %666, %v649
        %v668 = vpop.permute.xlu0 %667
        %v670 = vmul.f32 %v653, %v631
        %v671 = vmul.f32 %v653, %v635
        %v672 = vmul.f32 %v658, %v631
        %v673 = vmul.f32 %v658, %v635
        %v674 = vmul.f32 %v663, %v631
        %v675 = vmul.f32 %v663, %v635
        %v676 = vmul.f32 %v668, %v631
        %v677 = vmul.f32 %v668, %v635
        %vm678 = vcmp.eq.s32.totalorder %v599, 1
        %v679 = vsel %vm678, 1, 0
        %v680 = vcvt.s32.f32 %v679
        %681 = vset.pattern.permute.xlu0 1
        %682 = vperm.xlu0 %681, %v603
        %v683 = vpop.permute.xlu0 %682
        %685 = vset.pattern.permute.xlu0 1
        %686 = vperm.xlu0 %685, %v604
        %v687 = vpop.permute.xlu0 %686
        %689 = vset.pattern.permute.xlu0 1
        %690 = vperm.xlu0 %689, %v605
        %v691 = vpop.permute.xlu0 %690
        %693 = vset.pattern.permute.xlu0 1
        %694 = vperm.xlu0 %693, %v606
        %v695 = vpop.permute.xlu0 %694
        %v698 = vlaneseq
        %v699 = vshrl.u32 %v698, 7
        %v700 = vsub.s32 0, %v699
        %v701 = vrot.slane %v680, %v700
        %v702 = vlaneseq
        %v703 = vshrl.u32 %v702, 7
        %v704 = vsub.s32 1, %v703
        %v705 = vrot.slane %v680, %v704
        %v708 = vmul.f32 %v683, %v701
        %v709 = vmul.f32 %v683, %v705
        %v710 = vmul.f32 %v687, %v701
        %v711 = vmul.f32 %v687, %v705
        %v712 = vmul.f32 %v691, %v701
        %v713 = vmul.f32 %v691, %v705
        %v714 = vmul.f32 %v695, %v701
        %v715 = vmul.f32 %v695, %v705
        %v716 = vadd.f32 %v638, %v708
        %v717 = vadd.f32 %v639, %v709
        %v718 = vadd.f32 %v640, %v710
        %v719 = vadd.f32 %v641, %v711
        %v720 = vadd.f32 %v642, %v712
        %v721 = vadd.f32 %v643, %v713
        %v722 = vadd.f32 %v644, %v714
        %v723 = vadd.f32 %v645, %v715
        %724 = vset.pattern.permute.xlu0 1
        %725 = vperm.xlu0 %724, %v646
        %v726 = vpop.permute.xlu0 %725
        %728 = vset.pattern.permute.xlu0 1
        %729 = vperm.xlu0 %728, %v647
        %v730 = vpop.permute.xlu0 %729
        %732 = vset.pattern.permute.xlu0 1
        %733 = vperm.xlu0 %732, %v648
        %v734 = vpop.permute.xlu0 %733
        %736 = vset.pattern.permute.xlu0 1
        %737 = vperm.xlu0 %736, %v649
        %v738 = vpop.permute.xlu0 %737
        %v740 = vmul.f32 %v726, %v701
        %v741 = vmul.f32 %v726, %v705
        %v742 = vmul.f32 %v730, %v701
        %v743 = vmul.f32 %v730, %v705
        %v744 = vmul.f32 %v734, %v701
        %v745 = vmul.f32 %v734, %v705
        %v746 = vmul.f32 %v738, %v701
        %v747 = vmul.f32 %v738, %v705
        %v748 = vadd.f32 %v670, %v740
        %v749 = vadd.f32 %v671, %v741
        %v750 = vadd.f32 %v672, %v742
        %v751 = vadd.f32 %v673, %v743
        %v752 = vadd.f32 %v674, %v744
        %v753 = vadd.f32 %v675, %v745
        %v754 = vadd.f32 %v676, %v746
        %v755 = vadd.f32 %v677, %v747
        %v756 = vsub.f32 %v591, %v716
        %v757 = vsub.f32 %v592, %v717
        %v758 = vsub.f32 %v593, %v718
        %v759 = vsub.f32 %v594, %v719
        %v760 = vsub.f32 %v595, %v720
        %v761 = vsub.f32 %v596, %v721
        %v762 = vsub.f32 %v597, %v722
        %v763 = vsub.f32 %v598, %v723
        %v764 = vmul.f32 %v756, %v748
        %v765 = vmul.f32 %v757, %v749
        %v766 = vmul.f32 %v758, %v750
        %v767 = vmul.f32 %v759, %v751
        %v768 = vmul.f32 %v760, %v752
        %v769 = vmul.f32 %v761, %v753
        %v770 = vmul.f32 %v762, %v754
        %v771 = vmul.f32 %v763, %v755
        %v772 = vld [vmem:[%s7] sm:$0xff]
        %v773 = vld [vmem:[%s7 + $0x8] sm:$0xff]
        %v774 = vld [vmem:[%s7 + $0x10] sm:$0xff]
        %v775 = vld [vmem:[%s7 + $0x18] sm:$0xff]
        %v776 = vld [vmem:[%s7 + $0x20] sm:$0xff]
        %v777 = vld [vmem:[%s7 + $0x28] sm:$0xff]
        %v778 = vld [vmem:[%s7 + $0x30] sm:$0xff]
        %v779 = vld [vmem:[%s7 + $0x38] sm:$0xff]
        %v780 = vld [vmem:[%s7 + $0x40] sm:$0xff]
        %v781 = vld [vmem:[%s7 + $0x48] sm:$0xff]
        %v782 = vld [vmem:[%s7 + $0x50] sm:$0xff]
        %v783 = vld [vmem:[%s7 + $0x58] sm:$0xff]
        %v784 = vld [vmem:[%s7 + $0x60] sm:$0xff]
        %v785 = vld [vmem:[%s7 + $0x68] sm:$0xff]
        %v786 = vld [vmem:[%s7 + $0x70] sm:$0xff]
        %v787 = vld [vmem:[%s7 + $0x78] sm:$0xff]
        %v788 = vld [vmem:[%s9] sm:$0xff]
        %v789 = vld [vmem:[%s9 + $0x8] sm:$0xff]
        %v790 = vld [vmem:[%s9 + $0x10] sm:$0xff]
        %v791 = vld [vmem:[%s9 + $0x18] sm:$0xff]
        %v792 = vld [vmem:[%s9 + $0x20] sm:$0xff]
        %v793 = vld [vmem:[%s9 + $0x28] sm:$0xff]
        %v794 = vld [vmem:[%s9 + $0x30] sm:$0xff]
        %v795 = vld [vmem:[%s9 + $0x38] sm:$0xff]
        %v796 = vld [vmem:[%s9 + $0x40] sm:$0xff]
        %v797 = vld [vmem:[%s9 + $0x48] sm:$0xff]
        %v798 = vld [vmem:[%s9 + $0x50] sm:$0xff]
        %v799 = vld [vmem:[%s9 + $0x58] sm:$0xff]
        %v800 = vld [vmem:[%s9 + $0x60] sm:$0xff]
        %v801 = vld [vmem:[%s9 + $0x68] sm:$0xff]
        %v802 = vld [vmem:[%s9 + $0x70] sm:$0xff]
        %v803 = vld [vmem:[%s9 + $0x78] sm:$0xff]
        %805 = vset.pattern.permute.xlu0 0
        %806 = vperm.xlu0 %805, %v788
        %v807 = vpop.permute.xlu0 %806
        %810 = vset.pattern.permute.xlu0 0
        %811 = vperm.xlu0 %810, %v789
        %v812 = vpop.permute.xlu0 %811
        %815 = vset.pattern.permute.xlu0 0
        %816 = vperm.xlu0 %815, %v790
        %v817 = vpop.permute.xlu0 %816
        %820 = vset.pattern.permute.xlu0 0
        %821 = vperm.xlu0 %820, %v791
        %v822 = vpop.permute.xlu0 %821
        %825 = vset.pattern.permute.xlu0 0
        %826 = vperm.xlu0 %825, %v792
        %v827 = vpop.permute.xlu0 %826
        %830 = vset.pattern.permute.xlu0 0
        %831 = vperm.xlu0 %830, %v793
        %v832 = vpop.permute.xlu0 %831
        %835 = vset.pattern.permute.xlu0 0
        %836 = vperm.xlu0 %835, %v794
        %v837 = vpop.permute.xlu0 %836
        %840 = vset.pattern.permute.xlu0 0
        %841 = vperm.xlu0 %840, %v795
        %v842 = vpop.permute.xlu0 %841
        %845 = vset.pattern.permute.xlu0 0
        %846 = vperm.xlu0 %845, %v796
        %v847 = vpop.permute.xlu0 %846
        %850 = vset.pattern.permute.xlu0 0
        %851 = vperm.xlu0 %850, %v797
        %v852 = vpop.permute.xlu0 %851
        %855 = vset.pattern.permute.xlu0 0
        %856 = vperm.xlu0 %855, %v798
        %v857 = vpop.permute.xlu0 %856
        %860 = vset.pattern.permute.xlu0 0
        %861 = vperm.xlu0 %860, %v799
        %v862 = vpop.permute.xlu0 %861
        %865 = vset.pattern.permute.xlu0 0
        %866 = vperm.xlu0 %865, %v800
        %v867 = vpop.permute.xlu0 %866
        %870 = vset.pattern.permute.xlu0 0
        %871 = vperm.xlu0 %870, %v801
        %v872 = vpop.permute.xlu0 %871
        %875 = vset.pattern.permute.xlu0 0
        %876 = vperm.xlu0 %875, %v802
        %v877 = vpop.permute.xlu0 %876
        %880 = vset.pattern.permute.xlu0 0
        %881 = vperm.xlu0 %880, %v803
        %v882 = vpop.permute.xlu0 %881
        %vm884 = vcmask 261120
        %v886 = vsel %vm884, %v772, 0
        %v889 = vsel %vm884, %v773, 0
        %v892 = vsel %vm884, %v774, 0
        %v895 = vsel %vm884, %v775, 0
        %v898 = vsel %vm884, %v776, 0
        %v901 = vsel %vm884, %v777, 0
        %v904 = vsel %vm884, %v778, 0
        %v907 = vsel %vm884, %v779, 0
        %v910 = vsel %vm884, %v780, 0
        %v913 = vsel %vm884, %v781, 0
        %v916 = vsel %vm884, %v782, 0
        %v919 = vsel %vm884, %v783, 0
        %v922 = vsel %vm884, %v784, 0
        %v925 = vsel %vm884, %v785, 0
        %v928 = vsel %vm884, %v786, 0
        %v931 = vsel %vm884, %v787, 0
        %933 = vmatprep.subr.mxu0 %v765
        %934 = vmatpush1.msra.mxu0 %v764
        %935 = vmatprep.subr.mxu0 %v767
        %936 = vmatpush1.msra.mxu0 %v766
        %937 = vmatprep.subr.mxu0 %v769
        %938 = vmatpush1.msra.mxu0 %v768
        %939 = vmatprep.subr.mxu0 %v771
        %940 = vmatpush1.msra.mxu0 %v770
        %941 = vmatprep.subr.mxu0 0.0
        %942 = vmatpush1.msra.mxu0 0.0
        %943 = vmatprep.subr.mxu0 0.0
        %944 = vmatpush1.msra.mxu0 0.0
        %945 = vmatprep.subr.mxu0 0.0
        %946 = vmatpush1.msra.mxu0 0.0
        %947 = vmatprep.subr.mxu0 0.0
        %948 = vmatpush1.msra.mxu0 0.0
        %949 = vmatprep.subr.mxu0 0.0
        %950 = vmatpush1.msra.mxu0 0.0
        %951 = vmatprep.subr.mxu0 0.0
        %952 = vmatpush1.msra.mxu0 0.0
        %953 = vmatprep.subr.mxu0 0.0
        %954 = vmatpush1.msra.mxu0 0.0
        %955 = vmatprep.subr.mxu0 0.0
        %956 = vmatpush1.msra.mxu0 0.0
        %957 = vmatprep.subr.mxu0 0.0
        %958 = vmatpush1.msra.mxu0 0.0
        %959 = vmatprep.subr.mxu0 0.0
        %960 = vmatpush1.msra.mxu0 0.0
        %961 = vmatprep.subr.mxu0 0.0
        %962 = vmatpush1.msra.mxu0 0.0
        %963 = vmatprep.subr.mxu0 0.0
        %964 = vmatpush1.msra.mxu0 0.0
        %965 = vmatprep.subr.mxu0 0.0
        %966 = vmatpush1.msra.mxu0 0.0
        %967 = vmatprep.subr.mxu0 0.0
        %968 = vmatpush1.msra.mxu0 0.0
        %969 = vmatprep.subr.mxu0 0.0
        %970 = vmatpush1.msra.mxu0 0.0
        %971 = vmatprep.subr.mxu0 0.0
        %972 = vmatpush1.msra.mxu0 0.0
        %973 = vmatprep.subr.mxu0 0.0
        %974 = vmatpush1.msra.mxu0 0.0
        %975 = vmatprep.subr.mxu0 0.0
        %976 = vmatpush1.msra.mxu0 0.0
        %977 = vmatprep.subr.mxu0 0.0
        %978 = vmatpush1.msra.mxu0 0.0
        %979 = vmatprep.subr.mxu0 0.0
        %980 = vmatpush1.msra.mxu0 0.0
        %981 = vmatprep.subr.mxu0 0.0
        %982 = vmatpush1.msra.mxu0 0.0
        %983 = vmatprep.subr.mxu0 0.0
        %984 = vmatpush1.msra.mxu0 0.0
        %985 = vmatprep.subr.mxu0 0.0
        %986 = vmatpush1.msra.mxu0 0.0
        %987 = vmatprep.subr.mxu0 0.0
        %988 = vmatpush1.msra.mxu0 0.0
        %989 = vmatprep.subr.mxu0 0.0
        %990 = vmatpush1.msra.mxu0 0.0
        %991 = vmatprep.subr.mxu0 0.0
        %992 = vmatpush1.msra.mxu0 0.0
        %993 = vmatprep.subr.mxu0 0.0
        %994 = vmatpush1.msra.mxu0 0.0
        %995 = vmatprep.subr.mxu0 0.0
        %996 = vmatpush1.msra.mxu0 0.0
        %997 = vmatprep.mubr.f32.mxu0 0.0
        %998 = vmatmul.mubr.f32.gmra.mrb[0].mxu0 %v886
        %v999 = vpop.f32.mrb[0].mxu0
        %v1000 = vadd.f32 %v807, %v999
        %v1001 = vpop.f32.mrb[0].mxu0
        %v1002 = vadd.f32 %v807, %v1001
        %1003 = vmatprep.mubr.f32.mxu0 0.0
        %1004 = vmatmul.mubr.f32.gmra.mrb[0].mxu0 %v889
        %v1005 = vpop.f32.mrb[0].mxu0
        %v1006 = vadd.f32 %v812, %v1005
        %v1007 = vpop.f32.mrb[0].mxu0
        %v1008 = vadd.f32 %v812, %v1007
        %1009 = vmatprep.mubr.f32.mxu0 0.0
        %1010 = vmatmul.mubr.f32.gmra.mrb[0].mxu0 %v892
        %v1011 = vpop.f32.mrb[0].mxu0
        %v1012 = vadd.f32 %v817, %v1011
        %v1013 = vpop.f32.mrb[0].mxu0
        %v1014 = vadd.f32 %v817, %v1013
        %1015 = vmatprep.mubr.f32.mxu0 0.0
        %1016 = vmatmul.mubr.f32.gmra.mrb[0].mxu0 %v895
        %v1017 = vpop.f32.mrb[0].mxu0
        %v1018 = vadd.f32 %v822, %v1017
        %v1019 = vpop.f32.mrb[0].mxu0
        %v1020 = vadd.f32 %v822, %v1019
        %1021 = vmatprep.mubr.f32.mxu0 0.0
        %1022 = vmatmul.mubr.f32.gmra.mrb[0].mxu0 %v898
        %v1023 = vpop.f32.mrb[0].mxu0
        %v1024 = vadd.f32 %v827, %v1023
        %v1025 = vpop.f32.mrb[0].mxu0
        %v1026 = vadd.f32 %v827, %v1025
        %1027 = vmatprep.mubr.f32.mxu0 0.0
        %1028 = vmatmul.mubr.f32.gmra.mrb[0].mxu0 %v901
        %v1029 = vpop.f32.mrb[0].mxu0
        %v1030 = vadd.f32 %v832, %v1029
        %v1031 = vpop.f32.mrb[0].mxu0
        %v1032 = vadd.f32 %v832, %v1031
        %1033 = vmatprep.mubr.f32.mxu0 0.0
        %1034 = vmatmul.mubr.f32.gmra.mrb[0].mxu0 %v904
        %v1035 = vpop.f32.mrb[0].mxu0
        %v1036 = vadd.f32 %v837, %v1035
        %v1037 = vpop.f32.mrb[0].mxu0
        %v1038 = vadd.f32 %v837, %v1037
        %1039 = vmatprep.mubr.f32.mxu0 0.0
        %1040 = vmatmul.mubr.f32.gmra.mrb[0].mxu0 %v907
        %v1041 = vpop.f32.mrb[0].mxu0
        %v1042 = vadd.f32 %v842, %v1041
        %v1043 = vpop.f32.mrb[0].mxu0
        %v1044 = vadd.f32 %v842, %v1043
        %1045 = vmatprep.mubr.f32.mxu0 0.0
        %1046 = vmatmul.mubr.f32.gmra.mrb[0].mxu0 %v910
        %v1047 = vpop.f32.mrb[0].mxu0
        %v1048 = vadd.f32 %v847, %v1047
        %v1049 = vpop.f32.mrb[0].mxu0
        %v1050 = vadd.f32 %v847, %v1049
        %1051 = vmatprep.mubr.f32.mxu0 0.0
        %1052 = vmatmul.mubr.f32.gmra.mrb[0].mxu0 %v913
        %v1053 = vpop.f32.mrb[0].mxu0
        %v1054 = vadd.f32 %v852, %v1053
        %v1055 = vpop.f32.mrb[0].mxu0
        %v1056 = vadd.f32 %v852, %v1055
        %1057 = vmatprep.mubr.f32.mxu0 0.0
        %1058 = vmatmul.mubr.f32.gmra.mrb[0].mxu0 %v916
        %v1059 = vpop.f32.mrb[0].mxu0
        %v1060 = vadd.f32 %v857, %v1059
        %v1061 = vpop.f32.mrb[0].mxu0
        %v1062 = vadd.f32 %v857, %v1061
        %1063 = vmatprep.mubr.f32.mxu0 0.0
        %1064 = vmatmul.mubr.f32.gmra.mrb[0].mxu0 %v919
        %v1065 = vpop.f32.mrb[0].mxu0
        %v1066 = vadd.f32 %v862, %v1065
        %v1067 = vpop.f32.mrb[0].mxu0
        %v1068 = vadd.f32 %v862, %v1067
        %1069 = vmatprep.mubr.f32.mxu0 0.0
        %1070 = vmatmul.mubr.f32.gmra.mrb[0].mxu0 %v922
        %v1071 = vpop.f32.mrb[0].mxu0
        %v1072 = vadd.f32 %v867, %v1071
        %v1073 = vpop.f32.mrb[0].mxu0
        %v1074 = vadd.f32 %v867, %v1073
        %1075 = vmatprep.mubr.f32.mxu0 0.0
        %1076 = vmatmul.mubr.f32.gmra.mrb[0].mxu0 %v925
        %v1077 = vpop.f32.mrb[0].mxu0
        %v1078 = vadd.f32 %v872, %v1077
        %v1079 = vpop.f32.mrb[0].mxu0
        %v1080 = vadd.f32 %v872, %v1079
        %1081 = vmatprep.mubr.f32.mxu0 0.0
        %1082 = vmatmul.mubr.f32.gmra.mrb[0].mxu0 %v928
        %v1083 = vpop.f32.mrb[0].mxu0
        %v1084 = vadd.f32 %v877, %v1083
        %v1085 = vpop.f32.mrb[0].mxu0
        %v1086 = vadd.f32 %v877, %v1085
        %1087 = vmatprep.mubr.f32.mxu0 0.0
        %1088 = vmatmul.mubr.f32.gmra.mrb[0].mxu0 %v931
        %v1089 = vpop.f32.mrb[0].mxu0
        %v1090 = vadd.f32 %v882, %v1089
        %v1091 = vpop.f32.mrb[0].mxu0
        %v1092 = vadd.f32 %v882, %v1091
        %1093 = vdwg.mxu0
        %v1094 = vld [vmem:[%s10] sm:$0x1]
        %v1095 = vand.u32 2147483647, %v1000
        %vm1096 = vcmp.le.f32.partialorder %v1095, 0.7853982
        %vm1097 = vcmp.lt.s32.totalorder %v1000, 0
        %v1098 = vand.u32 %v1000, 2139095040
        %v1099 = vshrl.u32 %v1098, 23
        %v1100 = vsub.s32 %v1099, 127
        %v1101 = vand.u32 2147483647, %v1000
        %v1102 = vand.u32 %v1101, 8388607
        %v1103 = vor.u32 %v1102, 8388608
        %v1104 = vsub.s32 0, %v1103
        %v1105 = vadd.s32 %v1100, 1
        %vm1106 = vcmp.gt.s32.totalorder %v1105, 0
        %v1107 = vsel %vm1106, %v1105, 0
        %v1108 = vshrl.u32 %v1107, 5
        %v1109 = vand.u32 %v1107, 31
        %v1110 = vsub.s32 32, %v1109
        %v1111 = vshrl.u32 683565275, %v1110
        %v1112 = vshll.u32 683565275, %v1109
        %v1113 = vshrl.u32 2475754826, %v1110
        %v1114 = vor.u32 %v1112, %v1113
        %v1115 = vshll.u32 2475754826, %v1109
        %v1116 = vshrl.u32 2131351028, %v1110
        %v1117 = vor.u32 %v1115, %v1116
        %v1118 = vshll.u32 2131351028, %v1109
        %v1119 = vshrl.u32 2102212464, %v1110
        %v1120 = vor.u32 %v1118, %v1119
        %v1121 = vshll.u32 2102212464, %v1109
        %v1122 = vshrl.u32 920167782, %v1110
        %v1123 = vor.u32 %v1121, %v1122
        %v1124 = vshll.u32 920167782, %v1109
        %v1125 = vshrl.u32 1326507024, %v1110
        %v1126 = vor.u32 %v1124, %v1125
        %vm1127 = vcmp.lt.s32.totalorder %v1108, 1
        %vm1128 = vcmp.lt.s32.totalorder %v1108, 2
        %vm1129 = vcmp.lt.s32.totalorder %v1108, 3
        %vm1130 = vcmp.lt.s32.totalorder %v1108, 4
        %v1131 = vsel %vm1127, %v1111, %v1114
        %v1132 = vsel %vm1130, %v1120, 2102212464
        %v1133 = vsel %vm1129, %v1117, %v1132
        %v1134 = vsel %vm1128, %v1131, %v1133
        %v1135 = vsel %vm1127, %v1114, %v1117
        %v1136 = vsel %vm1130, %v1123, 920167782
        %v1137 = vsel %vm1129, %v1120, %v1136
        %v1138 = vsel %vm1128, %v1135, %v1137
        %v1139 = vsel %vm1127, %v1117, %v1120
        %v1140 = vsel %vm1130, %v1126, 1326507024
        %v1141 = vsel %vm1129, %v1123, %v1140
        %v1142 = vsel %vm1128, %v1139, %v1141
        %v1143 = vshll.u32 %v1103, 8
        %v1144 = vmul.u32.u64.compose %v1143, %v1142
        %v1145 = vextract.low.u32 %v1144
        %v1146 = vextract.high.u32 %v1144
        %v1147 = vmul.u32.u64.compose %v1143, %v1138
        %v1148 = vextract.low.u32 %v1147
        %v1149 = vextract.high.u32 %v1147
        %v1150 = vmul.u32 %v1143, %v1134
        %v1151 = vadd.s32 %v1146, %v1148
        %vm1152 = vc.u32 %v1146, %v1148
        %v1153 = vadd.s32 %v1149, 1
        %v1154 = vsel %vm1152, %v1153, %v1149
        %v1155 = vadd.s32 %v1150, %v1154
        %v1156 = vadd.s32 %v1155, 536870912
        %v1157 = vshrl.u32 %v1156, 30
        %v1158 = vshll.u32 %v1157, 30
        %v1159 = vsub.s32 %v1155, %v1158
        %vm1160 = vcmp.lt.s32.totalorder %v1159, 0
        %v1161 = vsub.s32 0, %v1159
        %v1162 = vsel %vm1160, %v1161, %v1159
        %v1163 = vclz %v1162
        %v1164 = vsub.s32 %v1163, 2
        %vm1165 = vcmp.gt.s32.totalorder 0, %v1164
        %v1166 = vsel %vm1165, 0, %v1164
        %v1167 = vsub.s32 32, %v1166
        %v1168 = vshll.u32 %v1159, %v1166
        %v1169 = vshrl.u32 %v1151, %v1167
        %v1170 = vor.u32 %v1168, %v1169
        %v1171 = vsub.s32 4294967266, %v1166
        %v1172 = vadd.s32 %v1171, 127
        %v1173 = vshll.u32 %v1172, 23
        %v1174 = vor.u32 4788187, %v1173
        %v1175 = vand.u32 2147483647, %v1174
        %v1177 = vcvt.s32.f32 %v1170
        %v1178 = vmul.f32 %v1177, %v1175
        %v1179 = vxor.u32 %v1178, 2147483648
        %v1180 = vsel %vm1097, %v1179, %v1178
        %v1181 = vsub.s32 4, %v1157
        %v1182 = vsel %vm1097, %v1181, %v1157
        %v1183 = vsel %vm1096, %v1000, %v1180
        %v1184 = vsel %vm1096, 0, %v1182
        %v1185 = vcosq.f32.pop %v1183
        %v1186 = vsinq.f32.pop %v1183
        %vm1187 = vweird.f32 %v1000
        %v1188 = vand.u32 %v1184, 3
        %vm1189 = vcmp.lt.s32.totalorder %v1188, 2
        %vm1190 = vcmp.eq.s32.totalorder %v1188, 0
        %v1191 = vxor.u32 %v1186, 2147483648
        %v1192 = vsel %vm1190, %v1185, %v1191
        %vm1193 = vcmp.eq.s32.totalorder %v1188, 2
        %v1194 = vxor.u32 %v1185, 2147483648
        %v1195 = vsel %vm1193, %v1194, %v1186
        %v1196 = vsel %vm1189, %v1192, %v1195
        %v1197 = vsel %vm1187, nan, %v1196
        %v1198 = vand.u32 2147483647, %v1002
        %vm1199 = vcmp.le.f32.partialorder %v1198, 0.7853982
        %vm1200 = vcmp.lt.s32.totalorder %v1002, 0
        %v1201 = vand.u32 %v1002, 2139095040
        %v1202 = vshrl.u32 %v1201, 23
        %v1203 = vsub.s32 %v1202, 127
        %v1204 = vand.u32 2147483647, %v1002
        %v1205 = vand.u32 %v1204, 8388607
        %v1206 = vor.u32 %v1205, 8388608
        %v1207 = vsub.s32 0, %v1206
        %v1208 = vadd.s32 %v1203, 1
        %vm1209 = vcmp.gt.s32.totalorder %v1208, 0
        %v1210 = vsel %vm1209, %v1208, 0
        %v1211 = vshrl.u32 %v1210, 5
        %v1212 = vand.u32 %v1210, 31
        %v1213 = vsub.s32 32, %v1212
        %v1214 = vshrl.u32 683565275, %v1213
        %v1215 = vshll.u32 683565275, %v1212
        %v1216 = vshrl.u32 2475754826, %v1213
        %v1217 = vor.u32 %v1215, %v1216
        %v1218 = vshll.u32 2475754826, %v1212
        %v1219 = vshrl.u32 2131351028, %v1213
        %v1220 = vor.u32 %v1218, %v1219
        %v1221 = vshll.u32 2131351028, %v1212
        %v1222 = vshrl.u32 2102212464, %v1213
        %v1223 = vor.u32 %v1221, %v1222
        %v1224 = vshll.u32 2102212464, %v1212
        %v1225 = vshrl.u32 920167782, %v1213
        %v1226 = vor.u32 %v1224, %v1225
        %v1227 = vshll.u32 920167782, %v1212
        %v1228 = vshrl.u32 1326507024, %v1213
        %v1229 = vor.u32 %v1227, %v1228
        %vm1230 = vcmp.lt.s32.totalorder %v1211, 1
        %vm1231 = vcmp.lt.s32.totalorder %v1211, 2
        %vm1232 = vcmp.lt.s32.totalorder %v1211, 3
        %vm1233 = vcmp.lt.s32.totalorder %v1211, 4
        %v1234 = vsel %vm1230, %v1214, %v1217
        %v1235 = vsel %vm1233, %v1223, 2102212464
        %v1236 = vsel %vm1232, %v1220, %v1235
        %v1237 = vsel %vm1231, %v1234, %v1236
        %v1238 = vsel %vm1230, %v1217, %v1220
        %v1239 = vsel %vm1233, %v1226, 920167782
        %v1240 = vsel %vm1232, %v1223, %v1239
        %v1241 = vsel %vm1231, %v1238, %v1240
        %v1242 = vsel %vm1230, %v1220, %v1223
        %v1243 = vsel %vm1233, %v1229, 1326507024
        %v1244 = vsel %vm1232, %v1226, %v1243
        %v1245 = vsel %vm1231, %v1242, %v1244
        %v1246 = vshll.u32 %v1206, 8
        %v1247 = vmul.u32.u64.compose %v1246, %v1245
        %v1248 = vextract.low.u32 %v1247
        %v1249 = vextract.high.u32 %v1247
        %v1250 = vmul.u32.u64.compose %v1246, %v1241
        %v1251 = vextract.low.u32 %v1250
        %v1252 = vextract.high.u32 %v1250
        %v1253 = vmul.u32 %v1246, %v1237
        %v1254 = vadd.s32 %v1249, %v1251
        %vm1255 = vc.u32 %v1249, %v1251
        %v1256 = vadd.s32 %v1252, 1
        %v1257 = vsel %vm1255, %v1256, %v1252
        %v1258 = vadd.s32 %v1253, %v1257
        %v1259 = vadd.s32 %v1258, 536870912
        %v1260 = vshrl.u32 %v1259, 30
        %v1261 = vshll.u32 %v1260, 30
        %v1262 = vsub.s32 %v1258, %v1261
        %vm1263 = vcmp.lt.s32.totalorder %v1262, 0
        %v1264 = vsub.s32 0, %v1262
        %v1265 = vsel %vm1263, %v1264, %v1262
        %v1266 = vclz %v1265
        %v1267 = vsub.s32 %v1266, 2
        %vm1268 = vcmp.gt.s32.totalorder 0, %v1267
        %v1269 = vsel %vm1268, 0, %v1267
        %v1270 = vsub.s32 32, %v1269
        %v1271 = vshll.u32 %v1262, %v1269
        %v1272 = vshrl.u32 %v1254, %v1270
        %v1273 = vor.u32 %v1271, %v1272
        %v1274 = vsub.s32 4294967266, %v1269
        %v1275 = vadd.s32 %v1274, 127
        %v1276 = vshll.u32 %v1275, 23
        %v1277 = vor.u32 4788187, %v1276
        %v1278 = vand.u32 2147483647, %v1277
        %v1280 = vcvt.s32.f32 %v1273
        %v1281 = vmul.f32 %v1280, %v1278
        %v1282 = vxor.u32 %v1281, 2147483648
        %v1283 = vsel %vm1200, %v1282, %v1281
        %v1284 = vsub.s32 4, %v1260
        %v1285 = vsel %vm1200, %v1284, %v1260
        %v1286 = vsel %vm1199, %v1002, %v1283
        %v1287 = vsel %vm1199, 0, %v1285
        %v1288 = vcosq.f32.pop %v1286
        %v1289 = vsinq.f32.pop %v1286
        %vm1290 = vweird.f32 %v1002
        %v1291 = vand.u32 %v1287, 3
        %vm1292 = vcmp.lt.s32.totalorder %v1291, 2
        %vm1293 = vcmp.eq.s32.totalorder %v1291, 0
        %v1294 = vxor.u32 %v1289, 2147483648
        %v1295 = vsel %vm1293, %v1288, %v1294
        %vm1296 = vcmp.eq.s32.totalorder %v1291, 2
        %v1297 = vxor.u32 %v1288, 2147483648
        %v1298 = vsel %vm1296, %v1297, %v1289
        %v1299 = vsel %vm1292, %v1295, %v1298
        %v1300 = vsel %vm1290, nan, %v1299
        %v1301 = vand.u32 2147483647, %v1006
        %vm1302 = vcmp.le.f32.partialorder %v1301, 0.7853982
        %vm1303 = vcmp.lt.s32.totalorder %v1006, 0
        %v1304 = vand.u32 %v1006, 2139095040
        %v1305 = vshrl.u32 %v1304, 23
        %v1306 = vsub.s32 %v1305, 127
        %v1307 = vand.u32 2147483647, %v1006
        %v1308 = vand.u32 %v1307, 8388607
        %v1309 = vor.u32 %v1308, 8388608
        %v1310 = vsub.s32 0, %v1309
        %v1311 = vadd.s32 %v1306, 1
        %vm1312 = vcmp.gt.s32.totalorder %v1311, 0
        %v1313 = vsel %vm1312, %v1311, 0
        %v1314 = vshrl.u32 %v1313, 5
        %v1315 = vand.u32 %v1313, 31
        %v1316 = vsub.s32 32, %v1315
        %v1317 = vshrl.u32 683565275, %v1316
        %v1318 = vshll.u32 683565275, %v1315
        %v1319 = vshrl.u32 2475754826, %v1316
        %v1320 = vor.u32 %v1318, %v1319
        %v1321 = vshll.u32 2475754826, %v1315
        %v1322 = vshrl.u32 2131351028, %v1316
        %v1323 = vor.u32 %v1321, %v1322
        %v1324 = vshll.u32 2131351028, %v1315
        %v1325 = vshrl.u32 2102212464, %v1316
        %v1326 = vor.u32 %v1324, %v1325
        %v1327 = vshll.u32 2102212464, %v1315
        %v1328 = vshrl.u32 920167782, %v1316
        %v1329 = vor.u32 %v1327, %v1328
        %v1330 = vshll.u32 920167782, %v1315
        %v1331 = vshrl.u32 1326507024, %v1316
        %v1332 = vor.u32 %v1330, %v1331
        %vm1333 = vcmp.lt.s32.totalorder %v1314, 1
        %vm1334 = vcmp.lt.s32.totalorder %v1314, 2
        %vm1335 = vcmp.lt.s32.totalorder %v1314, 3
        %vm1336 = vcmp.lt.s32.totalorder %v1314, 4
        %v1337 = vsel %vm1333, %v1317, %v1320
        %v1338 = vsel %vm1336, %v1326, 2102212464
        %v1339 = vsel %vm1335, %v1323, %v1338
        %v1340 = vsel %vm1334, %v1337, %v1339
        %v1341 = vsel %vm1333, %v1320, %v1323
        %v1342 = vsel %vm1336, %v1329, 920167782
        %v1343 = vsel %vm1335, %v1326, %v1342
        %v1344 = vsel %vm1334, %v1341, %v1343
        %v1345 = vsel %vm1333, %v1323, %v1326
        %v1346 = vsel %vm1336, %v1332, 1326507024
        %v1347 = vsel %vm1335, %v1329, %v1346
        %v1348 = vsel %vm1334, %v1345, %v1347
        %v1349 = vshll.u32 %v1309, 8
        %v1350 = vmul.u32.u64.compose %v1349, %v1348
        %v1351 = vextract.low.u32 %v1350
        %v1352 = vextract.high.u32 %v1350
        %v1353 = vmul.u32.u64.compose %v1349, %v1344
        %v1354 = vextract.low.u32 %v1353
        %v1355 = vextract.high.u32 %v1353
        %v1356 = vmul.u32 %v1349, %v1340
        %v1357 = vadd.s32 %v1352, %v1354
        %vm1358 = vc.u32 %v1352, %v1354
        %v1359 = vadd.s32 %v1355, 1
        %v1360 = vsel %vm1358, %v1359, %v1355
        %v1361 = vadd.s32 %v1356, %v1360
        %v1362 = vadd.s32 %v1361, 536870912
        %v1363 = vshrl.u32 %v1362, 30
        %v1364 = vshll.u32 %v1363, 30
        %v1365 = vsub.s32 %v1361, %v1364
        %vm1366 = vcmp.lt.s32.totalorder %v1365, 0
        %v1367 = vsub.s32 0, %v1365
        %v1368 = vsel %vm1366, %v1367, %v1365
        %v1369 = vclz %v1368
        %v1370 = vsub.s32 %v1369, 2
        %vm1371 = vcmp.gt.s32.totalorder 0, %v1370
        %v1372 = vsel %vm1371, 0, %v1370
        %v1373 = vsub.s32 32, %v1372
        %v1374 = vshll.u32 %v1365, %v1372
        %v1375 = vshrl.u32 %v1357, %v1373
        %v1376 = vor.u32 %v1374, %v1375
        %v1377 = vsub.s32 4294967266, %v1372
        %v1378 = vadd.s32 %v1377, 127
        %v1379 = vshll.u32 %v1378, 23
        %v1380 = vor.u32 4788187, %v1379
        %v1381 = vand.u32 2147483647, %v1380
        %v1383 = vcvt.s32.f32 %v1376
        %v1384 = vmul.f32 %v1383, %v1381
        %v1385 = vxor.u32 %v1384, 2147483648
        %v1386 = vsel %vm1303, %v1385, %v1384
        %v1387 = vsub.s32 4, %v1363
        %v1388 = vsel %vm1303, %v1387, %v1363
        %v1389 = vsel %vm1302, %v1006, %v1386
        %v1390 = vsel %vm1302, 0, %v1388
        %v1391 = vcosq.f32.pop %v1389
        %v1392 = vsinq.f32.pop %v1389
        %vm1393 = vweird.f32 %v1006
        %v1394 = vand.u32 %v1390, 3
        %vm1395 = vcmp.lt.s32.totalorder %v1394, 2
        %vm1396 = vcmp.eq.s32.totalorder %v1394, 0
        %v1397 = vxor.u32 %v1392, 2147483648
        %v1398 = vsel %vm1396, %v1391, %v1397
        %vm1399 = vcmp.eq.s32.totalorder %v1394, 2
        %v1400 = vxor.u32 %v1391, 2147483648
        %v1401 = vsel %vm1399, %v1400, %v1392
        %v1402 = vsel %vm1395, %v1398, %v1401
        %v1403 = vsel %vm1393, nan, %v1402
        %v1404 = vand.u32 2147483647, %v1008
        %vm1405 = vcmp.le.f32.partialorder %v1404, 0.7853982
        %vm1406 = vcmp.lt.s32.totalorder %v1008, 0
        %v1407 = vand.u32 %v1008, 2139095040
        %v1408 = vshrl.u32 %v1407, 23
        %v1409 = vsub.s32 %v1408, 127
        %v1410 = vand.u32 2147483647, %v1008
        %v1411 = vand.u32 %v1410, 8388607
        %v1412 = vor.u32 %v1411, 8388608
        %v1413 = vsub.s32 0, %v1412
        %v1414 = vadd.s32 %v1409, 1
        %vm1415 = vcmp.gt.s32.totalorder %v1414, 0
        %v1416 = vsel %vm1415, %v1414, 0
        %v1417 = vshrl.u32 %v1416, 5
        %v1418 = vand.u32 %v1416, 31
        %v1419 = vsub.s32 32, %v1418
        %v1420 = vshrl.u32 683565275, %v1419
        %v1421 = vshll.u32 683565275, %v1418
        %v1422 = vshrl.u32 2475754826, %v1419
        %v1423 = vor.u32 %v1421, %v1422
        %v1424 = vshll.u32 2475754826, %v1418
        %v1425 = vshrl.u32 2131351028, %v1419
        %v1426 = vor.u32 %v1424, %v1425
        %v1427 = vshll.u32 2131351028, %v1418
        %v1428 = vshrl.u32 2102212464, %v1419
        %v1429 = vor.u32 %v1427, %v1428
        %v1430 = vshll.u32 2102212464, %v1418
        %v1431 = vshrl.u32 920167782, %v1419
        %v1432 = vor.u32 %v1430, %v1431
        %v1433 = vshll.u32 920167782, %v1418
        %v1434 = vshrl.u32 1326507024, %v1419
        %v1435 = vor.u32 %v1433, %v1434
        %vm1436 = vcmp.lt.s32.totalorder %v1417, 1
        %vm1437 = vcmp.lt.s32.totalorder %v1417, 2
        %vm1438 = vcmp.lt.s32.totalorder %v1417, 3
        %vm1439 = vcmp.lt.s32.totalorder %v1417, 4
        %v1440 = vsel %vm1436, %v1420, %v1423
        %v1441 = vsel %vm1439, %v1429, 2102212464
        %v1442 = vsel %vm1438, %v1426, %v1441
        %v1443 = vsel %vm1437, %v1440, %v1442
        %v1444 = vsel %vm1436, %v1423, %v1426
        %v1445 = vsel %vm1439, %v1432, 920167782
        %v1446 = vsel %vm1438, %v1429, %v1445
        %v1447 = vsel %vm1437, %v1444, %v1446
        %v1448 = vsel %vm1436, %v1426, %v1429
        %v1449 = vsel %vm1439, %v1435, 1326507024
        %v1450 = vsel %vm1438, %v1432, %v1449
        %v1451 = vsel %vm1437, %v1448, %v1450
        %v1452 = vshll.u32 %v1412, 8
        %v1453 = vmul.u32.u64.compose %v1452, %v1451
        %v1454 = vextract.low.u32 %v1453
        %v1455 = vextract.high.u32 %v1453
        %v1456 = vmul.u32.u64.compose %v1452, %v1447
        %v1457 = vextract.low.u32 %v1456
        %v1458 = vextract.high.u32 %v1456
        %v1459 = vmul.u32 %v1452, %v1443
        %v1460 = vadd.s32 %v1455, %v1457
        %vm1461 = vc.u32 %v1455, %v1457
        %v1462 = vadd.s32 %v1458, 1
        %v1463 = vsel %vm1461, %v1462, %v1458
        %v1464 = vadd.s32 %v1459, %v1463
        %v1465 = vadd.s32 %v1464, 536870912
        %v1466 = vshrl.u32 %v1465, 30
        %v1467 = vshll.u32 %v1466, 30
        %v1468 = vsub.s32 %v1464, %v1467
        %vm1469 = vcmp.lt.s32.totalorder %v1468, 0
        %v1470 = vsub.s32 0, %v1468
        %v1471 = vsel %vm1469, %v1470, %v1468
        %v1472 = vclz %v1471
        %v1473 = vsub.s32 %v1472, 2
        %vm1474 = vcmp.gt.s32.totalorder 0, %v1473
        %v1475 = vsel %vm1474, 0, %v1473
        %v1476 = vsub.s32 32, %v1475
        %v1477 = vshll.u32 %v1468, %v1475
        %v1478 = vshrl.u32 %v1460, %v1476
        %v1479 = vor.u32 %v1477, %v1478
        %v1480 = vsub.s32 4294967266, %v1475
        %v1481 = vadd.s32 %v1480, 127
        %v1482 = vshll.u32 %v1481, 23
        %v1483 = vor.u32 4788187, %v1482
        %v1484 = vand.u32 2147483647, %v1483
        %v1486 = vcvt.s32.f32 %v1479
        %v1487 = vmul.f32 %v1486, %v1484
        %v1488 = vxor.u32 %v1487, 2147483648
        %v1489 = vsel %vm1406, %v1488, %v1487
        %v1490 = vsub.s32 4, %v1466
        %v1491 = vsel %vm1406, %v1490, %v1466
        %v1492 = vsel %vm1405, %v1008, %v1489
        %v1493 = vsel %vm1405, 0, %v1491
        %v1494 = vcosq.f32.pop %v1492
        %v1495 = vsinq.f32.pop %v1492
        %vm1496 = vweird.f32 %v1008
        %v1497 = vand.u32 %v1493, 3
        %vm1498 = vcmp.lt.s32.totalorder %v1497, 2
        %vm1499 = vcmp.eq.s32.totalorder %v1497, 0
        %v1500 = vxor.u32 %v1495, 2147483648
        %v1501 = vsel %vm1499, %v1494, %v1500
        %vm1502 = vcmp.eq.s32.totalorder %v1497, 2
        %v1503 = vxor.u32 %v1494, 2147483648
        %v1504 = vsel %vm1502, %v1503, %v1495
        %v1505 = vsel %vm1498, %v1501, %v1504
        %v1506 = vsel %vm1496, nan, %v1505
        %v1507 = vand.u32 2147483647, %v1012
        %vm1508 = vcmp.le.f32.partialorder %v1507, 0.7853982
        %vm1509 = vcmp.lt.s32.totalorder %v1012, 0
        %v1510 = vand.u32 %v1012, 2139095040
        %v1511 = vshrl.u32 %v1510, 23
        %v1512 = vsub.s32 %v1511, 127
        %v1513 = vand.u32 2147483647, %v1012
        %v1514 = vand.u32 %v1513, 8388607
        %v1515 = vor.u32 %v1514, 8388608
        %v1516 = vsub.s32 0, %v1515
        %v1517 = vadd.s32 %v1512, 1
        %vm1518 = vcmp.gt.s32.totalorder %v1517, 0
        %v1519 = vsel %vm1518, %v1517, 0
        %v1520 = vshrl.u32 %v1519, 5
        %v1521 = vand.u32 %v1519, 31
        %v1522 = vsub.s32 32, %v1521
        %v1523 = vshrl.u32 683565275, %v1522
        %v1524 = vshll.u32 683565275, %v1521
        %v1525 = vshrl.u32 2475754826, %v1522
        %v1526 = vor.u32 %v1524, %v1525
        %v1527 = vshll.u32 2475754826, %v1521
        %v1528 = vshrl.u32 2131351028, %v1522
        %v1529 = vor.u32 %v1527, %v1528
        %v1530 = vshll.u32 2131351028, %v1521
        %v1531 = vshrl.u32 2102212464, %v1522
        %v1532 = vor.u32 %v1530, %v1531
        %v1533 = vshll.u32 2102212464, %v1521
        %v1534 = vshrl.u32 920167782, %v1522
        %v1535 = vor.u32 %v1533, %v1534
        %v1536 = vshll.u32 920167782, %v1521
        %v1537 = vshrl.u32 1326507024, %v1522
        %v1538 = vor.u32 %v1536, %v1537
        %vm1539 = vcmp.lt.s32.totalorder %v1520, 1
        %vm1540 = vcmp.lt.s32.totalorder %v1520, 2
        %vm1541 = vcmp.lt.s32.totalorder %v1520, 3
        %vm1542 = vcmp.lt.s32.totalorder %v1520, 4
        %v1543 = vsel %vm1539, %v1523, %v1526
        %v1544 = vsel %vm1542, %v1532, 2102212464
        %v1545 = vsel %vm1541, %v1529, %v1544
        %v1546 = vsel %vm1540, %v1543, %v1545
        %v1547 = vsel %vm1539, %v1526, %v1529
        %v1548 = vsel %vm1542, %v1535, 920167782
        %v1549 = vsel %vm1541, %v1532, %v1548
        %v1550 = vsel %vm1540, %v1547, %v1549
        %v1551 = vsel %vm1539, %v1529, %v1532
        %v1552 = vsel %vm1542, %v1538, 1326507024
        %v1553 = vsel %vm1541, %v1535, %v1552
        %v1554 = vsel %vm1540, %v1551, %v1553
        %v1555 = vshll.u32 %v1515, 8
        %v1556 = vmul.u32.u64.compose %v1555, %v1554
        %v1557 = vextract.low.u32 %v1556
        %v1558 = vextract.high.u32 %v1556
        %v1559 = vmul.u32.u64.compose %v1555, %v1550
        %v1560 = vextract.low.u32 %v1559
        %v1561 = vextract.high.u32 %v1559
        %v1562 = vmul.u32 %v1555, %v1546
        %v1563 = vadd.s32 %v1558, %v1560
        %vm1564 = vc.u32 %v1558, %v1560
        %v1565 = vadd.s32 %v1561, 1
        %v1566 = vsel %vm1564, %v1565, %v1561
        %v1567 = vadd.s32 %v1562, %v1566
        %v1568 = vadd.s32 %v1567, 536870912
        %v1569 = vshrl.u32 %v1568, 30
        %v1570 = vshll.u32 %v1569, 30
        %v1571 = vsub.s32 %v1567, %v1570
        %vm1572 = vcmp.lt.s32.totalorder %v1571, 0
        %v1573 = vsub.s32 0, %v1571
        %v1574 = vsel %vm1572, %v1573, %v1571
        %v1575 = vclz %v1574
        %v1576 = vsub.s32 %v1575, 2
        %vm1577 = vcmp.gt.s32.totalorder 0, %v1576
        %v1578 = vsel %vm1577, 0, %v1576
        %v1579 = vsub.s32 32, %v1578
        %v1580 = vshll.u32 %v1571, %v1578
        %v1581 = vshrl.u32 %v1563, %v1579
        %v1582 = vor.u32 %v1580, %v1581
        %v1583 = vsub.s32 4294967266, %v1578
        %v1584 = vadd.s32 %v1583, 127
        %v1585 = vshll.u32 %v1584, 23
        %v1586 = vor.u32 4788187, %v1585
        %v1587 = vand.u32 2147483647, %v1586
        %v1589 = vcvt.s32.f32 %v1582
        %v1590 = vmul.f32 %v1589, %v1587
        %v1591 = vxor.u32 %v1590, 2147483648
        %v1592 = vsel %vm1509, %v1591, %v1590
        %v1593 = vsub.s32 4, %v1569
        %v1594 = vsel %vm1509, %v1593, %v1569
        %v1595 = vsel %vm1508, %v1012, %v1592
        %v1596 = vsel %vm1508, 0, %v1594
        %v1597 = vcosq.f32.pop %v1595
        %v1598 = vsinq.f32.pop %v1595
        %vm1599 = vweird.f32 %v1012
        %v1600 = vand.u32 %v1596, 3
        %vm1601 = vcmp.lt.s32.totalorder %v1600, 2
        %vm1602 = vcmp.eq.s32.totalorder %v1600, 0
        %v1603 = vxor.u32 %v1598, 2147483648
        %v1604 = vsel %vm1602, %v1597, %v1603
        %vm1605 = vcmp.eq.s32.totalorder %v1600, 2
        %v1606 = vxor.u32 %v1597, 2147483648
        %v1607 = vsel %vm1605, %v1606, %v1598
        %v1608 = vsel %vm1601, %v1604, %v1607
        %v1609 = vsel %vm1599, nan, %v1608
        %v1610 = vand.u32 2147483647, %v1014
        %vm1611 = vcmp.le.f32.partialorder %v1610, 0.7853982
        %vm1612 = vcmp.lt.s32.totalorder %v1014, 0
        %v1613 = vand.u32 %v1014, 2139095040
        %v1614 = vshrl.u32 %v1613, 23
        %v1615 = vsub.s32 %v1614, 127
        %v1616 = vand.u32 2147483647, %v1014
        %v1617 = vand.u32 %v1616, 8388607
        %v1618 = vor.u32 %v1617, 8388608
        %v1619 = vsub.s32 0, %v1618
        %v1620 = vadd.s32 %v1615, 1
        %vm1621 = vcmp.gt.s32.totalorder %v1620, 0
        %v1622 = vsel %vm1621, %v1620, 0
        %v1623 = vshrl.u32 %v1622, 5
        %v1624 = vand.u32 %v1622, 31
        %v1625 = vsub.s32 32, %v1624
        %v1626 = vshrl.u32 683565275, %v1625
        %v1627 = vshll.u32 683565275, %v1624
        %v1628 = vshrl.u32 2475754826, %v1625
        %v1629 = vor.u32 %v1627, %v1628
        %v1630 = vshll.u32 2475754826, %v1624
        %v1631 = vshrl.u32 2131351028, %v1625
        %v1632 = vor.u32 %v1630, %v1631
        %v1633 = vshll.u32 2131351028, %v1624
        %v1634 = vshrl.u32 2102212464, %v1625
        %v1635 = vor.u32 %v1633, %v1634
        %v1636 = vshll.u32 2102212464, %v1624
        %v1637 = vshrl.u32 920167782, %v1625
        %v1638 = vor.u32 %v1636, %v1637
        %v1639 = vshll.u32 920167782, %v1624
        %v1640 = vshrl.u32 1326507024, %v1625
        %v1641 = vor.u32 %v1639, %v1640
        %vm1642 = vcmp.lt.s32.totalorder %v1623, 1
        %vm1643 = vcmp.lt.s32.totalorder %v1623, 2
        %vm1644 = vcmp.lt.s32.totalorder %v1623, 3
        %vm1645 = vcmp.lt.s32.totalorder %v1623, 4
        %v1646 = vsel %vm1642, %v1626, %v1629
        %v1647 = vsel %vm1645, %v1635, 2102212464
        %v1648 = vsel %vm1644, %v1632, %v1647
        %v1649 = vsel %vm1643, %v1646, %v1648
        %v1650 = vsel %vm1642, %v1629, %v1632
        %v1651 = vsel %vm1645, %v1638, 920167782
        %v1652 = vsel %vm1644, %v1635, %v1651
        %v1653 = vsel %vm1643, %v1650, %v1652
        %v1654 = vsel %vm1642, %v1632, %v1635
        %v1655 = vsel %vm1645, %v1641, 1326507024
        %v1656 = vsel %vm1644, %v1638, %v1655
        %v1657 = vsel %vm1643, %v1654, %v1656
        %v1658 = vshll.u32 %v1618, 8
        %v1659 = vmul.u32.u64.compose %v1658, %v1657
        %v1660 = vextract.low.u32 %v1659
        %v1661 = vextract.high.u32 %v1659
        %v1662 = vmul.u32.u64.compose %v1658, %v1653
        %v1663 = vextract.low.u32 %v1662
        %v1664 = vextract.high.u32 %v1662
        %v1665 = vmul.u32 %v1658, %v1649
        %v1666 = vadd.s32 %v1661, %v1663
        %vm1667 = vc.u32 %v1661, %v1663
        %v1668 = vadd.s32 %v1664, 1
        %v1669 = vsel %vm1667, %v1668, %v1664
        %v1670 = vadd.s32 %v1665, %v1669
        %v1671 = vadd.s32 %v1670, 536870912
        %v1672 = vshrl.u32 %v1671, 30
        %v1673 = vshll.u32 %v1672, 30
        %v1674 = vsub.s32 %v1670, %v1673
        %vm1675 = vcmp.lt.s32.totalorder %v1674, 0
        %v1676 = vsub.s32 0, %v1674
        %v1677 = vsel %vm1675, %v1676, %v1674
        %v1678 = vclz %v1677
        %v1679 = vsub.s32 %v1678, 2
        %vm1680 = vcmp.gt.s32.totalorder 0, %v1679
        %v1681 = vsel %vm1680, 0, %v1679
        %v1682 = vsub.s32 32, %v1681
        %v1683 = vshll.u32 %v1674, %v1681
        %v1684 = vshrl.u32 %v1666, %v1682
        %v1685 = vor.u32 %v1683, %v1684
        %v1686 = vsub.s32 4294967266, %v1681
        %v1687 = vadd.s32 %v1686, 127
        %v1688 = vshll.u32 %v1687, 23
        %v1689 = vor.u32 4788187, %v1688
        %v1690 = vand.u32 2147483647, %v1689
        %v1692 = vcvt.s32.f32 %v1685
        %v1693 = vmul.f32 %v1692, %v1690
        %v1694 = vxor.u32 %v1693, 2147483648
        %v1695 = vsel %vm1612, %v1694, %v1693
        %v1696 = vsub.s32 4, %v1672
        %v1697 = vsel %vm1612, %v1696, %v1672
        %v1698 = vsel %vm1611, %v1014, %v1695
        %v1699 = vsel %vm1611, 0, %v1697
        %v1700 = vcosq.f32.pop %v1698
        %v1701 = vsinq.f32.pop %v1698
        %vm1702 = vweird.f32 %v1014
        %v1703 = vand.u32 %v1699, 3
        %vm1704 = vcmp.lt.s32.totalorder %v1703, 2
        %vm1705 = vcmp.eq.s32.totalorder %v1703, 0
        %v1706 = vxor.u32 %v1701, 2147483648
        %v1707 = vsel %vm1705, %v1700, %v1706
        %vm1708 = vcmp.eq.s32.totalorder %v1703, 2
        %v1709 = vxor.u32 %v1700, 2147483648
        %v1710 = vsel %vm1708, %v1709, %v1701
        %v1711 = vsel %vm1704, %v1707, %v1710
        %v1712 = vsel %vm1702, nan, %v1711
        %v1713 = vand.u32 2147483647, %v1018
        %vm1714 = vcmp.le.f32.partialorder %v1713, 0.7853982
        %vm1715 = vcmp.lt.s32.totalorder %v1018, 0
        %v1716 = vand.u32 %v1018, 2139095040
        %v1717 = vshrl.u32 %v1716, 23
        %v1718 = vsub.s32 %v1717, 127
        %v1719 = vand.u32 2147483647, %v1018
        %v1720 = vand.u32 %v1719, 8388607
        %v1721 = vor.u32 %v1720, 8388608
        %v1722 = vsub.s32 0, %v1721
        %v1723 = vadd.s32 %v1718, 1
        %vm1724 = vcmp.gt.s32.totalorder %v1723, 0
        %v1725 = vsel %vm1724, %v1723, 0
        %v1726 = vshrl.u32 %v1725, 5
        %v1727 = vand.u32 %v1725, 31
        %v1728 = vsub.s32 32, %v1727
        %v1729 = vshrl.u32 683565275, %v1728
        %v1730 = vshll.u32 683565275, %v1727
        %v1731 = vshrl.u32 2475754826, %v1728
        %v1732 = vor.u32 %v1730, %v1731
        %v1733 = vshll.u32 2475754826, %v1727
        %v1734 = vshrl.u32 2131351028, %v1728
        %v1735 = vor.u32 %v1733, %v1734
        %v1736 = vshll.u32 2131351028, %v1727
        %v1737 = vshrl.u32 2102212464, %v1728
        %v1738 = vor.u32 %v1736, %v1737
        %v1739 = vshll.u32 2102212464, %v1727
        %v1740 = vshrl.u32 920167782, %v1728
        %v1741 = vor.u32 %v1739, %v1740
        %v1742 = vshll.u32 920167782, %v1727
        %v1743 = vshrl.u32 1326507024, %v1728
        %v1744 = vor.u32 %v1742, %v1743
        %vm1745 = vcmp.lt.s32.totalorder %v1726, 1
        %vm1746 = vcmp.lt.s32.totalorder %v1726, 2
        %vm1747 = vcmp.lt.s32.totalorder %v1726, 3
        %vm1748 = vcmp.lt.s32.totalorder %v1726, 4
        %v1749 = vsel %vm1745, %v1729, %v1732
        %v1750 = vsel %vm1748, %v1738, 2102212464
        %v1751 = vsel %vm1747, %v1735, %v1750
        %v1752 = vsel %vm1746, %v1749, %v1751
        %v1753 = vsel %vm1745, %v1732, %v1735
        %v1754 = vsel %vm1748, %v1741, 920167782
        %v1755 = vsel %vm1747, %v1738, %v1754
        %v1756 = vsel %vm1746, %v1753, %v1755
        %v1757 = vsel %vm1745, %v1735, %v1738
        %v1758 = vsel %vm1748, %v1744, 1326507024
        %v1759 = vsel %vm1747, %v1741, %v1758
        %v1760 = vsel %vm1746, %v1757, %v1759
        %v1761 = vshll.u32 %v1721, 8
        %v1762 = vmul.u32.u64.compose %v1761, %v1760
        %v1763 = vextract.low.u32 %v1762
        %v1764 = vextract.high.u32 %v1762
        %v1765 = vmul.u32.u64.compose %v1761, %v1756
        %v1766 = vextract.low.u32 %v1765
        %v1767 = vextract.high.u32 %v1765
        %v1768 = vmul.u32 %v1761, %v1752
        %v1769 = vadd.s32 %v1764, %v1766
        %vm1770 = vc.u32 %v1764, %v1766
        %v1771 = vadd.s32 %v1767, 1
        %v1772 = vsel %vm1770, %v1771, %v1767
        %v1773 = vadd.s32 %v1768, %v1772
        %v1774 = vadd.s32 %v1773, 536870912
        %v1775 = vshrl.u32 %v1774, 30
        %v1776 = vshll.u32 %v1775, 30
        %v1777 = vsub.s32 %v1773, %v1776
        %vm1778 = vcmp.lt.s32.totalorder %v1777, 0
        %v1779 = vsub.s32 0, %v1777
        %v1780 = vsel %vm1778, %v1779, %v1777
        %v1781 = vclz %v1780
        %v1782 = vsub.s32 %v1781, 2
        %vm1783 = vcmp.gt.s32.totalorder 0, %v1782
        %v1784 = vsel %vm1783, 0, %v1782
        %v1785 = vsub.s32 32, %v1784
        %v1786 = vshll.u32 %v1777, %v1784
        %v1787 = vshrl.u32 %v1769, %v1785
        %v1788 = vor.u32 %v1786, %v1787
        %v1789 = vsub.s32 4294967266, %v1784
        %v1790 = vadd.s32 %v1789, 127
        %v1791 = vshll.u32 %v1790, 23
        %v1792 = vor.u32 4788187, %v1791
        %v1793 = vand.u32 2147483647, %v1792
        %v1795 = vcvt.s32.f32 %v1788
        %v1796 = vmul.f32 %v1795, %v1793
        %v1797 = vxor.u32 %v1796, 2147483648
        %v1798 = vsel %vm1715, %v1797, %v1796
        %v1799 = vsub.s32 4, %v1775
        %v1800 = vsel %vm1715, %v1799, %v1775
        %v1801 = vsel %vm1714, %v1018, %v1798
        %v1802 = vsel %vm1714, 0, %v1800
        %v1803 = vcosq.f32.pop %v1801
        %v1804 = vsinq.f32.pop %v1801
        %vm1805 = vweird.f32 %v1018
        %v1806 = vand.u32 %v1802, 3
        %vm1807 = vcmp.lt.s32.totalorder %v1806, 2
        %vm1808 = vcmp.eq.s32.totalorder %v1806, 0
        %v1809 = vxor.u32 %v1804, 2147483648
        %v1810 = vsel %vm1808, %v1803, %v1809
        %vm1811 = vcmp.eq.s32.totalorder %v1806, 2
        %v1812 = vxor.u32 %v1803, 2147483648
        %v1813 = vsel %vm1811, %v1812, %v1804
        %v1814 = vsel %vm1807, %v1810, %v1813
        %v1815 = vsel %vm1805, nan, %v1814
        %v1816 = vand.u32 2147483647, %v1020
        %vm1817 = vcmp.le.f32.partialorder %v1816, 0.7853982
        %vm1818 = vcmp.lt.s32.totalorder %v1020, 0
        %v1819 = vand.u32 %v1020, 2139095040
        %v1820 = vshrl.u32 %v1819, 23
        %v1821 = vsub.s32 %v1820, 127
        %v1822 = vand.u32 2147483647, %v1020
        %v1823 = vand.u32 %v1822, 8388607
        %v1824 = vor.u32 %v1823, 8388608
        %v1825 = vsub.s32 0, %v1824
        %v1826 = vadd.s32 %v1821, 1
        %vm1827 = vcmp.gt.s32.totalorder %v1826, 0
        %v1828 = vsel %vm1827, %v1826, 0
        %v1829 = vshrl.u32 %v1828, 5
        %v1830 = vand.u32 %v1828, 31
        %v1831 = vsub.s32 32, %v1830
        %v1832 = vshrl.u32 683565275, %v1831
        %v1833 = vshll.u32 683565275, %v1830
        %v1834 = vshrl.u32 2475754826, %v1831
        %v1835 = vor.u32 %v1833, %v1834
        %v1836 = vshll.u32 2475754826, %v1830
        %v1837 = vshrl.u32 2131351028, %v1831
        %v1838 = vor.u32 %v1836, %v1837
        %v1839 = vshll.u32 2131351028, %v1830
        %v1840 = vshrl.u32 2102212464, %v1831
        %v1841 = vor.u32 %v1839, %v1840
        %v1842 = vshll.u32 2102212464, %v1830
        %v1843 = vshrl.u32 920167782, %v1831
        %v1844 = vor.u32 %v1842, %v1843
        %v1845 = vshll.u32 920167782, %v1830
        %v1846 = vshrl.u32 1326507024, %v1831
        %v1847 = vor.u32 %v1845, %v1846
        %vm1848 = vcmp.lt.s32.totalorder %v1829, 1
        %vm1849 = vcmp.lt.s32.totalorder %v1829, 2
        %vm1850 = vcmp.lt.s32.totalorder %v1829, 3
        %vm1851 = vcmp.lt.s32.totalorder %v1829, 4
        %v1852 = vsel %vm1848, %v1832, %v1835
        %v1853 = vsel %vm1851, %v1841, 2102212464
        %v1854 = vsel %vm1850, %v1838, %v1853
        %v1855 = vsel %vm1849, %v1852, %v1854
        %v1856 = vsel %vm1848, %v1835, %v1838
        %v1857 = vsel %vm1851, %v1844, 920167782
        %v1858 = vsel %vm1850, %v1841, %v1857
        %v1859 = vsel %vm1849, %v1856, %v1858
        %v1860 = vsel %vm1848, %v1838, %v1841
        %v1861 = vsel %vm1851, %v1847, 1326507024
        %v1862 = vsel %vm1850, %v1844, %v1861
        %v1863 = vsel %vm1849, %v1860, %v1862
        %v1864 = vshll.u32 %v1824, 8
        %v1865 = vmul.u32.u64.compose %v1864, %v1863
        %v1866 = vextract.low.u32 %v1865
        %v1867 = vextract.high.u32 %v1865
        %v1868 = vmul.u32.u64.compose %v1864, %v1859
        %v1869 = vextract.low.u32 %v1868
        %v1870 = vextract.high.u32 %v1868
        %v1871 = vmul.u32 %v1864, %v1855
        %v1872 = vadd.s32 %v1867, %v1869
        %vm1873 = vc.u32 %v1867, %v1869
        %v1874 = vadd.s32 %v1870, 1
        %v1875 = vsel %vm1873, %v1874, %v1870
        %v1876 = vadd.s32 %v1871, %v1875
        %v1877 = vadd.s32 %v1876, 536870912
        %v1878 = vshrl.u32 %v1877, 30
        %v1879 = vshll.u32 %v1878, 30
        %v1880 = vsub.s32 %v1876, %v1879
        %vm1881 = vcmp.lt.s32.totalorder %v1880, 0
        %v1882 = vsub.s32 0, %v1880
        %v1883 = vsel %vm1881, %v1882, %v1880
        %v1884 = vclz %v1883
        %v1885 = vsub.s32 %v1884, 2
        %vm1886 = vcmp.gt.s32.totalorder 0, %v1885
        %v1887 = vsel %vm1886, 0, %v1885
        %v1888 = vsub.s32 32, %v1887
        %v1889 = vshll.u32 %v1880, %v1887
        %v1890 = vshrl.u32 %v1872, %v1888
        %v1891 = vor.u32 %v1889, %v1890
        %v1892 = vsub.s32 4294967266, %v1887
        %v1893 = vadd.s32 %v1892, 127
        %v1894 = vshll.u32 %v1893, 23
        %v1895 = vor.u32 4788187, %v1894
        %v1896 = vand.u32 2147483647, %v1895
        %v1898 = vcvt.s32.f32 %v1891
        %v1899 = vmul.f32 %v1898, %v1896
        %v1900 = vxor.u32 %v1899, 2147483648
        %v1901 = vsel %vm1818, %v1900, %v1899
        %v1902 = vsub.s32 4, %v1878
        %v1903 = vsel %vm1818, %v1902, %v1878
        %v1904 = vsel %vm1817, %v1020, %v1901
        %v1905 = vsel %vm1817, 0, %v1903
        %v1906 = vcosq.f32.pop %v1904
        %v1907 = vsinq.f32.pop %v1904
        %vm1908 = vweird.f32 %v1020
        %v1909 = vand.u32 %v1905, 3
        %vm1910 = vcmp.lt.s32.totalorder %v1909, 2
        %vm1911 = vcmp.eq.s32.totalorder %v1909, 0
        %v1912 = vxor.u32 %v1907, 2147483648
        %v1913 = vsel %vm1911, %v1906, %v1912
        %vm1914 = vcmp.eq.s32.totalorder %v1909, 2
        %v1915 = vxor.u32 %v1906, 2147483648
        %v1916 = vsel %vm1914, %v1915, %v1907
        %v1917 = vsel %vm1910, %v1913, %v1916
        %v1918 = vsel %vm1908, nan, %v1917
        %v1919 = vand.u32 2147483647, %v1024
        %vm1920 = vcmp.le.f32.partialorder %v1919, 0.7853982
        %vm1921 = vcmp.lt.s32.totalorder %v1024, 0
        %v1922 = vand.u32 %v1024, 2139095040
        %v1923 = vshrl.u32 %v1922, 23
        %v1924 = vsub.s32 %v1923, 127
        %v1925 = vand.u32 2147483647, %v1024
        %v1926 = vand.u32 %v1925, 8388607
        %v1927 = vor.u32 %v1926, 8388608
        %v1928 = vsub.s32 0, %v1927
        %v1929 = vadd.s32 %v1924, 1
        %vm1930 = vcmp.gt.s32.totalorder %v1929, 0
        %v1931 = vsel %vm1930, %v1929, 0
        %v1932 = vshrl.u32 %v1931, 5
        %v1933 = vand.u32 %v1931, 31
        %v1934 = vsub.s32 32, %v1933
        %v1935 = vshrl.u32 683565275, %v1934
        %v1936 = vshll.u32 683565275, %v1933
        %v1937 = vshrl.u32 2475754826, %v1934
        %v1938 = vor.u32 %v1936, %v1937
        %v1939 = vshll.u32 2475754826, %v1933
        %v1940 = vshrl.u32 2131351028, %v1934
        %v1941 = vor.u32 %v1939, %v1940
        %v1942 = vshll.u32 2131351028, %v1933
        %v1943 = vshrl.u32 2102212464, %v1934
        %v1944 = vor.u32 %v1942, %v1943
        %v1945 = vshll.u32 2102212464, %v1933
        %v1946 = vshrl.u32 920167782, %v1934
        %v1947 = vor.u32 %v1945, %v1946
        %v1948 = vshll.u32 920167782, %v1933
        %v1949 = vshrl.u32 1326507024, %v1934
        %v1950 = vor.u32 %v1948, %v1949
        %vm1951 = vcmp.lt.s32.totalorder %v1932, 1
        %vm1952 = vcmp.lt.s32.totalorder %v1932, 2
        %vm1953 = vcmp.lt.s32.totalorder %v1932, 3
        %vm1954 = vcmp.lt.s32.totalorder %v1932, 4
        %v1955 = vsel %vm1951, %v1935, %v1938
        %v1956 = vsel %vm1954, %v1944, 2102212464
        %v1957 = vsel %vm1953, %v1941, %v1956
        %v1958 = vsel %vm1952, %v1955, %v1957
        %v1959 = vsel %vm1951, %v1938, %v1941
        %v1960 = vsel %vm1954, %v1947, 920167782
        %v1961 = vsel %vm1953, %v1944, %v1960
        %v1962 = vsel %vm1952, %v1959, %v1961
        %v1963 = vsel %vm1951, %v1941, %v1944
        %v1964 = vsel %vm1954, %v1950, 1326507024
        %v1965 = vsel %vm1953, %v1947, %v1964
        %v1966 = vsel %vm1952, %v1963, %v1965
        %v1967 = vshll.u32 %v1927, 8
        %v1968 = vmul.u32.u64.compose %v1967, %v1966
        %v1969 = vextract.low.u32 %v1968
        %v1970 = vextract.high.u32 %v1968
        %v1971 = vmul.u32.u64.compose %v1967, %v1962
        %v1972 = vextract.low.u32 %v1971
        %v1973 = vextract.high.u32 %v1971
        %v1974 = vmul.u32 %v1967, %v1958
        %v1975 = vadd.s32 %v1970, %v1972
        %vm1976 = vc.u32 %v1970, %v1972
        %v1977 = vadd.s32 %v1973, 1
        %v1978 = vsel %vm1976, %v1977, %v1973
        %v1979 = vadd.s32 %v1974, %v1978
        %v1980 = vadd.s32 %v1979, 536870912
        %v1981 = vshrl.u32 %v1980, 30
        %v1982 = vshll.u32 %v1981, 30
        %v1983 = vsub.s32 %v1979, %v1982
        %vm1984 = vcmp.lt.s32.totalorder %v1983, 0
        %v1985 = vsub.s32 0, %v1983
        %v1986 = vsel %vm1984, %v1985, %v1983
        %v1987 = vclz %v1986
        %v1988 = vsub.s32 %v1987, 2
        %vm1989 = vcmp.gt.s32.totalorder 0, %v1988
        %v1990 = vsel %vm1989, 0, %v1988
        %v1991 = vsub.s32 32, %v1990
        %v1992 = vshll.u32 %v1983, %v1990
        %v1993 = vshrl.u32 %v1975, %v1991
        %v1994 = vor.u32 %v1992, %v1993
        %v1995 = vsub.s32 4294967266, %v1990
        %v1996 = vadd.s32 %v1995, 127
        %v1997 = vshll.u32 %v1996, 23
        %v1998 = vor.u32 4788187, %v1997
        %v1999 = vand.u32 2147483647, %v1998
        %v2001 = vcvt.s32.f32 %v1994
        %v2002 = vmul.f32 %v2001, %v1999
        %v2003 = vxor.u32 %v2002, 2147483648
        %v2004 = vsel %vm1921, %v2003, %v2002
        %v2005 = vsub.s32 4, %v1981
        %v2006 = vsel %vm1921, %v2005, %v1981
        %v2007 = vsel %vm1920, %v1024, %v2004
        %v2008 = vsel %vm1920, 0, %v2006
        %v2009 = vcosq.f32.pop %v2007
        %v2010 = vsinq.f32.pop %v2007
        %vm2011 = vweird.f32 %v1024
        %v2012 = vand.u32 %v2008, 3
        %vm2013 = vcmp.lt.s32.totalorder %v2012, 2
        %vm2014 = vcmp.eq.s32.totalorder %v2012, 0
        %v2015 = vxor.u32 %v2010, 2147483648
        %v2016 = vsel %vm2014, %v2009, %v2015
        %vm2017 = vcmp.eq.s32.totalorder %v2012, 2
        %v2018 = vxor.u32 %v2009, 2147483648
        %v2019 = vsel %vm2017, %v2018, %v2010
        %v2020 = vsel %vm2013, %v2016, %v2019
        %v2021 = vsel %vm2011, nan, %v2020
        %v2022 = vand.u32 2147483647, %v1026
        %vm2023 = vcmp.le.f32.partialorder %v2022, 0.7853982
        %vm2024 = vcmp.lt.s32.totalorder %v1026, 0
        %v2025 = vand.u32 %v1026, 2139095040
        %v2026 = vshrl.u32 %v2025, 23
        %v2027 = vsub.s32 %v2026, 127
        %v2028 = vand.u32 2147483647, %v1026
        %v2029 = vand.u32 %v2028, 8388607
        %v2030 = vor.u32 %v2029, 8388608
        %v2031 = vsub.s32 0, %v2030
        %v2032 = vadd.s32 %v2027, 1
        %vm2033 = vcmp.gt.s32.totalorder %v2032, 0
        %v2034 = vsel %vm2033, %v2032, 0
        %v2035 = vshrl.u32 %v2034, 5
        %v2036 = vand.u32 %v2034, 31
        %v2037 = vsub.s32 32, %v2036
        %v2038 = vshrl.u32 683565275, %v2037
        %v2039 = vshll.u32 683565275, %v2036
        %v2040 = vshrl.u32 2475754826, %v2037
        %v2041 = vor.u32 %v2039, %v2040
        %v2042 = vshll.u32 2475754826, %v2036
        %v2043 = vshrl.u32 2131351028, %v2037
        %v2044 = vor.u32 %v2042, %v2043
        %v2045 = vshll.u32 2131351028, %v2036
        %v2046 = vshrl.u32 2102212464, %v2037
        %v2047 = vor.u32 %v2045, %v2046
        %v2048 = vshll.u32 2102212464, %v2036
        %v2049 = vshrl.u32 920167782, %v2037
        %v2050 = vor.u32 %v2048, %v2049
        %v2051 = vshll.u32 920167782, %v2036
        %v2052 = vshrl.u32 1326507024, %v2037
        %v2053 = vor.u32 %v2051, %v2052
        %vm2054 = vcmp.lt.s32.totalorder %v2035, 1
        %vm2055 = vcmp.lt.s32.totalorder %v2035, 2
        %vm2056 = vcmp.lt.s32.totalorder %v2035, 3
        %vm2057 = vcmp.lt.s32.totalorder %v2035, 4
        %v2058 = vsel %vm2054, %v2038, %v2041
        %v2059 = vsel %vm2057, %v2047, 2102212464
        %v2060 = vsel %vm2056, %v2044, %v2059
        %v2061 = vsel %vm2055, %v2058, %v2060
        %v2062 = vsel %vm2054, %v2041, %v2044
        %v2063 = vsel %vm2057, %v2050, 920167782
        %v2064 = vsel %vm2056, %v2047, %v2063
        %v2065 = vsel %vm2055, %v2062, %v2064
        %v2066 = vsel %vm2054, %v2044, %v2047
        %v2067 = vsel %vm2057, %v2053, 1326507024
        %v2068 = vsel %vm2056, %v2050, %v2067
        %v2069 = vsel %vm2055, %v2066, %v2068
        %v2070 = vshll.u32 %v2030, 8
        %v2071 = vmul.u32.u64.compose %v2070, %v2069
        %v2072 = vextract.low.u32 %v2071
        %v2073 = vextract.high.u32 %v2071
        %v2074 = vmul.u32.u64.compose %v2070, %v2065
        %v2075 = vextract.low.u32 %v2074
        %v2076 = vextract.high.u32 %v2074
        %v2077 = vmul.u32 %v2070, %v2061
        %v2078 = vadd.s32 %v2073, %v2075
        %vm2079 = vc.u32 %v2073, %v2075
        %v2080 = vadd.s32 %v2076, 1
        %v2081 = vsel %vm2079, %v2080, %v2076
        %v2082 = vadd.s32 %v2077, %v2081
        %v2083 = vadd.s32 %v2082, 536870912
        %v2084 = vshrl.u32 %v2083, 30
        %v2085 = vshll.u32 %v2084, 30
        %v2086 = vsub.s32 %v2082, %v2085
        %vm2087 = vcmp.lt.s32.totalorder %v2086, 0
        %v2088 = vsub.s32 0, %v2086
        %v2089 = vsel %vm2087, %v2088, %v2086
        %v2090 = vclz %v2089
        %v2091 = vsub.s32 %v2090, 2
        %vm2092 = vcmp.gt.s32.totalorder 0, %v2091
        %v2093 = vsel %vm2092, 0, %v2091
        %v2094 = vsub.s32 32, %v2093
        %v2095 = vshll.u32 %v2086, %v2093
        %v2096 = vshrl.u32 %v2078, %v2094
        %v2097 = vor.u32 %v2095, %v2096
        %v2098 = vsub.s32 4294967266, %v2093
        %v2099 = vadd.s32 %v2098, 127
        %v2100 = vshll.u32 %v2099, 23
        %v2101 = vor.u32 4788187, %v2100
        %v2102 = vand.u32 2147483647, %v2101
        %v2104 = vcvt.s32.f32 %v2097
        %v2105 = vmul.f32 %v2104, %v2102
        %v2106 = vxor.u32 %v2105, 2147483648
        %v2107 = vsel %vm2024, %v2106, %v2105
        %v2108 = vsub.s32 4, %v2084
        %v2109 = vsel %vm2024, %v2108, %v2084
        %v2110 = vsel %vm2023, %v1026, %v2107
        %v2111 = vsel %vm2023, 0, %v2109
        %v2112 = vcosq.f32.pop %v2110
        %v2113 = vsinq.f32.pop %v2110
        %vm2114 = vweird.f32 %v1026
        %v2115 = vand.u32 %v2111, 3
        %vm2116 = vcmp.lt.s32.totalorder %v2115, 2
        %vm2117 = vcmp.eq.s32.totalorder %v2115, 0
        %v2118 = vxor.u32 %v2113, 2147483648
        %v2119 = vsel %vm2117, %v2112, %v2118
        %vm2120 = vcmp.eq.s32.totalorder %v2115, 2
        %v2121 = vxor.u32 %v2112, 2147483648
        %v2122 = vsel %vm2120, %v2121, %v2113
        %v2123 = vsel %vm2116, %v2119, %v2122
        %v2124 = vsel %vm2114, nan, %v2123
        %v2125 = vand.u32 2147483647, %v1030
        %vm2126 = vcmp.le.f32.partialorder %v2125, 0.7853982
        %vm2127 = vcmp.lt.s32.totalorder %v1030, 0
        %v2128 = vand.u32 %v1030, 2139095040
        %v2129 = vshrl.u32 %v2128, 23
        %v2130 = vsub.s32 %v2129, 127
        %v2131 = vand.u32 2147483647, %v1030
        %v2132 = vand.u32 %v2131, 8388607
        %v2133 = vor.u32 %v2132, 8388608
        %v2134 = vsub.s32 0, %v2133
        %v2135 = vadd.s32 %v2130, 1
        %vm2136 = vcmp.gt.s32.totalorder %v2135, 0
        %v2137 = vsel %vm2136, %v2135, 0
        %v2138 = vshrl.u32 %v2137, 5
        %v2139 = vand.u32 %v2137, 31
        %v2140 = vsub.s32 32, %v2139
        %v2141 = vshrl.u32 683565275, %v2140
        %v2142 = vshll.u32 683565275, %v2139
        %v2143 = vshrl.u32 2475754826, %v2140
        %v2144 = vor.u32 %v2142, %v2143
        %v2145 = vshll.u32 2475754826, %v2139
        %v2146 = vshrl.u32 2131351028, %v2140
        %v2147 = vor.u32 %v2145, %v2146
        %v2148 = vshll.u32 2131351028, %v2139
        %v2149 = vshrl.u32 2102212464, %v2140
        %v2150 = vor.u32 %v2148, %v2149
        %v2151 = vshll.u32 2102212464, %v2139
        %v2152 = vshrl.u32 920167782, %v2140
        %v2153 = vor.u32 %v2151, %v2152
        %v2154 = vshll.u32 920167782, %v2139
        %v2155 = vshrl.u32 1326507024, %v2140
        %v2156 = vor.u32 %v2154, %v2155
        %vm2157 = vcmp.lt.s32.totalorder %v2138, 1
        %vm2158 = vcmp.lt.s32.totalorder %v2138, 2
        %vm2159 = vcmp.lt.s32.totalorder %v2138, 3
        %vm2160 = vcmp.lt.s32.totalorder %v2138, 4
        %v2161 = vsel %vm2157, %v2141, %v2144
        %v2162 = vsel %vm2160, %v2150, 2102212464
        %v2163 = vsel %vm2159, %v2147, %v2162
        %v2164 = vsel %vm2158, %v2161, %v2163
        %v2165 = vsel %vm2157, %v2144, %v2147
        %v2166 = vsel %vm2160, %v2153, 920167782
        %v2167 = vsel %vm2159, %v2150, %v2166
        %v2168 = vsel %vm2158, %v2165, %v2167
        %v2169 = vsel %vm2157, %v2147, %v2150
        %v2170 = vsel %vm2160, %v2156, 1326507024
        %v2171 = vsel %vm2159, %v2153, %v2170
        %v2172 = vsel %vm2158, %v2169, %v2171
        %v2173 = vshll.u32 %v2133, 8
        %v2174 = vmul.u32.u64.compose %v2173, %v2172
        %v2175 = vextract.low.u32 %v2174
        %v2176 = vextract.high.u32 %v2174
        %v2177 = vmul.u32.u64.compose %v2173, %v2168
        %v2178 = vextract.low.u32 %v2177
        %v2179 = vextract.high.u32 %v2177
        %v2180 = vmul.u32 %v2173, %v2164
        %v2181 = vadd.s32 %v2176, %v2178
        %vm2182 = vc.u32 %v2176, %v2178
        %v2183 = vadd.s32 %v2179, 1
        %v2184 = vsel %vm2182, %v2183, %v2179
        %v2185 = vadd.s32 %v2180, %v2184
        %v2186 = vadd.s32 %v2185, 536870912
        %v2187 = vshrl.u32 %v2186, 30
        %v2188 = vshll.u32 %v2187, 30
        %v2189 = vsub.s32 %v2185, %v2188
        %vm2190 = vcmp.lt.s32.totalorder %v2189, 0
        %v2191 = vsub.s32 0, %v2189
        %v2192 = vsel %vm2190, %v2191, %v2189
        %v2193 = vclz %v2192
        %v2194 = vsub.s32 %v2193, 2
        %vm2195 = vcmp.gt.s32.totalorder 0, %v2194
        %v2196 = vsel %vm2195, 0, %v2194
        %v2197 = vsub.s32 32, %v2196
        %v2198 = vshll.u32 %v2189, %v2196
        %v2199 = vshrl.u32 %v2181, %v2197
        %v2200 = vor.u32 %v2198, %v2199
        %v2201 = vsub.s32 4294967266, %v2196
        %v2202 = vadd.s32 %v2201, 127
        %v2203 = vshll.u32 %v2202, 23
        %v2204 = vor.u32 4788187, %v2203
        %v2205 = vand.u32 2147483647, %v2204
        %v2207 = vcvt.s32.f32 %v2200
        %v2208 = vmul.f32 %v2207, %v2205
        %v2209 = vxor.u32 %v2208, 2147483648
        %v2210 = vsel %vm2127, %v2209, %v2208
        %v2211 = vsub.s32 4, %v2187
        %v2212 = vsel %vm2127, %v2211, %v2187
        %v2213 = vsel %vm2126, %v1030, %v2210
        %v2214 = vsel %vm2126, 0, %v2212
        %v2215 = vcosq.f32.pop %v2213
        %v2216 = vsinq.f32.pop %v2213
        %vm2217 = vweird.f32 %v1030
        %v2218 = vand.u32 %v2214, 3
        %vm2219 = vcmp.lt.s32.totalorder %v2218, 2
        %vm2220 = vcmp.eq.s32.totalorder %v2218, 0
        %v2221 = vxor.u32 %v2216, 2147483648
        %v2222 = vsel %vm2220, %v2215, %v2221
        %vm2223 = vcmp.eq.s32.totalorder %v2218, 2
        %v2224 = vxor.u32 %v2215, 2147483648
        %v2225 = vsel %vm2223, %v2224, %v2216
        %v2226 = vsel %vm2219, %v2222, %v2225
        %v2227 = vsel %vm2217, nan, %v2226
        %v2228 = vand.u32 2147483647, %v1032
        %vm2229 = vcmp.le.f32.partialorder %v2228, 0.7853982
        %vm2230 = vcmp.lt.s32.totalorder %v1032, 0
        %v2231 = vand.u32 %v1032, 2139095040
        %v2232 = vshrl.u32 %v2231, 23
        %v2233 = vsub.s32 %v2232, 127
        %v2234 = vand.u32 2147483647, %v1032
        %v2235 = vand.u32 %v2234, 8388607
        %v2236 = vor.u32 %v2235, 8388608
        %v2237 = vsub.s32 0, %v2236
        %v2238 = vadd.s32 %v2233, 1
        %vm2239 = vcmp.gt.s32.totalorder %v2238, 0
        %v2240 = vsel %vm2239, %v2238, 0
        %v2241 = vshrl.u32 %v2240, 5
        %v2242 = vand.u32 %v2240, 31
        %v2243 = vsub.s32 32, %v2242
        %v2244 = vshrl.u32 683565275, %v2243
        %v2245 = vshll.u32 683565275, %v2242
        %v2246 = vshrl.u32 2475754826, %v2243
        %v2247 = vor.u32 %v2245, %v2246
        %v2248 = vshll.u32 2475754826, %v2242
        %v2249 = vshrl.u32 2131351028, %v2243
        %v2250 = vor.u32 %v2248, %v2249
        %v2251 = vshll.u32 2131351028, %v2242
        %v2252 = vshrl.u32 2102212464, %v2243
        %v2253 = vor.u32 %v2251, %v2252
        %v2254 = vshll.u32 2102212464, %v2242
        %v2255 = vshrl.u32 920167782, %v2243
        %v2256 = vor.u32 %v2254, %v2255
        %v2257 = vshll.u32 920167782, %v2242
        %v2258 = vshrl.u32 1326507024, %v2243
        %v2259 = vor.u32 %v2257, %v2258
        %vm2260 = vcmp.lt.s32.totalorder %v2241, 1
        %vm2261 = vcmp.lt.s32.totalorder %v2241, 2
        %vm2262 = vcmp.lt.s32.totalorder %v2241, 3
        %vm2263 = vcmp.lt.s32.totalorder %v2241, 4
        %v2264 = vsel %vm2260, %v2244, %v2247
        %v2265 = vsel %vm2263, %v2253, 2102212464
        %v2266 = vsel %vm2262, %v2250, %v2265
        %v2267 = vsel %vm2261, %v2264, %v2266
        %v2268 = vsel %vm2260, %v2247, %v2250
        %v2269 = vsel %vm2263, %v2256, 920167782
        %v2270 = vsel %vm2262, %v2253, %v2269
        %v2271 = vsel %vm2261, %v2268, %v2270
        %v2272 = vsel %vm2260, %v2250, %v2253
        %v2273 = vsel %vm2263, %v2259, 1326507024
        %v2274 = vsel %vm2262, %v2256, %v2273
        %v2275 = vsel %vm2261, %v2272, %v2274
        %v2276 = vshll.u32 %v2236, 8
        %v2277 = vmul.u32.u64.compose %v2276, %v2275
        %v2278 = vextract.low.u32 %v2277
        %v2279 = vextract.high.u32 %v2277
        %v2280 = vmul.u32.u64.compose %v2276, %v2271
        %v2281 = vextract.low.u32 %v2280
        %v2282 = vextract.high.u32 %v2280
        %v2283 = vmul.u32 %v2276, %v2267
        %v2284 = vadd.s32 %v2279, %v2281
        %vm2285 = vc.u32 %v2279, %v2281
        %v2286 = vadd.s32 %v2282, 1
        %v2287 = vsel %vm2285, %v2286, %v2282
        %v2288 = vadd.s32 %v2283, %v2287
        %v2289 = vadd.s32 %v2288, 536870912
        %v2290 = vshrl.u32 %v2289, 30
        %v2291 = vshll.u32 %v2290, 30
        %v2292 = vsub.s32 %v2288, %v2291
        %vm2293 = vcmp.lt.s32.totalorder %v2292, 0
        %v2294 = vsub.s32 0, %v2292
        %v2295 = vsel %vm2293, %v2294, %v2292
        %v2296 = vclz %v2295
        %v2297 = vsub.s32 %v2296, 2
        %vm2298 = vcmp.gt.s32.totalorder 0, %v2297
        %v2299 = vsel %vm2298, 0, %v2297
        %v2300 = vsub.s32 32, %v2299
        %v2301 = vshll.u32 %v2292, %v2299
        %v2302 = vshrl.u32 %v2284, %v2300
        %v2303 = vor.u32 %v2301, %v2302
        %v2304 = vsub.s32 4294967266, %v2299
        %v2305 = vadd.s32 %v2304, 127
        %v2306 = vshll.u32 %v2305, 23
        %v2307 = vor.u32 4788187, %v2306
        %v2308 = vand.u32 2147483647, %v2307
        %v2310 = vcvt.s32.f32 %v2303
        %v2311 = vmul.f32 %v2310, %v2308
        %v2312 = vxor.u32 %v2311, 2147483648
        %v2313 = vsel %vm2230, %v2312, %v2311
        %v2314 = vsub.s32 4, %v2290
        %v2315 = vsel %vm2230, %v2314, %v2290
        %v2316 = vsel %vm2229, %v1032, %v2313
        %v2317 = vsel %vm2229, 0, %v2315
        %v2318 = vcosq.f32.pop %v2316
        %v2319 = vsinq.f32.pop %v2316
        %vm2320 = vweird.f32 %v1032
        %v2321 = vand.u32 %v2317, 3
        %vm2322 = vcmp.lt.s32.totalorder %v2321, 2
        %vm2323 = vcmp.eq.s32.totalorder %v2321, 0
        %v2324 = vxor.u32 %v2319, 2147483648
        %v2325 = vsel %vm2323, %v2318, %v2324
        %vm2326 = vcmp.eq.s32.totalorder %v2321, 2
        %v2327 = vxor.u32 %v2318, 2147483648
        %v2328 = vsel %vm2326, %v2327, %v2319
        %v2329 = vsel %vm2322, %v2325, %v2328
        %v2330 = vsel %vm2320, nan, %v2329
        %v2331 = vand.u32 2147483647, %v1036
        %vm2332 = vcmp.le.f32.partialorder %v2331, 0.7853982
        %vm2333 = vcmp.lt.s32.totalorder %v1036, 0
        %v2334 = vand.u32 %v1036, 2139095040
        %v2335 = vshrl.u32 %v2334, 23
        %v2336 = vsub.s32 %v2335, 127
        %v2337 = vand.u32 2147483647, %v1036
        %v2338 = vand.u32 %v2337, 8388607
        %v2339 = vor.u32 %v2338, 8388608
        %v2340 = vsub.s32 0, %v2339
        %v2341 = vadd.s32 %v2336, 1
        %vm2342 = vcmp.gt.s32.totalorder %v2341, 0
        %v2343 = vsel %vm2342, %v2341, 0
        %v2344 = vshrl.u32 %v2343, 5
        %v2345 = vand.u32 %v2343, 31
        %v2346 = vsub.s32 32, %v2345
        %v2347 = vshrl.u32 683565275, %v2346
        %v2348 = vshll.u32 683565275, %v2345
        %v2349 = vshrl.u32 2475754826, %v2346
        %v2350 = vor.u32 %v2348, %v2349
        %v2351 = vshll.u32 2475754826, %v2345
        %v2352 = vshrl.u32 2131351028, %v2346
        %v2353 = vor.u32 %v2351, %v2352
        %v2354 = vshll.u32 2131351028, %v2345
        %v2355 = vshrl.u32 2102212464, %v2346
        %v2356 = vor.u32 %v2354, %v2355
        %v2357 = vshll.u32 2102212464, %v2345
        %v2358 = vshrl.u32 920167782, %v2346
        %v2359 = vor.u32 %v2357, %v2358
        %v2360 = vshll.u32 920167782, %v2345
        %v2361 = vshrl.u32 1326507024, %v2346
        %v2362 = vor.u32 %v2360, %v2361
        %vm2363 = vcmp.lt.s32.totalorder %v2344, 1
        %vm2364 = vcmp.lt.s32.totalorder %v2344, 2
        %vm2365 = vcmp.lt.s32.totalorder %v2344, 3
        %vm2366 = vcmp.lt.s32.totalorder %v2344, 4
        %v2367 = vsel %vm2363, %v2347, %v2350
        %v2368 = vsel %vm2366, %v2356, 2102212464
        %v2369 = vsel %vm2365, %v2353, %v2368
        %v2370 = vsel %vm2364, %v2367, %v2369
        %v2371 = vsel %vm2363, %v2350, %v2353
        %v2372 = vsel %vm2366, %v2359, 920167782
        %v2373 = vsel %vm2365, %v2356, %v2372
        %v2374 = vsel %vm2364, %v2371, %v2373
        %v2375 = vsel %vm2363, %v2353, %v2356
        %v2376 = vsel %vm2366, %v2362, 1326507024
        %v2377 = vsel %vm2365, %v2359, %v2376
        %v2378 = vsel %vm2364, %v2375, %v2377
        %v2379 = vshll.u32 %v2339, 8
        %v2380 = vmul.u32.u64.compose %v2379, %v2378
        %v2381 = vextract.low.u32 %v2380
        %v2382 = vextract.high.u32 %v2380
        %v2383 = vmul.u32.u64.compose %v2379, %v2374
        %v2384 = vextract.low.u32 %v2383
        %v2385 = vextract.high.u32 %v2383
        %v2386 = vmul.u32 %v2379, %v2370
        %v2387 = vadd.s32 %v2382, %v2384
        %vm2388 = vc.u32 %v2382, %v2384
        %v2389 = vadd.s32 %v2385, 1
        %v2390 = vsel %vm2388, %v2389, %v2385
        %v2391 = vadd.s32 %v2386, %v2390
        %v2392 = vadd.s32 %v2391, 536870912
        %v2393 = vshrl.u32 %v2392, 30
        %v2394 = vshll.u32 %v2393, 30
        %v2395 = vsub.s32 %v2391, %v2394
        %vm2396 = vcmp.lt.s32.totalorder %v2395, 0
        %v2397 = vsub.s32 0, %v2395
        %v2398 = vsel %vm2396, %v2397, %v2395
        %v2399 = vclz %v2398
        %v2400 = vsub.s32 %v2399, 2
        %vm2401 = vcmp.gt.s32.totalorder 0, %v2400
        %v2402 = vsel %vm2401, 0, %v2400
        %v2403 = vsub.s32 32, %v2402
        %v2404 = vshll.u32 %v2395, %v2402
        %v2405 = vshrl.u32 %v2387, %v2403
        %v2406 = vor.u32 %v2404, %v2405
        %v2407 = vsub.s32 4294967266, %v2402
        %v2408 = vadd.s32 %v2407, 127
        %v2409 = vshll.u32 %v2408, 23
        %v2410 = vor.u32 4788187, %v2409
        %v2411 = vand.u32 2147483647, %v2410
        %v2413 = vcvt.s32.f32 %v2406
        %v2414 = vmul.f32 %v2413, %v2411
        %v2415 = vxor.u32 %v2414, 2147483648
        %v2416 = vsel %vm2333, %v2415, %v2414
        %v2417 = vsub.s32 4, %v2393
        %v2418 = vsel %vm2333, %v2417, %v2393
        %v2419 = vsel %vm2332, %v1036, %v2416
        %v2420 = vsel %vm2332, 0, %v2418
        %v2421 = vcosq.f32.pop %v2419
        %v2422 = vsinq.f32.pop %v2419
        %vm2423 = vweird.f32 %v1036
        %v2424 = vand.u32 %v2420, 3
        %vm2425 = vcmp.lt.s32.totalorder %v2424, 2
        %vm2426 = vcmp.eq.s32.totalorder %v2424, 0
        %v2427 = vxor.u32 %v2422, 2147483648
        %v2428 = vsel %vm2426, %v2421, %v2427
        %vm2429 = vcmp.eq.s32.totalorder %v2424, 2
        %v2430 = vxor.u32 %v2421, 2147483648
        %v2431 = vsel %vm2429, %v2430, %v2422
        %v2432 = vsel %vm2425, %v2428, %v2431
        %v2433 = vsel %vm2423, nan, %v2432
        %v2434 = vand.u32 2147483647, %v1038
        %vm2435 = vcmp.le.f32.partialorder %v2434, 0.7853982
        %vm2436 = vcmp.lt.s32.totalorder %v1038, 0
        %v2437 = vand.u32 %v1038, 2139095040
        %v2438 = vshrl.u32 %v2437, 23
        %v2439 = vsub.s32 %v2438, 127
        %v2440 = vand.u32 2147483647, %v1038
        %v2441 = vand.u32 %v2440, 8388607
        %v2442 = vor.u32 %v2441, 8388608
        %v2443 = vsub.s32 0, %v2442
        %v2444 = vadd.s32 %v2439, 1
        %vm2445 = vcmp.gt.s32.totalorder %v2444, 0
        %v2446 = vsel %vm2445, %v2444, 0
        %v2447 = vshrl.u32 %v2446, 5
        %v2448 = vand.u32 %v2446, 31
        %v2449 = vsub.s32 32, %v2448
        %v2450 = vshrl.u32 683565275, %v2449
        %v2451 = vshll.u32 683565275, %v2448
        %v2452 = vshrl.u32 2475754826, %v2449
        %v2453 = vor.u32 %v2451, %v2452
        %v2454 = vshll.u32 2475754826, %v2448
        %v2455 = vshrl.u32 2131351028, %v2449
        %v2456 = vor.u32 %v2454, %v2455
        %v2457 = vshll.u32 2131351028, %v2448
        %v2458 = vshrl.u32 2102212464, %v2449
        %v2459 = vor.u32 %v2457, %v2458
        %v2460 = vshll.u32 2102212464, %v2448
        %v2461 = vshrl.u32 920167782, %v2449
        %v2462 = vor.u32 %v2460, %v2461
        %v2463 = vshll.u32 920167782, %v2448
        %v2464 = vshrl.u32 1326507024, %v2449
        %v2465 = vor.u32 %v2463, %v2464
        %vm2466 = vcmp.lt.s32.totalorder %v2447, 1
        %vm2467 = vcmp.lt.s32.totalorder %v2447, 2
        %vm2468 = vcmp.lt.s32.totalorder %v2447, 3
        %vm2469 = vcmp.lt.s32.totalorder %v2447, 4
        %v2470 = vsel %vm2466, %v2450, %v2453
        %v2471 = vsel %vm2469, %v2459, 2102212464
        %v2472 = vsel %vm2468, %v2456, %v2471
        %v2473 = vsel %vm2467, %v2470, %v2472
        %v2474 = vsel %vm2466, %v2453, %v2456
        %v2475 = vsel %vm2469, %v2462, 920167782
        %v2476 = vsel %vm2468, %v2459, %v2475
        %v2477 = vsel %vm2467, %v2474, %v2476
        %v2478 = vsel %vm2466, %v2456, %v2459
        %v2479 = vsel %vm2469, %v2465, 1326507024
        %v2480 = vsel %vm2468, %v2462, %v2479
        %v2481 = vsel %vm2467, %v2478, %v2480
        %v2482 = vshll.u32 %v2442, 8
        %v2483 = vmul.u32.u64.compose %v2482, %v2481
        %v2484 = vextract.low.u32 %v2483
        %v2485 = vextract.high.u32 %v2483
        %v2486 = vmul.u32.u64.compose %v2482, %v2477
        %v2487 = vextract.low.u32 %v2486
        %v2488 = vextract.high.u32 %v2486
        %v2489 = vmul.u32 %v2482, %v2473
        %v2490 = vadd.s32 %v2485, %v2487
        %vm2491 = vc.u32 %v2485, %v2487
        %v2492 = vadd.s32 %v2488, 1
        %v2493 = vsel %vm2491, %v2492, %v2488
        %v2494 = vadd.s32 %v2489, %v2493
        %v2495 = vadd.s32 %v2494, 536870912
        %v2496 = vshrl.u32 %v2495, 30
        %v2497 = vshll.u32 %v2496, 30
        %v2498 = vsub.s32 %v2494, %v2497
        %vm2499 = vcmp.lt.s32.totalorder %v2498, 0
        %v2500 = vsub.s32 0, %v2498
        %v2501 = vsel %vm2499, %v2500, %v2498
        %v2502 = vclz %v2501
        %v2503 = vsub.s32 %v2502, 2
        %vm2504 = vcmp.gt.s32.totalorder 0, %v2503
        %v2505 = vsel %vm2504, 0, %v2503
        %v2506 = vsub.s32 32, %v2505
        %v2507 = vshll.u32 %v2498, %v2505
        %v2508 = vshrl.u32 %v2490, %v2506
        %v2509 = vor.u32 %v2507, %v2508
        %v2510 = vsub.s32 4294967266, %v2505
        %v2511 = vadd.s32 %v2510, 127
        %v2512 = vshll.u32 %v2511, 23
        %v2513 = vor.u32 4788187, %v2512
        %v2514 = vand.u32 2147483647, %v2513
        %v2516 = vcvt.s32.f32 %v2509
        %v2517 = vmul.f32 %v2516, %v2514
        %v2518 = vxor.u32 %v2517, 2147483648
        %v2519 = vsel %vm2436, %v2518, %v2517
        %v2520 = vsub.s32 4, %v2496
        %v2521 = vsel %vm2436, %v2520, %v2496
        %v2522 = vsel %vm2435, %v1038, %v2519
        %v2523 = vsel %vm2435, 0, %v2521
        %v2524 = vcosq.f32.pop %v2522
        %v2525 = vsinq.f32.pop %v2522
        %vm2526 = vweird.f32 %v1038
        %v2527 = vand.u32 %v2523, 3
        %vm2528 = vcmp.lt.s32.totalorder %v2527, 2
        %vm2529 = vcmp.eq.s32.totalorder %v2527, 0
        %v2530 = vxor.u32 %v2525, 2147483648
        %v2531 = vsel %vm2529, %v2524, %v2530
        %vm2532 = vcmp.eq.s32.totalorder %v2527, 2
        %v2533 = vxor.u32 %v2524, 2147483648
        %v2534 = vsel %vm2532, %v2533, %v2525
        %v2535 = vsel %vm2528, %v2531, %v2534
        %v2536 = vsel %vm2526, nan, %v2535
        %v2537 = vand.u32 2147483647, %v1042
        %vm2538 = vcmp.le.f32.partialorder %v2537, 0.7853982
        %vm2539 = vcmp.lt.s32.totalorder %v1042, 0
        %v2540 = vand.u32 %v1042, 2139095040
        %v2541 = vshrl.u32 %v2540, 23
        %v2542 = vsub.s32 %v2541, 127
        %v2543 = vand.u32 2147483647, %v1042
        %v2544 = vand.u32 %v2543, 8388607
        %v2545 = vor.u32 %v2544, 8388608
        %v2546 = vsub.s32 0, %v2545
        %v2547 = vadd.s32 %v2542, 1
        %vm2548 = vcmp.gt.s32.totalorder %v2547, 0
        %v2549 = vsel %vm2548, %v2547, 0
        %v2550 = vshrl.u32 %v2549, 5
        %v2551 = vand.u32 %v2549, 31
        %v2552 = vsub.s32 32, %v2551
        %v2553 = vshrl.u32 683565275, %v2552
        %v2554 = vshll.u32 683565275, %v2551
        %v2555 = vshrl.u32 2475754826, %v2552
        %v2556 = vor.u32 %v2554, %v2555
        %v2557 = vshll.u32 2475754826, %v2551
        %v2558 = vshrl.u32 2131351028, %v2552
        %v2559 = vor.u32 %v2557, %v2558
        %v2560 = vshll.u32 2131351028, %v2551
        %v2561 = vshrl.u32 2102212464, %v2552
        %v2562 = vor.u32 %v2560, %v2561
        %v2563 = vshll.u32 2102212464, %v2551
        %v2564 = vshrl.u32 920167782, %v2552
        %v2565 = vor.u32 %v2563, %v2564
        %v2566 = vshll.u32 920167782, %v2551
        %v2567 = vshrl.u32 1326507024, %v2552
        %v2568 = vor.u32 %v2566, %v2567
        %vm2569 = vcmp.lt.s32.totalorder %v2550, 1
        %vm2570 = vcmp.lt.s32.totalorder %v2550, 2
        %vm2571 = vcmp.lt.s32.totalorder %v2550, 3
        %vm2572 = vcmp.lt.s32.totalorder %v2550, 4
        %v2573 = vsel %vm2569, %v2553, %v2556
        %v2574 = vsel %vm2572, %v2562, 2102212464
        %v2575 = vsel %vm2571, %v2559, %v2574
        %v2576 = vsel %vm2570, %v2573, %v2575
        %v2577 = vsel %vm2569, %v2556, %v2559
        %v2578 = vsel %vm2572, %v2565, 920167782
        %v2579 = vsel %vm2571, %v2562, %v2578
        %v2580 = vsel %vm2570, %v2577, %v2579
        %v2581 = vsel %vm2569, %v2559, %v2562
        %v2582 = vsel %vm2572, %v2568, 1326507024
        %v2583 = vsel %vm2571, %v2565, %v2582
        %v2584 = vsel %vm2570, %v2581, %v2583
        %v2585 = vshll.u32 %v2545, 8
        %v2586 = vmul.u32.u64.compose %v2585, %v2584
        %v2587 = vextract.low.u32 %v2586
        %v2588 = vextract.high.u32 %v2586
        %v2589 = vmul.u32.u64.compose %v2585, %v2580
        %v2590 = vextract.low.u32 %v2589
        %v2591 = vextract.high.u32 %v2589
        %v2592 = vmul.u32 %v2585, %v2576
        %v2593 = vadd.s32 %v2588, %v2590
        %vm2594 = vc.u32 %v2588, %v2590
        %v2595 = vadd.s32 %v2591, 1
        %v2596 = vsel %vm2594, %v2595, %v2591
        %v2597 = vadd.s32 %v2592, %v2596
        %v2598 = vadd.s32 %v2597, 536870912
        %v2599 = vshrl.u32 %v2598, 30
        %v2600 = vshll.u32 %v2599, 30
        %v2601 = vsub.s32 %v2597, %v2600
        %vm2602 = vcmp.lt.s32.totalorder %v2601, 0
        %v2603 = vsub.s32 0, %v2601
        %v2604 = vsel %vm2602, %v2603, %v2601
        %v2605 = vclz %v2604
        %v2606 = vsub.s32 %v2605, 2
        %vm2607 = vcmp.gt.s32.totalorder 0, %v2606
        %v2608 = vsel %vm2607, 0, %v2606
        %v2609 = vsub.s32 32, %v2608
        %v2610 = vshll.u32 %v2601, %v2608
        %v2611 = vshrl.u32 %v2593, %v2609
        %v2612 = vor.u32 %v2610, %v2611
        %v2613 = vsub.s32 4294967266, %v2608
        %v2614 = vadd.s32 %v2613, 127
        %v2615 = vshll.u32 %v2614, 23
        %v2616 = vor.u32 4788187, %v2615
        %v2617 = vand.u32 2147483647, %v2616
        %v2619 = vcvt.s32.f32 %v2612
        %v2620 = vmul.f32 %v2619, %v2617
        %v2621 = vxor.u32 %v2620, 2147483648
        %v2622 = vsel %vm2539, %v2621, %v2620
        %v2623 = vsub.s32 4, %v2599
        %v2624 = vsel %vm2539, %v2623, %v2599
        %v2625 = vsel %vm2538, %v1042, %v2622
        %v2626 = vsel %vm2538, 0, %v2624
        %v2627 = vcosq.f32.pop %v2625
        %v2628 = vsinq.f32.pop %v2625
        %vm2629 = vweird.f32 %v1042
        %v2630 = vand.u32 %v2626, 3
        %vm2631 = vcmp.lt.s32.totalorder %v2630, 2
        %vm2632 = vcmp.eq.s32.totalorder %v2630, 0
        %v2633 = vxor.u32 %v2628, 2147483648
        %v2634 = vsel %vm2632, %v2627, %v2633
        %vm2635 = vcmp.eq.s32.totalorder %v2630, 2
        %v2636 = vxor.u32 %v2627, 2147483648
        %v2637 = vsel %vm2635, %v2636, %v2628
        %v2638 = vsel %vm2631, %v2634, %v2637
        %v2639 = vsel %vm2629, nan, %v2638
        %v2640 = vand.u32 2147483647, %v1044
        %vm2641 = vcmp.le.f32.partialorder %v2640, 0.7853982
        %vm2642 = vcmp.lt.s32.totalorder %v1044, 0
        %v2643 = vand.u32 %v1044, 2139095040
        %v2644 = vshrl.u32 %v2643, 23
        %v2645 = vsub.s32 %v2644, 127
        %v2646 = vand.u32 2147483647, %v1044
        %v2647 = vand.u32 %v2646, 8388607
        %v2648 = vor.u32 %v2647, 8388608
        %v2649 = vsub.s32 0, %v2648
        %v2650 = vadd.s32 %v2645, 1
        %vm2651 = vcmp.gt.s32.totalorder %v2650, 0
        %v2652 = vsel %vm2651, %v2650, 0
        %v2653 = vshrl.u32 %v2652, 5
        %v2654 = vand.u32 %v2652, 31
        %v2655 = vsub.s32 32, %v2654
        %v2656 = vshrl.u32 683565275, %v2655
        %v2657 = vshll.u32 683565275, %v2654
        %v2658 = vshrl.u32 2475754826, %v2655
        %v2659 = vor.u32 %v2657, %v2658
        %v2660 = vshll.u32 2475754826, %v2654
        %v2661 = vshrl.u32 2131351028, %v2655
        %v2662 = vor.u32 %v2660, %v2661
        %v2663 = vshll.u32 2131351028, %v2654
        %v2664 = vshrl.u32 2102212464, %v2655
        %v2665 = vor.u32 %v2663, %v2664
        %v2666 = vshll.u32 2102212464, %v2654
        %v2667 = vshrl.u32 920167782, %v2655
        %v2668 = vor.u32 %v2666, %v2667
        %v2669 = vshll.u32 920167782, %v2654
        %v2670 = vshrl.u32 1326507024, %v2655
        %v2671 = vor.u32 %v2669, %v2670
        %vm2672 = vcmp.lt.s32.totalorder %v2653, 1
        %vm2673 = vcmp.lt.s32.totalorder %v2653, 2
        %vm2674 = vcmp.lt.s32.totalorder %v2653, 3
        %vm2675 = vcmp.lt.s32.totalorder %v2653, 4
        %v2676 = vsel %vm2672, %v2656, %v2659
        %v2677 = vsel %vm2675, %v2665, 2102212464
        %v2678 = vsel %vm2674, %v2662, %v2677
        %v2679 = vsel %vm2673, %v2676, %v2678
        %v2680 = vsel %vm2672, %v2659, %v2662
        %v2681 = vsel %vm2675, %v2668, 920167782
        %v2682 = vsel %vm2674, %v2665, %v2681
        %v2683 = vsel %vm2673, %v2680, %v2682
        %v2684 = vsel %vm2672, %v2662, %v2665
        %v2685 = vsel %vm2675, %v2671, 1326507024
        %v2686 = vsel %vm2674, %v2668, %v2685
        %v2687 = vsel %vm2673, %v2684, %v2686
        %v2688 = vshll.u32 %v2648, 8
        %v2689 = vmul.u32.u64.compose %v2688, %v2687
        %v2690 = vextract.low.u32 %v2689
        %v2691 = vextract.high.u32 %v2689
        %v2692 = vmul.u32.u64.compose %v2688, %v2683
        %v2693 = vextract.low.u32 %v2692
        %v2694 = vextract.high.u32 %v2692
        %v2695 = vmul.u32 %v2688, %v2679
        %v2696 = vadd.s32 %v2691, %v2693
        %vm2697 = vc.u32 %v2691, %v2693
        %v2698 = vadd.s32 %v2694, 1
        %v2699 = vsel %vm2697, %v2698, %v2694
        %v2700 = vadd.s32 %v2695, %v2699
        %v2701 = vadd.s32 %v2700, 536870912
        %v2702 = vshrl.u32 %v2701, 30
        %v2703 = vshll.u32 %v2702, 30
        %v2704 = vsub.s32 %v2700, %v2703
        %vm2705 = vcmp.lt.s32.totalorder %v2704, 0
        %v2706 = vsub.s32 0, %v2704
        %v2707 = vsel %vm2705, %v2706, %v2704
        %v2708 = vclz %v2707
        %v2709 = vsub.s32 %v2708, 2
        %vm2710 = vcmp.gt.s32.totalorder 0, %v2709
        %v2711 = vsel %vm2710, 0, %v2709
        %v2712 = vsub.s32 32, %v2711
        %v2713 = vshll.u32 %v2704, %v2711
        %v2714 = vshrl.u32 %v2696, %v2712
        %v2715 = vor.u32 %v2713, %v2714
        %v2716 = vsub.s32 4294967266, %v2711
        %v2717 = vadd.s32 %v2716, 127
        %v2718 = vshll.u32 %v2717, 23
        %v2719 = vor.u32 4788187, %v2718
        %v2720 = vand.u32 2147483647, %v2719
        %v2722 = vcvt.s32.f32 %v2715
        %v2723 = vmul.f32 %v2722, %v2720
        %v2724 = vxor.u32 %v2723, 2147483648
        %v2725 = vsel %vm2642, %v2724, %v2723
        %v2726 = vsub.s32 4, %v2702
        %v2727 = vsel %vm2642, %v2726, %v2702
        %v2728 = vsel %vm2641, %v1044, %v2725
        %v2729 = vsel %vm2641, 0, %v2727
        %v2730 = vcosq.f32.pop %v2728
        %v2731 = vsinq.f32.pop %v2728
        %vm2732 = vweird.f32 %v1044
        %v2733 = vand.u32 %v2729, 3
        %vm2734 = vcmp.lt.s32.totalorder %v2733, 2
        %vm2735 = vcmp.eq.s32.totalorder %v2733, 0
        %v2736 = vxor.u32 %v2731, 2147483648
        %v2737 = vsel %vm2735, %v2730, %v2736
        %vm2738 = vcmp.eq.s32.totalorder %v2733, 2
        %v2739 = vxor.u32 %v2730, 2147483648
        %v2740 = vsel %vm2738, %v2739, %v2731
        %v2741 = vsel %vm2734, %v2737, %v2740
        %v2742 = vsel %vm2732, nan, %v2741
        %v2743 = vand.u32 2147483647, %v1048
        %vm2744 = vcmp.le.f32.partialorder %v2743, 0.7853982
        %vm2745 = vcmp.lt.s32.totalorder %v1048, 0
        %v2746 = vand.u32 %v1048, 2139095040
        %v2747 = vshrl.u32 %v2746, 23
        %v2748 = vsub.s32 %v2747, 127
        %v2749 = vand.u32 2147483647, %v1048
        %v2750 = vand.u32 %v2749, 8388607
        %v2751 = vor.u32 %v2750, 8388608
        %v2752 = vsub.s32 0, %v2751
        %v2753 = vadd.s32 %v2748, 1
        %vm2754 = vcmp.gt.s32.totalorder %v2753, 0
        %v2755 = vsel %vm2754, %v2753, 0
        %v2756 = vshrl.u32 %v2755, 5
        %v2757 = vand.u32 %v2755, 31
        %v2758 = vsub.s32 32, %v2757
        %v2759 = vshrl.u32 683565275, %v2758
        %v2760 = vshll.u32 683565275, %v2757
        %v2761 = vshrl.u32 2475754826, %v2758
        %v2762 = vor.u32 %v2760, %v2761
        %v2763 = vshll.u32 2475754826, %v2757
        %v2764 = vshrl.u32 2131351028, %v2758
        %v2765 = vor.u32 %v2763, %v2764
        %v2766 = vshll.u32 2131351028, %v2757
        %v2767 = vshrl.u32 2102212464, %v2758
        %v2768 = vor.u32 %v2766, %v2767
        %v2769 = vshll.u32 2102212464, %v2757
        %v2770 = vshrl.u32 920167782, %v2758
        %v2771 = vor.u32 %v2769, %v2770
        %v2772 = vshll.u32 920167782, %v2757
        %v2773 = vshrl.u32 1326507024, %v2758
        %v2774 = vor.u32 %v2772, %v2773
        %vm2775 = vcmp.lt.s32.totalorder %v2756, 1
        %vm2776 = vcmp.lt.s32.totalorder %v2756, 2
        %vm2777 = vcmp.lt.s32.totalorder %v2756, 3
        %vm2778 = vcmp.lt.s32.totalorder %v2756, 4
        %v2779 = vsel %vm2775, %v2759, %v2762
        %v2780 = vsel %vm2778, %v2768, 2102212464
        %v2781 = vsel %vm2777, %v2765, %v2780
        %v2782 = vsel %vm2776, %v2779, %v2781
        %v2783 = vsel %vm2775, %v2762, %v2765
        %v2784 = vsel %vm2778, %v2771, 920167782
        %v2785 = vsel %vm2777, %v2768, %v2784
        %v2786 = vsel %vm2776, %v2783, %v2785
        %v2787 = vsel %vm2775, %v2765, %v2768
        %v2788 = vsel %vm2778, %v2774, 1326507024
        %v2789 = vsel %vm2777, %v2771, %v2788
        %v2790 = vsel %vm2776, %v2787, %v2789
        %v2791 = vshll.u32 %v2751, 8
        %v2792 = vmul.u32.u64.compose %v2791, %v2790
        %v2793 = vextract.low.u32 %v2792
        %v2794 = vextract.high.u32 %v2792
        %v2795 = vmul.u32.u64.compose %v2791, %v2786
        %v2796 = vextract.low.u32 %v2795
        %v2797 = vextract.high.u32 %v2795
        %v2798 = vmul.u32 %v2791, %v2782
        %v2799 = vadd.s32 %v2794, %v2796
        %vm2800 = vc.u32 %v2794, %v2796
        %v2801 = vadd.s32 %v2797, 1
        %v2802 = vsel %vm2800, %v2801, %v2797
        %v2803 = vadd.s32 %v2798, %v2802
        %v2804 = vadd.s32 %v2803, 536870912
        %v2805 = vshrl.u32 %v2804, 30
        %v2806 = vshll.u32 %v2805, 30
        %v2807 = vsub.s32 %v2803, %v2806
        %vm2808 = vcmp.lt.s32.totalorder %v2807, 0
        %v2809 = vsub.s32 0, %v2807
        %v2810 = vsel %vm2808, %v2809, %v2807
        %v2811 = vclz %v2810
        %v2812 = vsub.s32 %v2811, 2
        %vm2813 = vcmp.gt.s32.totalorder 0, %v2812
        %v2814 = vsel %vm2813, 0, %v2812
        %v2815 = vsub.s32 32, %v2814
        %v2816 = vshll.u32 %v2807, %v2814
        %v2817 = vshrl.u32 %v2799, %v2815
        %v2818 = vor.u32 %v2816, %v2817
        %v2819 = vsub.s32 4294967266, %v2814
        %v2820 = vadd.s32 %v2819, 127
        %v2821 = vshll.u32 %v2820, 23
        %v2822 = vor.u32 4788187, %v2821
        %v2823 = vand.u32 2147483647, %v2822
        %v2825 = vcvt.s32.f32 %v2818
        %v2826 = vmul.f32 %v2825, %v2823
        %v2827 = vxor.u32 %v2826, 2147483648
        %v2828 = vsel %vm2745, %v2827, %v2826
        %v2829 = vsub.s32 4, %v2805
        %v2830 = vsel %vm2745, %v2829, %v2805
        %v2831 = vsel %vm2744, %v1048, %v2828
        %v2832 = vsel %vm2744, 0, %v2830
        %v2833 = vcosq.f32.pop %v2831
        %v2834 = vsinq.f32.pop %v2831
        %vm2835 = vweird.f32 %v1048
        %v2836 = vand.u32 %v2832, 3
        %vm2837 = vcmp.lt.s32.totalorder %v2836, 2
        %vm2838 = vcmp.eq.s32.totalorder %v2836, 0
        %v2839 = vxor.u32 %v2834, 2147483648
        %v2840 = vsel %vm2838, %v2833, %v2839
        %vm2841 = vcmp.eq.s32.totalorder %v2836, 2
        %v2842 = vxor.u32 %v2833, 2147483648
        %v2843 = vsel %vm2841, %v2842, %v2834
        %v2844 = vsel %vm2837, %v2840, %v2843
        %v2845 = vsel %vm2835, nan, %v2844
        %v2846 = vand.u32 2147483647, %v1050
        %vm2847 = vcmp.le.f32.partialorder %v2846, 0.7853982
        %vm2848 = vcmp.lt.s32.totalorder %v1050, 0
        %v2849 = vand.u32 %v1050, 2139095040
        %v2850 = vshrl.u32 %v2849, 23
        %v2851 = vsub.s32 %v2850, 127
        %v2852 = vand.u32 2147483647, %v1050
        %v2853 = vand.u32 %v2852, 8388607
        %v2854 = vor.u32 %v2853, 8388608
        %v2855 = vsub.s32 0, %v2854
        %v2856 = vadd.s32 %v2851, 1
        %vm2857 = vcmp.gt.s32.totalorder %v2856, 0
        %v2858 = vsel %vm2857, %v2856, 0
        %v2859 = vshrl.u32 %v2858, 5
        %v2860 = vand.u32 %v2858, 31
        %v2861 = vsub.s32 32, %v2860
        %v2862 = vshrl.u32 683565275, %v2861
        %v2863 = vshll.u32 683565275, %v2860
        %v2864 = vshrl.u32 2475754826, %v2861
        %v2865 = vor.u32 %v2863, %v2864
        %v2866 = vshll.u32 2475754826, %v2860
        %v2867 = vshrl.u32 2131351028, %v2861
        %v2868 = vor.u32 %v2866, %v2867
        %v2869 = vshll.u32 2131351028, %v2860
        %v2870 = vshrl.u32 2102212464, %v2861
        %v2871 = vor.u32 %v2869, %v2870
        %v2872 = vshll.u32 2102212464, %v2860
        %v2873 = vshrl.u32 920167782, %v2861
        %v2874 = vor.u32 %v2872, %v2873
        %v2875 = vshll.u32 920167782, %v2860
        %v2876 = vshrl.u32 1326507024, %v2861
        %v2877 = vor.u32 %v2875, %v2876
        %vm2878 = vcmp.lt.s32.totalorder %v2859, 1
        %vm2879 = vcmp.lt.s32.totalorder %v2859, 2
        %vm2880 = vcmp.lt.s32.totalorder %v2859, 3
        %vm2881 = vcmp.lt.s32.totalorder %v2859, 4
        %v2882 = vsel %vm2878, %v2862, %v2865
        %v2883 = vsel %vm2881, %v2871, 2102212464
        %v2884 = vsel %vm2880, %v2868, %v2883
        %v2885 = vsel %vm2879, %v2882, %v2884
        %v2886 = vsel %vm2878, %v2865, %v2868
        %v2887 = vsel %vm2881, %v2874, 920167782
        %v2888 = vsel %vm2880, %v2871, %v2887
        %v2889 = vsel %vm2879, %v2886, %v2888
        %v2890 = vsel %vm2878, %v2868, %v2871
        %v2891 = vsel %vm2881, %v2877, 1326507024
        %v2892 = vsel %vm2880, %v2874, %v2891
        %v2893 = vsel %vm2879, %v2890, %v2892
        %v2894 = vshll.u32 %v2854, 8
        %v2895 = vmul.u32.u64.compose %v2894, %v2893
        %v2896 = vextract.low.u32 %v2895
        %v2897 = vextract.high.u32 %v2895
        %v2898 = vmul.u32.u64.compose %v2894, %v2889
        %v2899 = vextract.low.u32 %v2898
        %v2900 = vextract.high.u32 %v2898
        %v2901 = vmul.u32 %v2894, %v2885
        %v2902 = vadd.s32 %v2897, %v2899
        %vm2903 = vc.u32 %v2897, %v2899
        %v2904 = vadd.s32 %v2900, 1
        %v2905 = vsel %vm2903, %v2904, %v2900
        %v2906 = vadd.s32 %v2901, %v2905
        %v2907 = vadd.s32 %v2906, 536870912
        %v2908 = vshrl.u32 %v2907, 30
        %v2909 = vshll.u32 %v2908, 30
        %v2910 = vsub.s32 %v2906, %v2909
        %vm2911 = vcmp.lt.s32.totalorder %v2910, 0
        %v2912 = vsub.s32 0, %v2910
        %v2913 = vsel %vm2911, %v2912, %v2910
        %v2914 = vclz %v2913
        %v2915 = vsub.s32 %v2914, 2
        %vm2916 = vcmp.gt.s32.totalorder 0, %v2915
        %v2917 = vsel %vm2916, 0, %v2915
        %v2918 = vsub.s32 32, %v2917
        %v2919 = vshll.u32 %v2910, %v2917
        %v2920 = vshrl.u32 %v2902, %v2918
        %v2921 = vor.u32 %v2919, %v2920
        %v2922 = vsub.s32 4294967266, %v2917
        %v2923 = vadd.s32 %v2922, 127
        %v2924 = vshll.u32 %v2923, 23
        %v2925 = vor.u32 4788187, %v2924
        %v2926 = vand.u32 2147483647, %v2925
        %v2928 = vcvt.s32.f32 %v2921
        %v2929 = vmul.f32 %v2928, %v2926
        %v2930 = vxor.u32 %v2929, 2147483648
        %v2931 = vsel %vm2848, %v2930, %v2929
        %v2932 = vsub.s32 4, %v2908
        %v2933 = vsel %vm2848, %v2932, %v2908
        %v2934 = vsel %vm2847, %v1050, %v2931
        %v2935 = vsel %vm2847, 0, %v2933
        %v2936 = vcosq.f32.pop %v2934
        %v2937 = vsinq.f32.pop %v2934
        %vm2938 = vweird.f32 %v1050
        %v2939 = vand.u32 %v2935, 3
        %vm2940 = vcmp.lt.s32.totalorder %v2939, 2
        %vm2941 = vcmp.eq.s32.totalorder %v2939, 0
        %v2942 = vxor.u32 %v2937, 2147483648
        %v2943 = vsel %vm2941, %v2936, %v2942
        %vm2944 = vcmp.eq.s32.totalorder %v2939, 2
        %v2945 = vxor.u32 %v2936, 2147483648
        %v2946 = vsel %vm2944, %v2945, %v2937
        %v2947 = vsel %vm2940, %v2943, %v2946
        %v2948 = vsel %vm2938, nan, %v2947
        %v2949 = vand.u32 2147483647, %v1054
        %vm2950 = vcmp.le.f32.partialorder %v2949, 0.7853982
        %vm2951 = vcmp.lt.s32.totalorder %v1054, 0
        %v2952 = vand.u32 %v1054, 2139095040
        %v2953 = vshrl.u32 %v2952, 23
        %v2954 = vsub.s32 %v2953, 127
        %v2955 = vand.u32 2147483647, %v1054
        %v2956 = vand.u32 %v2955, 8388607
        %v2957 = vor.u32 %v2956, 8388608
        %v2958 = vsub.s32 0, %v2957
        %v2959 = vadd.s32 %v2954, 1
        %vm2960 = vcmp.gt.s32.totalorder %v2959, 0
        %v2961 = vsel %vm2960, %v2959, 0
        %v2962 = vshrl.u32 %v2961, 5
        %v2963 = vand.u32 %v2961, 31
        %v2964 = vsub.s32 32, %v2963
        %v2965 = vshrl.u32 683565275, %v2964
        %v2966 = vshll.u32 683565275, %v2963
        %v2967 = vshrl.u32 2475754826, %v2964
        %v2968 = vor.u32 %v2966, %v2967
        %v2969 = vshll.u32 2475754826, %v2963
        %v2970 = vshrl.u32 2131351028, %v2964
        %v2971 = vor.u32 %v2969, %v2970
        %v2972 = vshll.u32 2131351028, %v2963
        %v2973 = vshrl.u32 2102212464, %v2964
        %v2974 = vor.u32 %v2972, %v2973
        %v2975 = vshll.u32 2102212464, %v2963
        %v2976 = vshrl.u32 920167782, %v2964
        %v2977 = vor.u32 %v2975, %v2976
        %v2978 = vshll.u32 920167782, %v2963
        %v2979 = vshrl.u32 1326507024, %v2964
        %v2980 = vor.u32 %v2978, %v2979
        %vm2981 = vcmp.lt.s32.totalorder %v2962, 1
        %vm2982 = vcmp.lt.s32.totalorder %v2962, 2
        %vm2983 = vcmp.lt.s32.totalorder %v2962, 3
        %vm2984 = vcmp.lt.s32.totalorder %v2962, 4
        %v2985 = vsel %vm2981, %v2965, %v2968
        %v2986 = vsel %vm2984, %v2974, 2102212464
        %v2987 = vsel %vm2983, %v2971, %v2986
        %v2988 = vsel %vm2982, %v2985, %v2987
        %v2989 = vsel %vm2981, %v2968, %v2971
        %v2990 = vsel %vm2984, %v2977, 920167782
        %v2991 = vsel %vm2983, %v2974, %v2990
        %v2992 = vsel %vm2982, %v2989, %v2991
        %v2993 = vsel %vm2981, %v2971, %v2974
        %v2994 = vsel %vm2984, %v2980, 1326507024
        %v2995 = vsel %vm2983, %v2977, %v2994
        %v2996 = vsel %vm2982, %v2993, %v2995
        %v2997 = vshll.u32 %v2957, 8
        %v2998 = vmul.u32.u64.compose %v2997, %v2996
        %v2999 = vextract.low.u32 %v2998
        %v3000 = vextract.high.u32 %v2998
        %v3001 = vmul.u32.u64.compose %v2997, %v2992
        %v3002 = vextract.low.u32 %v3001
        %v3003 = vextract.high.u32 %v3001
        %v3004 = vmul.u32 %v2997, %v2988
        %v3005 = vadd.s32 %v3000, %v3002
        %vm3006 = vc.u32 %v3000, %v3002
        %v3007 = vadd.s32 %v3003, 1
        %v3008 = vsel %vm3006, %v3007, %v3003
        %v3009 = vadd.s32 %v3004, %v3008
        %v3010 = vadd.s32 %v3009, 536870912
        %v3011 = vshrl.u32 %v3010, 30
        %v3012 = vshll.u32 %v3011, 30
        %v3013 = vsub.s32 %v3009, %v3012
        %vm3014 = vcmp.lt.s32.totalorder %v3013, 0
        %v3015 = vsub.s32 0, %v3013
        %v3016 = vsel %vm3014, %v3015, %v3013
        %v3017 = vclz %v3016
        %v3018 = vsub.s32 %v3017, 2
        %vm3019 = vcmp.gt.s32.totalorder 0, %v3018
        %v3020 = vsel %vm3019, 0, %v3018
        %v3021 = vsub.s32 32, %v3020
        %v3022 = vshll.u32 %v3013, %v3020
        %v3023 = vshrl.u32 %v3005, %v3021
        %v3024 = vor.u32 %v3022, %v3023
        %v3025 = vsub.s32 4294967266, %v3020
        %v3026 = vadd.s32 %v3025, 127
        %v3027 = vshll.u32 %v3026, 23
        %v3028 = vor.u32 4788187, %v3027
        %v3029 = vand.u32 2147483647, %v3028
        %v3031 = vcvt.s32.f32 %v3024
        %v3032 = vmul.f32 %v3031, %v3029
        %v3033 = vxor.u32 %v3032, 2147483648
        %v3034 = vsel %vm2951, %v3033, %v3032
        %v3035 = vsub.s32 4, %v3011
        %v3036 = vsel %vm2951, %v3035, %v3011
        %v3037 = vsel %vm2950, %v1054, %v3034
        %v3038 = vsel %vm2950, 0, %v3036
        %v3039 = vcosq.f32.pop %v3037
        %v3040 = vsinq.f32.pop %v3037
        %vm3041 = vweird.f32 %v1054
        %v3042 = vand.u32 %v3038, 3
        %vm3043 = vcmp.lt.s32.totalorder %v3042, 2
        %vm3044 = vcmp.eq.s32.totalorder %v3042, 0
        %v3045 = vxor.u32 %v3040, 2147483648
        %v3046 = vsel %vm3044, %v3039, %v3045
        %vm3047 = vcmp.eq.s32.totalorder %v3042, 2
        %v3048 = vxor.u32 %v3039, 2147483648
        %v3049 = vsel %vm3047, %v3048, %v3040
        %v3050 = vsel %vm3043, %v3046, %v3049
        %v3051 = vsel %vm3041, nan, %v3050
        %v3052 = vand.u32 2147483647, %v1056
        %vm3053 = vcmp.le.f32.partialorder %v3052, 0.7853982
        %vm3054 = vcmp.lt.s32.totalorder %v1056, 0
        %v3055 = vand.u32 %v1056, 2139095040
        %v3056 = vshrl.u32 %v3055, 23
        %v3057 = vsub.s32 %v3056, 127
        %v3058 = vand.u32 2147483647, %v1056
        %v3059 = vand.u32 %v3058, 8388607
        %v3060 = vor.u32 %v3059, 8388608
        %v3061 = vsub.s32 0, %v3060
        %v3062 = vadd.s32 %v3057, 1
        %vm3063 = vcmp.gt.s32.totalorder %v3062, 0
        %v3064 = vsel %vm3063, %v3062, 0
        %v3065 = vshrl.u32 %v3064, 5
        %v3066 = vand.u32 %v3064, 31
        %v3067 = vsub.s32 32, %v3066
        %v3068 = vshrl.u32 683565275, %v3067
        %v3069 = vshll.u32 683565275, %v3066
        %v3070 = vshrl.u32 2475754826, %v3067
        %v3071 = vor.u32 %v3069, %v3070
        %v3072 = vshll.u32 2475754826, %v3066
        %v3073 = vshrl.u32 2131351028, %v3067
        %v3074 = vor.u32 %v3072, %v3073
        %v3075 = vshll.u32 2131351028, %v3066
        %v3076 = vshrl.u32 2102212464, %v3067
        %v3077 = vor.u32 %v3075, %v3076
        %v3078 = vshll.u32 2102212464, %v3066
        %v3079 = vshrl.u32 920167782, %v3067
        %v3080 = vor.u32 %v3078, %v3079
        %v3081 = vshll.u32 920167782, %v3066
        %v3082 = vshrl.u32 1326507024, %v3067
        %v3083 = vor.u32 %v3081, %v3082
        %vm3084 = vcmp.lt.s32.totalorder %v3065, 1
        %vm3085 = vcmp.lt.s32.totalorder %v3065, 2
        %vm3086 = vcmp.lt.s32.totalorder %v3065, 3
        %vm3087 = vcmp.lt.s32.totalorder %v3065, 4
        %v3088 = vsel %vm3084, %v3068, %v3071
        %v3089 = vsel %vm3087, %v3077, 2102212464
        %v3090 = vsel %vm3086, %v3074, %v3089
        %v3091 = vsel %vm3085, %v3088, %v3090
        %v3092 = vsel %vm3084, %v3071, %v3074
        %v3093 = vsel %vm3087, %v3080, 920167782
        %v3094 = vsel %vm3086, %v3077, %v3093
        %v3095 = vsel %vm3085, %v3092, %v3094
        %v3096 = vsel %vm3084, %v3074, %v3077
        %v3097 = vsel %vm3087, %v3083, 1326507024
        %v3098 = vsel %vm3086, %v3080, %v3097
        %v3099 = vsel %vm3085, %v3096, %v3098
        %v3100 = vshll.u32 %v3060, 8
        %v3101 = vmul.u32.u64.compose %v3100, %v3099
        %v3102 = vextract.low.u32 %v3101
        %v3103 = vextract.high.u32 %v3101
        %v3104 = vmul.u32.u64.compose %v3100, %v3095
        %v3105 = vextract.low.u32 %v3104
        %v3106 = vextract.high.u32 %v3104
        %v3107 = vmul.u32 %v3100, %v3091
        %v3108 = vadd.s32 %v3103, %v3105
        %vm3109 = vc.u32 %v3103, %v3105
        %v3110 = vadd.s32 %v3106, 1
        %v3111 = vsel %vm3109, %v3110, %v3106
        %v3112 = vadd.s32 %v3107, %v3111
        %v3113 = vadd.s32 %v3112, 536870912
        %v3114 = vshrl.u32 %v3113, 30
        %v3115 = vshll.u32 %v3114, 30
        %v3116 = vsub.s32 %v3112, %v3115
        %vm3117 = vcmp.lt.s32.totalorder %v3116, 0
        %v3118 = vsub.s32 0, %v3116
        %v3119 = vsel %vm3117, %v3118, %v3116
        %v3120 = vclz %v3119
        %v3121 = vsub.s32 %v3120, 2
        %vm3122 = vcmp.gt.s32.totalorder 0, %v3121
        %v3123 = vsel %vm3122, 0, %v3121
        %v3124 = vsub.s32 32, %v3123
        %v3125 = vshll.u32 %v3116, %v3123
        %v3126 = vshrl.u32 %v3108, %v3124
        %v3127 = vor.u32 %v3125, %v3126
        %v3128 = vsub.s32 4294967266, %v3123
        %v3129 = vadd.s32 %v3128, 127
        %v3130 = vshll.u32 %v3129, 23
        %v3131 = vor.u32 4788187, %v3130
        %v3132 = vand.u32 2147483647, %v3131
        %v3134 = vcvt.s32.f32 %v3127
        %v3135 = vmul.f32 %v3134, %v3132
        %v3136 = vxor.u32 %v3135, 2147483648
        %v3137 = vsel %vm3054, %v3136, %v3135
        %v3138 = vsub.s32 4, %v3114
        %v3139 = vsel %vm3054, %v3138, %v3114
        %v3140 = vsel %vm3053, %v1056, %v3137
        %v3141 = vsel %vm3053, 0, %v3139
        %v3142 = vcosq.f32.pop %v3140
        %v3143 = vsinq.f32.pop %v3140
        %vm3144 = vweird.f32 %v1056
        %v3145 = vand.u32 %v3141, 3
        %vm3146 = vcmp.lt.s32.totalorder %v3145, 2
        %vm3147 = vcmp.eq.s32.totalorder %v3145, 0
        %v3148 = vxor.u32 %v3143, 2147483648
        %v3149 = vsel %vm3147, %v3142, %v3148
        %vm3150 = vcmp.eq.s32.totalorder %v3145, 2
        %v3151 = vxor.u32 %v3142, 2147483648
        %v3152 = vsel %vm3150, %v3151, %v3143
        %v3153 = vsel %vm3146, %v3149, %v3152
        %v3154 = vsel %vm3144, nan, %v3153
        %v3155 = vand.u32 2147483647, %v1060
        %vm3156 = vcmp.le.f32.partialorder %v3155, 0.7853982
        %vm3157 = vcmp.lt.s32.totalorder %v1060, 0
        %v3158 = vand.u32 %v1060, 2139095040
        %v3159 = vshrl.u32 %v3158, 23
        %v3160 = vsub.s32 %v3159, 127
        %v3161 = vand.u32 2147483647, %v1060
        %v3162 = vand.u32 %v3161, 8388607
        %v3163 = vor.u32 %v3162, 8388608
        %v3164 = vsub.s32 0, %v3163
        %v3165 = vadd.s32 %v3160, 1
        %vm3166 = vcmp.gt.s32.totalorder %v3165, 0
        %v3167 = vsel %vm3166, %v3165, 0
        %v3168 = vshrl.u32 %v3167, 5
        %v3169 = vand.u32 %v3167, 31
        %v3170 = vsub.s32 32, %v3169
        %v3171 = vshrl.u32 683565275, %v3170
        %v3172 = vshll.u32 683565275, %v3169
        %v3173 = vshrl.u32 2475754826, %v3170
        %v3174 = vor.u32 %v3172, %v3173
        %v3175 = vshll.u32 2475754826, %v3169
        %v3176 = vshrl.u32 2131351028, %v3170
        %v3177 = vor.u32 %v3175, %v3176
        %v3178 = vshll.u32 2131351028, %v3169
        %v3179 = vshrl.u32 2102212464, %v3170
        %v3180 = vor.u32 %v3178, %v3179
        %v3181 = vshll.u32 2102212464, %v3169
        %v3182 = vshrl.u32 920167782, %v3170
        %v3183 = vor.u32 %v3181, %v3182
        %v3184 = vshll.u32 920167782, %v3169
        %v3185 = vshrl.u32 1326507024, %v3170
        %v3186 = vor.u32 %v3184, %v3185
        %vm3187 = vcmp.lt.s32.totalorder %v3168, 1
        %vm3188 = vcmp.lt.s32.totalorder %v3168, 2
        %vm3189 = vcmp.lt.s32.totalorder %v3168, 3
        %vm3190 = vcmp.lt.s32.totalorder %v3168, 4
        %v3191 = vsel %vm3187, %v3171, %v3174
        %v3192 = vsel %vm3190, %v3180, 2102212464
        %v3193 = vsel %vm3189, %v3177, %v3192
        %v3194 = vsel %vm3188, %v3191, %v3193
        %v3195 = vsel %vm3187, %v3174, %v3177
        %v3196 = vsel %vm3190, %v3183, 920167782
        %v3197 = vsel %vm3189, %v3180, %v3196
        %v3198 = vsel %vm3188, %v3195, %v3197
        %v3199 = vsel %vm3187, %v3177, %v3180
        %v3200 = vsel %vm3190, %v3186, 1326507024
        %v3201 = vsel %vm3189, %v3183, %v3200
        %v3202 = vsel %vm3188, %v3199, %v3201
        %v3203 = vshll.u32 %v3163, 8
        %v3204 = vmul.u32.u64.compose %v3203, %v3202
        %v3205 = vextract.low.u32 %v3204
        %v3206 = vextract.high.u32 %v3204
        %v3207 = vmul.u32.u64.compose %v3203, %v3198
        %v3208 = vextract.low.u32 %v3207
        %v3209 = vextract.high.u32 %v3207
        %v3210 = vmul.u32 %v3203, %v3194
        %v3211 = vadd.s32 %v3206, %v3208
        %vm3212 = vc.u32 %v3206, %v3208
        %v3213 = vadd.s32 %v3209, 1
        %v3214 = vsel %vm3212, %v3213, %v3209
        %v3215 = vadd.s32 %v3210, %v3214
        %v3216 = vadd.s32 %v3215, 536870912
        %v3217 = vshrl.u32 %v3216, 30
        %v3218 = vshll.u32 %v3217, 30
        %v3219 = vsub.s32 %v3215, %v3218
        %vm3220 = vcmp.lt.s32.totalorder %v3219, 0
        %v3221 = vsub.s32 0, %v3219
        %v3222 = vsel %vm3220, %v3221, %v3219
        %v3223 = vclz %v3222
        %v3224 = vsub.s32 %v3223, 2
        %vm3225 = vcmp.gt.s32.totalorder 0, %v3224
        %v3226 = vsel %vm3225, 0, %v3224
        %v3227 = vsub.s32 32, %v3226
        %v3228 = vshll.u32 %v3219, %v3226
        %v3229 = vshrl.u32 %v3211, %v3227
        %v3230 = vor.u32 %v3228, %v3229
        %v3231 = vsub.s32 4294967266, %v3226
        %v3232 = vadd.s32 %v3231, 127
        %v3233 = vshll.u32 %v3232, 23
        %v3234 = vor.u32 4788187, %v3233
        %v3235 = vand.u32 2147483647, %v3234
        %v3237 = vcvt.s32.f32 %v3230
        %v3238 = vmul.f32 %v3237, %v3235
        %v3239 = vxor.u32 %v3238, 2147483648
        %v3240 = vsel %vm3157, %v3239, %v3238
        %v3241 = vsub.s32 4, %v3217
        %v3242 = vsel %vm3157, %v3241, %v3217
        %v3243 = vsel %vm3156, %v1060, %v3240
        %v3244 = vsel %vm3156, 0, %v3242
        %v3245 = vcosq.f32.pop %v3243
        %v3246 = vsinq.f32.pop %v3243
        %vm3247 = vweird.f32 %v1060
        %v3248 = vand.u32 %v3244, 3
        %vm3249 = vcmp.lt.s32.totalorder %v3248, 2
        %vm3250 = vcmp.eq.s32.totalorder %v3248, 0
        %v3251 = vxor.u32 %v3246, 2147483648
        %v3252 = vsel %vm3250, %v3245, %v3251
        %vm3253 = vcmp.eq.s32.totalorder %v3248, 2
        %v3254 = vxor.u32 %v3245, 2147483648
        %v3255 = vsel %vm3253, %v3254, %v3246
        %v3256 = vsel %vm3249, %v3252, %v3255
        %v3257 = vsel %vm3247, nan, %v3256
        %v3258 = vand.u32 2147483647, %v1062
        %vm3259 = vcmp.le.f32.partialorder %v3258, 0.7853982
        %vm3260 = vcmp.lt.s32.totalorder %v1062, 0
        %v3261 = vand.u32 %v1062, 2139095040
        %v3262 = vshrl.u32 %v3261, 23
        %v3263 = vsub.s32 %v3262, 127
        %v3264 = vand.u32 2147483647, %v1062
        %v3265 = vand.u32 %v3264, 8388607
        %v3266 = vor.u32 %v3265, 8388608
        %v3267 = vsub.s32 0, %v3266
        %v3268 = vadd.s32 %v3263, 1
        %vm3269 = vcmp.gt.s32.totalorder %v3268, 0
        %v3270 = vsel %vm3269, %v3268, 0
        %v3271 = vshrl.u32 %v3270, 5
        %v3272 = vand.u32 %v3270, 31
        %v3273 = vsub.s32 32, %v3272
        %v3274 = vshrl.u32 683565275, %v3273
        %v3275 = vshll.u32 683565275, %v3272
        %v3276 = vshrl.u32 2475754826, %v3273
        %v3277 = vor.u32 %v3275, %v3276
        %v3278 = vshll.u32 2475754826, %v3272
        %v3279 = vshrl.u32 2131351028, %v3273
        %v3280 = vor.u32 %v3278, %v3279
        %v3281 = vshll.u32 2131351028, %v3272
        %v3282 = vshrl.u32 2102212464, %v3273
        %v3283 = vor.u32 %v3281, %v3282
        %v3284 = vshll.u32 2102212464, %v3272
        %v3285 = vshrl.u32 920167782, %v3273
        %v3286 = vor.u32 %v3284, %v3285
        %v3287 = vshll.u32 920167782, %v3272
        %v3288 = vshrl.u32 1326507024, %v3273
        %v3289 = vor.u32 %v3287, %v3288
        %vm3290 = vcmp.lt.s32.totalorder %v3271, 1
        %vm3291 = vcmp.lt.s32.totalorder %v3271, 2
        %vm3292 = vcmp.lt.s32.totalorder %v3271, 3
        %vm3293 = vcmp.lt.s32.totalorder %v3271, 4
        %v3294 = vsel %vm3290, %v3274, %v3277
        %v3295 = vsel %vm3293, %v3283, 2102212464
        %v3296 = vsel %vm3292, %v3280, %v3295
        %v3297 = vsel %vm3291, %v3294, %v3296
        %v3298 = vsel %vm3290, %v3277, %v3280
        %v3299 = vsel %vm3293, %v3286, 920167782
        %v3300 = vsel %vm3292, %v3283, %v3299
        %v3301 = vsel %vm3291, %v3298, %v3300
        %v3302 = vsel %vm3290, %v3280, %v3283
        %v3303 = vsel %vm3293, %v3289, 1326507024
        %v3304 = vsel %vm3292, %v3286, %v3303
        %v3305 = vsel %vm3291, %v3302, %v3304
        %v3306 = vshll.u32 %v3266, 8
        %v3307 = vmul.u32.u64.compose %v3306, %v3305
        %v3308 = vextract.low.u32 %v3307
        %v3309 = vextract.high.u32 %v3307
        %v3310 = vmul.u32.u64.compose %v3306, %v3301
        %v3311 = vextract.low.u32 %v3310
        %v3312 = vextract.high.u32 %v3310
        %v3313 = vmul.u32 %v3306, %v3297
        %v3314 = vadd.s32 %v3309, %v3311
        %vm3315 = vc.u32 %v3309, %v3311
        %v3316 = vadd.s32 %v3312, 1
        %v3317 = vsel %vm3315, %v3316, %v3312
        %v3318 = vadd.s32 %v3313, %v3317
        %v3319 = vadd.s32 %v3318, 536870912
        %v3320 = vshrl.u32 %v3319, 30
        %v3321 = vshll.u32 %v3320, 30
        %v3322 = vsub.s32 %v3318, %v3321
        %vm3323 = vcmp.lt.s32.totalorder %v3322, 0
        %v3324 = vsub.s32 0, %v3322
        %v3325 = vsel %vm3323, %v3324, %v3322
        %v3326 = vclz %v3325
        %v3327 = vsub.s32 %v3326, 2
        %vm3328 = vcmp.gt.s32.totalorder 0, %v3327
        %v3329 = vsel %vm3328, 0, %v3327
        %v3330 = vsub.s32 32, %v3329
        %v3331 = vshll.u32 %v3322, %v3329
        %v3332 = vshrl.u32 %v3314, %v3330
        %v3333 = vor.u32 %v3331, %v3332
        %v3334 = vsub.s32 4294967266, %v3329
        %v3335 = vadd.s32 %v3334, 127
        %v3336 = vshll.u32 %v3335, 23
        %v3337 = vor.u32 4788187, %v3336
        %v3338 = vand.u32 2147483647, %v3337
        %v3340 = vcvt.s32.f32 %v3333
        %v3341 = vmul.f32 %v3340, %v3338
        %v3342 = vxor.u32 %v3341, 2147483648
        %v3343 = vsel %vm3260, %v3342, %v3341
        %v3344 = vsub.s32 4, %v3320
        %v3345 = vsel %vm3260, %v3344, %v3320
        %v3346 = vsel %vm3259, %v1062, %v3343
        %v3347 = vsel %vm3259, 0, %v3345
        %v3348 = vcosq.f32.pop %v3346
        %v3349 = vsinq.f32.pop %v3346
        %vm3350 = vweird.f32 %v1062
        %v3351 = vand.u32 %v3347, 3
        %vm3352 = vcmp.lt.s32.totalorder %v3351, 2
        %vm3353 = vcmp.eq.s32.totalorder %v3351, 0
        %v3354 = vxor.u32 %v3349, 2147483648
        %v3355 = vsel %vm3353, %v3348, %v3354
        %vm3356 = vcmp.eq.s32.totalorder %v3351, 2
        %v3357 = vxor.u32 %v3348, 2147483648
        %v3358 = vsel %vm3356, %v3357, %v3349
        %v3359 = vsel %vm3352, %v3355, %v3358
        %v3360 = vsel %vm3350, nan, %v3359
        %v3361 = vand.u32 2147483647, %v1066
        %vm3362 = vcmp.le.f32.partialorder %v3361, 0.7853982
        %vm3363 = vcmp.lt.s32.totalorder %v1066, 0
        %v3364 = vand.u32 %v1066, 2139095040
        %v3365 = vshrl.u32 %v3364, 23
        %v3366 = vsub.s32 %v3365, 127
        %v3367 = vand.u32 2147483647, %v1066
        %v3368 = vand.u32 %v3367, 8388607
        %v3369 = vor.u32 %v3368, 8388608
        %v3370 = vsub.s32 0, %v3369
        %v3371 = vadd.s32 %v3366, 1
        %vm3372 = vcmp.gt.s32.totalorder %v3371, 0
        %v3373 = vsel %vm3372, %v3371, 0
        %v3374 = vshrl.u32 %v3373, 5
        %v3375 = vand.u32 %v3373, 31
        %v3376 = vsub.s32 32, %v3375
        %v3377 = vshrl.u32 683565275, %v3376
        %v3378 = vshll.u32 683565275, %v3375
        %v3379 = vshrl.u32 2475754826, %v3376
        %v3380 = vor.u32 %v3378, %v3379
        %v3381 = vshll.u32 2475754826, %v3375
        %v3382 = vshrl.u32 2131351028, %v3376
        %v3383 = vor.u32 %v3381, %v3382
        %v3384 = vshll.u32 2131351028, %v3375
        %v3385 = vshrl.u32 2102212464, %v3376
        %v3386 = vor.u32 %v3384, %v3385
        %v3387 = vshll.u32 2102212464, %v3375
        %v3388 = vshrl.u32 920167782, %v3376
        %v3389 = vor.u32 %v3387, %v3388
        %v3390 = vshll.u32 920167782, %v3375
        %v3391 = vshrl.u32 1326507024, %v3376
        %v3392 = vor.u32 %v3390, %v3391
        %vm3393 = vcmp.lt.s32.totalorder %v3374, 1
        %vm3394 = vcmp.lt.s32.totalorder %v3374, 2
        %vm3395 = vcmp.lt.s32.totalorder %v3374, 3
        %vm3396 = vcmp.lt.s32.totalorder %v3374, 4
        %v3397 = vsel %vm3393, %v3377, %v3380
        %v3398 = vsel %vm3396, %v3386, 2102212464
        %v3399 = vsel %vm3395, %v3383, %v3398
        %v3400 = vsel %vm3394, %v3397, %v3399
        %v3401 = vsel %vm3393, %v3380, %v3383
        %v3402 = vsel %vm3396, %v3389, 920167782
        %v3403 = vsel %vm3395, %v3386, %v3402
        %v3404 = vsel %vm3394, %v3401, %v3403
        %v3405 = vsel %vm3393, %v3383, %v3386
        %v3406 = vsel %vm3396, %v3392, 1326507024
        %v3407 = vsel %vm3395, %v3389, %v3406
        %v3408 = vsel %vm3394, %v3405, %v3407
        %v3409 = vshll.u32 %v3369, 8
        %v3410 = vmul.u32.u64.compose %v3409, %v3408
        %v3411 = vextract.low.u32 %v3410
        %v3412 = vextract.high.u32 %v3410
        %v3413 = vmul.u32.u64.compose %v3409, %v3404
        %v3414 = vextract.low.u32 %v3413
        %v3415 = vextract.high.u32 %v3413
        %v3416 = vmul.u32 %v3409, %v3400
        %v3417 = vadd.s32 %v3412, %v3414
        %vm3418 = vc.u32 %v3412, %v3414
        %v3419 = vadd.s32 %v3415, 1
        %v3420 = vsel %vm3418, %v3419, %v3415
        %v3421 = vadd.s32 %v3416, %v3420
        %v3422 = vadd.s32 %v3421, 536870912
        %v3423 = vshrl.u32 %v3422, 30
        %v3424 = vshll.u32 %v3423, 30
        %v3425 = vsub.s32 %v3421, %v3424
        %vm3426 = vcmp.lt.s32.totalorder %v3425, 0
        %v3427 = vsub.s32 0, %v3425
        %v3428 = vsel %vm3426, %v3427, %v3425
        %v3429 = vclz %v3428
        %v3430 = vsub.s32 %v3429, 2
        %vm3431 = vcmp.gt.s32.totalorder 0, %v3430
        %v3432 = vsel %vm3431, 0, %v3430
        %v3433 = vsub.s32 32, %v3432
        %v3434 = vshll.u32 %v3425, %v3432
        %v3435 = vshrl.u32 %v3417, %v3433
        %v3436 = vor.u32 %v3434, %v3435
        %v3437 = vsub.s32 4294967266, %v3432
        %v3438 = vadd.s32 %v3437, 127
        %v3439 = vshll.u32 %v3438, 23
        %v3440 = vor.u32 4788187, %v3439
        %v3441 = vand.u32 2147483647, %v3440
        %v3443 = vcvt.s32.f32 %v3436
        %v3444 = vmul.f32 %v3443, %v3441
        %v3445 = vxor.u32 %v3444, 2147483648
        %v3446 = vsel %vm3363, %v3445, %v3444
        %v3447 = vsub.s32 4, %v3423
        %v3448 = vsel %vm3363, %v3447, %v3423
        %v3449 = vsel %vm3362, %v1066, %v3446
        %v3450 = vsel %vm3362, 0, %v3448
        %v3451 = vcosq.f32.pop %v3449
        %v3452 = vsinq.f32.pop %v3449
        %vm3453 = vweird.f32 %v1066
        %v3454 = vand.u32 %v3450, 3
        %vm3455 = vcmp.lt.s32.totalorder %v3454, 2
        %vm3456 = vcmp.eq.s32.totalorder %v3454, 0
        %v3457 = vxor.u32 %v3452, 2147483648
        %v3458 = vsel %vm3456, %v3451, %v3457
        %vm3459 = vcmp.eq.s32.totalorder %v3454, 2
        %v3460 = vxor.u32 %v3451, 2147483648
        %v3461 = vsel %vm3459, %v3460, %v3452
        %v3462 = vsel %vm3455, %v3458, %v3461
        %v3463 = vsel %vm3453, nan, %v3462
        %v3464 = vand.u32 2147483647, %v1068
        %vm3465 = vcmp.le.f32.partialorder %v3464, 0.7853982
        %vm3466 = vcmp.lt.s32.totalorder %v1068, 0
        %v3467 = vand.u32 %v1068, 2139095040
        %v3468 = vshrl.u32 %v3467, 23
        %v3469 = vsub.s32 %v3468, 127
        %v3470 = vand.u32 2147483647, %v1068
        %v3471 = vand.u32 %v3470, 8388607
        %v3472 = vor.u32 %v3471, 8388608
        %v3473 = vsub.s32 0, %v3472
        %v3474 = vadd.s32 %v3469, 1
        %vm3475 = vcmp.gt.s32.totalorder %v3474, 0
        %v3476 = vsel %vm3475, %v3474, 0
        %v3477 = vshrl.u32 %v3476, 5
        %v3478 = vand.u32 %v3476, 31
        %v3479 = vsub.s32 32, %v3478
        %v3480 = vshrl.u32 683565275, %v3479
        %v3481 = vshll.u32 683565275, %v3478
        %v3482 = vshrl.u32 2475754826, %v3479
        %v3483 = vor.u32 %v3481, %v3482
        %v3484 = vshll.u32 2475754826, %v3478
        %v3485 = vshrl.u32 2131351028, %v3479
        %v3486 = vor.u32 %v3484, %v3485
        %v3487 = vshll.u32 2131351028, %v3478
        %v3488 = vshrl.u32 2102212464, %v3479
        %v3489 = vor.u32 %v3487, %v3488
        %v3490 = vshll.u32 2102212464, %v3478
        %v3491 = vshrl.u32 920167782, %v3479
        %v3492 = vor.u32 %v3490, %v3491
        %v3493 = vshll.u32 920167782, %v3478
        %v3494 = vshrl.u32 1326507024, %v3479
        %v3495 = vor.u32 %v3493, %v3494
        %vm3496 = vcmp.lt.s32.totalorder %v3477, 1
        %vm3497 = vcmp.lt.s32.totalorder %v3477, 2
        %vm3498 = vcmp.lt.s32.totalorder %v3477, 3
        %vm3499 = vcmp.lt.s32.totalorder %v3477, 4
        %v3500 = vsel %vm3496, %v3480, %v3483
        %v3501 = vsel %vm3499, %v3489, 2102212464
        %v3502 = vsel %vm3498, %v3486, %v3501
        %v3503 = vsel %vm3497, %v3500, %v3502
        %v3504 = vsel %vm3496, %v3483, %v3486
        %v3505 = vsel %vm3499, %v3492, 920167782
        %v3506 = vsel %vm3498, %v3489, %v3505
        %v3507 = vsel %vm3497, %v3504, %v3506
        %v3508 = vsel %vm3496, %v3486, %v3489
        %v3509 = vsel %vm3499, %v3495, 1326507024
        %v3510 = vsel %vm3498, %v3492, %v3509
        %v3511 = vsel %vm3497, %v3508, %v3510
        %v3512 = vshll.u32 %v3472, 8
        %v3513 = vmul.u32.u64.compose %v3512, %v3511
        %v3514 = vextract.low.u32 %v3513
        %v3515 = vextract.high.u32 %v3513
        %v3516 = vmul.u32.u64.compose %v3512, %v3507
        %v3517 = vextract.low.u32 %v3516
        %v3518 = vextract.high.u32 %v3516
        %v3519 = vmul.u32 %v3512, %v3503
        %v3520 = vadd.s32 %v3515, %v3517
        %vm3521 = vc.u32 %v3515, %v3517
        %v3522 = vadd.s32 %v3518, 1
        %v3523 = vsel %vm3521, %v3522, %v3518
        %v3524 = vadd.s32 %v3519, %v3523
        %v3525 = vadd.s32 %v3524, 536870912
        %v3526 = vshrl.u32 %v3525, 30
        %v3527 = vshll.u32 %v3526, 30
        %v3528 = vsub.s32 %v3524, %v3527
        %vm3529 = vcmp.lt.s32.totalorder %v3528, 0
        %v3530 = vsub.s32 0, %v3528
        %v3531 = vsel %vm3529, %v3530, %v3528
        %v3532 = vclz %v3531
        %v3533 = vsub.s32 %v3532, 2
        %vm3534 = vcmp.gt.s32.totalorder 0, %v3533
        %v3535 = vsel %vm3534, 0, %v3533
        %v3536 = vsub.s32 32, %v3535
        %v3537 = vshll.u32 %v3528, %v3535
        %v3538 = vshrl.u32 %v3520, %v3536
        %v3539 = vor.u32 %v3537, %v3538
        %v3540 = vsub.s32 4294967266, %v3535
        %v3541 = vadd.s32 %v3540, 127
        %v3542 = vshll.u32 %v3541, 23
        %v3543 = vor.u32 4788187, %v3542
        %v3544 = vand.u32 2147483647, %v3543
        %v3546 = vcvt.s32.f32 %v3539
        %v3547 = vmul.f32 %v3546, %v3544
        %v3548 = vxor.u32 %v3547, 2147483648
        %v3549 = vsel %vm3466, %v3548, %v3547
        %v3550 = vsub.s32 4, %v3526
        %v3551 = vsel %vm3466, %v3550, %v3526
        %v3552 = vsel %vm3465, %v1068, %v3549
        %v3553 = vsel %vm3465, 0, %v3551
        %v3554 = vcosq.f32.pop %v3552
        %v3555 = vsinq.f32.pop %v3552
        %vm3556 = vweird.f32 %v1068
        %v3557 = vand.u32 %v3553, 3
        %vm3558 = vcmp.lt.s32.totalorder %v3557, 2
        %vm3559 = vcmp.eq.s32.totalorder %v3557, 0
        %v3560 = vxor.u32 %v3555, 2147483648
        %v3561 = vsel %vm3559, %v3554, %v3560
        %vm3562 = vcmp.eq.s32.totalorder %v3557, 2
        %v3563 = vxor.u32 %v3554, 2147483648
        %v3564 = vsel %vm3562, %v3563, %v3555
        %v3565 = vsel %vm3558, %v3561, %v3564
        %v3566 = vsel %vm3556, nan, %v3565
        %v3567 = vand.u32 2147483647, %v1072
        %vm3568 = vcmp.le.f32.partialorder %v3567, 0.7853982
        %vm3569 = vcmp.lt.s32.totalorder %v1072, 0
        %v3570 = vand.u32 %v1072, 2139095040
        %v3571 = vshrl.u32 %v3570, 23
        %v3572 = vsub.s32 %v3571, 127
        %v3573 = vand.u32 2147483647, %v1072
        %v3574 = vand.u32 %v3573, 8388607
        %v3575 = vor.u32 %v3574, 8388608
        %v3576 = vsub.s32 0, %v3575
        %v3577 = vadd.s32 %v3572, 1
        %vm3578 = vcmp.gt.s32.totalorder %v3577, 0
        %v3579 = vsel %vm3578, %v3577, 0
        %v3580 = vshrl.u32 %v3579, 5
        %v3581 = vand.u32 %v3579, 31
        %v3582 = vsub.s32 32, %v3581
        %v3583 = vshrl.u32 683565275, %v3582
        %v3584 = vshll.u32 683565275, %v3581
        %v3585 = vshrl.u32 2475754826, %v3582
        %v3586 = vor.u32 %v3584, %v3585
        %v3587 = vshll.u32 2475754826, %v3581
        %v3588 = vshrl.u32 2131351028, %v3582
        %v3589 = vor.u32 %v3587, %v3588
        %v3590 = vshll.u32 2131351028, %v3581
        %v3591 = vshrl.u32 2102212464, %v3582
        %v3592 = vor.u32 %v3590, %v3591
        %v3593 = vshll.u32 2102212464, %v3581
        %v3594 = vshrl.u32 920167782, %v3582
        %v3595 = vor.u32 %v3593, %v3594
        %v3596 = vshll.u32 920167782, %v3581
        %v3597 = vshrl.u32 1326507024, %v3582
        %v3598 = vor.u32 %v3596, %v3597
        %vm3599 = vcmp.lt.s32.totalorder %v3580, 1
        %vm3600 = vcmp.lt.s32.totalorder %v3580, 2
        %vm3601 = vcmp.lt.s32.totalorder %v3580, 3
        %vm3602 = vcmp.lt.s32.totalorder %v3580, 4
        %v3603 = vsel %vm3599, %v3583, %v3586
        %v3604 = vsel %vm3602, %v3592, 2102212464
        %v3605 = vsel %vm3601, %v3589, %v3604
        %v3606 = vsel %vm3600, %v3603, %v3605
        %v3607 = vsel %vm3599, %v3586, %v3589
        %v3608 = vsel %vm3602, %v3595, 920167782
        %v3609 = vsel %vm3601, %v3592, %v3608
        %v3610 = vsel %vm3600, %v3607, %v3609
        %v3611 = vsel %vm3599, %v3589, %v3592
        %v3612 = vsel %vm3602, %v3598, 1326507024
        %v3613 = vsel %vm3601, %v3595, %v3612
        %v3614 = vsel %vm3600, %v3611, %v3613
        %v3615 = vshll.u32 %v3575, 8
        %v3616 = vmul.u32.u64.compose %v3615, %v3614
        %v3617 = vextract.low.u32 %v3616
        %v3618 = vextract.high.u32 %v3616
        %v3619 = vmul.u32.u64.compose %v3615, %v3610
        %v3620 = vextract.low.u32 %v3619
        %v3621 = vextract.high.u32 %v3619
        %v3622 = vmul.u32 %v3615, %v3606
        %v3623 = vadd.s32 %v3618, %v3620
        %vm3624 = vc.u32 %v3618, %v3620
        %v3625 = vadd.s32 %v3621, 1
        %v3626 = vsel %vm3624, %v3625, %v3621
        %v3627 = vadd.s32 %v3622, %v3626
        %v3628 = vadd.s32 %v3627, 536870912
        %v3629 = vshrl.u32 %v3628, 30
        %v3630 = vshll.u32 %v3629, 30
        %v3631 = vsub.s32 %v3627, %v3630
        %vm3632 = vcmp.lt.s32.totalorder %v3631, 0
        %v3633 = vsub.s32 0, %v3631
        %v3634 = vsel %vm3632, %v3633, %v3631
        %v3635 = vclz %v3634
        %v3636 = vsub.s32 %v3635, 2
        %vm3637 = vcmp.gt.s32.totalorder 0, %v3636
        %v3638 = vsel %vm3637, 0, %v3636
        %v3639 = vsub.s32 32, %v3638
        %v3640 = vshll.u32 %v3631, %v3638
        %v3641 = vshrl.u32 %v3623, %v3639
        %v3642 = vor.u32 %v3640, %v3641
        %v3643 = vsub.s32 4294967266, %v3638
        %v3644 = vadd.s32 %v3643, 127
        %v3645 = vshll.u32 %v3644, 23
        %v3646 = vor.u32 4788187, %v3645
        %v3647 = vand.u32 2147483647, %v3646
        %v3649 = vcvt.s32.f32 %v3642
        %v3650 = vmul.f32 %v3649, %v3647
        %v3651 = vxor.u32 %v3650, 2147483648
        %v3652 = vsel %vm3569, %v3651, %v3650
        %v3653 = vsub.s32 4, %v3629
        %v3654 = vsel %vm3569, %v3653, %v3629
        %v3655 = vsel %vm3568, %v1072, %v3652
        %v3656 = vsel %vm3568, 0, %v3654
        %v3657 = vcosq.f32.pop %v3655
        %v3658 = vsinq.f32.pop %v3655
        %vm3659 = vweird.f32 %v1072
        %v3660 = vand.u32 %v3656, 3
        %vm3661 = vcmp.lt.s32.totalorder %v3660, 2
        %vm3662 = vcmp.eq.s32.totalorder %v3660, 0
        %v3663 = vxor.u32 %v3658, 2147483648
        %v3664 = vsel %vm3662, %v3657, %v3663
        %vm3665 = vcmp.eq.s32.totalorder %v3660, 2
        %v3666 = vxor.u32 %v3657, 2147483648
        %v3667 = vsel %vm3665, %v3666, %v3658
        %v3668 = vsel %vm3661, %v3664, %v3667
        %v3669 = vsel %vm3659, nan, %v3668
        %v3670 = vand.u32 2147483647, %v1074
        %vm3671 = vcmp.le.f32.partialorder %v3670, 0.7853982
        %vm3672 = vcmp.lt.s32.totalorder %v1074, 0
        %v3673 = vand.u32 %v1074, 2139095040
        %v3674 = vshrl.u32 %v3673, 23
        %v3675 = vsub.s32 %v3674, 127
        %v3676 = vand.u32 2147483647, %v1074
        %v3677 = vand.u32 %v3676, 8388607
        %v3678 = vor.u32 %v3677, 8388608
        %v3679 = vsub.s32 0, %v3678
        %v3680 = vadd.s32 %v3675, 1
        %vm3681 = vcmp.gt.s32.totalorder %v3680, 0
        %v3682 = vsel %vm3681, %v3680, 0
        %v3683 = vshrl.u32 %v3682, 5
        %v3684 = vand.u32 %v3682, 31
        %v3685 = vsub.s32 32, %v3684
        %v3686 = vshrl.u32 683565275, %v3685
        %v3687 = vshll.u32 683565275, %v3684
        %v3688 = vshrl.u32 2475754826, %v3685
        %v3689 = vor.u32 %v3687, %v3688
        %v3690 = vshll.u32 2475754826, %v3684
        %v3691 = vshrl.u32 2131351028, %v3685
        %v3692 = vor.u32 %v3690, %v3691
        %v3693 = vshll.u32 2131351028, %v3684
        %v3694 = vshrl.u32 2102212464, %v3685
        %v3695 = vor.u32 %v3693, %v3694
        %v3696 = vshll.u32 2102212464, %v3684
        %v3697 = vshrl.u32 920167782, %v3685
        %v3698 = vor.u32 %v3696, %v3697
        %v3699 = vshll.u32 920167782, %v3684
        %v3700 = vshrl.u32 1326507024, %v3685
        %v3701 = vor.u32 %v3699, %v3700
        %vm3702 = vcmp.lt.s32.totalorder %v3683, 1
        %vm3703 = vcmp.lt.s32.totalorder %v3683, 2
        %vm3704 = vcmp.lt.s32.totalorder %v3683, 3
        %vm3705 = vcmp.lt.s32.totalorder %v3683, 4
        %v3706 = vsel %vm3702, %v3686, %v3689
        %v3707 = vsel %vm3705, %v3695, 2102212464
        %v3708 = vsel %vm3704, %v3692, %v3707
        %v3709 = vsel %vm3703, %v3706, %v3708
        %v3710 = vsel %vm3702, %v3689, %v3692
        %v3711 = vsel %vm3705, %v3698, 920167782
        %v3712 = vsel %vm3704, %v3695, %v3711
        %v3713 = vsel %vm3703, %v3710, %v3712
        %v3714 = vsel %vm3702, %v3692, %v3695
        %v3715 = vsel %vm3705, %v3701, 1326507024
        %v3716 = vsel %vm3704, %v3698, %v3715
        %v3717 = vsel %vm3703, %v3714, %v3716
        %v3718 = vshll.u32 %v3678, 8
        %v3719 = vmul.u32.u64.compose %v3718, %v3717
        %v3720 = vextract.low.u32 %v3719
        %v3721 = vextract.high.u32 %v3719
        %v3722 = vmul.u32.u64.compose %v3718, %v3713
        %v3723 = vextract.low.u32 %v3722
        %v3724 = vextract.high.u32 %v3722
        %v3725 = vmul.u32 %v3718, %v3709
        %v3726 = vadd.s32 %v3721, %v3723
        %vm3727 = vc.u32 %v3721, %v3723
        %v3728 = vadd.s32 %v3724, 1
        %v3729 = vsel %vm3727, %v3728, %v3724
        %v3730 = vadd.s32 %v3725, %v3729
        %v3731 = vadd.s32 %v3730, 536870912
        %v3732 = vshrl.u32 %v3731, 30
        %v3733 = vshll.u32 %v3732, 30
        %v3734 = vsub.s32 %v3730, %v3733
        %vm3735 = vcmp.lt.s32.totalorder %v3734, 0
        %v3736 = vsub.s32 0, %v3734
        %v3737 = vsel %vm3735, %v3736, %v3734
        %v3738 = vclz %v3737
        %v3739 = vsub.s32 %v3738, 2
        %vm3740 = vcmp.gt.s32.totalorder 0, %v3739
        %v3741 = vsel %vm3740, 0, %v3739
        %v3742 = vsub.s32 32, %v3741
        %v3743 = vshll.u32 %v3734, %v3741
        %v3744 = vshrl.u32 %v3726, %v3742
        %v3745 = vor.u32 %v3743, %v3744
        %v3746 = vsub.s32 4294967266, %v3741
        %v3747 = vadd.s32 %v3746, 127
        %v3748 = vshll.u32 %v3747, 23
        %v3749 = vor.u32 4788187, %v3748
        %v3750 = vand.u32 2147483647, %v3749
        %v3752 = vcvt.s32.f32 %v3745
        %v3753 = vmul.f32 %v3752, %v3750
        %v3754 = vxor.u32 %v3753, 2147483648
        %v3755 = vsel %vm3672, %v3754, %v3753
        %v3756 = vsub.s32 4, %v3732
        %v3757 = vsel %vm3672, %v3756, %v3732
        %v3758 = vsel %vm3671, %v1074, %v3755
        %v3759 = vsel %vm3671, 0, %v3757
        %v3760 = vcosq.f32.pop %v3758
        %v3761 = vsinq.f32.pop %v3758
        %vm3762 = vweird.f32 %v1074
        %v3763 = vand.u32 %v3759, 3
        %vm3764 = vcmp.lt.s32.totalorder %v3763, 2
        %vm3765 = vcmp.eq.s32.totalorder %v3763, 0
        %v3766 = vxor.u32 %v3761, 2147483648
        %v3767 = vsel %vm3765, %v3760, %v3766
        %vm3768 = vcmp.eq.s32.totalorder %v3763, 2
        %v3769 = vxor.u32 %v3760, 2147483648
        %v3770 = vsel %vm3768, %v3769, %v3761
        %v3771 = vsel %vm3764, %v3767, %v3770
        %v3772 = vsel %vm3762, nan, %v3771
        %v3773 = vand.u32 2147483647, %v1078
        %vm3774 = vcmp.le.f32.partialorder %v3773, 0.7853982
        %vm3775 = vcmp.lt.s32.totalorder %v1078, 0
        %v3776 = vand.u32 %v1078, 2139095040
        %v3777 = vshrl.u32 %v3776, 23
        %v3778 = vsub.s32 %v3777, 127
        %v3779 = vand.u32 2147483647, %v1078
        %v3780 = vand.u32 %v3779, 8388607
        %v3781 = vor.u32 %v3780, 8388608
        %v3782 = vsub.s32 0, %v3781
        %v3783 = vadd.s32 %v3778, 1
        %vm3784 = vcmp.gt.s32.totalorder %v3783, 0
        %v3785 = vsel %vm3784, %v3783, 0
        %v3786 = vshrl.u32 %v3785, 5
        %v3787 = vand.u32 %v3785, 31
        %v3788 = vsub.s32 32, %v3787
        %v3789 = vshrl.u32 683565275, %v3788
        %v3790 = vshll.u32 683565275, %v3787
        %v3791 = vshrl.u32 2475754826, %v3788
        %v3792 = vor.u32 %v3790, %v3791
        %v3793 = vshll.u32 2475754826, %v3787
        %v3794 = vshrl.u32 2131351028, %v3788
        %v3795 = vor.u32 %v3793, %v3794
        %v3796 = vshll.u32 2131351028, %v3787
        %v3797 = vshrl.u32 2102212464, %v3788
        %v3798 = vor.u32 %v3796, %v3797
        %v3799 = vshll.u32 2102212464, %v3787
        %v3800 = vshrl.u32 920167782, %v3788
        %v3801 = vor.u32 %v3799, %v3800
        %v3802 = vshll.u32 920167782, %v3787
        %v3803 = vshrl.u32 1326507024, %v3788
        %v3804 = vor.u32 %v3802, %v3803
        %vm3805 = vcmp.lt.s32.totalorder %v3786, 1
        %vm3806 = vcmp.lt.s32.totalorder %v3786, 2
        %vm3807 = vcmp.lt.s32.totalorder %v3786, 3
        %vm3808 = vcmp.lt.s32.totalorder %v3786, 4
        %v3809 = vsel %vm3805, %v3789, %v3792
        %v3810 = vsel %vm3808, %v3798, 2102212464
        %v3811 = vsel %vm3807, %v3795, %v3810
        %v3812 = vsel %vm3806, %v3809, %v3811
        %v3813 = vsel %vm3805, %v3792, %v3795
        %v3814 = vsel %vm3808, %v3801, 920167782
        %v3815 = vsel %vm3807, %v3798, %v3814
        %v3816 = vsel %vm3806, %v3813, %v3815
        %v3817 = vsel %vm3805, %v3795, %v3798
        %v3818 = vsel %vm3808, %v3804, 1326507024
        %v3819 = vsel %vm3807, %v3801, %v3818
        %v3820 = vsel %vm3806, %v3817, %v3819
        %v3821 = vshll.u32 %v3781, 8
        %v3822 = vmul.u32.u64.compose %v3821, %v3820
        %v3823 = vextract.low.u32 %v3822
        %v3824 = vextract.high.u32 %v3822
        %v3825 = vmul.u32.u64.compose %v3821, %v3816
        %v3826 = vextract.low.u32 %v3825
        %v3827 = vextract.high.u32 %v3825
        %v3828 = vmul.u32 %v3821, %v3812
        %v3829 = vadd.s32 %v3824, %v3826
        %vm3830 = vc.u32 %v3824, %v3826
        %v3831 = vadd.s32 %v3827, 1
        %v3832 = vsel %vm3830, %v3831, %v3827
        %v3833 = vadd.s32 %v3828, %v3832
        %v3834 = vadd.s32 %v3833, 536870912
        %v3835 = vshrl.u32 %v3834, 30
        %v3836 = vshll.u32 %v3835, 30
        %v3837 = vsub.s32 %v3833, %v3836
        %vm3838 = vcmp.lt.s32.totalorder %v3837, 0
        %v3839 = vsub.s32 0, %v3837
        %v3840 = vsel %vm3838, %v3839, %v3837
        %v3841 = vclz %v3840
        %v3842 = vsub.s32 %v3841, 2
        %vm3843 = vcmp.gt.s32.totalorder 0, %v3842
        %v3844 = vsel %vm3843, 0, %v3842
        %v3845 = vsub.s32 32, %v3844
        %v3846 = vshll.u32 %v3837, %v3844
        %v3847 = vshrl.u32 %v3829, %v3845
        %v3848 = vor.u32 %v3846, %v3847
        %v3849 = vsub.s32 4294967266, %v3844
        %v3850 = vadd.s32 %v3849, 127
        %v3851 = vshll.u32 %v3850, 23
        %v3852 = vor.u32 4788187, %v3851
        %v3853 = vand.u32 2147483647, %v3852
        %v3855 = vcvt.s32.f32 %v3848
        %v3856 = vmul.f32 %v3855, %v3853
        %v3857 = vxor.u32 %v3856, 2147483648
        %v3858 = vsel %vm3775, %v3857, %v3856
        %v3859 = vsub.s32 4, %v3835
        %v3860 = vsel %vm3775, %v3859, %v3835
        %v3861 = vsel %vm3774, %v1078, %v3858
        %v3862 = vsel %vm3774, 0, %v3860
        %v3863 = vcosq.f32.pop %v3861
        %v3864 = vsinq.f32.pop %v3861
        %vm3865 = vweird.f32 %v1078
        %v3866 = vand.u32 %v3862, 3
        %vm3867 = vcmp.lt.s32.totalorder %v3866, 2
        %vm3868 = vcmp.eq.s32.totalorder %v3866, 0
        %v3869 = vxor.u32 %v3864, 2147483648
        %v3870 = vsel %vm3868, %v3863, %v3869
        %vm3871 = vcmp.eq.s32.totalorder %v3866, 2
        %v3872 = vxor.u32 %v3863, 2147483648
        %v3873 = vsel %vm3871, %v3872, %v3864
        %v3874 = vsel %vm3867, %v3870, %v3873
        %v3875 = vsel %vm3865, nan, %v3874
        %v3876 = vand.u32 2147483647, %v1080
        %vm3877 = vcmp.le.f32.partialorder %v3876, 0.7853982
        %vm3878 = vcmp.lt.s32.totalorder %v1080, 0
        %v3879 = vand.u32 %v1080, 2139095040
        %v3880 = vshrl.u32 %v3879, 23
        %v3881 = vsub.s32 %v3880, 127
        %v3882 = vand.u32 2147483647, %v1080
        %v3883 = vand.u32 %v3882, 8388607
        %v3884 = vor.u32 %v3883, 8388608
        %v3885 = vsub.s32 0, %v3884
        %v3886 = vadd.s32 %v3881, 1
        %vm3887 = vcmp.gt.s32.totalorder %v3886, 0
        %v3888 = vsel %vm3887, %v3886, 0
        %v3889 = vshrl.u32 %v3888, 5
        %v3890 = vand.u32 %v3888, 31
        %v3891 = vsub.s32 32, %v3890
        %v3892 = vshrl.u32 683565275, %v3891
        %v3893 = vshll.u32 683565275, %v3890
        %v3894 = vshrl.u32 2475754826, %v3891
        %v3895 = vor.u32 %v3893, %v3894
        %v3896 = vshll.u32 2475754826, %v3890
        %v3897 = vshrl.u32 2131351028, %v3891
        %v3898 = vor.u32 %v3896, %v3897
        %v3899 = vshll.u32 2131351028, %v3890
        %v3900 = vshrl.u32 2102212464, %v3891
        %v3901 = vor.u32 %v3899, %v3900
        %v3902 = vshll.u32 2102212464, %v3890
        %v3903 = vshrl.u32 920167782, %v3891
        %v3904 = vor.u32 %v3902, %v3903
        %v3905 = vshll.u32 920167782, %v3890
        %v3906 = vshrl.u32 1326507024, %v3891
        %v3907 = vor.u32 %v3905, %v3906
        %vm3908 = vcmp.lt.s32.totalorder %v3889, 1
        %vm3909 = vcmp.lt.s32.totalorder %v3889, 2
        %vm3910 = vcmp.lt.s32.totalorder %v3889, 3
        %vm3911 = vcmp.lt.s32.totalorder %v3889, 4
        %v3912 = vsel %vm3908, %v3892, %v3895
        %v3913 = vsel %vm3911, %v3901, 2102212464
        %v3914 = vsel %vm3910, %v3898, %v3913
        %v3915 = vsel %vm3909, %v3912, %v3914
        %v3916 = vsel %vm3908, %v3895, %v3898
        %v3917 = vsel %vm3911, %v3904, 920167782
        %v3918 = vsel %vm3910, %v3901, %v3917
        %v3919 = vsel %vm3909, %v3916, %v3918
        %v3920 = vsel %vm3908, %v3898, %v3901
        %v3921 = vsel %vm3911, %v3907, 1326507024
        %v3922 = vsel %vm3910, %v3904, %v3921
        %v3923 = vsel %vm3909, %v3920, %v3922
        %v3924 = vshll.u32 %v3884, 8
        %v3925 = vmul.u32.u64.compose %v3924, %v3923
        %v3926 = vextract.low.u32 %v3925
        %v3927 = vextract.high.u32 %v3925
        %v3928 = vmul.u32.u64.compose %v3924, %v3919
        %v3929 = vextract.low.u32 %v3928
        %v3930 = vextract.high.u32 %v3928
        %v3931 = vmul.u32 %v3924, %v3915
        %v3932 = vadd.s32 %v3927, %v3929
        %vm3933 = vc.u32 %v3927, %v3929
        %v3934 = vadd.s32 %v3930, 1
        %v3935 = vsel %vm3933, %v3934, %v3930
        %v3936 = vadd.s32 %v3931, %v3935
        %v3937 = vadd.s32 %v3936, 536870912
        %v3938 = vshrl.u32 %v3937, 30
        %v3939 = vshll.u32 %v3938, 30
        %v3940 = vsub.s32 %v3936, %v3939
        %vm3941 = vcmp.lt.s32.totalorder %v3940, 0
        %v3942 = vsub.s32 0, %v3940
        %v3943 = vsel %vm3941, %v3942, %v3940
        %v3944 = vclz %v3943
        %v3945 = vsub.s32 %v3944, 2
        %vm3946 = vcmp.gt.s32.totalorder 0, %v3945
        %v3947 = vsel %vm3946, 0, %v3945
        %v3948 = vsub.s32 32, %v3947
        %v3949 = vshll.u32 %v3940, %v3947
        %v3950 = vshrl.u32 %v3932, %v3948
        %v3951 = vor.u32 %v3949, %v3950
        %v3952 = vsub.s32 4294967266, %v3947
        %v3953 = vadd.s32 %v3952, 127
        %v3954 = vshll.u32 %v3953, 23
        %v3955 = vor.u32 4788187, %v3954
        %v3956 = vand.u32 2147483647, %v3955
        %v3958 = vcvt.s32.f32 %v3951
        %v3959 = vmul.f32 %v3958, %v3956
        %v3960 = vxor.u32 %v3959, 2147483648
        %v3961 = vsel %vm3878, %v3960, %v3959
        %v3962 = vsub.s32 4, %v3938
        %v3963 = vsel %vm3878, %v3962, %v3938
        %v3964 = vsel %vm3877, %v1080, %v3961
        %v3965 = vsel %vm3877, 0, %v3963
        %v3966 = vcosq.f32.pop %v3964
        %v3967 = vsinq.f32.pop %v3964
        %vm3968 = vweird.f32 %v1080
        %v3969 = vand.u32 %v3965, 3
        %vm3970 = vcmp.lt.s32.totalorder %v3969, 2
        %vm3971 = vcmp.eq.s32.totalorder %v3969, 0
        %v3972 = vxor.u32 %v3967, 2147483648
        %v3973 = vsel %vm3971, %v3966, %v3972
        %vm3974 = vcmp.eq.s32.totalorder %v3969, 2
        %v3975 = vxor.u32 %v3966, 2147483648
        %v3976 = vsel %vm3974, %v3975, %v3967
        %v3977 = vsel %vm3970, %v3973, %v3976
        %v3978 = vsel %vm3968, nan, %v3977
        %v3979 = vand.u32 2147483647, %v1084
        %vm3980 = vcmp.le.f32.partialorder %v3979, 0.7853982
        %vm3981 = vcmp.lt.s32.totalorder %v1084, 0
        %v3982 = vand.u32 %v1084, 2139095040
        %v3983 = vshrl.u32 %v3982, 23
        %v3984 = vsub.s32 %v3983, 127
        %v3985 = vand.u32 2147483647, %v1084
        %v3986 = vand.u32 %v3985, 8388607
        %v3987 = vor.u32 %v3986, 8388608
        %v3988 = vsub.s32 0, %v3987
        %v3989 = vadd.s32 %v3984, 1
        %vm3990 = vcmp.gt.s32.totalorder %v3989, 0
        %v3991 = vsel %vm3990, %v3989, 0
        %v3992 = vshrl.u32 %v3991, 5
        %v3993 = vand.u32 %v3991, 31
        %v3994 = vsub.s32 32, %v3993
        %v3995 = vshrl.u32 683565275, %v3994
        %v3996 = vshll.u32 683565275, %v3993
        %v3997 = vshrl.u32 2475754826, %v3994
        %v3998 = vor.u32 %v3996, %v3997
        %v3999 = vshll.u32 2475754826, %v3993
        %v4000 = vshrl.u32 2131351028, %v3994
        %v4001 = vor.u32 %v3999, %v4000
        %v4002 = vshll.u32 2131351028, %v3993
        %v4003 = vshrl.u32 2102212464, %v3994
        %v4004 = vor.u32 %v4002, %v4003
        %v4005 = vshll.u32 2102212464, %v3993
        %v4006 = vshrl.u32 920167782, %v3994
        %v4007 = vor.u32 %v4005, %v4006
        %v4008 = vshll.u32 920167782, %v3993
        %v4009 = vshrl.u32 1326507024, %v3994
        %v4010 = vor.u32 %v4008, %v4009
        %vm4011 = vcmp.lt.s32.totalorder %v3992, 1
        %vm4012 = vcmp.lt.s32.totalorder %v3992, 2
        %vm4013 = vcmp.lt.s32.totalorder %v3992, 3
        %vm4014 = vcmp.lt.s32.totalorder %v3992, 4
        %v4015 = vsel %vm4011, %v3995, %v3998
        %v4016 = vsel %vm4014, %v4004, 2102212464
        %v4017 = vsel %vm4013, %v4001, %v4016
        %v4018 = vsel %vm4012, %v4015, %v4017
        %v4019 = vsel %vm4011, %v3998, %v4001
        %v4020 = vsel %vm4014, %v4007, 920167782
        %v4021 = vsel %vm4013, %v4004, %v4020
        %v4022 = vsel %vm4012, %v4019, %v4021
        %v4023 = vsel %vm4011, %v4001, %v4004
        %v4024 = vsel %vm4014, %v4010, 1326507024
        %v4025 = vsel %vm4013, %v4007, %v4024
        %v4026 = vsel %vm4012, %v4023, %v4025
        %v4027 = vshll.u32 %v3987, 8
        %v4028 = vmul.u32.u64.compose %v4027, %v4026
        %v4029 = vextract.low.u32 %v4028
        %v4030 = vextract.high.u32 %v4028
        %v4031 = vmul.u32.u64.compose %v4027, %v4022
        %v4032 = vextract.low.u32 %v4031
        %v4033 = vextract.high.u32 %v4031
        %v4034 = vmul.u32 %v4027, %v4018
        %v4035 = vadd.s32 %v4030, %v4032
        %vm4036 = vc.u32 %v4030, %v4032
        %v4037 = vadd.s32 %v4033, 1
        %v4038 = vsel %vm4036, %v4037, %v4033
        %v4039 = vadd.s32 %v4034, %v4038
        %v4040 = vadd.s32 %v4039, 536870912
        %v4041 = vshrl.u32 %v4040, 30
        %v4042 = vshll.u32 %v4041, 30
        %v4043 = vsub.s32 %v4039, %v4042
        %vm4044 = vcmp.lt.s32.totalorder %v4043, 0
        %v4045 = vsub.s32 0, %v4043
        %v4046 = vsel %vm4044, %v4045, %v4043
        %v4047 = vclz %v4046
        %v4048 = vsub.s32 %v4047, 2
        %vm4049 = vcmp.gt.s32.totalorder 0, %v4048
        %v4050 = vsel %vm4049, 0, %v4048
        %v4051 = vsub.s32 32, %v4050
        %v4052 = vshll.u32 %v4043, %v4050
        %v4053 = vshrl.u32 %v4035, %v4051
        %v4054 = vor.u32 %v4052, %v4053
        %v4055 = vsub.s32 4294967266, %v4050
        %v4056 = vadd.s32 %v4055, 127
        %v4057 = vshll.u32 %v4056, 23
        %v4058 = vor.u32 4788187, %v4057
        %v4059 = vand.u32 2147483647, %v4058
        %v4061 = vcvt.s32.f32 %v4054
        %v4062 = vmul.f32 %v4061, %v4059
        %v4063 = vxor.u32 %v4062, 2147483648
        %v4064 = vsel %vm3981, %v4063, %v4062
        %v4065 = vsub.s32 4, %v4041
        %v4066 = vsel %vm3981, %v4065, %v4041
        %v4067 = vsel %vm3980, %v1084, %v4064
        %v4068 = vsel %vm3980, 0, %v4066
        %v4069 = vcosq.f32.pop %v4067
        %v4070 = vsinq.f32.pop %v4067
        %vm4071 = vweird.f32 %v1084
        %v4072 = vand.u32 %v4068, 3
        %vm4073 = vcmp.lt.s32.totalorder %v4072, 2
        %vm4074 = vcmp.eq.s32.totalorder %v4072, 0
        %v4075 = vxor.u32 %v4070, 2147483648
        %v4076 = vsel %vm4074, %v4069, %v4075
        %vm4077 = vcmp.eq.s32.totalorder %v4072, 2
        %v4078 = vxor.u32 %v4069, 2147483648
        %v4079 = vsel %vm4077, %v4078, %v4070
        %v4080 = vsel %vm4073, %v4076, %v4079
        %v4081 = vsel %vm4071, nan, %v4080
        %v4082 = vand.u32 2147483647, %v1086
        %vm4083 = vcmp.le.f32.partialorder %v4082, 0.7853982
        %vm4084 = vcmp.lt.s32.totalorder %v1086, 0
        %v4085 = vand.u32 %v1086, 2139095040
        %v4086 = vshrl.u32 %v4085, 23
        %v4087 = vsub.s32 %v4086, 127
        %v4088 = vand.u32 2147483647, %v1086
        %v4089 = vand.u32 %v4088, 8388607
        %v4090 = vor.u32 %v4089, 8388608
        %v4091 = vsub.s32 0, %v4090
        %v4092 = vadd.s32 %v4087, 1
        %vm4093 = vcmp.gt.s32.totalorder %v4092, 0
        %v4094 = vsel %vm4093, %v4092, 0
        %v4095 = vshrl.u32 %v4094, 5
        %v4096 = vand.u32 %v4094, 31
        %v4097 = vsub.s32 32, %v4096
        %v4098 = vshrl.u32 683565275, %v4097
        %v4099 = vshll.u32 683565275, %v4096
        %v4100 = vshrl.u32 2475754826, %v4097
        %v4101 = vor.u32 %v4099, %v4100
        %v4102 = vshll.u32 2475754826, %v4096
        %v4103 = vshrl.u32 2131351028, %v4097
        %v4104 = vor.u32 %v4102, %v4103
        %v4105 = vshll.u32 2131351028, %v4096
        %v4106 = vshrl.u32 2102212464, %v4097
        %v4107 = vor.u32 %v4105, %v4106
        %v4108 = vshll.u32 2102212464, %v4096
        %v4109 = vshrl.u32 920167782, %v4097
        %v4110 = vor.u32 %v4108, %v4109
        %v4111 = vshll.u32 920167782, %v4096
        %v4112 = vshrl.u32 1326507024, %v4097
        %v4113 = vor.u32 %v4111, %v4112
        %vm4114 = vcmp.lt.s32.totalorder %v4095, 1
        %vm4115 = vcmp.lt.s32.totalorder %v4095, 2
        %vm4116 = vcmp.lt.s32.totalorder %v4095, 3
        %vm4117 = vcmp.lt.s32.totalorder %v4095, 4
        %v4118 = vsel %vm4114, %v4098, %v4101
        %v4119 = vsel %vm4117, %v4107, 2102212464
        %v4120 = vsel %vm4116, %v4104, %v4119
        %v4121 = vsel %vm4115, %v4118, %v4120
        %v4122 = vsel %vm4114, %v4101, %v4104
        %v4123 = vsel %vm4117, %v4110, 920167782
        %v4124 = vsel %vm4116, %v4107, %v4123
        %v4125 = vsel %vm4115, %v4122, %v4124
        %v4126 = vsel %vm4114, %v4104, %v4107
        %v4127 = vsel %vm4117, %v4113, 1326507024
        %v4128 = vsel %vm4116, %v4110, %v4127
        %v4129 = vsel %vm4115, %v4126, %v4128
        %v4130 = vshll.u32 %v4090, 8
        %v4131 = vmul.u32.u64.compose %v4130, %v4129
        %v4132 = vextract.low.u32 %v4131
        %v4133 = vextract.high.u32 %v4131
        %v4134 = vmul.u32.u64.compose %v4130, %v4125
        %v4135 = vextract.low.u32 %v4134
        %v4136 = vextract.high.u32 %v4134
        %v4137 = vmul.u32 %v4130, %v4121
        %v4138 = vadd.s32 %v4133, %v4135
        %vm4139 = vc.u32 %v4133, %v4135
        %v4140 = vadd.s32 %v4136, 1
        %v4141 = vsel %vm4139, %v4140, %v4136
        %v4142 = vadd.s32 %v4137, %v4141
        %v4143 = vadd.s32 %v4142, 536870912
        %v4144 = vshrl.u32 %v4143, 30
        %v4145 = vshll.u32 %v4144, 30
        %v4146 = vsub.s32 %v4142, %v4145
        %vm4147 = vcmp.lt.s32.totalorder %v4146, 0
        %v4148 = vsub.s32 0, %v4146
        %v4149 = vsel %vm4147, %v4148, %v4146
        %v4150 = vclz %v4149
        %v4151 = vsub.s32 %v4150, 2
        %vm4152 = vcmp.gt.s32.totalorder 0, %v4151
        %v4153 = vsel %vm4152, 0, %v4151
        %v4154 = vsub.s32 32, %v4153
        %v4155 = vshll.u32 %v4146, %v4153
        %v4156 = vshrl.u32 %v4138, %v4154
        %v4157 = vor.u32 %v4155, %v4156
        %v4158 = vsub.s32 4294967266, %v4153
        %v4159 = vadd.s32 %v4158, 127
        %v4160 = vshll.u32 %v4159, 23
        %v4161 = vor.u32 4788187, %v4160
        %v4162 = vand.u32 2147483647, %v4161
        %v4164 = vcvt.s32.f32 %v4157
        %v4165 = vmul.f32 %v4164, %v4162
        %v4166 = vxor.u32 %v4165, 2147483648
        %v4167 = vsel %vm4084, %v4166, %v4165
        %v4168 = vsub.s32 4, %v4144
        %v4169 = vsel %vm4084, %v4168, %v4144
        %v4170 = vsel %vm4083, %v1086, %v4167
        %v4171 = vsel %vm4083, 0, %v4169
        %v4172 = vcosq.f32.pop %v4170
        %v4173 = vsinq.f32.pop %v4170
        %vm4174 = vweird.f32 %v1086
        %v4175 = vand.u32 %v4171, 3
        %vm4176 = vcmp.lt.s32.totalorder %v4175, 2
        %vm4177 = vcmp.eq.s32.totalorder %v4175, 0
        %v4178 = vxor.u32 %v4173, 2147483648
        %v4179 = vsel %vm4177, %v4172, %v4178
        %vm4180 = vcmp.eq.s32.totalorder %v4175, 2
        %v4181 = vxor.u32 %v4172, 2147483648
        %v4182 = vsel %vm4180, %v4181, %v4173
        %v4183 = vsel %vm4176, %v4179, %v4182
        %v4184 = vsel %vm4174, nan, %v4183
        %v4185 = vand.u32 2147483647, %v1090
        %vm4186 = vcmp.le.f32.partialorder %v4185, 0.7853982
        %vm4187 = vcmp.lt.s32.totalorder %v1090, 0
        %v4188 = vand.u32 %v1090, 2139095040
        %v4189 = vshrl.u32 %v4188, 23
        %v4190 = vsub.s32 %v4189, 127
        %v4191 = vand.u32 2147483647, %v1090
        %v4192 = vand.u32 %v4191, 8388607
        %v4193 = vor.u32 %v4192, 8388608
        %v4194 = vsub.s32 0, %v4193
        %v4195 = vadd.s32 %v4190, 1
        %vm4196 = vcmp.gt.s32.totalorder %v4195, 0
        %v4197 = vsel %vm4196, %v4195, 0
        %v4198 = vshrl.u32 %v4197, 5
        %v4199 = vand.u32 %v4197, 31
        %v4200 = vsub.s32 32, %v4199
        %v4201 = vshrl.u32 683565275, %v4200
        %v4202 = vshll.u32 683565275, %v4199
        %v4203 = vshrl.u32 2475754826, %v4200
        %v4204 = vor.u32 %v4202, %v4203
        %v4205 = vshll.u32 2475754826, %v4199
        %v4206 = vshrl.u32 2131351028, %v4200
        %v4207 = vor.u32 %v4205, %v4206
        %v4208 = vshll.u32 2131351028, %v4199
        %v4209 = vshrl.u32 2102212464, %v4200
        %v4210 = vor.u32 %v4208, %v4209
        %v4211 = vshll.u32 2102212464, %v4199
        %v4212 = vshrl.u32 920167782, %v4200
        %v4213 = vor.u32 %v4211, %v4212
        %v4214 = vshll.u32 920167782, %v4199
        %v4215 = vshrl.u32 1326507024, %v4200
        %v4216 = vor.u32 %v4214, %v4215
        %vm4217 = vcmp.lt.s32.totalorder %v4198, 1
        %vm4218 = vcmp.lt.s32.totalorder %v4198, 2
        %vm4219 = vcmp.lt.s32.totalorder %v4198, 3
        %vm4220 = vcmp.lt.s32.totalorder %v4198, 4
        %v4221 = vsel %vm4217, %v4201, %v4204
        %v4222 = vsel %vm4220, %v4210, 2102212464
        %v4223 = vsel %vm4219, %v4207, %v4222
        %v4224 = vsel %vm4218, %v4221, %v4223
        %v4225 = vsel %vm4217, %v4204, %v4207
        %v4226 = vsel %vm4220, %v4213, 920167782
        %v4227 = vsel %vm4219, %v4210, %v4226
        %v4228 = vsel %vm4218, %v4225, %v4227
        %v4229 = vsel %vm4217, %v4207, %v4210
        %v4230 = vsel %vm4220, %v4216, 1326507024
        %v4231 = vsel %vm4219, %v4213, %v4230
        %v4232 = vsel %vm4218, %v4229, %v4231
        %v4233 = vshll.u32 %v4193, 8
        %v4234 = vmul.u32.u64.compose %v4233, %v4232
        %v4235 = vextract.low.u32 %v4234
        %v4236 = vextract.high.u32 %v4234
        %v4237 = vmul.u32.u64.compose %v4233, %v4228
        %v4238 = vextract.low.u32 %v4237
        %v4239 = vextract.high.u32 %v4237
        %v4240 = vmul.u32 %v4233, %v4224
        %v4241 = vadd.s32 %v4236, %v4238
        %vm4242 = vc.u32 %v4236, %v4238
        %v4243 = vadd.s32 %v4239, 1
        %v4244 = vsel %vm4242, %v4243, %v4239
        %v4245 = vadd.s32 %v4240, %v4244
        %v4246 = vadd.s32 %v4245, 536870912
        %v4247 = vshrl.u32 %v4246, 30
        %v4248 = vshll.u32 %v4247, 30
        %v4249 = vsub.s32 %v4245, %v4248
        %vm4250 = vcmp.lt.s32.totalorder %v4249, 0
        %v4251 = vsub.s32 0, %v4249
        %v4252 = vsel %vm4250, %v4251, %v4249
        %v4253 = vclz %v4252
        %v4254 = vsub.s32 %v4253, 2
        %vm4255 = vcmp.gt.s32.totalorder 0, %v4254
        %v4256 = vsel %vm4255, 0, %v4254
        %v4257 = vsub.s32 32, %v4256
        %v4258 = vshll.u32 %v4249, %v4256
        %v4259 = vshrl.u32 %v4241, %v4257
        %v4260 = vor.u32 %v4258, %v4259
        %v4261 = vsub.s32 4294967266, %v4256
        %v4262 = vadd.s32 %v4261, 127
        %v4263 = vshll.u32 %v4262, 23
        %v4264 = vor.u32 4788187, %v4263
        %v4265 = vand.u32 2147483647, %v4264
        %v4267 = vcvt.s32.f32 %v4260
        %v4268 = vmul.f32 %v4267, %v4265
        %v4269 = vxor.u32 %v4268, 2147483648
        %v4270 = vsel %vm4187, %v4269, %v4268
        %v4271 = vsub.s32 4, %v4247
        %v4272 = vsel %vm4187, %v4271, %v4247
        %v4273 = vsel %vm4186, %v1090, %v4270
        %v4274 = vsel %vm4186, 0, %v4272
        %v4275 = vcosq.f32.pop %v4273
        %v4276 = vsinq.f32.pop %v4273
        %vm4277 = vweird.f32 %v1090
        %v4278 = vand.u32 %v4274, 3
        %vm4279 = vcmp.lt.s32.totalorder %v4278, 2
        %vm4280 = vcmp.eq.s32.totalorder %v4278, 0
        %v4281 = vxor.u32 %v4276, 2147483648
        %v4282 = vsel %vm4280, %v4275, %v4281
        %vm4283 = vcmp.eq.s32.totalorder %v4278, 2
        %v4284 = vxor.u32 %v4275, 2147483648
        %v4285 = vsel %vm4283, %v4284, %v4276
        %v4286 = vsel %vm4279, %v4282, %v4285
        %v4287 = vsel %vm4277, nan, %v4286
        %v4288 = vand.u32 2147483647, %v1092
        %vm4289 = vcmp.le.f32.partialorder %v4288, 0.7853982
        %vm4290 = vcmp.lt.s32.totalorder %v1092, 0
        %v4291 = vand.u32 %v1092, 2139095040
        %v4292 = vshrl.u32 %v4291, 23
        %v4293 = vsub.s32 %v4292, 127
        %v4294 = vand.u32 2147483647, %v1092
        %v4295 = vand.u32 %v4294, 8388607
        %v4296 = vor.u32 %v4295, 8388608
        %v4297 = vsub.s32 0, %v4296
        %v4298 = vadd.s32 %v4293, 1
        %vm4299 = vcmp.gt.s32.totalorder %v4298, 0
        %v4300 = vsel %vm4299, %v4298, 0
        %v4301 = vshrl.u32 %v4300, 5
        %v4302 = vand.u32 %v4300, 31
        %v4303 = vsub.s32 32, %v4302
        %v4304 = vshrl.u32 683565275, %v4303
        %v4305 = vshll.u32 683565275, %v4302
        %v4306 = vshrl.u32 2475754826, %v4303
        %v4307 = vor.u32 %v4305, %v4306
        %v4308 = vshll.u32 2475754826, %v4302
        %v4309 = vshrl.u32 2131351028, %v4303
        %v4310 = vor.u32 %v4308, %v4309
        %v4311 = vshll.u32 2131351028, %v4302
        %v4312 = vshrl.u32 2102212464, %v4303
        %v4313 = vor.u32 %v4311, %v4312
        %v4314 = vshll.u32 2102212464, %v4302
        %v4315 = vshrl.u32 920167782, %v4303
        %v4316 = vor.u32 %v4314, %v4315
        %v4317 = vshll.u32 920167782, %v4302
        %v4318 = vshrl.u32 1326507024, %v4303
        %v4319 = vor.u32 %v4317, %v4318
        %vm4320 = vcmp.lt.s32.totalorder %v4301, 1
        %vm4321 = vcmp.lt.s32.totalorder %v4301, 2
        %vm4322 = vcmp.lt.s32.totalorder %v4301, 3
        %vm4323 = vcmp.lt.s32.totalorder %v4301, 4
        %v4324 = vsel %vm4320, %v4304, %v4307
        %v4325 = vsel %vm4323, %v4313, 2102212464
        %v4326 = vsel %vm4322, %v4310, %v4325
        %v4327 = vsel %vm4321, %v4324, %v4326
        %v4328 = vsel %vm4320, %v4307, %v4310
        %v4329 = vsel %vm4323, %v4316, 920167782
        %v4330 = vsel %vm4322, %v4313, %v4329
        %v4331 = vsel %vm4321, %v4328, %v4330
        %v4332 = vsel %vm4320, %v4310, %v4313
        %v4333 = vsel %vm4323, %v4319, 1326507024
        %v4334 = vsel %vm4322, %v4316, %v4333
        %v4335 = vsel %vm4321, %v4332, %v4334
        %v4336 = vshll.u32 %v4296, 8
        %v4337 = vmul.u32.u64.compose %v4336, %v4335
        %v4338 = vextract.low.u32 %v4337
        %v4339 = vextract.high.u32 %v4337
        %v4340 = vmul.u32.u64.compose %v4336, %v4331
        %v4341 = vextract.low.u32 %v4340
        %v4342 = vextract.high.u32 %v4340
        %v4343 = vmul.u32 %v4336, %v4327
        %v4344 = vadd.s32 %v4339, %v4341
        %vm4345 = vc.u32 %v4339, %v4341
        %v4346 = vadd.s32 %v4342, 1
        %v4347 = vsel %vm4345, %v4346, %v4342
        %v4348 = vadd.s32 %v4343, %v4347
        %v4349 = vadd.s32 %v4348, 536870912
        %v4350 = vshrl.u32 %v4349, 30
        %v4351 = vshll.u32 %v4350, 30
        %v4352 = vsub.s32 %v4348, %v4351
        %vm4353 = vcmp.lt.s32.totalorder %v4352, 0
        %v4354 = vsub.s32 0, %v4352
        %v4355 = vsel %vm4353, %v4354, %v4352
        %v4356 = vclz %v4355
        %v4357 = vsub.s32 %v4356, 2
        %vm4358 = vcmp.gt.s32.totalorder 0, %v4357
        %v4359 = vsel %vm4358, 0, %v4357
        %v4360 = vsub.s32 32, %v4359
        %v4361 = vshll.u32 %v4352, %v4359
        %v4362 = vshrl.u32 %v4344, %v4360
        %v4363 = vor.u32 %v4361, %v4362
        %v4364 = vsub.s32 4294967266, %v4359
        %v4365 = vadd.s32 %v4364, 127
        %v4366 = vshll.u32 %v4365, 23
        %v4367 = vor.u32 4788187, %v4366
        %v4368 = vand.u32 2147483647, %v4367
        %v4370 = vcvt.s32.f32 %v4363
        %v4371 = vmul.f32 %v4370, %v4368
        %v4372 = vxor.u32 %v4371, 2147483648
        %v4373 = vsel %vm4290, %v4372, %v4371
        %v4374 = vsub.s32 4, %v4350
        %v4375 = vsel %vm4290, %v4374, %v4350
        %v4376 = vsel %vm4289, %v1092, %v4373
        %v4377 = vsel %vm4289, 0, %v4375
        %v4378 = vcosq.f32.pop %v4376
        %v4379 = vsinq.f32.pop %v4376
        %vm4380 = vweird.f32 %v1092
        %v4381 = vand.u32 %v4377, 3
        %vm4382 = vcmp.lt.s32.totalorder %v4381, 2
        %vm4383 = vcmp.eq.s32.totalorder %v4381, 0
        %v4384 = vxor.u32 %v4379, 2147483648
        %v4385 = vsel %vm4383, %v4378, %v4384
        %vm4386 = vcmp.eq.s32.totalorder %v4381, 2
        %v4387 = vxor.u32 %v4378, 2147483648
        %v4388 = vsel %vm4386, %v4387, %v4379
        %v4389 = vsel %vm4382, %v4385, %v4388
        %v4390 = vsel %vm4380, nan, %v4389
        %4391 = vmatprep.subr.mxu0 %v1300
        %4392 = vmatpush1.msra.mxu0 %v1197
        %4393 = vmatprep.subr.mxu0 %v1506
        %4394 = vmatpush1.msra.mxu0 %v1403
        %4395 = vmatprep.subr.mxu0 %v1712
        %4396 = vmatpush1.msra.mxu0 %v1609
        %4397 = vmatprep.subr.mxu0 %v1918
        %4398 = vmatpush1.msra.mxu0 %v1815
        %4399 = vmatprep.subr.mxu0 %v2124
        %4400 = vmatpush1.msra.mxu0 %v2021
        %4401 = vmatprep.subr.mxu0 %v2330
        %4402 = vmatpush1.msra.mxu0 %v2227
        %4403 = vmatprep.subr.mxu0 %v2536
        %4404 = vmatpush1.msra.mxu0 %v2433
        %4405 = vmatprep.subr.mxu0 %v2742
        %4406 = vmatpush1.msra.mxu0 %v2639
        %4407 = vmatprep.subr.mxu0 %v2948
        %4408 = vmatpush1.msra.mxu0 %v2845
        %4409 = vmatprep.subr.mxu0 %v3154
        %4410 = vmatpush1.msra.mxu0 %v3051
        %4411 = vmatprep.subr.mxu0 %v3360
        %4412 = vmatpush1.msra.mxu0 %v3257
        %4413 = vmatprep.subr.mxu0 %v3566
        %4414 = vmatpush1.msra.mxu0 %v3463
        %4415 = vmatprep.subr.mxu0 %v3772
        %4416 = vmatpush1.msra.mxu0 %v3669
        %4417 = vmatprep.subr.mxu0 %v3978
        %4418 = vmatpush1.msra.mxu0 %v3875
        %4419 = vmatprep.subr.mxu0 %v4184
        %4420 = vmatpush1.msra.mxu0 %v4081
        %4421 = vmatprep.subr.mxu0 %v4390
        %4422 = vmatpush1.msra.mxu0 %v4287
        %4423 = vmatprep.subr.mxu0 0.0
        %4424 = vmatpush1.msra.mxu0 0.0
        %4425 = vmatprep.subr.mxu0 0.0
        %4426 = vmatpush1.msra.mxu0 0.0
        %4427 = vmatprep.subr.mxu0 0.0
        %4428 = vmatpush1.msra.mxu0 0.0
        %4429 = vmatprep.subr.mxu0 0.0
        %4430 = vmatpush1.msra.mxu0 0.0
        %4431 = vmatprep.subr.mxu0 0.0
        %4432 = vmatpush1.msra.mxu0 0.0
        %4433 = vmatprep.subr.mxu0 0.0
        %4434 = vmatpush1.msra.mxu0 0.0
        %4435 = vmatprep.subr.mxu0 0.0
        %4436 = vmatpush1.msra.mxu0 0.0
        %4437 = vmatprep.subr.mxu0 0.0
        %4438 = vmatpush1.msra.mxu0 0.0
        %4439 = vmatprep.subr.mxu0 0.0
        %4440 = vmatpush1.msra.mxu0 0.0
        %4441 = vmatprep.subr.mxu0 0.0
        %4442 = vmatpush1.msra.mxu0 0.0
        %4443 = vmatprep.subr.mxu0 0.0
        %4444 = vmatpush1.msra.mxu0 0.0
        %4445 = vmatprep.subr.mxu0 0.0
        %4446 = vmatpush1.msra.mxu0 0.0
        %4447 = vmatprep.subr.mxu0 0.0
        %4448 = vmatpush1.msra.mxu0 0.0
        %4449 = vmatprep.subr.mxu0 0.0
        %4450 = vmatpush1.msra.mxu0 0.0
        %4451 = vmatprep.subr.mxu0 0.0
        %4452 = vmatpush1.msra.mxu0 0.0
        %4453 = vmatprep.subr.mxu0 0.0
        %4454 = vmatpush1.msra.mxu0 0.0
        %4455 = vmatprep.mubr.f32.mxu0 0.0
        %4456 = vmatmul.mubr.f32.gmra.mrb[0].mxu0 %v1094
        %v4457 = vpop.f32.mrb[0].mxu0
        %v4458 = vadd.f32 0.0, %v4457
        %v4459 = vpop.f32.mrb[0].mxu0
        %v4460 = vadd.f32 0.0, %v4459
        %4461 = vdwg.mxu0
        %v4464 = vcombine.low %v4458, %v4460
        %v4466 = vunpack.c.l.s4 1966171168
        %v4467 = vunpack.c.0.s8 %v4466
        %v4468 = vlaneseq
        %v4469 = vshrl.u32 %v4468, 7
        %v4470 = vsub.s32 %v4467, %v4469
        %v4471 = vrot.slane %v4464, %v4470
        %v4473 = vunpack.c.l.s4 1966171168
        %v4474 = vunpack.c.0.s8 %v4473
        %v4475 = vlaneseq
        %v4476 = vshrl.u32 %v4475, 7
        %v4477 = vsub.s32 %v4474, %v4476
        %v4478 = vrot.slane %v4471, %v4477
        %v4480 = vlaneseq
        %vm4481 = vcmp.ge.s32.totalorder %v4480, 0
        %vm4482 = vcmp.lt.s32.totalorder %v4480, 256
        %vm4483 = vmand %vm4481, %vm4482
        %4484 = vst.msk [vmem:[%s394] ss:$4 sm:$0x3] %vm4483, %v4478
        %v4485 = vld [vmem:[%s8] sm:$0xff]
        %v4486 = vld [vmem:[%s8 + $0x8] sm:$0xff]
        %v4487 = vld [vmem:[%s8 + $0x10] sm:$0xff]
        %v4488 = vld [vmem:[%s8 + $0x18] sm:$0xff]
        %v4489 = vand.u32 2147483647, %v1000
        %vm4490 = vcmp.le.f32.partialorder %v4489, 0.7853982
        %vm4491 = vcmp.lt.s32.totalorder %v1000, 0
        %v4492 = vand.u32 %v1000, 2139095040
        %v4493 = vshrl.u32 %v4492, 23
        %v4494 = vsub.s32 %v4493, 127
        %v4495 = vand.u32 2147483647, %v1000
        %v4496 = vand.u32 %v4495, 8388607
        %v4497 = vor.u32 %v4496, 8388608
        %v4498 = vsub.s32 0, %v4497
        %v4499 = vadd.s32 %v4494, 1
        %vm4500 = vcmp.gt.s32.totalorder %v4499, 0
        %v4501 = vsel %vm4500, %v4499, 0
        %v4502 = vshrl.u32 %v4501, 5
        %v4503 = vand.u32 %v4501, 31
        %v4504 = vsub.s32 32, %v4503
        %v4505 = vshrl.u32 683565275, %v4504
        %v4506 = vshll.u32 683565275, %v4503
        %v4507 = vshrl.u32 2475754826, %v4504
        %v4508 = vor.u32 %v4506, %v4507
        %v4509 = vshll.u32 2475754826, %v4503
        %v4510 = vshrl.u32 2131351028, %v4504
        %v4511 = vor.u32 %v4509, %v4510
        %v4512 = vshll.u32 2131351028, %v4503
        %v4513 = vshrl.u32 2102212464, %v4504
        %v4514 = vor.u32 %v4512, %v4513
        %v4515 = vshll.u32 2102212464, %v4503
        %v4516 = vshrl.u32 920167782, %v4504
        %v4517 = vor.u32 %v4515, %v4516
        %v4518 = vshll.u32 920167782, %v4503
        %v4519 = vshrl.u32 1326507024, %v4504
        %v4520 = vor.u32 %v4518, %v4519
        %vm4521 = vcmp.lt.s32.totalorder %v4502, 1
        %vm4522 = vcmp.lt.s32.totalorder %v4502, 2
        %vm4523 = vcmp.lt.s32.totalorder %v4502, 3
        %vm4524 = vcmp.lt.s32.totalorder %v4502, 4
        %v4525 = vsel %vm4521, %v4505, %v4508
        %v4526 = vsel %vm4524, %v4514, 2102212464
        %v4527 = vsel %vm4523, %v4511, %v4526
        %v4528 = vsel %vm4522, %v4525, %v4527
        %v4529 = vsel %vm4521, %v4508, %v4511
        %v4530 = vsel %vm4524, %v4517, 920167782
        %v4531 = vsel %vm4523, %v4514, %v4530
        %v4532 = vsel %vm4522, %v4529, %v4531
        %v4533 = vsel %vm4521, %v4511, %v4514
        %v4534 = vsel %vm4524, %v4520, 1326507024
        %v4535 = vsel %vm4523, %v4517, %v4534
        %v4536 = vsel %vm4522, %v4533, %v4535
        %v4537 = vshll.u32 %v4497, 8
        %v4538 = vmul.u32.u64.compose %v4537, %v4536
        %v4539 = vextract.low.u32 %v4538
        %v4540 = vextract.high.u32 %v4538
        %v4541 = vmul.u32.u64.compose %v4537, %v4532
        %v4542 = vextract.low.u32 %v4541
        %v4543 = vextract.high.u32 %v4541
        %v4544 = vmul.u32 %v4537, %v4528
        %v4545 = vadd.s32 %v4540, %v4542
        %vm4546 = vc.u32 %v4540, %v4542
        %v4547 = vadd.s32 %v4543, 1
        %v4548 = vsel %vm4546, %v4547, %v4543
        %v4549 = vadd.s32 %v4544, %v4548
        %v4550 = vadd.s32 %v4549, 536870912
        %v4551 = vshrl.u32 %v4550, 30
        %v4552 = vshll.u32 %v4551, 30
        %v4553 = vsub.s32 %v4549, %v4552
        %vm4554 = vcmp.lt.s32.totalorder %v4553, 0
        %v4555 = vsub.s32 0, %v4553
        %v4556 = vsel %vm4554, %v4555, %v4553
        %v4557 = vclz %v4556
        %v4558 = vsub.s32 %v4557, 2
        %vm4559 = vcmp.gt.s32.totalorder 0, %v4558
        %v4560 = vsel %vm4559, 0, %v4558
        %v4561 = vsub.s32 32, %v4560
        %v4562 = vshll.u32 %v4553, %v4560
        %v4563 = vshrl.u32 %v4545, %v4561
        %v4564 = vor.u32 %v4562, %v4563
        %v4565 = vsub.s32 4294967266, %v4560
        %v4566 = vadd.s32 %v4565, 127
        %v4567 = vshll.u32 %v4566, 23
        %v4568 = vor.u32 4788187, %v4567
        %v4569 = vand.u32 2147483647, %v4568
        %v4571 = vcvt.s32.f32 %v4564
        %v4572 = vmul.f32 %v4571, %v4569
        %v4573 = vxor.u32 %v4572, 2147483648
        %v4574 = vsel %vm4491, %v4573, %v4572
        %v4575 = vsub.s32 4, %v4551
        %v4576 = vsel %vm4491, %v4575, %v4551
        %v4577 = vsel %vm4490, %v1000, %v4574
        %v4578 = vsel %vm4490, 0, %v4576
        %v4579 = vcosq.f32.pop %v4577
        %v4580 = vsinq.f32.pop %v4577
        %vm4581 = vweird.f32 %v1000
        %v4582 = vadd.s32 %v4578, 3
        %v4583 = vand.u32 %v4582, 3
        %vm4584 = vcmp.lt.s32.totalorder %v4583, 2
        %vm4585 = vcmp.eq.s32.totalorder %v4583, 0
        %v4586 = vxor.u32 %v4580, 2147483648
        %v4587 = vsel %vm4585, %v4579, %v4586
        %vm4588 = vcmp.eq.s32.totalorder %v4583, 2
        %v4589 = vxor.u32 %v4579, 2147483648
        %v4590 = vsel %vm4588, %v4589, %v4580
        %v4591 = vsel %vm4584, %v4587, %v4590
        %v4592 = vsel %vm4581, nan, %v4591
        %v4593 = vand.u32 2147483647, %v1002
        %vm4594 = vcmp.le.f32.partialorder %v4593, 0.7853982
        %vm4595 = vcmp.lt.s32.totalorder %v1002, 0
        %v4596 = vand.u32 %v1002, 2139095040
        %v4597 = vshrl.u32 %v4596, 23
        %v4598 = vsub.s32 %v4597, 127
        %v4599 = vand.u32 2147483647, %v1002
        %v4600 = vand.u32 %v4599, 8388607
        %v4601 = vor.u32 %v4600, 8388608
        %v4602 = vsub.s32 0, %v4601
        %v4603 = vadd.s32 %v4598, 1
        %vm4604 = vcmp.gt.s32.totalorder %v4603, 0
        %v4605 = vsel %vm4604, %v4603, 0
        %v4606 = vshrl.u32 %v4605, 5
        %v4607 = vand.u32 %v4605, 31
        %v4608 = vsub.s32 32, %v4607
        %v4609 = vshrl.u32 683565275, %v4608
        %v4610 = vshll.u32 683565275, %v4607
        %v4611 = vshrl.u32 2475754826, %v4608
        %v4612 = vor.u32 %v4610, %v4611
        %v4613 = vshll.u32 2475754826, %v4607
        %v4614 = vshrl.u32 2131351028, %v4608
        %v4615 = vor.u32 %v4613, %v4614
        %v4616 = vshll.u32 2131351028, %v4607
        %v4617 = vshrl.u32 2102212464, %v4608
        %v4618 = vor.u32 %v4616, %v4617
        %v4619 = vshll.u32 2102212464, %v4607
        %v4620 = vshrl.u32 920167782, %v4608
        %v4621 = vor.u32 %v4619, %v4620
        %v4622 = vshll.u32 920167782, %v4607
        %v4623 = vshrl.u32 1326507024, %v4608
        %v4624 = vor.u32 %v4622, %v4623
        %vm4625 = vcmp.lt.s32.totalorder %v4606, 1
        %vm4626 = vcmp.lt.s32.totalorder %v4606, 2
        %vm4627 = vcmp.lt.s32.totalorder %v4606, 3
        %vm4628 = vcmp.lt.s32.totalorder %v4606, 4
        %v4629 = vsel %vm4625, %v4609, %v4612
        %v4630 = vsel %vm4628, %v4618, 2102212464
        %v4631 = vsel %vm4627, %v4615, %v4630
        %v4632 = vsel %vm4626, %v4629, %v4631
        %v4633 = vsel %vm4625, %v4612, %v4615
        %v4634 = vsel %vm4628, %v4621, 920167782
        %v4635 = vsel %vm4627, %v4618, %v4634
        %v4636 = vsel %vm4626, %v4633, %v4635
        %v4637 = vsel %vm4625, %v4615, %v4618
        %v4638 = vsel %vm4628, %v4624, 1326507024
        %v4639 = vsel %vm4627, %v4621, %v4638
        %v4640 = vsel %vm4626, %v4637, %v4639
        %v4641 = vshll.u32 %v4601, 8
        %v4642 = vmul.u32.u64.compose %v4641, %v4640
        %v4643 = vextract.low.u32 %v4642
        %v4644 = vextract.high.u32 %v4642
        %v4645 = vmul.u32.u64.compose %v4641, %v4636
        %v4646 = vextract.low.u32 %v4645
        %v4647 = vextract.high.u32 %v4645
        %v4648 = vmul.u32 %v4641, %v4632
        %v4649 = vadd.s32 %v4644, %v4646
        %vm4650 = vc.u32 %v4644, %v4646
        %v4651 = vadd.s32 %v4647, 1
        %v4652 = vsel %vm4650, %v4651, %v4647
        %v4653 = vadd.s32 %v4648, %v4652
        %v4654 = vadd.s32 %v4653, 536870912
        %v4655 = vshrl.u32 %v4654, 30
        %v4656 = vshll.u32 %v4655, 30
        %v4657 = vsub.s32 %v4653, %v4656
        %vm4658 = vcmp.lt.s32.totalorder %v4657, 0
        %v4659 = vsub.s32 0, %v4657
        %v4660 = vsel %vm4658, %v4659, %v4657
        %v4661 = vclz %v4660
        %v4662 = vsub.s32 %v4661, 2
        %vm4663 = vcmp.gt.s32.totalorder 0, %v4662
        %v4664 = vsel %vm4663, 0, %v4662
        %v4665 = vsub.s32 32, %v4664
        %v4666 = vshll.u32 %v4657, %v4664
        %v4667 = vshrl.u32 %v4649, %v4665
        %v4668 = vor.u32 %v4666, %v4667
        %v4669 = vsub.s32 4294967266, %v4664
        %v4670 = vadd.s32 %v4669, 127
        %v4671 = vshll.u32 %v4670, 23
        %v4672 = vor.u32 4788187, %v4671
        %v4673 = vand.u32 2147483647, %v4672
        %v4675 = vcvt.s32.f32 %v4668
        %v4676 = vmul.f32 %v4675, %v4673
        %v4677 = vxor.u32 %v4676, 2147483648
        %v4678 = vsel %vm4595, %v4677, %v4676
        %v4679 = vsub.s32 4, %v4655
        %v4680 = vsel %vm4595, %v4679, %v4655
        %v4681 = vsel %vm4594, %v1002, %v4678
        %v4682 = vsel %vm4594, 0, %v4680
        %v4683 = vcosq.f32.pop %v4681
        %v4684 = vsinq.f32.pop %v4681
        %vm4685 = vweird.f32 %v1002
        %v4686 = vadd.s32 %v4682, 3
        %v4687 = vand.u32 %v4686, 3
        %vm4688 = vcmp.lt.s32.totalorder %v4687, 2
        %vm4689 = vcmp.eq.s32.totalorder %v4687, 0
        %v4690 = vxor.u32 %v4684, 2147483648
        %v4691 = vsel %vm4689, %v4683, %v4690
        %vm4692 = vcmp.eq.s32.totalorder %v4687, 2
        %v4693 = vxor.u32 %v4683, 2147483648
        %v4694 = vsel %vm4692, %v4693, %v4684
        %v4695 = vsel %vm4688, %v4691, %v4694
        %v4696 = vsel %vm4685, nan, %v4695
        %v4697 = vand.u32 2147483647, %v1006
        %vm4698 = vcmp.le.f32.partialorder %v4697, 0.7853982
        %vm4699 = vcmp.lt.s32.totalorder %v1006, 0
        %v4700 = vand.u32 %v1006, 2139095040
        %v4701 = vshrl.u32 %v4700, 23
        %v4702 = vsub.s32 %v4701, 127
        %v4703 = vand.u32 2147483647, %v1006
        %v4704 = vand.u32 %v4703, 8388607
        %v4705 = vor.u32 %v4704, 8388608
        %v4706 = vsub.s32 0, %v4705
        %v4707 = vadd.s32 %v4702, 1
        %vm4708 = vcmp.gt.s32.totalorder %v4707, 0
        %v4709 = vsel %vm4708, %v4707, 0
        %v4710 = vshrl.u32 %v4709, 5
        %v4711 = vand.u32 %v4709, 31
        %v4712 = vsub.s32 32, %v4711
        %v4713 = vshrl.u32 683565275, %v4712
        %v4714 = vshll.u32 683565275, %v4711
        %v4715 = vshrl.u32 2475754826, %v4712
        %v4716 = vor.u32 %v4714, %v4715
        %v4717 = vshll.u32 2475754826, %v4711
        %v4718 = vshrl.u32 2131351028, %v4712
        %v4719 = vor.u32 %v4717, %v4718
        %v4720 = vshll.u32 2131351028, %v4711
        %v4721 = vshrl.u32 2102212464, %v4712
        %v4722 = vor.u32 %v4720, %v4721
        %v4723 = vshll.u32 2102212464, %v4711
        %v4724 = vshrl.u32 920167782, %v4712
        %v4725 = vor.u32 %v4723, %v4724
        %v4726 = vshll.u32 920167782, %v4711
        %v4727 = vshrl.u32 1326507024, %v4712
        %v4728 = vor.u32 %v4726, %v4727
        %vm4729 = vcmp.lt.s32.totalorder %v4710, 1
        %vm4730 = vcmp.lt.s32.totalorder %v4710, 2
        %vm4731 = vcmp.lt.s32.totalorder %v4710, 3
        %vm4732 = vcmp.lt.s32.totalorder %v4710, 4
        %v4733 = vsel %vm4729, %v4713, %v4716
        %v4734 = vsel %vm4732, %v4722, 2102212464
        %v4735 = vsel %vm4731, %v4719, %v4734
        %v4736 = vsel %vm4730, %v4733, %v4735
        %v4737 = vsel %vm4729, %v4716, %v4719
        %v4738 = vsel %vm4732, %v4725, 920167782
        %v4739 = vsel %vm4731, %v4722, %v4738
        %v4740 = vsel %vm4730, %v4737, %v4739
        %v4741 = vsel %vm4729, %v4719, %v4722
        %v4742 = vsel %vm4732, %v4728, 1326507024
        %v4743 = vsel %vm4731, %v4725, %v4742
        %v4744 = vsel %vm4730, %v4741, %v4743
        %v4745 = vshll.u32 %v4705, 8
        %v4746 = vmul.u32.u64.compose %v4745, %v4744
        %v4747 = vextract.low.u32 %v4746
        %v4748 = vextract.high.u32 %v4746
        %v4749 = vmul.u32.u64.compose %v4745, %v4740
        %v4750 = vextract.low.u32 %v4749
        %v4751 = vextract.high.u32 %v4749
        %v4752 = vmul.u32 %v4745, %v4736
        %v4753 = vadd.s32 %v4748, %v4750
        %vm4754 = vc.u32 %v4748, %v4750
        %v4755 = vadd.s32 %v4751, 1
        %v4756 = vsel %vm4754, %v4755, %v4751
        %v4757 = vadd.s32 %v4752, %v4756
        %v4758 = vadd.s32 %v4757, 536870912
        %v4759 = vshrl.u32 %v4758, 30
        %v4760 = vshll.u32 %v4759, 30
        %v4761 = vsub.s32 %v4757, %v4760
        %vm4762 = vcmp.lt.s32.totalorder %v4761, 0
        %v4763 = vsub.s32 0, %v4761
        %v4764 = vsel %vm4762, %v4763, %v4761
        %v4765 = vclz %v4764
        %v4766 = vsub.s32 %v4765, 2
        %vm4767 = vcmp.gt.s32.totalorder 0, %v4766
        %v4768 = vsel %vm4767, 0, %v4766
        %v4769 = vsub.s32 32, %v4768
        %v4770 = vshll.u32 %v4761, %v4768
        %v4771 = vshrl.u32 %v4753, %v4769
        %v4772 = vor.u32 %v4770, %v4771
        %v4773 = vsub.s32 4294967266, %v4768
        %v4774 = vadd.s32 %v4773, 127
        %v4775 = vshll.u32 %v4774, 23
        %v4776 = vor.u32 4788187, %v4775
        %v4777 = vand.u32 2147483647, %v4776
        %v4779 = vcvt.s32.f32 %v4772
        %v4780 = vmul.f32 %v4779, %v4777
        %v4781 = vxor.u32 %v4780, 2147483648
        %v4782 = vsel %vm4699, %v4781, %v4780
        %v4783 = vsub.s32 4, %v4759
        %v4784 = vsel %vm4699, %v4783, %v4759
        %v4785 = vsel %vm4698, %v1006, %v4782
        %v4786 = vsel %vm4698, 0, %v4784
        %v4787 = vcosq.f32.pop %v4785
        %v4788 = vsinq.f32.pop %v4785
        %vm4789 = vweird.f32 %v1006
        %v4790 = vadd.s32 %v4786, 3
        %v4791 = vand.u32 %v4790, 3
        %vm4792 = vcmp.lt.s32.totalorder %v4791, 2
        %vm4793 = vcmp.eq.s32.totalorder %v4791, 0
        %v4794 = vxor.u32 %v4788, 2147483648
        %v4795 = vsel %vm4793, %v4787, %v4794
        %vm4796 = vcmp.eq.s32.totalorder %v4791, 2
        %v4797 = vxor.u32 %v4787, 2147483648
        %v4798 = vsel %vm4796, %v4797, %v4788
        %v4799 = vsel %vm4792, %v4795, %v4798
        %v4800 = vsel %vm4789, nan, %v4799
        %v4801 = vand.u32 2147483647, %v1008
        %vm4802 = vcmp.le.f32.partialorder %v4801, 0.7853982
        %vm4803 = vcmp.lt.s32.totalorder %v1008, 0
        %v4804 = vand.u32 %v1008, 2139095040
        %v4805 = vshrl.u32 %v4804, 23
        %v4806 = vsub.s32 %v4805, 127
        %v4807 = vand.u32 2147483647, %v1008
        %v4808 = vand.u32 %v4807, 8388607
        %v4809 = vor.u32 %v4808, 8388608
        %v4810 = vsub.s32 0, %v4809
        %v4811 = vadd.s32 %v4806, 1
        %vm4812 = vcmp.gt.s32.totalorder %v4811, 0
        %v4813 = vsel %vm4812, %v4811, 0
        %v4814 = vshrl.u32 %v4813, 5
        %v4815 = vand.u32 %v4813, 31
        %v4816 = vsub.s32 32, %v4815
        %v4817 = vshrl.u32 683565275, %v4816
        %v4818 = vshll.u32 683565275, %v4815
        %v4819 = vshrl.u32 2475754826, %v4816
        %v4820 = vor.u32 %v4818, %v4819
        %v4821 = vshll.u32 2475754826, %v4815
        %v4822 = vshrl.u32 2131351028, %v4816
        %v4823 = vor.u32 %v4821, %v4822
        %v4824 = vshll.u32 2131351028, %v4815
        %v4825 = vshrl.u32 2102212464, %v4816
        %v4826 = vor.u32 %v4824, %v4825
        %v4827 = vshll.u32 2102212464, %v4815
        %v4828 = vshrl.u32 920167782, %v4816
        %v4829 = vor.u32 %v4827, %v4828
        %v4830 = vshll.u32 920167782, %v4815
        %v4831 = vshrl.u32 1326507024, %v4816
        %v4832 = vor.u32 %v4830, %v4831
        %vm4833 = vcmp.lt.s32.totalorder %v4814, 1
        %vm4834 = vcmp.lt.s32.totalorder %v4814, 2
        %vm4835 = vcmp.lt.s32.totalorder %v4814, 3
        %vm4836 = vcmp.lt.s32.totalorder %v4814, 4
        %v4837 = vsel %vm4833, %v4817, %v4820
        %v4838 = vsel %vm4836, %v4826, 2102212464
        %v4839 = vsel %vm4835, %v4823, %v4838
        %v4840 = vsel %vm4834, %v4837, %v4839
        %v4841 = vsel %vm4833, %v4820, %v4823
        %v4842 = vsel %vm4836, %v4829, 920167782
        %v4843 = vsel %vm4835, %v4826, %v4842
        %v4844 = vsel %vm4834, %v4841, %v4843
        %v4845 = vsel %vm4833, %v4823, %v4826
        %v4846 = vsel %vm4836, %v4832, 1326507024
        %v4847 = vsel %vm4835, %v4829, %v4846
        %v4848 = vsel %vm4834, %v4845, %v4847
        %v4849 = vshll.u32 %v4809, 8
        %v4850 = vmul.u32.u64.compose %v4849, %v4848
        %v4851 = vextract.low.u32 %v4850
        %v4852 = vextract.high.u32 %v4850
        %v4853 = vmul.u32.u64.compose %v4849, %v4844
        %v4854 = vextract.low.u32 %v4853
        %v4855 = vextract.high.u32 %v4853
        %v4856 = vmul.u32 %v4849, %v4840
        %v4857 = vadd.s32 %v4852, %v4854
        %vm4858 = vc.u32 %v4852, %v4854
        %v4859 = vadd.s32 %v4855, 1
        %v4860 = vsel %vm4858, %v4859, %v4855
        %v4861 = vadd.s32 %v4856, %v4860
        %v4862 = vadd.s32 %v4861, 536870912
        %v4863 = vshrl.u32 %v4862, 30
        %v4864 = vshll.u32 %v4863, 30
        %v4865 = vsub.s32 %v4861, %v4864
        %vm4866 = vcmp.lt.s32.totalorder %v4865, 0
        %v4867 = vsub.s32 0, %v4865
        %v4868 = vsel %vm4866, %v4867, %v4865
        %v4869 = vclz %v4868
        %v4870 = vsub.s32 %v4869, 2
        %vm4871 = vcmp.gt.s32.totalorder 0, %v4870
        %v4872 = vsel %vm4871, 0, %v4870
        %v4873 = vsub.s32 32, %v4872
        %v4874 = vshll.u32 %v4865, %v4872
        %v4875 = vshrl.u32 %v4857, %v4873
        %v4876 = vor.u32 %v4874, %v4875
        %v4877 = vsub.s32 4294967266, %v4872
        %v4878 = vadd.s32 %v4877, 127
        %v4879 = vshll.u32 %v4878, 23
        %v4880 = vor.u32 4788187, %v4879
        %v4881 = vand.u32 2147483647, %v4880
        %v4883 = vcvt.s32.f32 %v4876
        %v4884 = vmul.f32 %v4883, %v4881
        %v4885 = vxor.u32 %v4884, 2147483648
        %v4886 = vsel %vm4803, %v4885, %v4884
        %v4887 = vsub.s32 4, %v4863
        %v4888 = vsel %vm4803, %v4887, %v4863
        %v4889 = vsel %vm4802, %v1008, %v4886
        %v4890 = vsel %vm4802, 0, %v4888
        %v4891 = vcosq.f32.pop %v4889
        %v4892 = vsinq.f32.pop %v4889
        %vm4893 = vweird.f32 %v1008
        %v4894 = vadd.s32 %v4890, 3
        %v4895 = vand.u32 %v4894, 3
        %vm4896 = vcmp.lt.s32.totalorder %v4895, 2
        %vm4897 = vcmp.eq.s32.totalorder %v4895, 0
        %v4898 = vxor.u32 %v4892, 2147483648
        %v4899 = vsel %vm4897, %v4891, %v4898
        %vm4900 = vcmp.eq.s32.totalorder %v4895, 2
        %v4901 = vxor.u32 %v4891, 2147483648
        %v4902 = vsel %vm4900, %v4901, %v4892
        %v4903 = vsel %vm4896, %v4899, %v4902
        %v4904 = vsel %vm4893, nan, %v4903
        %v4905 = vand.u32 2147483647, %v1012
        %vm4906 = vcmp.le.f32.partialorder %v4905, 0.7853982
        %vm4907 = vcmp.lt.s32.totalorder %v1012, 0
        %v4908 = vand.u32 %v1012, 2139095040
        %v4909 = vshrl.u32 %v4908, 23
        %v4910 = vsub.s32 %v4909, 127
        %v4911 = vand.u32 2147483647, %v1012
        %v4912 = vand.u32 %v4911, 8388607
        %v4913 = vor.u32 %v4912, 8388608
        %v4914 = vsub.s32 0, %v4913
        %v4915 = vadd.s32 %v4910, 1
        %vm4916 = vcmp.gt.s32.totalorder %v4915, 0
        %v4917 = vsel %vm4916, %v4915, 0
        %v4918 = vshrl.u32 %v4917, 5
        %v4919 = vand.u32 %v4917, 31
        %v4920 = vsub.s32 32, %v4919
        %v4921 = vshrl.u32 683565275, %v4920
        %v4922 = vshll.u32 683565275, %v4919
        %v4923 = vshrl.u32 2475754826, %v4920
        %v4924 = vor.u32 %v4922, %v4923
        %v4925 = vshll.u32 2475754826, %v4919
        %v4926 = vshrl.u32 2131351028, %v4920
        %v4927 = vor.u32 %v4925, %v4926
        %v4928 = vshll.u32 2131351028, %v4919
        %v4929 = vshrl.u32 2102212464, %v4920
        %v4930 = vor.u32 %v4928, %v4929
        %v4931 = vshll.u32 2102212464, %v4919
        %v4932 = vshrl.u32 920167782, %v4920
        %v4933 = vor.u32 %v4931, %v4932
        %v4934 = vshll.u32 920167782, %v4919
        %v4935 = vshrl.u32 1326507024, %v4920
        %v4936 = vor.u32 %v4934, %v4935
        %vm4937 = vcmp.lt.s32.totalorder %v4918, 1
        %vm4938 = vcmp.lt.s32.totalorder %v4918, 2
        %vm4939 = vcmp.lt.s32.totalorder %v4918, 3
        %vm4940 = vcmp.lt.s32.totalorder %v4918, 4
        %v4941 = vsel %vm4937, %v4921, %v4924
        %v4942 = vsel %vm4940, %v4930, 2102212464
        %v4943 = vsel %vm4939, %v4927, %v4942
        %v4944 = vsel %vm4938, %v4941, %v4943
        %v4945 = vsel %vm4937, %v4924, %v4927
        %v4946 = vsel %vm4940, %v4933, 920167782
        %v4947 = vsel %vm4939, %v4930, %v4946
        %v4948 = vsel %vm4938, %v4945, %v4947
        %v4949 = vsel %vm4937, %v4927, %v4930
        %v4950 = vsel %vm4940, %v4936, 1326507024
        %v4951 = vsel %vm4939, %v4933, %v4950
        %v4952 = vsel %vm4938, %v4949, %v4951
        %v4953 = vshll.u32 %v4913, 8
        %v4954 = vmul.u32.u64.compose %v4953, %v4952
        %v4955 = vextract.low.u32 %v4954
        %v4956 = vextract.high.u32 %v4954
        %v4957 = vmul.u32.u64.compose %v4953, %v4948
        %v4958 = vextract.low.u32 %v4957
        %v4959 = vextract.high.u32 %v4957
        %v4960 = vmul.u32 %v4953, %v4944
        %v4961 = vadd.s32 %v4956, %v4958
        %vm4962 = vc.u32 %v4956, %v4958
        %v4963 = vadd.s32 %v4959, 1
        %v4964 = vsel %vm4962, %v4963, %v4959
        %v4965 = vadd.s32 %v4960, %v4964
        %v4966 = vadd.s32 %v4965, 536870912
        %v4967 = vshrl.u32 %v4966, 30
        %v4968 = vshll.u32 %v4967, 30
        %v4969 = vsub.s32 %v4965, %v4968
        %vm4970 = vcmp.lt.s32.totalorder %v4969, 0
        %v4971 = vsub.s32 0, %v4969
        %v4972 = vsel %vm4970, %v4971, %v4969
        %v4973 = vclz %v4972
        %v4974 = vsub.s32 %v4973, 2
        %vm4975 = vcmp.gt.s32.totalorder 0, %v4974
        %v4976 = vsel %vm4975, 0, %v4974
        %v4977 = vsub.s32 32, %v4976
        %v4978 = vshll.u32 %v4969, %v4976
        %v4979 = vshrl.u32 %v4961, %v4977
        %v4980 = vor.u32 %v4978, %v4979
        %v4981 = vsub.s32 4294967266, %v4976
        %v4982 = vadd.s32 %v4981, 127
        %v4983 = vshll.u32 %v4982, 23
        %v4984 = vor.u32 4788187, %v4983
        %v4985 = vand.u32 2147483647, %v4984
        %v4987 = vcvt.s32.f32 %v4980
        %v4988 = vmul.f32 %v4987, %v4985
        %v4989 = vxor.u32 %v4988, 2147483648
        %v4990 = vsel %vm4907, %v4989, %v4988
        %v4991 = vsub.s32 4, %v4967
        %v4992 = vsel %vm4907, %v4991, %v4967
        %v4993 = vsel %vm4906, %v1012, %v4990
        %v4994 = vsel %vm4906, 0, %v4992
        %v4995 = vcosq.f32.pop %v4993
        %v4996 = vsinq.f32.pop %v4993
        %vm4997 = vweird.f32 %v1012
        %v4998 = vadd.s32 %v4994, 3
        %v4999 = vand.u32 %v4998, 3
        %vm5000 = vcmp.lt.s32.totalorder %v4999, 2
        %vm5001 = vcmp.eq.s32.totalorder %v4999, 0
        %v5002 = vxor.u32 %v4996, 2147483648
        %v5003 = vsel %vm5001, %v4995, %v5002
        %vm5004 = vcmp.eq.s32.totalorder %v4999, 2
        %v5005 = vxor.u32 %v4995, 2147483648
        %v5006 = vsel %vm5004, %v5005, %v4996
        %v5007 = vsel %vm5000, %v5003, %v5006
        %v5008 = vsel %vm4997, nan, %v5007
        %v5009 = vand.u32 2147483647, %v1014
        %vm5010 = vcmp.le.f32.partialorder %v5009, 0.7853982
        %vm5011 = vcmp.lt.s32.totalorder %v1014, 0
        %v5012 = vand.u32 %v1014, 2139095040
        %v5013 = vshrl.u32 %v5012, 23
        %v5014 = vsub.s32 %v5013, 127
        %v5015 = vand.u32 2147483647, %v1014
        %v5016 = vand.u32 %v5015, 8388607
        %v5017 = vor.u32 %v5016, 8388608
        %v5018 = vsub.s32 0, %v5017
        %v5019 = vadd.s32 %v5014, 1
        %vm5020 = vcmp.gt.s32.totalorder %v5019, 0
        %v5021 = vsel %vm5020, %v5019, 0
        %v5022 = vshrl.u32 %v5021, 5
        %v5023 = vand.u32 %v5021, 31
        %v5024 = vsub.s32 32, %v5023
        %v5025 = vshrl.u32 683565275, %v5024
        %v5026 = vshll.u32 683565275, %v5023
        %v5027 = vshrl.u32 2475754826, %v5024
        %v5028 = vor.u32 %v5026, %v5027
        %v5029 = vshll.u32 2475754826, %v5023
        %v5030 = vshrl.u32 2131351028, %v5024
        %v5031 = vor.u32 %v5029, %v5030
        %v5032 = vshll.u32 2131351028, %v5023
        %v5033 = vshrl.u32 2102212464, %v5024
        %v5034 = vor.u32 %v5032, %v5033
        %v5035 = vshll.u32 2102212464, %v5023
        %v5036 = vshrl.u32 920167782, %v5024
        %v5037 = vor.u32 %v5035, %v5036
        %v5038 = vshll.u32 920167782, %v5023
        %v5039 = vshrl.u32 1326507024, %v5024
        %v5040 = vor.u32 %v5038, %v5039
        %vm5041 = vcmp.lt.s32.totalorder %v5022, 1
        %vm5042 = vcmp.lt.s32.totalorder %v5022, 2
        %vm5043 = vcmp.lt.s32.totalorder %v5022, 3
        %vm5044 = vcmp.lt.s32.totalorder %v5022, 4
        %v5045 = vsel %vm5041, %v5025, %v5028
        %v5046 = vsel %vm5044, %v5034, 2102212464
        %v5047 = vsel %vm5043, %v5031, %v5046
        %v5048 = vsel %vm5042, %v5045, %v5047
        %v5049 = vsel %vm5041, %v5028, %v5031
        %v5050 = vsel %vm5044, %v5037, 920167782
        %v5051 = vsel %vm5043, %v5034, %v5050
        %v5052 = vsel %vm5042, %v5049, %v5051
        %v5053 = vsel %vm5041, %v5031, %v5034
        %v5054 = vsel %vm5044, %v5040, 1326507024
        %v5055 = vsel %vm5043, %v5037, %v5054
        %v5056 = vsel %vm5042, %v5053, %v5055
        %v5057 = vshll.u32 %v5017, 8
        %v5058 = vmul.u32.u64.compose %v5057, %v5056
        %v5059 = vextract.low.u32 %v5058
        %v5060 = vextract.high.u32 %v5058
        %v5061 = vmul.u32.u64.compose %v5057, %v5052
        %v5062 = vextract.low.u32 %v5061
        %v5063 = vextract.high.u32 %v5061
        %v5064 = vmul.u32 %v5057, %v5048
        %v5065 = vadd.s32 %v5060, %v5062
        %vm5066 = vc.u32 %v5060, %v5062
        %v5067 = vadd.s32 %v5063, 1
        %v5068 = vsel %vm5066, %v5067, %v5063
        %v5069 = vadd.s32 %v5064, %v5068
        %v5070 = vadd.s32 %v5069, 536870912
        %v5071 = vshrl.u32 %v5070, 30
        %v5072 = vshll.u32 %v5071, 30
        %v5073 = vsub.s32 %v5069, %v5072
        %vm5074 = vcmp.lt.s32.totalorder %v5073, 0
        %v5075 = vsub.s32 0, %v5073
        %v5076 = vsel %vm5074, %v5075, %v5073
        %v5077 = vclz %v5076
        %v5078 = vsub.s32 %v5077, 2
        %vm5079 = vcmp.gt.s32.totalorder 0, %v5078
        %v5080 = vsel %vm5079, 0, %v5078
        %v5081 = vsub.s32 32, %v5080
        %v5082 = vshll.u32 %v5073, %v5080
        %v5083 = vshrl.u32 %v5065, %v5081
        %v5084 = vor.u32 %v5082, %v5083
        %v5085 = vsub.s32 4294967266, %v5080
        %v5086 = vadd.s32 %v5085, 127
        %v5087 = vshll.u32 %v5086, 23
        %v5088 = vor.u32 4788187, %v5087
        %v5089 = vand.u32 2147483647, %v5088
        %v5091 = vcvt.s32.f32 %v5084
        %v5092 = vmul.f32 %v5091, %v5089
        %v5093 = vxor.u32 %v5092, 2147483648
        %v5094 = vsel %vm5011, %v5093, %v5092
        %v5095 = vsub.s32 4, %v5071
        %v5096 = vsel %vm5011, %v5095, %v5071
        %v5097 = vsel %vm5010, %v1014, %v5094
        %v5098 = vsel %vm5010, 0, %v5096
        %v5099 = vcosq.f32.pop %v5097
        %v5100 = vsinq.f32.pop %v5097
        %vm5101 = vweird.f32 %v1014
        %v5102 = vadd.s32 %v5098, 3
        %v5103 = vand.u32 %v5102, 3
        %vm5104 = vcmp.lt.s32.totalorder %v5103, 2
        %vm5105 = vcmp.eq.s32.totalorder %v5103, 0
        %v5106 = vxor.u32 %v5100, 2147483648
        %v5107 = vsel %vm5105, %v5099, %v5106
        %vm5108 = vcmp.eq.s32.totalorder %v5103, 2
        %v5109 = vxor.u32 %v5099, 2147483648
        %v5110 = vsel %vm5108, %v5109, %v5100
        %v5111 = vsel %vm5104, %v5107, %v5110
        %v5112 = vsel %vm5101, nan, %v5111
        %v5113 = vand.u32 2147483647, %v1018
        %vm5114 = vcmp.le.f32.partialorder %v5113, 0.7853982
        %vm5115 = vcmp.lt.s32.totalorder %v1018, 0
        %v5116 = vand.u32 %v1018, 2139095040
        %v5117 = vshrl.u32 %v5116, 23
        %v5118 = vsub.s32 %v5117, 127
        %v5119 = vand.u32 2147483647, %v1018
        %v5120 = vand.u32 %v5119, 8388607
        %v5121 = vor.u32 %v5120, 8388608
        %v5122 = vsub.s32 0, %v5121
        %v5123 = vadd.s32 %v5118, 1
        %vm5124 = vcmp.gt.s32.totalorder %v5123, 0
        %v5125 = vsel %vm5124, %v5123, 0
        %v5126 = vshrl.u32 %v5125, 5
        %v5127 = vand.u32 %v5125, 31
        %v5128 = vsub.s32 32, %v5127
        %v5129 = vshrl.u32 683565275, %v5128
        %v5130 = vshll.u32 683565275, %v5127
        %v5131 = vshrl.u32 2475754826, %v5128
        %v5132 = vor.u32 %v5130, %v5131
        %v5133 = vshll.u32 2475754826, %v5127
        %v5134 = vshrl.u32 2131351028, %v5128
        %v5135 = vor.u32 %v5133, %v5134
        %v5136 = vshll.u32 2131351028, %v5127
        %v5137 = vshrl.u32 2102212464, %v5128
        %v5138 = vor.u32 %v5136, %v5137
        %v5139 = vshll.u32 2102212464, %v5127
        %v5140 = vshrl.u32 920167782, %v5128
        %v5141 = vor.u32 %v5139, %v5140
        %v5142 = vshll.u32 920167782, %v5127
        %v5143 = vshrl.u32 1326507024, %v5128
        %v5144 = vor.u32 %v5142, %v5143
        %vm5145 = vcmp.lt.s32.totalorder %v5126, 1
        %vm5146 = vcmp.lt.s32.totalorder %v5126, 2
        %vm5147 = vcmp.lt.s32.totalorder %v5126, 3
        %vm5148 = vcmp.lt.s32.totalorder %v5126, 4
        %v5149 = vsel %vm5145, %v5129, %v5132
        %v5150 = vsel %vm5148, %v5138, 2102212464
        %v5151 = vsel %vm5147, %v5135, %v5150
        %v5152 = vsel %vm5146, %v5149, %v5151
        %v5153 = vsel %vm5145, %v5132, %v5135
        %v5154 = vsel %vm5148, %v5141, 920167782
        %v5155 = vsel %vm5147, %v5138, %v5154
        %v5156 = vsel %vm5146, %v5153, %v5155
        %v5157 = vsel %vm5145, %v5135, %v5138
        %v5158 = vsel %vm5148, %v5144, 1326507024
        %v5159 = vsel %vm5147, %v5141, %v5158
        %v5160 = vsel %vm5146, %v5157, %v5159
        %v5161 = vshll.u32 %v5121, 8
        %v5162 = vmul.u32.u64.compose %v5161, %v5160
        %v5163 = vextract.low.u32 %v5162
        %v5164 = vextract.high.u32 %v5162
        %v5165 = vmul.u32.u64.compose %v5161, %v5156
        %v5166 = vextract.low.u32 %v5165
        %v5167 = vextract.high.u32 %v5165
        %v5168 = vmul.u32 %v5161, %v5152
        %v5169 = vadd.s32 %v5164, %v5166
        %vm5170 = vc.u32 %v5164, %v5166
        %v5171 = vadd.s32 %v5167, 1
        %v5172 = vsel %vm5170, %v5171, %v5167
        %v5173 = vadd.s32 %v5168, %v5172
        %v5174 = vadd.s32 %v5173, 536870912
        %v5175 = vshrl.u32 %v5174, 30
        %v5176 = vshll.u32 %v5175, 30
        %v5177 = vsub.s32 %v5173, %v5176
        %vm5178 = vcmp.lt.s32.totalorder %v5177, 0
        %v5179 = vsub.s32 0, %v5177
        %v5180 = vsel %vm5178, %v5179, %v5177
        %v5181 = vclz %v5180
        %v5182 = vsub.s32 %v5181, 2
        %vm5183 = vcmp.gt.s32.totalorder 0, %v5182
        %v5184 = vsel %vm5183, 0, %v5182
        %v5185 = vsub.s32 32, %v5184
        %v5186 = vshll.u32 %v5177, %v5184
        %v5187 = vshrl.u32 %v5169, %v5185
        %v5188 = vor.u32 %v5186, %v5187
        %v5189 = vsub.s32 4294967266, %v5184
        %v5190 = vadd.s32 %v5189, 127
        %v5191 = vshll.u32 %v5190, 23
        %v5192 = vor.u32 4788187, %v5191
        %v5193 = vand.u32 2147483647, %v5192
        %v5195 = vcvt.s32.f32 %v5188
        %v5196 = vmul.f32 %v5195, %v5193
        %v5197 = vxor.u32 %v5196, 2147483648
        %v5198 = vsel %vm5115, %v5197, %v5196
        %v5199 = vsub.s32 4, %v5175
        %v5200 = vsel %vm5115, %v5199, %v5175
        %v5201 = vsel %vm5114, %v1018, %v5198
        %v5202 = vsel %vm5114, 0, %v5200
        %v5203 = vcosq.f32.pop %v5201
        %v5204 = vsinq.f32.pop %v5201
        %vm5205 = vweird.f32 %v1018
        %v5206 = vadd.s32 %v5202, 3
        %v5207 = vand.u32 %v5206, 3
        %vm5208 = vcmp.lt.s32.totalorder %v5207, 2
        %vm5209 = vcmp.eq.s32.totalorder %v5207, 0
        %v5210 = vxor.u32 %v5204, 2147483648
        %v5211 = vsel %vm5209, %v5203, %v5210
        %vm5212 = vcmp.eq.s32.totalorder %v5207, 2
        %v5213 = vxor.u32 %v5203, 2147483648
        %v5214 = vsel %vm5212, %v5213, %v5204
        %v5215 = vsel %vm5208, %v5211, %v5214
        %v5216 = vsel %vm5205, nan, %v5215
        %v5217 = vand.u32 2147483647, %v1020
        %vm5218 = vcmp.le.f32.partialorder %v5217, 0.7853982
        %vm5219 = vcmp.lt.s32.totalorder %v1020, 0
        %v5220 = vand.u32 %v1020, 2139095040
        %v5221 = vshrl.u32 %v5220, 23
        %v5222 = vsub.s32 %v5221, 127
        %v5223 = vand.u32 2147483647, %v1020
        %v5224 = vand.u32 %v5223, 8388607
        %v5225 = vor.u32 %v5224, 8388608
        %v5226 = vsub.s32 0, %v5225
        %v5227 = vadd.s32 %v5222, 1
        %vm5228 = vcmp.gt.s32.totalorder %v5227, 0
        %v5229 = vsel %vm5228, %v5227, 0
        %v5230 = vshrl.u32 %v5229, 5
        %v5231 = vand.u32 %v5229, 31
        %v5232 = vsub.s32 32, %v5231
        %v5233 = vshrl.u32 683565275, %v5232
        %v5234 = vshll.u32 683565275, %v5231
        %v5235 = vshrl.u32 2475754826, %v5232
        %v5236 = vor.u32 %v5234, %v5235
        %v5237 = vshll.u32 2475754826, %v5231
        %v5238 = vshrl.u32 2131351028, %v5232
        %v5239 = vor.u32 %v5237, %v5238
        %v5240 = vshll.u32 2131351028, %v5231
        %v5241 = vshrl.u32 2102212464, %v5232
        %v5242 = vor.u32 %v5240, %v5241
        %v5243 = vshll.u32 2102212464, %v5231
        %v5244 = vshrl.u32 920167782, %v5232
        %v5245 = vor.u32 %v5243, %v5244
        %v5246 = vshll.u32 920167782, %v5231
        %v5247 = vshrl.u32 1326507024, %v5232
        %v5248 = vor.u32 %v5246, %v5247
        %vm5249 = vcmp.lt.s32.totalorder %v5230, 1
        %vm5250 = vcmp.lt.s32.totalorder %v5230, 2
        %vm5251 = vcmp.lt.s32.totalorder %v5230, 3
        %vm5252 = vcmp.lt.s32.totalorder %v5230, 4
        %v5253 = vsel %vm5249, %v5233, %v5236
        %v5254 = vsel %vm5252, %v5242, 2102212464
        %v5255 = vsel %vm5251, %v5239, %v5254
        %v5256 = vsel %vm5250, %v5253, %v5255
        %v5257 = vsel %vm5249, %v5236, %v5239
        %v5258 = vsel %vm5252, %v5245, 920167782
        %v5259 = vsel %vm5251, %v5242, %v5258
        %v5260 = vsel %vm5250, %v5257, %v5259
        %v5261 = vsel %vm5249, %v5239, %v5242
        %v5262 = vsel %vm5252, %v5248, 1326507024
        %v5263 = vsel %vm5251, %v5245, %v5262
        %v5264 = vsel %vm5250, %v5261, %v5263
        %v5265 = vshll.u32 %v5225, 8
        %v5266 = vmul.u32.u64.compose %v5265, %v5264
        %v5267 = vextract.low.u32 %v5266
        %v5268 = vextract.high.u32 %v5266
        %v5269 = vmul.u32.u64.compose %v5265, %v5260
        %v5270 = vextract.low.u32 %v5269
        %v5271 = vextract.high.u32 %v5269
        %v5272 = vmul.u32 %v5265, %v5256
        %v5273 = vadd.s32 %v5268, %v5270
        %vm5274 = vc.u32 %v5268, %v5270
        %v5275 = vadd.s32 %v5271, 1
        %v5276 = vsel %vm5274, %v5275, %v5271
        %v5277 = vadd.s32 %v5272, %v5276
        %v5278 = vadd.s32 %v5277, 536870912
        %v5279 = vshrl.u32 %v5278, 30
        %v5280 = vshll.u32 %v5279, 30
        %v5281 = vsub.s32 %v5277, %v5280
        %vm5282 = vcmp.lt.s32.totalorder %v5281, 0
        %v5283 = vsub.s32 0, %v5281
        %v5284 = vsel %vm5282, %v5283, %v5281
        %v5285 = vclz %v5284
        %v5286 = vsub.s32 %v5285, 2
        %vm5287 = vcmp.gt.s32.totalorder 0, %v5286
        %v5288 = vsel %vm5287, 0, %v5286
        %v5289 = vsub.s32 32, %v5288
        %v5290 = vshll.u32 %v5281, %v5288
        %v5291 = vshrl.u32 %v5273, %v5289
        %v5292 = vor.u32 %v5290, %v5291
        %v5293 = vsub.s32 4294967266, %v5288
        %v5294 = vadd.s32 %v5293, 127
        %v5295 = vshll.u32 %v5294, 23
        %v5296 = vor.u32 4788187, %v5295
        %v5297 = vand.u32 2147483647, %v5296
        %v5299 = vcvt.s32.f32 %v5292
        %v5300 = vmul.f32 %v5299, %v5297
        %v5301 = vxor.u32 %v5300, 2147483648
        %v5302 = vsel %vm5219, %v5301, %v5300
        %v5303 = vsub.s32 4, %v5279
        %v5304 = vsel %vm5219, %v5303, %v5279
        %v5305 = vsel %vm5218, %v1020, %v5302
        %v5306 = vsel %vm5218, 0, %v5304
        %v5307 = vcosq.f32.pop %v5305
        %v5308 = vsinq.f32.pop %v5305
        %vm5309 = vweird.f32 %v1020
        %v5310 = vadd.s32 %v5306, 3
        %v5311 = vand.u32 %v5310, 3
        %vm5312 = vcmp.lt.s32.totalorder %v5311, 2
        %vm5313 = vcmp.eq.s32.totalorder %v5311, 0
        %v5314 = vxor.u32 %v5308, 2147483648
        %v5315 = vsel %vm5313, %v5307, %v5314
        %vm5316 = vcmp.eq.s32.totalorder %v5311, 2
        %v5317 = vxor.u32 %v5307, 2147483648
        %v5318 = vsel %vm5316, %v5317, %v5308
        %v5319 = vsel %vm5312, %v5315, %v5318
        %v5320 = vsel %vm5309, nan, %v5319
        %v5321 = vand.u32 2147483647, %v1024
        %vm5322 = vcmp.le.f32.partialorder %v5321, 0.7853982
        %vm5323 = vcmp.lt.s32.totalorder %v1024, 0
        %v5324 = vand.u32 %v1024, 2139095040
        %v5325 = vshrl.u32 %v5324, 23
        %v5326 = vsub.s32 %v5325, 127
        %v5327 = vand.u32 2147483647, %v1024
        %v5328 = vand.u32 %v5327, 8388607
        %v5329 = vor.u32 %v5328, 8388608
        %v5330 = vsub.s32 0, %v5329
        %v5331 = vadd.s32 %v5326, 1
        %vm5332 = vcmp.gt.s32.totalorder %v5331, 0
        %v5333 = vsel %vm5332, %v5331, 0
        %v5334 = vshrl.u32 %v5333, 5
        %v5335 = vand.u32 %v5333, 31
        %v5336 = vsub.s32 32, %v5335
        %v5337 = vshrl.u32 683565275, %v5336
        %v5338 = vshll.u32 683565275, %v5335
        %v5339 = vshrl.u32 2475754826, %v5336
        %v5340 = vor.u32 %v5338, %v5339
        %v5341 = vshll.u32 2475754826, %v5335
        %v5342 = vshrl.u32 2131351028, %v5336
        %v5343 = vor.u32 %v5341, %v5342
        %v5344 = vshll.u32 2131351028, %v5335
        %v5345 = vshrl.u32 2102212464, %v5336
        %v5346 = vor.u32 %v5344, %v5345
        %v5347 = vshll.u32 2102212464, %v5335
        %v5348 = vshrl.u32 920167782, %v5336
        %v5349 = vor.u32 %v5347, %v5348
        %v5350 = vshll.u32 920167782, %v5335
        %v5351 = vshrl.u32 1326507024, %v5336
        %v5352 = vor.u32 %v5350, %v5351
        %vm5353 = vcmp.lt.s32.totalorder %v5334, 1
        %vm5354 = vcmp.lt.s32.totalorder %v5334, 2
        %vm5355 = vcmp.lt.s32.totalorder %v5334, 3
        %vm5356 = vcmp.lt.s32.totalorder %v5334, 4
        %v5357 = vsel %vm5353, %v5337, %v5340
        %v5358 = vsel %vm5356, %v5346, 2102212464
        %v5359 = vsel %vm5355, %v5343, %v5358
        %v5360 = vsel %vm5354, %v5357, %v5359
        %v5361 = vsel %vm5353, %v5340, %v5343
        %v5362 = vsel %vm5356, %v5349, 920167782
        %v5363 = vsel %vm5355, %v5346, %v5362
        %v5364 = vsel %vm5354, %v5361, %v5363
        %v5365 = vsel %vm5353, %v5343, %v5346
        %v5366 = vsel %vm5356, %v5352, 1326507024
        %v5367 = vsel %vm5355, %v5349, %v5366
        %v5368 = vsel %vm5354, %v5365, %v5367
        %v5369 = vshll.u32 %v5329, 8
        %v5370 = vmul.u32.u64.compose %v5369, %v5368
        %v5371 = vextract.low.u32 %v5370
        %v5372 = vextract.high.u32 %v5370
        %v5373 = vmul.u32.u64.compose %v5369, %v5364
        %v5374 = vextract.low.u32 %v5373
        %v5375 = vextract.high.u32 %v5373
        %v5376 = vmul.u32 %v5369, %v5360
        %v5377 = vadd.s32 %v5372, %v5374
        %vm5378 = vc.u32 %v5372, %v5374
        %v5379 = vadd.s32 %v5375, 1
        %v5380 = vsel %vm5378, %v5379, %v5375
        %v5381 = vadd.s32 %v5376, %v5380
        %v5382 = vadd.s32 %v5381, 536870912
        %v5383 = vshrl.u32 %v5382, 30
        %v5384 = vshll.u32 %v5383, 30
        %v5385 = vsub.s32 %v5381, %v5384
        %vm5386 = vcmp.lt.s32.totalorder %v5385, 0
        %v5387 = vsub.s32 0, %v5385
        %v5388 = vsel %vm5386, %v5387, %v5385
        %v5389 = vclz %v5388
        %v5390 = vsub.s32 %v5389, 2
        %vm5391 = vcmp.gt.s32.totalorder 0, %v5390
        %v5392 = vsel %vm5391, 0, %v5390
        %v5393 = vsub.s32 32, %v5392
        %v5394 = vshll.u32 %v5385, %v5392
        %v5395 = vshrl.u32 %v5377, %v5393
        %v5396 = vor.u32 %v5394, %v5395
        %v5397 = vsub.s32 4294967266, %v5392
        %v5398 = vadd.s32 %v5397, 127
        %v5399 = vshll.u32 %v5398, 23
        %v5400 = vor.u32 4788187, %v5399
        %v5401 = vand.u32 2147483647, %v5400
        %v5403 = vcvt.s32.f32 %v5396
        %v5404 = vmul.f32 %v5403, %v5401
        %v5405 = vxor.u32 %v5404, 2147483648
        %v5406 = vsel %vm5323, %v5405, %v5404
        %v5407 = vsub.s32 4, %v5383
        %v5408 = vsel %vm5323, %v5407, %v5383
        %v5409 = vsel %vm5322, %v1024, %v5406
        %v5410 = vsel %vm5322, 0, %v5408
        %v5411 = vcosq.f32.pop %v5409
        %v5412 = vsinq.f32.pop %v5409
        %vm5413 = vweird.f32 %v1024
        %v5414 = vadd.s32 %v5410, 3
        %v5415 = vand.u32 %v5414, 3
        %vm5416 = vcmp.lt.s32.totalorder %v5415, 2
        %vm5417 = vcmp.eq.s32.totalorder %v5415, 0
        %v5418 = vxor.u32 %v5412, 2147483648
        %v5419 = vsel %vm5417, %v5411, %v5418
        %vm5420 = vcmp.eq.s32.totalorder %v5415, 2
        %v5421 = vxor.u32 %v5411, 2147483648
        %v5422 = vsel %vm5420, %v5421, %v5412
        %v5423 = vsel %vm5416, %v5419, %v5422
        %v5424 = vsel %vm5413, nan, %v5423
        %v5425 = vand.u32 2147483647, %v1026
        %vm5426 = vcmp.le.f32.partialorder %v5425, 0.7853982
        %vm5427 = vcmp.lt.s32.totalorder %v1026, 0
        %v5428 = vand.u32 %v1026, 2139095040
        %v5429 = vshrl.u32 %v5428, 23
        %v5430 = vsub.s32 %v5429, 127
        %v5431 = vand.u32 2147483647, %v1026
        %v5432 = vand.u32 %v5431, 8388607
        %v5433 = vor.u32 %v5432, 8388608
        %v5434 = vsub.s32 0, %v5433
        %v5435 = vadd.s32 %v5430, 1
        %vm5436 = vcmp.gt.s32.totalorder %v5435, 0
        %v5437 = vsel %vm5436, %v5435, 0
        %v5438 = vshrl.u32 %v5437, 5
        %v5439 = vand.u32 %v5437, 31
        %v5440 = vsub.s32 32, %v5439
        %v5441 = vshrl.u32 683565275, %v5440
        %v5442 = vshll.u32 683565275, %v5439
        %v5443 = vshrl.u32 2475754826, %v5440
        %v5444 = vor.u32 %v5442, %v5443
        %v5445 = vshll.u32 2475754826, %v5439
        %v5446 = vshrl.u32 2131351028, %v5440
        %v5447 = vor.u32 %v5445, %v5446
        %v5448 = vshll.u32 2131351028, %v5439
        %v5449 = vshrl.u32 2102212464, %v5440
        %v5450 = vor.u32 %v5448, %v5449
        %v5451 = vshll.u32 2102212464, %v5439
        %v5452 = vshrl.u32 920167782, %v5440
        %v5453 = vor.u32 %v5451, %v5452
        %v5454 = vshll.u32 920167782, %v5439
        %v5455 = vshrl.u32 1326507024, %v5440
        %v5456 = vor.u32 %v5454, %v5455
        %vm5457 = vcmp.lt.s32.totalorder %v5438, 1
        %vm5458 = vcmp.lt.s32.totalorder %v5438, 2
        %vm5459 = vcmp.lt.s32.totalorder %v5438, 3
        %vm5460 = vcmp.lt.s32.totalorder %v5438, 4
        %v5461 = vsel %vm5457, %v5441, %v5444
        %v5462 = vsel %vm5460, %v5450, 2102212464
        %v5463 = vsel %vm5459, %v5447, %v5462
        %v5464 = vsel %vm5458, %v5461, %v5463
        %v5465 = vsel %vm5457, %v5444, %v5447
        %v5466 = vsel %vm5460, %v5453, 920167782
        %v5467 = vsel %vm5459, %v5450, %v5466
        %v5468 = vsel %vm5458, %v5465, %v5467
        %v5469 = vsel %vm5457, %v5447, %v5450
        %v5470 = vsel %vm5460, %v5456, 1326507024
        %v5471 = vsel %vm5459, %v5453, %v5470
        %v5472 = vsel %vm5458, %v5469, %v5471
        %v5473 = vshll.u32 %v5433, 8
        %v5474 = vmul.u32.u64.compose %v5473, %v5472
        %v5475 = vextract.low.u32 %v5474
        %v5476 = vextract.high.u32 %v5474
        %v5477 = vmul.u32.u64.compose %v5473, %v5468
        %v5478 = vextract.low.u32 %v5477
        %v5479 = vextract.high.u32 %v5477
        %v5480 = vmul.u32 %v5473, %v5464
        %v5481 = vadd.s32 %v5476, %v5478
        %vm5482 = vc.u32 %v5476, %v5478
        %v5483 = vadd.s32 %v5479, 1
        %v5484 = vsel %vm5482, %v5483, %v5479
        %v5485 = vadd.s32 %v5480, %v5484
        %v5486 = vadd.s32 %v5485, 536870912
        %v5487 = vshrl.u32 %v5486, 30
        %v5488 = vshll.u32 %v5487, 30
        %v5489 = vsub.s32 %v5485, %v5488
        %vm5490 = vcmp.lt.s32.totalorder %v5489, 0
        %v5491 = vsub.s32 0, %v5489
        %v5492 = vsel %vm5490, %v5491, %v5489
        %v5493 = vclz %v5492
        %v5494 = vsub.s32 %v5493, 2
        %vm5495 = vcmp.gt.s32.totalorder 0, %v5494
        %v5496 = vsel %vm5495, 0, %v5494
        %v5497 = vsub.s32 32, %v5496
        %v5498 = vshll.u32 %v5489, %v5496
        %v5499 = vshrl.u32 %v5481, %v5497
        %v5500 = vor.u32 %v5498, %v5499
        %v5501 = vsub.s32 4294967266, %v5496
        %v5502 = vadd.s32 %v5501, 127
        %v5503 = vshll.u32 %v5502, 23
        %v5504 = vor.u32 4788187, %v5503
        %v5505 = vand.u32 2147483647, %v5504
        %v5507 = vcvt.s32.f32 %v5500
        %v5508 = vmul.f32 %v5507, %v5505
        %v5509 = vxor.u32 %v5508, 2147483648
        %v5510 = vsel %vm5427, %v5509, %v5508
        %v5511 = vsub.s32 4, %v5487
        %v5512 = vsel %vm5427, %v5511, %v5487
        %v5513 = vsel %vm5426, %v1026, %v5510
        %v5514 = vsel %vm5426, 0, %v5512
        %v5515 = vcosq.f32.pop %v5513
        %v5516 = vsinq.f32.pop %v5513
        %vm5517 = vweird.f32 %v1026
        %v5518 = vadd.s32 %v5514, 3
        %v5519 = vand.u32 %v5518, 3
        %vm5520 = vcmp.lt.s32.totalorder %v5519, 2
        %vm5521 = vcmp.eq.s32.totalorder %v5519, 0
        %v5522 = vxor.u32 %v5516, 2147483648
        %v5523 = vsel %vm5521, %v5515, %v5522
        %vm5524 = vcmp.eq.s32.totalorder %v5519, 2
        %v5525 = vxor.u32 %v5515, 2147483648
        %v5526 = vsel %vm5524, %v5525, %v5516
        %v5527 = vsel %vm5520, %v5523, %v5526
        %v5528 = vsel %vm5517, nan, %v5527
        %v5529 = vand.u32 2147483647, %v1030
        %vm5530 = vcmp.le.f32.partialorder %v5529, 0.7853982
        %vm5531 = vcmp.lt.s32.totalorder %v1030, 0
        %v5532 = vand.u32 %v1030, 2139095040
        %v5533 = vshrl.u32 %v5532, 23
        %v5534 = vsub.s32 %v5533, 127
        %v5535 = vand.u32 2147483647, %v1030
        %v5536 = vand.u32 %v5535, 8388607
        %v5537 = vor.u32 %v5536, 8388608
        %v5538 = vsub.s32 0, %v5537
        %v5539 = vadd.s32 %v5534, 1
        %vm5540 = vcmp.gt.s32.totalorder %v5539, 0
        %v5541 = vsel %vm5540, %v5539, 0
        %v5542 = vshrl.u32 %v5541, 5
        %v5543 = vand.u32 %v5541, 31
        %v5544 = vsub.s32 32, %v5543
        %v5545 = vshrl.u32 683565275, %v5544
        %v5546 = vshll.u32 683565275, %v5543
        %v5547 = vshrl.u32 2475754826, %v5544
        %v5548 = vor.u32 %v5546, %v5547
        %v5549 = vshll.u32 2475754826, %v5543
        %v5550 = vshrl.u32 2131351028, %v5544
        %v5551 = vor.u32 %v5549, %v5550
        %v5552 = vshll.u32 2131351028, %v5543
        %v5553 = vshrl.u32 2102212464, %v5544
        %v5554 = vor.u32 %v5552, %v5553
        %v5555 = vshll.u32 2102212464, %v5543
        %v5556 = vshrl.u32 920167782, %v5544
        %v5557 = vor.u32 %v5555, %v5556
        %v5558 = vshll.u32 920167782, %v5543
        %v5559 = vshrl.u32 1326507024, %v5544
        %v5560 = vor.u32 %v5558, %v5559
        %vm5561 = vcmp.lt.s32.totalorder %v5542, 1
        %vm5562 = vcmp.lt.s32.totalorder %v5542, 2
        %vm5563 = vcmp.lt.s32.totalorder %v5542, 3
        %vm5564 = vcmp.lt.s32.totalorder %v5542, 4
        %v5565 = vsel %vm5561, %v5545, %v5548
        %v5566 = vsel %vm5564, %v5554, 2102212464
        %v5567 = vsel %vm5563, %v5551, %v5566
        %v5568 = vsel %vm5562, %v5565, %v5567
        %v5569 = vsel %vm5561, %v5548, %v5551
        %v5570 = vsel %vm5564, %v5557, 920167782
        %v5571 = vsel %vm5563, %v5554, %v5570
        %v5572 = vsel %vm5562, %v5569, %v5571
        %v5573 = vsel %vm5561, %v5551, %v5554
        %v5574 = vsel %vm5564, %v5560, 1326507024
        %v5575 = vsel %vm5563, %v5557, %v5574
        %v5576 = vsel %vm5562, %v5573, %v5575
        %v5577 = vshll.u32 %v5537, 8
        %v5578 = vmul.u32.u64.compose %v5577, %v5576
        %v5579 = vextract.low.u32 %v5578
        %v5580 = vextract.high.u32 %v5578
        %v5581 = vmul.u32.u64.compose %v5577, %v5572
        %v5582 = vextract.low.u32 %v5581
        %v5583 = vextract.high.u32 %v5581
        %v5584 = vmul.u32 %v5577, %v5568
        %v5585 = vadd.s32 %v5580, %v5582
        %vm5586 = vc.u32 %v5580, %v5582
        %v5587 = vadd.s32 %v5583, 1
        %v5588 = vsel %vm5586, %v5587, %v5583
        %v5589 = vadd.s32 %v5584, %v5588
        %v5590 = vadd.s32 %v5589, 536870912
        %v5591 = vshrl.u32 %v5590, 30
        %v5592 = vshll.u32 %v5591, 30
        %v5593 = vsub.s32 %v5589, %v5592
        %vm5594 = vcmp.lt.s32.totalorder %v5593, 0
        %v5595 = vsub.s32 0, %v5593
        %v5596 = vsel %vm5594, %v5595, %v5593
        %v5597 = vclz %v5596
        %v5598 = vsub.s32 %v5597, 2
        %vm5599 = vcmp.gt.s32.totalorder 0, %v5598
        %v5600 = vsel %vm5599, 0, %v5598
        %v5601 = vsub.s32 32, %v5600
        %v5602 = vshll.u32 %v5593, %v5600
        %v5603 = vshrl.u32 %v5585, %v5601
        %v5604 = vor.u32 %v5602, %v5603
        %v5605 = vsub.s32 4294967266, %v5600
        %v5606 = vadd.s32 %v5605, 127
        %v5607 = vshll.u32 %v5606, 23
        %v5608 = vor.u32 4788187, %v5607
        %v5609 = vand.u32 2147483647, %v5608
        %v5611 = vcvt.s32.f32 %v5604
        %v5612 = vmul.f32 %v5611, %v5609
        %v5613 = vxor.u32 %v5612, 2147483648
        %v5614 = vsel %vm5531, %v5613, %v5612
        %v5615 = vsub.s32 4, %v5591
        %v5616 = vsel %vm5531, %v5615, %v5591
        %v5617 = vsel %vm5530, %v1030, %v5614
        %v5618 = vsel %vm5530, 0, %v5616
        %v5619 = vcosq.f32.pop %v5617
        %v5620 = vsinq.f32.pop %v5617
        %vm5621 = vweird.f32 %v1030
        %v5622 = vadd.s32 %v5618, 3
        %v5623 = vand.u32 %v5622, 3
        %vm5624 = vcmp.lt.s32.totalorder %v5623, 2
        %vm5625 = vcmp.eq.s32.totalorder %v5623, 0
        %v5626 = vxor.u32 %v5620, 2147483648
        %v5627 = vsel %vm5625, %v5619, %v5626
        %vm5628 = vcmp.eq.s32.totalorder %v5623, 2
        %v5629 = vxor.u32 %v5619, 2147483648
        %v5630 = vsel %vm5628, %v5629, %v5620
        %v5631 = vsel %vm5624, %v5627, %v5630
        %v5632 = vsel %vm5621, nan, %v5631
        %v5633 = vand.u32 2147483647, %v1032
        %vm5634 = vcmp.le.f32.partialorder %v5633, 0.7853982
        %vm5635 = vcmp.lt.s32.totalorder %v1032, 0
        %v5636 = vand.u32 %v1032, 2139095040
        %v5637 = vshrl.u32 %v5636, 23
        %v5638 = vsub.s32 %v5637, 127
        %v5639 = vand.u32 2147483647, %v1032
        %v5640 = vand.u32 %v5639, 8388607
        %v5641 = vor.u32 %v5640, 8388608
        %v5642 = vsub.s32 0, %v5641
        %v5643 = vadd.s32 %v5638, 1
        %vm5644 = vcmp.gt.s32.totalorder %v5643, 0
        %v5645 = vsel %vm5644, %v5643, 0
        %v5646 = vshrl.u32 %v5645, 5
        %v5647 = vand.u32 %v5645, 31
        %v5648 = vsub.s32 32, %v5647
        %v5649 = vshrl.u32 683565275, %v5648
        %v5650 = vshll.u32 683565275, %v5647
        %v5651 = vshrl.u32 2475754826, %v5648
        %v5652 = vor.u32 %v5650, %v5651
        %v5653 = vshll.u32 2475754826, %v5647
        %v5654 = vshrl.u32 2131351028, %v5648
        %v5655 = vor.u32 %v5653, %v5654
        %v5656 = vshll.u32 2131351028, %v5647
        %v5657 = vshrl.u32 2102212464, %v5648
        %v5658 = vor.u32 %v5656, %v5657
        %v5659 = vshll.u32 2102212464, %v5647
        %v5660 = vshrl.u32 920167782, %v5648
        %v5661 = vor.u32 %v5659, %v5660
        %v5662 = vshll.u32 920167782, %v5647
        %v5663 = vshrl.u32 1326507024, %v5648
        %v5664 = vor.u32 %v5662, %v5663
        %vm5665 = vcmp.lt.s32.totalorder %v5646, 1
        %vm5666 = vcmp.lt.s32.totalorder %v5646, 2
        %vm5667 = vcmp.lt.s32.totalorder %v5646, 3
        %vm5668 = vcmp.lt.s32.totalorder %v5646, 4
        %v5669 = vsel %vm5665, %v5649, %v5652
        %v5670 = vsel %vm5668, %v5658, 2102212464
        %v5671 = vsel %vm5667, %v5655, %v5670
        %v5672 = vsel %vm5666, %v5669, %v5671
        %v5673 = vsel %vm5665, %v5652, %v5655
        %v5674 = vsel %vm5668, %v5661, 920167782
        %v5675 = vsel %vm5667, %v5658, %v5674
        %v5676 = vsel %vm5666, %v5673, %v5675
        %v5677 = vsel %vm5665, %v5655, %v5658
        %v5678 = vsel %vm5668, %v5664, 1326507024
        %v5679 = vsel %vm5667, %v5661, %v5678
        %v5680 = vsel %vm5666, %v5677, %v5679
        %v5681 = vshll.u32 %v5641, 8
        %v5682 = vmul.u32.u64.compose %v5681, %v5680
        %v5683 = vextract.low.u32 %v5682
        %v5684 = vextract.high.u32 %v5682
        %v5685 = vmul.u32.u64.compose %v5681, %v5676
        %v5686 = vextract.low.u32 %v5685
        %v5687 = vextract.high.u32 %v5685
        %v5688 = vmul.u32 %v5681, %v5672
        %v5689 = vadd.s32 %v5684, %v5686
        %vm5690 = vc.u32 %v5684, %v5686
        %v5691 = vadd.s32 %v5687, 1
        %v5692 = vsel %vm5690, %v5691, %v5687
        %v5693 = vadd.s32 %v5688, %v5692
        %v5694 = vadd.s32 %v5693, 536870912
        %v5695 = vshrl.u32 %v5694, 30
        %v5696 = vshll.u32 %v5695, 30
        %v5697 = vsub.s32 %v5693, %v5696
        %vm5698 = vcmp.lt.s32.totalorder %v5697, 0
        %v5699 = vsub.s32 0, %v5697
        %v5700 = vsel %vm5698, %v5699, %v5697
        %v5701 = vclz %v5700
        %v5702 = vsub.s32 %v5701, 2
        %vm5703 = vcmp.gt.s32.totalorder 0, %v5702
        %v5704 = vsel %vm5703, 0, %v5702
        %v5705 = vsub.s32 32, %v5704
        %v5706 = vshll.u32 %v5697, %v5704
        %v5707 = vshrl.u32 %v5689, %v5705
        %v5708 = vor.u32 %v5706, %v5707
        %v5709 = vsub.s32 4294967266, %v5704
        %v5710 = vadd.s32 %v5709, 127
        %v5711 = vshll.u32 %v5710, 23
        %v5712 = vor.u32 4788187, %v5711
        %v5713 = vand.u32 2147483647, %v5712
        %v5715 = vcvt.s32.f32 %v5708
        %v5716 = vmul.f32 %v5715, %v5713
        %v5717 = vxor.u32 %v5716, 2147483648
        %v5718 = vsel %vm5635, %v5717, %v5716
        %v5719 = vsub.s32 4, %v5695
        %v5720 = vsel %vm5635, %v5719, %v5695
        %v5721 = vsel %vm5634, %v1032, %v5718
        %v5722 = vsel %vm5634, 0, %v5720
        %v5723 = vcosq.f32.pop %v5721
        %v5724 = vsinq.f32.pop %v5721
        %vm5725 = vweird.f32 %v1032
        %v5726 = vadd.s32 %v5722, 3
        %v5727 = vand.u32 %v5726, 3
        %vm5728 = vcmp.lt.s32.totalorder %v5727, 2
        %vm5729 = vcmp.eq.s32.totalorder %v5727, 0
        %v5730 = vxor.u32 %v5724, 2147483648
        %v5731 = vsel %vm5729, %v5723, %v5730
        %vm5732 = vcmp.eq.s32.totalorder %v5727, 2
        %v5733 = vxor.u32 %v5723, 2147483648
        %v5734 = vsel %vm5732, %v5733, %v5724
        %v5735 = vsel %vm5728, %v5731, %v5734
        %v5736 = vsel %vm5725, nan, %v5735
        %v5737 = vand.u32 2147483647, %v1036
        %vm5738 = vcmp.le.f32.partialorder %v5737, 0.7853982
        %vm5739 = vcmp.lt.s32.totalorder %v1036, 0
        %v5740 = vand.u32 %v1036, 2139095040
        %v5741 = vshrl.u32 %v5740, 23
        %v5742 = vsub.s32 %v5741, 127
        %v5743 = vand.u32 2147483647, %v1036
        %v5744 = vand.u32 %v5743, 8388607
        %v5745 = vor.u32 %v5744, 8388608
        %v5746 = vsub.s32 0, %v5745
        %v5747 = vadd.s32 %v5742, 1
        %vm5748 = vcmp.gt.s32.totalorder %v5747, 0
        %v5749 = vsel %vm5748, %v5747, 0
        %v5750 = vshrl.u32 %v5749, 5
        %v5751 = vand.u32 %v5749, 31
        %v5752 = vsub.s32 32, %v5751
        %v5753 = vshrl.u32 683565275, %v5752
        %v5754 = vshll.u32 683565275, %v5751
        %v5755 = vshrl.u32 2475754826, %v5752
        %v5756 = vor.u32 %v5754, %v5755
        %v5757 = vshll.u32 2475754826, %v5751
        %v5758 = vshrl.u32 2131351028, %v5752
        %v5759 = vor.u32 %v5757, %v5758
        %v5760 = vshll.u32 2131351028, %v5751
        %v5761 = vshrl.u32 2102212464, %v5752
        %v5762 = vor.u32 %v5760, %v5761
        %v5763 = vshll.u32 2102212464, %v5751
        %v5764 = vshrl.u32 920167782, %v5752
        %v5765 = vor.u32 %v5763, %v5764
        %v5766 = vshll.u32 920167782, %v5751
        %v5767 = vshrl.u32 1326507024, %v5752
        %v5768 = vor.u32 %v5766, %v5767
        %vm5769 = vcmp.lt.s32.totalorder %v5750, 1
        %vm5770 = vcmp.lt.s32.totalorder %v5750, 2
        %vm5771 = vcmp.lt.s32.totalorder %v5750, 3
        %vm5772 = vcmp.lt.s32.totalorder %v5750, 4
        %v5773 = vsel %vm5769, %v5753, %v5756
        %v5774 = vsel %vm5772, %v5762, 2102212464
        %v5775 = vsel %vm5771, %v5759, %v5774
        %v5776 = vsel %vm5770, %v5773, %v5775
        %v5777 = vsel %vm5769, %v5756, %v5759
        %v5778 = vsel %vm5772, %v5765, 920167782
        %v5779 = vsel %vm5771, %v5762, %v5778
        %v5780 = vsel %vm5770, %v5777, %v5779
        %v5781 = vsel %vm5769, %v5759, %v5762
        %v5782 = vsel %vm5772, %v5768, 1326507024
        %v5783 = vsel %vm5771, %v5765, %v5782
        %v5784 = vsel %vm5770, %v5781, %v5783
        %v5785 = vshll.u32 %v5745, 8
        %v5786 = vmul.u32.u64.compose %v5785, %v5784
        %v5787 = vextract.low.u32 %v5786
        %v5788 = vextract.high.u32 %v5786
        %v5789 = vmul.u32.u64.compose %v5785, %v5780
        %v5790 = vextract.low.u32 %v5789
        %v5791 = vextract.high.u32 %v5789
        %v5792 = vmul.u32 %v5785, %v5776
        %v5793 = vadd.s32 %v5788, %v5790
        %vm5794 = vc.u32 %v5788, %v5790
        %v5795 = vadd.s32 %v5791, 1
        %v5796 = vsel %vm5794, %v5795, %v5791
        %v5797 = vadd.s32 %v5792, %v5796
        %v5798 = vadd.s32 %v5797, 536870912
        %v5799 = vshrl.u32 %v5798, 30
        %v5800 = vshll.u32 %v5799, 30
        %v5801 = vsub.s32 %v5797, %v5800
        %vm5802 = vcmp.lt.s32.totalorder %v5801, 0
        %v5803 = vsub.s32 0, %v5801
        %v5804 = vsel %vm5802, %v5803, %v5801
        %v5805 = vclz %v5804
        %v5806 = vsub.s32 %v5805, 2
        %vm5807 = vcmp.gt.s32.totalorder 0, %v5806
        %v5808 = vsel %vm5807, 0, %v5806
        %v5809 = vsub.s32 32, %v5808
        %v5810 = vshll.u32 %v5801, %v5808
        %v5811 = vshrl.u32 %v5793, %v5809
        %v5812 = vor.u32 %v5810, %v5811
        %v5813 = vsub.s32 4294967266, %v5808
        %v5814 = vadd.s32 %v5813, 127
        %v5815 = vshll.u32 %v5814, 23
        %v5816 = vor.u32 4788187, %v5815
        %v5817 = vand.u32 2147483647, %v5816
        %v5819 = vcvt.s32.f32 %v5812
        %v5820 = vmul.f32 %v5819, %v5817
        %v5821 = vxor.u32 %v5820, 2147483648
        %v5822 = vsel %vm5739, %v5821, %v5820
        %v5823 = vsub.s32 4, %v5799
        %v5824 = vsel %vm5739, %v5823, %v5799
        %v5825 = vsel %vm5738, %v1036, %v5822
        %v5826 = vsel %vm5738, 0, %v5824
        %v5827 = vcosq.f32.pop %v5825
        %v5828 = vsinq.f32.pop %v5825
        %vm5829 = vweird.f32 %v1036
        %v5830 = vadd.s32 %v5826, 3
        %v5831 = vand.u32 %v5830, 3
        %vm5832 = vcmp.lt.s32.totalorder %v5831, 2
        %vm5833 = vcmp.eq.s32.totalorder %v5831, 0
        %v5834 = vxor.u32 %v5828, 2147483648
        %v5835 = vsel %vm5833, %v5827, %v5834
        %vm5836 = vcmp.eq.s32.totalorder %v5831, 2
        %v5837 = vxor.u32 %v5827, 2147483648
        %v5838 = vsel %vm5836, %v5837, %v5828
        %v5839 = vsel %vm5832, %v5835, %v5838
        %v5840 = vsel %vm5829, nan, %v5839
        %v5841 = vand.u32 2147483647, %v1038
        %vm5842 = vcmp.le.f32.partialorder %v5841, 0.7853982
        %vm5843 = vcmp.lt.s32.totalorder %v1038, 0
        %v5844 = vand.u32 %v1038, 2139095040
        %v5845 = vshrl.u32 %v5844, 23
        %v5846 = vsub.s32 %v5845, 127
        %v5847 = vand.u32 2147483647, %v1038
        %v5848 = vand.u32 %v5847, 8388607
        %v5849 = vor.u32 %v5848, 8388608
        %v5850 = vsub.s32 0, %v5849
        %v5851 = vadd.s32 %v5846, 1
        %vm5852 = vcmp.gt.s32.totalorder %v5851, 0
        %v5853 = vsel %vm5852, %v5851, 0
        %v5854 = vshrl.u32 %v5853, 5
        %v5855 = vand.u32 %v5853, 31
        %v5856 = vsub.s32 32, %v5855
        %v5857 = vshrl.u32 683565275, %v5856
        %v5858 = vshll.u32 683565275, %v5855
        %v5859 = vshrl.u32 2475754826, %v5856
        %v5860 = vor.u32 %v5858, %v5859
        %v5861 = vshll.u32 2475754826, %v5855
        %v5862 = vshrl.u32 2131351028, %v5856
        %v5863 = vor.u32 %v5861, %v5862
        %v5864 = vshll.u32 2131351028, %v5855
        %v5865 = vshrl.u32 2102212464, %v5856
        %v5866 = vor.u32 %v5864, %v5865
        %v5867 = vshll.u32 2102212464, %v5855
        %v5868 = vshrl.u32 920167782, %v5856
        %v5869 = vor.u32 %v5867, %v5868
        %v5870 = vshll.u32 920167782, %v5855
        %v5871 = vshrl.u32 1326507024, %v5856
        %v5872 = vor.u32 %v5870, %v5871
        %vm5873 = vcmp.lt.s32.totalorder %v5854, 1
        %vm5874 = vcmp.lt.s32.totalorder %v5854, 2
        %vm5875 = vcmp.lt.s32.totalorder %v5854, 3
        %vm5876 = vcmp.lt.s32.totalorder %v5854, 4
        %v5877 = vsel %vm5873, %v5857, %v5860
        %v5878 = vsel %vm5876, %v5866, 2102212464
        %v5879 = vsel %vm5875, %v5863, %v5878
        %v5880 = vsel %vm5874, %v5877, %v5879
        %v5881 = vsel %vm5873, %v5860, %v5863
        %v5882 = vsel %vm5876, %v5869, 920167782
        %v5883 = vsel %vm5875, %v5866, %v5882
        %v5884 = vsel %vm5874, %v5881, %v5883
        %v5885 = vsel %vm5873, %v5863, %v5866
        %v5886 = vsel %vm5876, %v5872, 1326507024
        %v5887 = vsel %vm5875, %v5869, %v5886
        %v5888 = vsel %vm5874, %v5885, %v5887
        %v5889 = vshll.u32 %v5849, 8
        %v5890 = vmul.u32.u64.compose %v5889, %v5888
        %v5891 = vextract.low.u32 %v5890
        %v5892 = vextract.high.u32 %v5890
        %v5893 = vmul.u32.u64.compose %v5889, %v5884
        %v5894 = vextract.low.u32 %v5893
        %v5895 = vextract.high.u32 %v5893
        %v5896 = vmul.u32 %v5889, %v5880
        %v5897 = vadd.s32 %v5892, %v5894
        %vm5898 = vc.u32 %v5892, %v5894
        %v5899 = vadd.s32 %v5895, 1
        %v5900 = vsel %vm5898, %v5899, %v5895
        %v5901 = vadd.s32 %v5896, %v5900
        %v5902 = vadd.s32 %v5901, 536870912
        %v5903 = vshrl.u32 %v5902, 30
        %v5904 = vshll.u32 %v5903, 30
        %v5905 = vsub.s32 %v5901, %v5904
        %vm5906 = vcmp.lt.s32.totalorder %v5905, 0
        %v5907 = vsub.s32 0, %v5905
        %v5908 = vsel %vm5906, %v5907, %v5905
        %v5909 = vclz %v5908
        %v5910 = vsub.s32 %v5909, 2
        %vm5911 = vcmp.gt.s32.totalorder 0, %v5910
        %v5912 = vsel %vm5911, 0, %v5910
        %v5913 = vsub.s32 32, %v5912
        %v5914 = vshll.u32 %v5905, %v5912
        %v5915 = vshrl.u32 %v5897, %v5913
        %v5916 = vor.u32 %v5914, %v5915
        %v5917 = vsub.s32 4294967266, %v5912
        %v5918 = vadd.s32 %v5917, 127
        %v5919 = vshll.u32 %v5918, 23
        %v5920 = vor.u32 4788187, %v5919
        %v5921 = vand.u32 2147483647, %v5920
        %v5923 = vcvt.s32.f32 %v5916
        %v5924 = vmul.f32 %v5923, %v5921
        %v5925 = vxor.u32 %v5924, 2147483648
        %v5926 = vsel %vm5843, %v5925, %v5924
        %v5927 = vsub.s32 4, %v5903
        %v5928 = vsel %vm5843, %v5927, %v5903
        %v5929 = vsel %vm5842, %v1038, %v5926
        %v5930 = vsel %vm5842, 0, %v5928
        %v5931 = vcosq.f32.pop %v5929
        %v5932 = vsinq.f32.pop %v5929
        %vm5933 = vweird.f32 %v1038
        %v5934 = vadd.s32 %v5930, 3
        %v5935 = vand.u32 %v5934, 3
        %vm5936 = vcmp.lt.s32.totalorder %v5935, 2
        %vm5937 = vcmp.eq.s32.totalorder %v5935, 0
        %v5938 = vxor.u32 %v5932, 2147483648
        %v5939 = vsel %vm5937, %v5931, %v5938
        %vm5940 = vcmp.eq.s32.totalorder %v5935, 2
        %v5941 = vxor.u32 %v5931, 2147483648
        %v5942 = vsel %vm5940, %v5941, %v5932
        %v5943 = vsel %vm5936, %v5939, %v5942
        %v5944 = vsel %vm5933, nan, %v5943
        %v5945 = vand.u32 2147483647, %v1042
        %vm5946 = vcmp.le.f32.partialorder %v5945, 0.7853982
        %vm5947 = vcmp.lt.s32.totalorder %v1042, 0
        %v5948 = vand.u32 %v1042, 2139095040
        %v5949 = vshrl.u32 %v5948, 23
        %v5950 = vsub.s32 %v5949, 127
        %v5951 = vand.u32 2147483647, %v1042
        %v5952 = vand.u32 %v5951, 8388607
        %v5953 = vor.u32 %v5952, 8388608
        %v5954 = vsub.s32 0, %v5953
        %v5955 = vadd.s32 %v5950, 1
        %vm5956 = vcmp.gt.s32.totalorder %v5955, 0
        %v5957 = vsel %vm5956, %v5955, 0
        %v5958 = vshrl.u32 %v5957, 5
        %v5959 = vand.u32 %v5957, 31
        %v5960 = vsub.s32 32, %v5959
        %v5961 = vshrl.u32 683565275, %v5960
        %v5962 = vshll.u32 683565275, %v5959
        %v5963 = vshrl.u32 2475754826, %v5960
        %v5964 = vor.u32 %v5962, %v5963
        %v5965 = vshll.u32 2475754826, %v5959
        %v5966 = vshrl.u32 2131351028, %v5960
        %v5967 = vor.u32 %v5965, %v5966
        %v5968 = vshll.u32 2131351028, %v5959
        %v5969 = vshrl.u32 2102212464, %v5960
        %v5970 = vor.u32 %v5968, %v5969
        %v5971 = vshll.u32 2102212464, %v5959
        %v5972 = vshrl.u32 920167782, %v5960
        %v5973 = vor.u32 %v5971, %v5972
        %v5974 = vshll.u32 920167782, %v5959
        %v5975 = vshrl.u32 1326507024, %v5960
        %v5976 = vor.u32 %v5974, %v5975
        %vm5977 = vcmp.lt.s32.totalorder %v5958, 1
        %vm5978 = vcmp.lt.s32.totalorder %v5958, 2
        %vm5979 = vcmp.lt.s32.totalorder %v5958, 3
        %vm5980 = vcmp.lt.s32.totalorder %v5958, 4
        %v5981 = vsel %vm5977, %v5961, %v5964
        %v5982 = vsel %vm5980, %v5970, 2102212464
        %v5983 = vsel %vm5979, %v5967, %v5982
        %v5984 = vsel %vm5978, %v5981, %v5983
        %v5985 = vsel %vm5977, %v5964, %v5967
        %v5986 = vsel %vm5980, %v5973, 920167782
        %v5987 = vsel %vm5979, %v5970, %v5986
        %v5988 = vsel %vm5978, %v5985, %v5987
        %v5989 = vsel %vm5977, %v5967, %v5970
        %v5990 = vsel %vm5980, %v5976, 1326507024
        %v5991 = vsel %vm5979, %v5973, %v5990
        %v5992 = vsel %vm5978, %v5989, %v5991
        %v5993 = vshll.u32 %v5953, 8
        %v5994 = vmul.u32.u64.compose %v5993, %v5992
        %v5995 = vextract.low.u32 %v5994
        %v5996 = vextract.high.u32 %v5994
        %v5997 = vmul.u32.u64.compose %v5993, %v5988
        %v5998 = vextract.low.u32 %v5997
        %v5999 = vextract.high.u32 %v5997
        %v6000 = vmul.u32 %v5993, %v5984
        %v6001 = vadd.s32 %v5996, %v5998
        %vm6002 = vc.u32 %v5996, %v5998
        %v6003 = vadd.s32 %v5999, 1
        %v6004 = vsel %vm6002, %v6003, %v5999
        %v6005 = vadd.s32 %v6000, %v6004
        %v6006 = vadd.s32 %v6005, 536870912
        %v6007 = vshrl.u32 %v6006, 30
        %v6008 = vshll.u32 %v6007, 30
        %v6009 = vsub.s32 %v6005, %v6008
        %vm6010 = vcmp.lt.s32.totalorder %v6009, 0
        %v6011 = vsub.s32 0, %v6009
        %v6012 = vsel %vm6010, %v6011, %v6009
        %v6013 = vclz %v6012
        %v6014 = vsub.s32 %v6013, 2
        %vm6015 = vcmp.gt.s32.totalorder 0, %v6014
        %v6016 = vsel %vm6015, 0, %v6014
        %v6017 = vsub.s32 32, %v6016
        %v6018 = vshll.u32 %v6009, %v6016
        %v6019 = vshrl.u32 %v6001, %v6017
        %v6020 = vor.u32 %v6018, %v6019
        %v6021 = vsub.s32 4294967266, %v6016
        %v6022 = vadd.s32 %v6021, 127
        %v6023 = vshll.u32 %v6022, 23
        %v6024 = vor.u32 4788187, %v6023
        %v6025 = vand.u32 2147483647, %v6024
        %v6027 = vcvt.s32.f32 %v6020
        %v6028 = vmul.f32 %v6027, %v6025
        %v6029 = vxor.u32 %v6028, 2147483648
        %v6030 = vsel %vm5947, %v6029, %v6028
        %v6031 = vsub.s32 4, %v6007
        %v6032 = vsel %vm5947, %v6031, %v6007
        %v6033 = vsel %vm5946, %v1042, %v6030
        %v6034 = vsel %vm5946, 0, %v6032
        %v6035 = vcosq.f32.pop %v6033
        %v6036 = vsinq.f32.pop %v6033
        %vm6037 = vweird.f32 %v1042
        %v6038 = vadd.s32 %v6034, 3
        %v6039 = vand.u32 %v6038, 3
        %vm6040 = vcmp.lt.s32.totalorder %v6039, 2
        %vm6041 = vcmp.eq.s32.totalorder %v6039, 0
        %v6042 = vxor.u32 %v6036, 2147483648
        %v6043 = vsel %vm6041, %v6035, %v6042
        %vm6044 = vcmp.eq.s32.totalorder %v6039, 2
        %v6045 = vxor.u32 %v6035, 2147483648
        %v6046 = vsel %vm6044, %v6045, %v6036
        %v6047 = vsel %vm6040, %v6043, %v6046
        %v6048 = vsel %vm6037, nan, %v6047
        %v6049 = vand.u32 2147483647, %v1044
        %vm6050 = vcmp.le.f32.partialorder %v6049, 0.7853982
        %vm6051 = vcmp.lt.s32.totalorder %v1044, 0
        %v6052 = vand.u32 %v1044, 2139095040
        %v6053 = vshrl.u32 %v6052, 23
        %v6054 = vsub.s32 %v6053, 127
        %v6055 = vand.u32 2147483647, %v1044
        %v6056 = vand.u32 %v6055, 8388607
        %v6057 = vor.u32 %v6056, 8388608
        %v6058 = vsub.s32 0, %v6057
        %v6059 = vadd.s32 %v6054, 1
        %vm6060 = vcmp.gt.s32.totalorder %v6059, 0
        %v6061 = vsel %vm6060, %v6059, 0
        %v6062 = vshrl.u32 %v6061, 5
        %v6063 = vand.u32 %v6061, 31
        %v6064 = vsub.s32 32, %v6063
        %v6065 = vshrl.u32 683565275, %v6064
        %v6066 = vshll.u32 683565275, %v6063
        %v6067 = vshrl.u32 2475754826, %v6064
        %v6068 = vor.u32 %v6066, %v6067
        %v6069 = vshll.u32 2475754826, %v6063
        %v6070 = vshrl.u32 2131351028, %v6064
        %v6071 = vor.u32 %v6069, %v6070
        %v6072 = vshll.u32 2131351028, %v6063
        %v6073 = vshrl.u32 2102212464, %v6064
        %v6074 = vor.u32 %v6072, %v6073
        %v6075 = vshll.u32 2102212464, %v6063
        %v6076 = vshrl.u32 920167782, %v6064
        %v6077 = vor.u32 %v6075, %v6076
        %v6078 = vshll.u32 920167782, %v6063
        %v6079 = vshrl.u32 1326507024, %v6064
        %v6080 = vor.u32 %v6078, %v6079
        %vm6081 = vcmp.lt.s32.totalorder %v6062, 1
        %vm6082 = vcmp.lt.s32.totalorder %v6062, 2
        %vm6083 = vcmp.lt.s32.totalorder %v6062, 3
        %vm6084 = vcmp.lt.s32.totalorder %v6062, 4
        %v6085 = vsel %vm6081, %v6065, %v6068
        %v6086 = vsel %vm6084, %v6074, 2102212464
        %v6087 = vsel %vm6083, %v6071, %v6086
        %v6088 = vsel %vm6082, %v6085, %v6087
        %v6089 = vsel %vm6081, %v6068, %v6071
        %v6090 = vsel %vm6084, %v6077, 920167782
        %v6091 = vsel %vm6083, %v6074, %v6090
        %v6092 = vsel %vm6082, %v6089, %v6091
        %v6093 = vsel %vm6081, %v6071, %v6074
        %v6094 = vsel %vm6084, %v6080, 1326507024
        %v6095 = vsel %vm6083, %v6077, %v6094
        %v6096 = vsel %vm6082, %v6093, %v6095
        %v6097 = vshll.u32 %v6057, 8
        %v6098 = vmul.u32.u64.compose %v6097, %v6096
        %v6099 = vextract.low.u32 %v6098
        %v6100 = vextract.high.u32 %v6098
        %v6101 = vmul.u32.u64.compose %v6097, %v6092
        %v6102 = vextract.low.u32 %v6101
        %v6103 = vextract.high.u32 %v6101
        %v6104 = vmul.u32 %v6097, %v6088
        %v6105 = vadd.s32 %v6100, %v6102
        %vm6106 = vc.u32 %v6100, %v6102
        %v6107 = vadd.s32 %v6103, 1
        %v6108 = vsel %vm6106, %v6107, %v6103
        %v6109 = vadd.s32 %v6104, %v6108
        %v6110 = vadd.s32 %v6109, 536870912
        %v6111 = vshrl.u32 %v6110, 30
        %v6112 = vshll.u32 %v6111, 30
        %v6113 = vsub.s32 %v6109, %v6112
        %vm6114 = vcmp.lt.s32.totalorder %v6113, 0
        %v6115 = vsub.s32 0, %v6113
        %v6116 = vsel %vm6114, %v6115, %v6113
        %v6117 = vclz %v6116
        %v6118 = vsub.s32 %v6117, 2
        %vm6119 = vcmp.gt.s32.totalorder 0, %v6118
        %v6120 = vsel %vm6119, 0, %v6118
        %v6121 = vsub.s32 32, %v6120
        %v6122 = vshll.u32 %v6113, %v6120
        %v6123 = vshrl.u32 %v6105, %v6121
        %v6124 = vor.u32 %v6122, %v6123
        %v6125 = vsub.s32 4294967266, %v6120
        %v6126 = vadd.s32 %v6125, 127
        %v6127 = vshll.u32 %v6126, 23
        %v6128 = vor.u32 4788187, %v6127
        %v6129 = vand.u32 2147483647, %v6128
        %v6131 = vcvt.s32.f32 %v6124
        %v6132 = vmul.f32 %v6131, %v6129
        %v6133 = vxor.u32 %v6132, 2147483648
        %v6134 = vsel %vm6051, %v6133, %v6132
        %v6135 = vsub.s32 4, %v6111
        %v6136 = vsel %vm6051, %v6135, %v6111
        %v6137 = vsel %vm6050, %v1044, %v6134
        %v6138 = vsel %vm6050, 0, %v6136
        %v6139 = vcosq.f32.pop %v6137
        %v6140 = vsinq.f32.pop %v6137
        %vm6141 = vweird.f32 %v1044
        %v6142 = vadd.s32 %v6138, 3
        %v6143 = vand.u32 %v6142, 3
        %vm6144 = vcmp.lt.s32.totalorder %v6143, 2
        %vm6145 = vcmp.eq.s32.totalorder %v6143, 0
        %v6146 = vxor.u32 %v6140, 2147483648
        %v6147 = vsel %vm6145, %v6139, %v6146
        %vm6148 = vcmp.eq.s32.totalorder %v6143, 2
        %v6149 = vxor.u32 %v6139, 2147483648
        %v6150 = vsel %vm6148, %v6149, %v6140
        %v6151 = vsel %vm6144, %v6147, %v6150
        %v6152 = vsel %vm6141, nan, %v6151
        %v6153 = vand.u32 2147483647, %v1048
        %vm6154 = vcmp.le.f32.partialorder %v6153, 0.7853982
        %vm6155 = vcmp.lt.s32.totalorder %v1048, 0
        %v6156 = vand.u32 %v1048, 2139095040
        %v6157 = vshrl.u32 %v6156, 23
        %v6158 = vsub.s32 %v6157, 127
        %v6159 = vand.u32 2147483647, %v1048
        %v6160 = vand.u32 %v6159, 8388607
        %v6161 = vor.u32 %v6160, 8388608
        %v6162 = vsub.s32 0, %v6161
        %v6163 = vadd.s32 %v6158, 1
        %vm6164 = vcmp.gt.s32.totalorder %v6163, 0
        %v6165 = vsel %vm6164, %v6163, 0
        %v6166 = vshrl.u32 %v6165, 5
        %v6167 = vand.u32 %v6165, 31
        %v6168 = vsub.s32 32, %v6167
        %v6169 = vshrl.u32 683565275, %v6168
        %v6170 = vshll.u32 683565275, %v6167
        %v6171 = vshrl.u32 2475754826, %v6168
        %v6172 = vor.u32 %v6170, %v6171
        %v6173 = vshll.u32 2475754826, %v6167
        %v6174 = vshrl.u32 2131351028, %v6168
        %v6175 = vor.u32 %v6173, %v6174
        %v6176 = vshll.u32 2131351028, %v6167
        %v6177 = vshrl.u32 2102212464, %v6168
        %v6178 = vor.u32 %v6176, %v6177
        %v6179 = vshll.u32 2102212464, %v6167
        %v6180 = vshrl.u32 920167782, %v6168
        %v6181 = vor.u32 %v6179, %v6180
        %v6182 = vshll.u32 920167782, %v6167
        %v6183 = vshrl.u32 1326507024, %v6168
        %v6184 = vor.u32 %v6182, %v6183
        %vm6185 = vcmp.lt.s32.totalorder %v6166, 1
        %vm6186 = vcmp.lt.s32.totalorder %v6166, 2
        %vm6187 = vcmp.lt.s32.totalorder %v6166, 3
        %vm6188 = vcmp.lt.s32.totalorder %v6166, 4
        %v6189 = vsel %vm6185, %v6169, %v6172
        %v6190 = vsel %vm6188, %v6178, 2102212464
        %v6191 = vsel %vm6187, %v6175, %v6190
        %v6192 = vsel %vm6186, %v6189, %v6191
        %v6193 = vsel %vm6185, %v6172, %v6175
        %v6194 = vsel %vm6188, %v6181, 920167782
        %v6195 = vsel %vm6187, %v6178, %v6194
        %v6196 = vsel %vm6186, %v6193, %v6195
        %v6197 = vsel %vm6185, %v6175, %v6178
        %v6198 = vsel %vm6188, %v6184, 1326507024
        %v6199 = vsel %vm6187, %v6181, %v6198
        %v6200 = vsel %vm6186, %v6197, %v6199
        %v6201 = vshll.u32 %v6161, 8
        %v6202 = vmul.u32.u64.compose %v6201, %v6200
        %v6203 = vextract.low.u32 %v6202
        %v6204 = vextract.high.u32 %v6202
        %v6205 = vmul.u32.u64.compose %v6201, %v6196
        %v6206 = vextract.low.u32 %v6205
        %v6207 = vextract.high.u32 %v6205
        %v6208 = vmul.u32 %v6201, %v6192
        %v6209 = vadd.s32 %v6204, %v6206
        %vm6210 = vc.u32 %v6204, %v6206
        %v6211 = vadd.s32 %v6207, 1
        %v6212 = vsel %vm6210, %v6211, %v6207
        %v6213 = vadd.s32 %v6208, %v6212
        %v6214 = vadd.s32 %v6213, 536870912
        %v6215 = vshrl.u32 %v6214, 30
        %v6216 = vshll.u32 %v6215, 30
        %v6217 = vsub.s32 %v6213, %v6216
        %vm6218 = vcmp.lt.s32.totalorder %v6217, 0
        %v6219 = vsub.s32 0, %v6217
        %v6220 = vsel %vm6218, %v6219, %v6217
        %v6221 = vclz %v6220
        %v6222 = vsub.s32 %v6221, 2
        %vm6223 = vcmp.gt.s32.totalorder 0, %v6222
        %v6224 = vsel %vm6223, 0, %v6222
        %v6225 = vsub.s32 32, %v6224
        %v6226 = vshll.u32 %v6217, %v6224
        %v6227 = vshrl.u32 %v6209, %v6225
        %v6228 = vor.u32 %v6226, %v6227
        %v6229 = vsub.s32 4294967266, %v6224
        %v6230 = vadd.s32 %v6229, 127
        %v6231 = vshll.u32 %v6230, 23
        %v6232 = vor.u32 4788187, %v6231
        %v6233 = vand.u32 2147483647, %v6232
        %v6235 = vcvt.s32.f32 %v6228
        %v6236 = vmul.f32 %v6235, %v6233
        %v6237 = vxor.u32 %v6236, 2147483648
        %v6238 = vsel %vm6155, %v6237, %v6236
        %v6239 = vsub.s32 4, %v6215
        %v6240 = vsel %vm6155, %v6239, %v6215
        %v6241 = vsel %vm6154, %v1048, %v6238
        %v6242 = vsel %vm6154, 0, %v6240
        %v6243 = vcosq.f32.pop %v6241
        %v6244 = vsinq.f32.pop %v6241
        %vm6245 = vweird.f32 %v1048
        %v6246 = vadd.s32 %v6242, 3
        %v6247 = vand.u32 %v6246, 3
        %vm6248 = vcmp.lt.s32.totalorder %v6247, 2
        %vm6249 = vcmp.eq.s32.totalorder %v6247, 0
        %v6250 = vxor.u32 %v6244, 2147483648
        %v6251 = vsel %vm6249, %v6243, %v6250
        %vm6252 = vcmp.eq.s32.totalorder %v6247, 2
        %v6253 = vxor.u32 %v6243, 2147483648
        %v6254 = vsel %vm6252, %v6253, %v6244
        %v6255 = vsel %vm6248, %v6251, %v6254
        %v6256 = vsel %vm6245, nan, %v6255
        %v6257 = vand.u32 2147483647, %v1050
        %vm6258 = vcmp.le.f32.partialorder %v6257, 0.7853982
        %vm6259 = vcmp.lt.s32.totalorder %v1050, 0
        %v6260 = vand.u32 %v1050, 2139095040
        %v6261 = vshrl.u32 %v6260, 23
        %v6262 = vsub.s32 %v6261, 127
        %v6263 = vand.u32 2147483647, %v1050
        %v6264 = vand.u32 %v6263, 8388607
        %v6265 = vor.u32 %v6264, 8388608
        %v6266 = vsub.s32 0, %v6265
        %v6267 = vadd.s32 %v6262, 1
        %vm6268 = vcmp.gt.s32.totalorder %v6267, 0
        %v6269 = vsel %vm6268, %v6267, 0
        %v6270 = vshrl.u32 %v6269, 5
        %v6271 = vand.u32 %v6269, 31
        %v6272 = vsub.s32 32, %v6271
        %v6273 = vshrl.u32 683565275, %v6272
        %v6274 = vshll.u32 683565275, %v6271
        %v6275 = vshrl.u32 2475754826, %v6272
        %v6276 = vor.u32 %v6274, %v6275
        %v6277 = vshll.u32 2475754826, %v6271
        %v6278 = vshrl.u32 2131351028, %v6272
        %v6279 = vor.u32 %v6277, %v6278
        %v6280 = vshll.u32 2131351028, %v6271
        %v6281 = vshrl.u32 2102212464, %v6272
        %v6282 = vor.u32 %v6280, %v6281
        %v6283 = vshll.u32 2102212464, %v6271
        %v6284 = vshrl.u32 920167782, %v6272
        %v6285 = vor.u32 %v6283, %v6284
        %v6286 = vshll.u32 920167782, %v6271
        %v6287 = vshrl.u32 1326507024, %v6272
        %v6288 = vor.u32 %v6286, %v6287
        %vm6289 = vcmp.lt.s32.totalorder %v6270, 1
        %vm6290 = vcmp.lt.s32.totalorder %v6270, 2
        %vm6291 = vcmp.lt.s32.totalorder %v6270, 3
        %vm6292 = vcmp.lt.s32.totalorder %v6270, 4
        %v6293 = vsel %vm6289, %v6273, %v6276
        %v6294 = vsel %vm6292, %v6282, 2102212464
        %v6295 = vsel %vm6291, %v6279, %v6294
        %v6296 = vsel %vm6290, %v6293, %v6295
        %v6297 = vsel %vm6289, %v6276, %v6279
        %v6298 = vsel %vm6292, %v6285, 920167782
        %v6299 = vsel %vm6291, %v6282, %v6298
        %v6300 = vsel %vm6290, %v6297, %v6299
        %v6301 = vsel %vm6289, %v6279, %v6282
        %v6302 = vsel %vm6292, %v6288, 1326507024
        %v6303 = vsel %vm6291, %v6285, %v6302
        %v6304 = vsel %vm6290, %v6301, %v6303
        %v6305 = vshll.u32 %v6265, 8
        %v6306 = vmul.u32.u64.compose %v6305, %v6304
        %v6307 = vextract.low.u32 %v6306
        %v6308 = vextract.high.u32 %v6306
        %v6309 = vmul.u32.u64.compose %v6305, %v6300
        %v6310 = vextract.low.u32 %v6309
        %v6311 = vextract.high.u32 %v6309
        %v6312 = vmul.u32 %v6305, %v6296
        %v6313 = vadd.s32 %v6308, %v6310
        %vm6314 = vc.u32 %v6308, %v6310
        %v6315 = vadd.s32 %v6311, 1
        %v6316 = vsel %vm6314, %v6315, %v6311
        %v6317 = vadd.s32 %v6312, %v6316
        %v6318 = vadd.s32 %v6317, 536870912
        %v6319 = vshrl.u32 %v6318, 30
        %v6320 = vshll.u32 %v6319, 30
        %v6321 = vsub.s32 %v6317, %v6320
        %vm6322 = vcmp.lt.s32.totalorder %v6321, 0
        %v6323 = vsub.s32 0, %v6321
        %v6324 = vsel %vm6322, %v6323, %v6321
        %v6325 = vclz %v6324
        %v6326 = vsub.s32 %v6325, 2
        %vm6327 = vcmp.gt.s32.totalorder 0, %v6326
        %v6328 = vsel %vm6327, 0, %v6326
        %v6329 = vsub.s32 32, %v6328
        %v6330 = vshll.u32 %v6321, %v6328
        %v6331 = vshrl.u32 %v6313, %v6329
        %v6332 = vor.u32 %v6330, %v6331
        %v6333 = vsub.s32 4294967266, %v6328
        %v6334 = vadd.s32 %v6333, 127
        %v6335 = vshll.u32 %v6334, 23
        %v6336 = vor.u32 4788187, %v6335
        %v6337 = vand.u32 2147483647, %v6336
        %v6339 = vcvt.s32.f32 %v6332
        %v6340 = vmul.f32 %v6339, %v6337
        %v6341 = vxor.u32 %v6340, 2147483648
        %v6342 = vsel %vm6259, %v6341, %v6340
        %v6343 = vsub.s32 4, %v6319
        %v6344 = vsel %vm6259, %v6343, %v6319
        %v6345 = vsel %vm6258, %v1050, %v6342
        %v6346 = vsel %vm6258, 0, %v6344
        %v6347 = vcosq.f32.pop %v6345
        %v6348 = vsinq.f32.pop %v6345
        %vm6349 = vweird.f32 %v1050
        %v6350 = vadd.s32 %v6346, 3
        %v6351 = vand.u32 %v6350, 3
        %vm6352 = vcmp.lt.s32.totalorder %v6351, 2
        %vm6353 = vcmp.eq.s32.totalorder %v6351, 0
        %v6354 = vxor.u32 %v6348, 2147483648
        %v6355 = vsel %vm6353, %v6347, %v6354
        %vm6356 = vcmp.eq.s32.totalorder %v6351, 2
        %v6357 = vxor.u32 %v6347, 2147483648
        %v6358 = vsel %vm6356, %v6357, %v6348
        %v6359 = vsel %vm6352, %v6355, %v6358
        %v6360 = vsel %vm6349, nan, %v6359
        %v6361 = vand.u32 2147483647, %v1054
        %vm6362 = vcmp.le.f32.partialorder %v6361, 0.7853982
        %vm6363 = vcmp.lt.s32.totalorder %v1054, 0
        %v6364 = vand.u32 %v1054, 2139095040
        %v6365 = vshrl.u32 %v6364, 23
        %v6366 = vsub.s32 %v6365, 127
        %v6367 = vand.u32 2147483647, %v1054
        %v6368 = vand.u32 %v6367, 8388607
        %v6369 = vor.u32 %v6368, 8388608
        %v6370 = vsub.s32 0, %v6369
        %v6371 = vadd.s32 %v6366, 1
        %vm6372 = vcmp.gt.s32.totalorder %v6371, 0
        %v6373 = vsel %vm6372, %v6371, 0
        %v6374 = vshrl.u32 %v6373, 5
        %v6375 = vand.u32 %v6373, 31
        %v6376 = vsub.s32 32, %v6375
        %v6377 = vshrl.u32 683565275, %v6376
        %v6378 = vshll.u32 683565275, %v6375
        %v6379 = vshrl.u32 2475754826, %v6376
        %v6380 = vor.u32 %v6378, %v6379
        %v6381 = vshll.u32 2475754826, %v6375
        %v6382 = vshrl.u32 2131351028, %v6376
        %v6383 = vor.u32 %v6381, %v6382
        %v6384 = vshll.u32 2131351028, %v6375
        %v6385 = vshrl.u32 2102212464, %v6376
        %v6386 = vor.u32 %v6384, %v6385
        %v6387 = vshll.u32 2102212464, %v6375
        %v6388 = vshrl.u32 920167782, %v6376
        %v6389 = vor.u32 %v6387, %v6388
        %v6390 = vshll.u32 920167782, %v6375
        %v6391 = vshrl.u32 1326507024, %v6376
        %v6392 = vor.u32 %v6390, %v6391
        %vm6393 = vcmp.lt.s32.totalorder %v6374, 1
        %vm6394 = vcmp.lt.s32.totalorder %v6374, 2
        %vm6395 = vcmp.lt.s32.totalorder %v6374, 3
        %vm6396 = vcmp.lt.s32.totalorder %v6374, 4
        %v6397 = vsel %vm6393, %v6377, %v6380
        %v6398 = vsel %vm6396, %v6386, 2102212464
        %v6399 = vsel %vm6395, %v6383, %v6398
        %v6400 = vsel %vm6394, %v6397, %v6399
        %v6401 = vsel %vm6393, %v6380, %v6383
        %v6402 = vsel %vm6396, %v6389, 920167782
        %v6403 = vsel %vm6395, %v6386, %v6402
        %v6404 = vsel %vm6394, %v6401, %v6403
        %v6405 = vsel %vm6393, %v6383, %v6386
        %v6406 = vsel %vm6396, %v6392, 1326507024
        %v6407 = vsel %vm6395, %v6389, %v6406
        %v6408 = vsel %vm6394, %v6405, %v6407
        %v6409 = vshll.u32 %v6369, 8
        %v6410 = vmul.u32.u64.compose %v6409, %v6408
        %v6411 = vextract.low.u32 %v6410
        %v6412 = vextract.high.u32 %v6410
        %v6413 = vmul.u32.u64.compose %v6409, %v6404
        %v6414 = vextract.low.u32 %v6413
        %v6415 = vextract.high.u32 %v6413
        %v6416 = vmul.u32 %v6409, %v6400
        %v6417 = vadd.s32 %v6412, %v6414
        %vm6418 = vc.u32 %v6412, %v6414
        %v6419 = vadd.s32 %v6415, 1
        %v6420 = vsel %vm6418, %v6419, %v6415
        %v6421 = vadd.s32 %v6416, %v6420
        %v6422 = vadd.s32 %v6421, 536870912
        %v6423 = vshrl.u32 %v6422, 30
        %v6424 = vshll.u32 %v6423, 30
        %v6425 = vsub.s32 %v6421, %v6424
        %vm6426 = vcmp.lt.s32.totalorder %v6425, 0
        %v6427 = vsub.s32 0, %v6425
        %v6428 = vsel %vm6426, %v6427, %v6425
        %v6429 = vclz %v6428
        %v6430 = vsub.s32 %v6429, 2
        %vm6431 = vcmp.gt.s32.totalorder 0, %v6430
        %v6432 = vsel %vm6431, 0, %v6430
        %v6433 = vsub.s32 32, %v6432
        %v6434 = vshll.u32 %v6425, %v6432
        %v6435 = vshrl.u32 %v6417, %v6433
        %v6436 = vor.u32 %v6434, %v6435
        %v6437 = vsub.s32 4294967266, %v6432
        %v6438 = vadd.s32 %v6437, 127
        %v6439 = vshll.u32 %v6438, 23
        %v6440 = vor.u32 4788187, %v6439
        %v6441 = vand.u32 2147483647, %v6440
        %v6443 = vcvt.s32.f32 %v6436
        %v6444 = vmul.f32 %v6443, %v6441
        %v6445 = vxor.u32 %v6444, 2147483648
        %v6446 = vsel %vm6363, %v6445, %v6444
        %v6447 = vsub.s32 4, %v6423
        %v6448 = vsel %vm6363, %v6447, %v6423
        %v6449 = vsel %vm6362, %v1054, %v6446
        %v6450 = vsel %vm6362, 0, %v6448
        %v6451 = vcosq.f32.pop %v6449
        %v6452 = vsinq.f32.pop %v6449
        %vm6453 = vweird.f32 %v1054
        %v6454 = vadd.s32 %v6450, 3
        %v6455 = vand.u32 %v6454, 3
        %vm6456 = vcmp.lt.s32.totalorder %v6455, 2
        %vm6457 = vcmp.eq.s32.totalorder %v6455, 0
        %v6458 = vxor.u32 %v6452, 2147483648
        %v6459 = vsel %vm6457, %v6451, %v6458
        %vm6460 = vcmp.eq.s32.totalorder %v6455, 2
        %v6461 = vxor.u32 %v6451, 2147483648
        %v6462 = vsel %vm6460, %v6461, %v6452
        %v6463 = vsel %vm6456, %v6459, %v6462
        %v6464 = vsel %vm6453, nan, %v6463
        %v6465 = vand.u32 2147483647, %v1056
        %vm6466 = vcmp.le.f32.partialorder %v6465, 0.7853982
        %vm6467 = vcmp.lt.s32.totalorder %v1056, 0
        %v6468 = vand.u32 %v1056, 2139095040
        %v6469 = vshrl.u32 %v6468, 23
        %v6470 = vsub.s32 %v6469, 127
        %v6471 = vand.u32 2147483647, %v1056
        %v6472 = vand.u32 %v6471, 8388607
        %v6473 = vor.u32 %v6472, 8388608
        %v6474 = vsub.s32 0, %v6473
        %v6475 = vadd.s32 %v6470, 1
        %vm6476 = vcmp.gt.s32.totalorder %v6475, 0
        %v6477 = vsel %vm6476, %v6475, 0
        %v6478 = vshrl.u32 %v6477, 5
        %v6479 = vand.u32 %v6477, 31
        %v6480 = vsub.s32 32, %v6479
        %v6481 = vshrl.u32 683565275, %v6480
        %v6482 = vshll.u32 683565275, %v6479
        %v6483 = vshrl.u32 2475754826, %v6480
        %v6484 = vor.u32 %v6482, %v6483
        %v6485 = vshll.u32 2475754826, %v6479
        %v6486 = vshrl.u32 2131351028, %v6480
        %v6487 = vor.u32 %v6485, %v6486
        %v6488 = vshll.u32 2131351028, %v6479
        %v6489 = vshrl.u32 2102212464, %v6480
        %v6490 = vor.u32 %v6488, %v6489
        %v6491 = vshll.u32 2102212464, %v6479
        %v6492 = vshrl.u32 920167782, %v6480
        %v6493 = vor.u32 %v6491, %v6492
        %v6494 = vshll.u32 920167782, %v6479
        %v6495 = vshrl.u32 1326507024, %v6480
        %v6496 = vor.u32 %v6494, %v6495
        %vm6497 = vcmp.lt.s32.totalorder %v6478, 1
        %vm6498 = vcmp.lt.s32.totalorder %v6478, 2
        %vm6499 = vcmp.lt.s32.totalorder %v6478, 3
        %vm6500 = vcmp.lt.s32.totalorder %v6478, 4
        %v6501 = vsel %vm6497, %v6481, %v6484
        %v6502 = vsel %vm6500, %v6490, 2102212464
        %v6503 = vsel %vm6499, %v6487, %v6502
        %v6504 = vsel %vm6498, %v6501, %v6503
        %v6505 = vsel %vm6497, %v6484, %v6487
        %v6506 = vsel %vm6500, %v6493, 920167782
        %v6507 = vsel %vm6499, %v6490, %v6506
        %v6508 = vsel %vm6498, %v6505, %v6507
        %v6509 = vsel %vm6497, %v6487, %v6490
        %v6510 = vsel %vm6500, %v6496, 1326507024
        %v6511 = vsel %vm6499, %v6493, %v6510
        %v6512 = vsel %vm6498, %v6509, %v6511
        %v6513 = vshll.u32 %v6473, 8
        %v6514 = vmul.u32.u64.compose %v6513, %v6512
        %v6515 = vextract.low.u32 %v6514
        %v6516 = vextract.high.u32 %v6514
        %v6517 = vmul.u32.u64.compose %v6513, %v6508
        %v6518 = vextract.low.u32 %v6517
        %v6519 = vextract.high.u32 %v6517
        %v6520 = vmul.u32 %v6513, %v6504
        %v6521 = vadd.s32 %v6516, %v6518
        %vm6522 = vc.u32 %v6516, %v6518
        %v6523 = vadd.s32 %v6519, 1
        %v6524 = vsel %vm6522, %v6523, %v6519
        %v6525 = vadd.s32 %v6520, %v6524
        %v6526 = vadd.s32 %v6525, 536870912
        %v6527 = vshrl.u32 %v6526, 30
        %v6528 = vshll.u32 %v6527, 30
        %v6529 = vsub.s32 %v6525, %v6528
        %vm6530 = vcmp.lt.s32.totalorder %v6529, 0
        %v6531 = vsub.s32 0, %v6529
        %v6532 = vsel %vm6530, %v6531, %v6529
        %v6533 = vclz %v6532
        %v6534 = vsub.s32 %v6533, 2
        %vm6535 = vcmp.gt.s32.totalorder 0, %v6534
        %v6536 = vsel %vm6535, 0, %v6534
        %v6537 = vsub.s32 32, %v6536
        %v6538 = vshll.u32 %v6529, %v6536
        %v6539 = vshrl.u32 %v6521, %v6537
        %v6540 = vor.u32 %v6538, %v6539
        %v6541 = vsub.s32 4294967266, %v6536
        %v6542 = vadd.s32 %v6541, 127
        %v6543 = vshll.u32 %v6542, 23
        %v6544 = vor.u32 4788187, %v6543
        %v6545 = vand.u32 2147483647, %v6544
        %v6547 = vcvt.s32.f32 %v6540
        %v6548 = vmul.f32 %v6547, %v6545
        %v6549 = vxor.u32 %v6548, 2147483648
        %v6550 = vsel %vm6467, %v6549, %v6548
        %v6551 = vsub.s32 4, %v6527
        %v6552 = vsel %vm6467, %v6551, %v6527
        %v6553 = vsel %vm6466, %v1056, %v6550
        %v6554 = vsel %vm6466, 0, %v6552
        %v6555 = vcosq.f32.pop %v6553
        %v6556 = vsinq.f32.pop %v6553
        %vm6557 = vweird.f32 %v1056
        %v6558 = vadd.s32 %v6554, 3
        %v6559 = vand.u32 %v6558, 3
        %vm6560 = vcmp.lt.s32.totalorder %v6559, 2
        %vm6561 = vcmp.eq.s32.totalorder %v6559, 0
        %v6562 = vxor.u32 %v6556, 2147483648
        %v6563 = vsel %vm6561, %v6555, %v6562
        %vm6564 = vcmp.eq.s32.totalorder %v6559, 2
        %v6565 = vxor.u32 %v6555, 2147483648
        %v6566 = vsel %vm6564, %v6565, %v6556
        %v6567 = vsel %vm6560, %v6563, %v6566
        %v6568 = vsel %vm6557, nan, %v6567
        %v6569 = vand.u32 2147483647, %v1060
        %vm6570 = vcmp.le.f32.partialorder %v6569, 0.7853982
        %vm6571 = vcmp.lt.s32.totalorder %v1060, 0
        %v6572 = vand.u32 %v1060, 2139095040
        %v6573 = vshrl.u32 %v6572, 23
        %v6574 = vsub.s32 %v6573, 127
        %v6575 = vand.u32 2147483647, %v1060
        %v6576 = vand.u32 %v6575, 8388607
        %v6577 = vor.u32 %v6576, 8388608
        %v6578 = vsub.s32 0, %v6577
        %v6579 = vadd.s32 %v6574, 1
        %vm6580 = vcmp.gt.s32.totalorder %v6579, 0
        %v6581 = vsel %vm6580, %v6579, 0
        %v6582 = vshrl.u32 %v6581, 5
        %v6583 = vand.u32 %v6581, 31
        %v6584 = vsub.s32 32, %v6583
        %v6585 = vshrl.u32 683565275, %v6584
        %v6586 = vshll.u32 683565275, %v6583
        %v6587 = vshrl.u32 2475754826, %v6584
        %v6588 = vor.u32 %v6586, %v6587
        %v6589 = vshll.u32 2475754826, %v6583
        %v6590 = vshrl.u32 2131351028, %v6584
        %v6591 = vor.u32 %v6589, %v6590
        %v6592 = vshll.u32 2131351028, %v6583
        %v6593 = vshrl.u32 2102212464, %v6584
        %v6594 = vor.u32 %v6592, %v6593
        %v6595 = vshll.u32 2102212464, %v6583
        %v6596 = vshrl.u32 920167782, %v6584
        %v6597 = vor.u32 %v6595, %v6596
        %v6598 = vshll.u32 920167782, %v6583
        %v6599 = vshrl.u32 1326507024, %v6584
        %v6600 = vor.u32 %v6598, %v6599
        %vm6601 = vcmp.lt.s32.totalorder %v6582, 1
        %vm6602 = vcmp.lt.s32.totalorder %v6582, 2
        %vm6603 = vcmp.lt.s32.totalorder %v6582, 3
        %vm6604 = vcmp.lt.s32.totalorder %v6582, 4
        %v6605 = vsel %vm6601, %v6585, %v6588
        %v6606 = vsel %vm6604, %v6594, 2102212464
        %v6607 = vsel %vm6603, %v6591, %v6606
        %v6608 = vsel %vm6602, %v6605, %v6607
        %v6609 = vsel %vm6601, %v6588, %v6591
        %v6610 = vsel %vm6604, %v6597, 920167782
        %v6611 = vsel %vm6603, %v6594, %v6610
        %v6612 = vsel %vm6602, %v6609, %v6611
        %v6613 = vsel %vm6601, %v6591, %v6594
        %v6614 = vsel %vm6604, %v6600, 1326507024
        %v6615 = vsel %vm6603, %v6597, %v6614
        %v6616 = vsel %vm6602, %v6613, %v6615
        %v6617 = vshll.u32 %v6577, 8
        %v6618 = vmul.u32.u64.compose %v6617, %v6616
        %v6619 = vextract.low.u32 %v6618
        %v6620 = vextract.high.u32 %v6618
        %v6621 = vmul.u32.u64.compose %v6617, %v6612
        %v6622 = vextract.low.u32 %v6621
        %v6623 = vextract.high.u32 %v6621
        %v6624 = vmul.u32 %v6617, %v6608
        %v6625 = vadd.s32 %v6620, %v6622
        %vm6626 = vc.u32 %v6620, %v6622
        %v6627 = vadd.s32 %v6623, 1
        %v6628 = vsel %vm6626, %v6627, %v6623
        %v6629 = vadd.s32 %v6624, %v6628
        %v6630 = vadd.s32 %v6629, 536870912
        %v6631 = vshrl.u32 %v6630, 30
        %v6632 = vshll.u32 %v6631, 30
        %v6633 = vsub.s32 %v6629, %v6632
        %vm6634 = vcmp.lt.s32.totalorder %v6633, 0
        %v6635 = vsub.s32 0, %v6633
        %v6636 = vsel %vm6634, %v6635, %v6633
        %v6637 = vclz %v6636
        %v6638 = vsub.s32 %v6637, 2
        %vm6639 = vcmp.gt.s32.totalorder 0, %v6638
        %v6640 = vsel %vm6639, 0, %v6638
        %v6641 = vsub.s32 32, %v6640
        %v6642 = vshll.u32 %v6633, %v6640
        %v6643 = vshrl.u32 %v6625, %v6641
        %v6644 = vor.u32 %v6642, %v6643
        %v6645 = vsub.s32 4294967266, %v6640
        %v6646 = vadd.s32 %v6645, 127
        %v6647 = vshll.u32 %v6646, 23
        %v6648 = vor.u32 4788187, %v6647
        %v6649 = vand.u32 2147483647, %v6648
        %v6651 = vcvt.s32.f32 %v6644
        %v6652 = vmul.f32 %v6651, %v6649
        %v6653 = vxor.u32 %v6652, 2147483648
        %v6654 = vsel %vm6571, %v6653, %v6652
        %v6655 = vsub.s32 4, %v6631
        %v6656 = vsel %vm6571, %v6655, %v6631
        %v6657 = vsel %vm6570, %v1060, %v6654
        %v6658 = vsel %vm6570, 0, %v6656
        %v6659 = vcosq.f32.pop %v6657
        %v6660 = vsinq.f32.pop %v6657
        %vm6661 = vweird.f32 %v1060
        %v6662 = vadd.s32 %v6658, 3
        %v6663 = vand.u32 %v6662, 3
        %vm6664 = vcmp.lt.s32.totalorder %v6663, 2
        %vm6665 = vcmp.eq.s32.totalorder %v6663, 0
        %v6666 = vxor.u32 %v6660, 2147483648
        %v6667 = vsel %vm6665, %v6659, %v6666
        %vm6668 = vcmp.eq.s32.totalorder %v6663, 2
        %v6669 = vxor.u32 %v6659, 2147483648
        %v6670 = vsel %vm6668, %v6669, %v6660
        %v6671 = vsel %vm6664, %v6667, %v6670
        %v6672 = vsel %vm6661, nan, %v6671
        %v6673 = vand.u32 2147483647, %v1062
        %vm6674 = vcmp.le.f32.partialorder %v6673, 0.7853982
        %vm6675 = vcmp.lt.s32.totalorder %v1062, 0
        %v6676 = vand.u32 %v1062, 2139095040
        %v6677 = vshrl.u32 %v6676, 23
        %v6678 = vsub.s32 %v6677, 127
        %v6679 = vand.u32 2147483647, %v1062
        %v6680 = vand.u32 %v6679, 8388607
        %v6681 = vor.u32 %v6680, 8388608
        %v6682 = vsub.s32 0, %v6681
        %v6683 = vadd.s32 %v6678, 1
        %vm6684 = vcmp.gt.s32.totalorder %v6683, 0
        %v6685 = vsel %vm6684, %v6683, 0
        %v6686 = vshrl.u32 %v6685, 5
        %v6687 = vand.u32 %v6685, 31
        %v6688 = vsub.s32 32, %v6687
        %v6689 = vshrl.u32 683565275, %v6688
        %v6690 = vshll.u32 683565275, %v6687
        %v6691 = vshrl.u32 2475754826, %v6688
        %v6692 = vor.u32 %v6690, %v6691
        %v6693 = vshll.u32 2475754826, %v6687
        %v6694 = vshrl.u32 2131351028, %v6688
        %v6695 = vor.u32 %v6693, %v6694
        %v6696 = vshll.u32 2131351028, %v6687
        %v6697 = vshrl.u32 2102212464, %v6688
        %v6698 = vor.u32 %v6696, %v6697
        %v6699 = vshll.u32 2102212464, %v6687
        %v6700 = vshrl.u32 920167782, %v6688
        %v6701 = vor.u32 %v6699, %v6700
        %v6702 = vshll.u32 920167782, %v6687
        %v6703 = vshrl.u32 1326507024, %v6688
        %v6704 = vor.u32 %v6702, %v6703
        %vm6705 = vcmp.lt.s32.totalorder %v6686, 1
        %vm6706 = vcmp.lt.s32.totalorder %v6686, 2
        %vm6707 = vcmp.lt.s32.totalorder %v6686, 3
        %vm6708 = vcmp.lt.s32.totalorder %v6686, 4
        %v6709 = vsel %vm6705, %v6689, %v6692
        %v6710 = vsel %vm6708, %v6698, 2102212464
        %v6711 = vsel %vm6707, %v6695, %v6710
        %v6712 = vsel %vm6706, %v6709, %v6711
        %v6713 = vsel %vm6705, %v6692, %v6695
        %v6714 = vsel %vm6708, %v6701, 920167782
        %v6715 = vsel %vm6707, %v6698, %v6714
        %v6716 = vsel %vm6706, %v6713, %v6715
        %v6717 = vsel %vm6705, %v6695, %v6698
        %v6718 = vsel %vm6708, %v6704, 1326507024
        %v6719 = vsel %vm6707, %v6701, %v6718
        %v6720 = vsel %vm6706, %v6717, %v6719
        %v6721 = vshll.u32 %v6681, 8
        %v6722 = vmul.u32.u64.compose %v6721, %v6720
        %v6723 = vextract.low.u32 %v6722
        %v6724 = vextract.high.u32 %v6722
        %v6725 = vmul.u32.u64.compose %v6721, %v6716
        %v6726 = vextract.low.u32 %v6725
        %v6727 = vextract.high.u32 %v6725
        %v6728 = vmul.u32 %v6721, %v6712
        %v6729 = vadd.s32 %v6724, %v6726
        %vm6730 = vc.u32 %v6724, %v6726
        %v6731 = vadd.s32 %v6727, 1
        %v6732 = vsel %vm6730, %v6731, %v6727
        %v6733 = vadd.s32 %v6728, %v6732
        %v6734 = vadd.s32 %v6733, 536870912
        %v6735 = vshrl.u32 %v6734, 30
        %v6736 = vshll.u32 %v6735, 30
        %v6737 = vsub.s32 %v6733, %v6736
        %vm6738 = vcmp.lt.s32.totalorder %v6737, 0
        %v6739 = vsub.s32 0, %v6737
        %v6740 = vsel %vm6738, %v6739, %v6737
        %v6741 = vclz %v6740
        %v6742 = vsub.s32 %v6741, 2
        %vm6743 = vcmp.gt.s32.totalorder 0, %v6742
        %v6744 = vsel %vm6743, 0, %v6742
        %v6745 = vsub.s32 32, %v6744
        %v6746 = vshll.u32 %v6737, %v6744
        %v6747 = vshrl.u32 %v6729, %v6745
        %v6748 = vor.u32 %v6746, %v6747
        %v6749 = vsub.s32 4294967266, %v6744
        %v6750 = vadd.s32 %v6749, 127
        %v6751 = vshll.u32 %v6750, 23
        %v6752 = vor.u32 4788187, %v6751
        %v6753 = vand.u32 2147483647, %v6752
        %v6755 = vcvt.s32.f32 %v6748
        %v6756 = vmul.f32 %v6755, %v6753
        %v6757 = vxor.u32 %v6756, 2147483648
        %v6758 = vsel %vm6675, %v6757, %v6756
        %v6759 = vsub.s32 4, %v6735
        %v6760 = vsel %vm6675, %v6759, %v6735
        %v6761 = vsel %vm6674, %v1062, %v6758
        %v6762 = vsel %vm6674, 0, %v6760
        %v6763 = vcosq.f32.pop %v6761
        %v6764 = vsinq.f32.pop %v6761
        %vm6765 = vweird.f32 %v1062
        %v6766 = vadd.s32 %v6762, 3
        %v6767 = vand.u32 %v6766, 3
        %vm6768 = vcmp.lt.s32.totalorder %v6767, 2
        %vm6769 = vcmp.eq.s32.totalorder %v6767, 0
        %v6770 = vxor.u32 %v6764, 2147483648
        %v6771 = vsel %vm6769, %v6763, %v6770
        %vm6772 = vcmp.eq.s32.totalorder %v6767, 2
        %v6773 = vxor.u32 %v6763, 2147483648
        %v6774 = vsel %vm6772, %v6773, %v6764
        %v6775 = vsel %vm6768, %v6771, %v6774
        %v6776 = vsel %vm6765, nan, %v6775
        %v6777 = vand.u32 2147483647, %v1066
        %vm6778 = vcmp.le.f32.partialorder %v6777, 0.7853982
        %vm6779 = vcmp.lt.s32.totalorder %v1066, 0
        %v6780 = vand.u32 %v1066, 2139095040
        %v6781 = vshrl.u32 %v6780, 23
        %v6782 = vsub.s32 %v6781, 127
        %v6783 = vand.u32 2147483647, %v1066
        %v6784 = vand.u32 %v6783, 8388607
        %v6785 = vor.u32 %v6784, 8388608
        %v6786 = vsub.s32 0, %v6785
        %v6787 = vadd.s32 %v6782, 1
        %vm6788 = vcmp.gt.s32.totalorder %v6787, 0
        %v6789 = vsel %vm6788, %v6787, 0
        %v6790 = vshrl.u32 %v6789, 5
        %v6791 = vand.u32 %v6789, 31
        %v6792 = vsub.s32 32, %v6791
        %v6793 = vshrl.u32 683565275, %v6792
        %v6794 = vshll.u32 683565275, %v6791
        %v6795 = vshrl.u32 2475754826, %v6792
        %v6796 = vor.u32 %v6794, %v6795
        %v6797 = vshll.u32 2475754826, %v6791
        %v6798 = vshrl.u32 2131351028, %v6792
        %v6799 = vor.u32 %v6797, %v6798
        %v6800 = vshll.u32 2131351028, %v6791
        %v6801 = vshrl.u32 2102212464, %v6792
        %v6802 = vor.u32 %v6800, %v6801
        %v6803 = vshll.u32 2102212464, %v6791
        %v6804 = vshrl.u32 920167782, %v6792
        %v6805 = vor.u32 %v6803, %v6804
        %v6806 = vshll.u32 920167782, %v6791
        %v6807 = vshrl.u32 1326507024, %v6792
        %v6808 = vor.u32 %v6806, %v6807
        %vm6809 = vcmp.lt.s32.totalorder %v6790, 1
        %vm6810 = vcmp.lt.s32.totalorder %v6790, 2
        %vm6811 = vcmp.lt.s32.totalorder %v6790, 3
        %vm6812 = vcmp.lt.s32.totalorder %v6790, 4
        %v6813 = vsel %vm6809, %v6793, %v6796
        %v6814 = vsel %vm6812, %v6802, 2102212464
        %v6815 = vsel %vm6811, %v6799, %v6814
        %v6816 = vsel %vm6810, %v6813, %v6815
        %v6817 = vsel %vm6809, %v6796, %v6799
        %v6818 = vsel %vm6812, %v6805, 920167782
        %v6819 = vsel %vm6811, %v6802, %v6818
        %v6820 = vsel %vm6810, %v6817, %v6819
        %v6821 = vsel %vm6809, %v6799, %v6802
        %v6822 = vsel %vm6812, %v6808, 1326507024
        %v6823 = vsel %vm6811, %v6805, %v6822
        %v6824 = vsel %vm6810, %v6821, %v6823
        %v6825 = vshll.u32 %v6785, 8
        %v6826 = vmul.u32.u64.compose %v6825, %v6824
        %v6827 = vextract.low.u32 %v6826
        %v6828 = vextract.high.u32 %v6826
        %v6829 = vmul.u32.u64.compose %v6825, %v6820
        %v6830 = vextract.low.u32 %v6829
        %v6831 = vextract.high.u32 %v6829
        %v6832 = vmul.u32 %v6825, %v6816
        %v6833 = vadd.s32 %v6828, %v6830
        %vm6834 = vc.u32 %v6828, %v6830
        %v6835 = vadd.s32 %v6831, 1
        %v6836 = vsel %vm6834, %v6835, %v6831
        %v6837 = vadd.s32 %v6832, %v6836
        %v6838 = vadd.s32 %v6837, 536870912
        %v6839 = vshrl.u32 %v6838, 30
        %v6840 = vshll.u32 %v6839, 30
        %v6841 = vsub.s32 %v6837, %v6840
        %vm6842 = vcmp.lt.s32.totalorder %v6841, 0
        %v6843 = vsub.s32 0, %v6841
        %v6844 = vsel %vm6842, %v6843, %v6841
        %v6845 = vclz %v6844
        %v6846 = vsub.s32 %v6845, 2
        %vm6847 = vcmp.gt.s32.totalorder 0, %v6846
        %v6848 = vsel %vm6847, 0, %v6846
        %v6849 = vsub.s32 32, %v6848
        %v6850 = vshll.u32 %v6841, %v6848
        %v6851 = vshrl.u32 %v6833, %v6849
        %v6852 = vor.u32 %v6850, %v6851
        %v6853 = vsub.s32 4294967266, %v6848
        %v6854 = vadd.s32 %v6853, 127
        %v6855 = vshll.u32 %v6854, 23
        %v6856 = vor.u32 4788187, %v6855
        %v6857 = vand.u32 2147483647, %v6856
        %v6859 = vcvt.s32.f32 %v6852
        %v6860 = vmul.f32 %v6859, %v6857
        %v6861 = vxor.u32 %v6860, 2147483648
        %v6862 = vsel %vm6779, %v6861, %v6860
        %v6863 = vsub.s32 4, %v6839
        %v6864 = vsel %vm6779, %v6863, %v6839
        %v6865 = vsel %vm6778, %v1066, %v6862
        %v6866 = vsel %vm6778, 0, %v6864
        %v6867 = vcosq.f32.pop %v6865
        %v6868 = vsinq.f32.pop %v6865
        %vm6869 = vweird.f32 %v1066
        %v6870 = vadd.s32 %v6866, 3
        %v6871 = vand.u32 %v6870, 3
        %vm6872 = vcmp.lt.s32.totalorder %v6871, 2
        %vm6873 = vcmp.eq.s32.totalorder %v6871, 0
        %v6874 = vxor.u32 %v6868, 2147483648
        %v6875 = vsel %vm6873, %v6867, %v6874
        %vm6876 = vcmp.eq.s32.totalorder %v6871, 2
        %v6877 = vxor.u32 %v6867, 2147483648
        %v6878 = vsel %vm6876, %v6877, %v6868
        %v6879 = vsel %vm6872, %v6875, %v6878
        %v6880 = vsel %vm6869, nan, %v6879
        %v6881 = vand.u32 2147483647, %v1068
        %vm6882 = vcmp.le.f32.partialorder %v6881, 0.7853982
        %vm6883 = vcmp.lt.s32.totalorder %v1068, 0
        %v6884 = vand.u32 %v1068, 2139095040
        %v6885 = vshrl.u32 %v6884, 23
        %v6886 = vsub.s32 %v6885, 127
        %v6887 = vand.u32 2147483647, %v1068
        %v6888 = vand.u32 %v6887, 8388607
        %v6889 = vor.u32 %v6888, 8388608
        %v6890 = vsub.s32 0, %v6889
        %v6891 = vadd.s32 %v6886, 1
        %vm6892 = vcmp.gt.s32.totalorder %v6891, 0
        %v6893 = vsel %vm6892, %v6891, 0
        %v6894 = vshrl.u32 %v6893, 5
        %v6895 = vand.u32 %v6893, 31
        %v6896 = vsub.s32 32, %v6895
        %v6897 = vshrl.u32 683565275, %v6896
        %v6898 = vshll.u32 683565275, %v6895
        %v6899 = vshrl.u32 2475754826, %v6896
        %v6900 = vor.u32 %v6898, %v6899
        %v6901 = vshll.u32 2475754826, %v6895
        %v6902 = vshrl.u32 2131351028, %v6896
        %v6903 = vor.u32 %v6901, %v6902
        %v6904 = vshll.u32 2131351028, %v6895
        %v6905 = vshrl.u32 2102212464, %v6896
        %v6906 = vor.u32 %v6904, %v6905
        %v6907 = vshll.u32 2102212464, %v6895
        %v6908 = vshrl.u32 920167782, %v6896
        %v6909 = vor.u32 %v6907, %v6908
        %v6910 = vshll.u32 920167782, %v6895
        %v6911 = vshrl.u32 1326507024, %v6896
        %v6912 = vor.u32 %v6910, %v6911
        %vm6913 = vcmp.lt.s32.totalorder %v6894, 1
        %vm6914 = vcmp.lt.s32.totalorder %v6894, 2
        %vm6915 = vcmp.lt.s32.totalorder %v6894, 3
        %vm6916 = vcmp.lt.s32.totalorder %v6894, 4
        %v6917 = vsel %vm6913, %v6897, %v6900
        %v6918 = vsel %vm6916, %v6906, 2102212464
        %v6919 = vsel %vm6915, %v6903, %v6918
        %v6920 = vsel %vm6914, %v6917, %v6919
        %v6921 = vsel %vm6913, %v6900, %v6903
        %v6922 = vsel %vm6916, %v6909, 920167782
        %v6923 = vsel %vm6915, %v6906, %v6922
        %v6924 = vsel %vm6914, %v6921, %v6923
        %v6925 = vsel %vm6913, %v6903, %v6906
        %v6926 = vsel %vm6916, %v6912, 1326507024
        %v6927 = vsel %vm6915, %v6909, %v6926
        %v6928 = vsel %vm6914, %v6925, %v6927
        %v6929 = vshll.u32 %v6889, 8
        %v6930 = vmul.u32.u64.compose %v6929, %v6928
        %v6931 = vextract.low.u32 %v6930
        %v6932 = vextract.high.u32 %v6930
        %v6933 = vmul.u32.u64.compose %v6929, %v6924
        %v6934 = vextract.low.u32 %v6933
        %v6935 = vextract.high.u32 %v6933
        %v6936 = vmul.u32 %v6929, %v6920
        %v6937 = vadd.s32 %v6932, %v6934
        %vm6938 = vc.u32 %v6932, %v6934
        %v6939 = vadd.s32 %v6935, 1
        %v6940 = vsel %vm6938, %v6939, %v6935
        %v6941 = vadd.s32 %v6936, %v6940
        %v6942 = vadd.s32 %v6941, 536870912
        %v6943 = vshrl.u32 %v6942, 30
        %v6944 = vshll.u32 %v6943, 30
        %v6945 = vsub.s32 %v6941, %v6944
        %vm6946 = vcmp.lt.s32.totalorder %v6945, 0
        %v6947 = vsub.s32 0, %v6945
        %v6948 = vsel %vm6946, %v6947, %v6945
        %v6949 = vclz %v6948
        %v6950 = vsub.s32 %v6949, 2
        %vm6951 = vcmp.gt.s32.totalorder 0, %v6950
        %v6952 = vsel %vm6951, 0, %v6950
        %v6953 = vsub.s32 32, %v6952
        %v6954 = vshll.u32 %v6945, %v6952
        %v6955 = vshrl.u32 %v6937, %v6953
        %v6956 = vor.u32 %v6954, %v6955
        %v6957 = vsub.s32 4294967266, %v6952
        %v6958 = vadd.s32 %v6957, 127
        %v6959 = vshll.u32 %v6958, 23
        %v6960 = vor.u32 4788187, %v6959
        %v6961 = vand.u32 2147483647, %v6960
        %v6963 = vcvt.s32.f32 %v6956
        %v6964 = vmul.f32 %v6963, %v6961
        %v6965 = vxor.u32 %v6964, 2147483648
        %v6966 = vsel %vm6883, %v6965, %v6964
        %v6967 = vsub.s32 4, %v6943
        %v6968 = vsel %vm6883, %v6967, %v6943
        %v6969 = vsel %vm6882, %v1068, %v6966
        %v6970 = vsel %vm6882, 0, %v6968
        %v6971 = vcosq.f32.pop %v6969
        %v6972 = vsinq.f32.pop %v6969
        %vm6973 = vweird.f32 %v1068
        %v6974 = vadd.s32 %v6970, 3
        %v6975 = vand.u32 %v6974, 3
        %vm6976 = vcmp.lt.s32.totalorder %v6975, 2
        %vm6977 = vcmp.eq.s32.totalorder %v6975, 0
        %v6978 = vxor.u32 %v6972, 2147483648
        %v6979 = vsel %vm6977, %v6971, %v6978
        %vm6980 = vcmp.eq.s32.totalorder %v6975, 2
        %v6981 = vxor.u32 %v6971, 2147483648
        %v6982 = vsel %vm6980, %v6981, %v6972
        %v6983 = vsel %vm6976, %v6979, %v6982
        %v6984 = vsel %vm6973, nan, %v6983
        %v6985 = vand.u32 2147483647, %v1072
        %vm6986 = vcmp.le.f32.partialorder %v6985, 0.7853982
        %vm6987 = vcmp.lt.s32.totalorder %v1072, 0
        %v6988 = vand.u32 %v1072, 2139095040
        %v6989 = vshrl.u32 %v6988, 23
        %v6990 = vsub.s32 %v6989, 127
        %v6991 = vand.u32 2147483647, %v1072
        %v6992 = vand.u32 %v6991, 8388607
        %v6993 = vor.u32 %v6992, 8388608
        %v6994 = vsub.s32 0, %v6993
        %v6995 = vadd.s32 %v6990, 1
        %vm6996 = vcmp.gt.s32.totalorder %v6995, 0
        %v6997 = vsel %vm6996, %v6995, 0
        %v6998 = vshrl.u32 %v6997, 5
        %v6999 = vand.u32 %v6997, 31
        %v7000 = vsub.s32 32, %v6999
        %v7001 = vshrl.u32 683565275, %v7000
        %v7002 = vshll.u32 683565275, %v6999
        %v7003 = vshrl.u32 2475754826, %v7000
        %v7004 = vor.u32 %v7002, %v7003
        %v7005 = vshll.u32 2475754826, %v6999
        %v7006 = vshrl.u32 2131351028, %v7000
        %v7007 = vor.u32 %v7005, %v7006
        %v7008 = vshll.u32 2131351028, %v6999
        %v7009 = vshrl.u32 2102212464, %v7000
        %v7010 = vor.u32 %v7008, %v7009
        %v7011 = vshll.u32 2102212464, %v6999
        %v7012 = vshrl.u32 920167782, %v7000
        %v7013 = vor.u32 %v7011, %v7012
        %v7014 = vshll.u32 920167782, %v6999
        %v7015 = vshrl.u32 1326507024, %v7000
        %v7016 = vor.u32 %v7014, %v7015
        %vm7017 = vcmp.lt.s32.totalorder %v6998, 1
        %vm7018 = vcmp.lt.s32.totalorder %v6998, 2
        %vm7019 = vcmp.lt.s32.totalorder %v6998, 3
        %vm7020 = vcmp.lt.s32.totalorder %v6998, 4
        %v7021 = vsel %vm7017, %v7001, %v7004
        %v7022 = vsel %vm7020, %v7010, 2102212464
        %v7023 = vsel %vm7019, %v7007, %v7022
        %v7024 = vsel %vm7018, %v7021, %v7023
        %v7025 = vsel %vm7017, %v7004, %v7007
        %v7026 = vsel %vm7020, %v7013, 920167782
        %v7027 = vsel %vm7019, %v7010, %v7026
        %v7028 = vsel %vm7018, %v7025, %v7027
        %v7029 = vsel %vm7017, %v7007, %v7010
        %v7030 = vsel %vm7020, %v7016, 1326507024
        %v7031 = vsel %vm7019, %v7013, %v7030
        %v7032 = vsel %vm7018, %v7029, %v7031
        %v7033 = vshll.u32 %v6993, 8
        %v7034 = vmul.u32.u64.compose %v7033, %v7032
        %v7035 = vextract.low.u32 %v7034
        %v7036 = vextract.high.u32 %v7034
        %v7037 = vmul.u32.u64.compose %v7033, %v7028
        %v7038 = vextract.low.u32 %v7037
        %v7039 = vextract.high.u32 %v7037
        %v7040 = vmul.u32 %v7033, %v7024
        %v7041 = vadd.s32 %v7036, %v7038
        %vm7042 = vc.u32 %v7036, %v7038
        %v7043 = vadd.s32 %v7039, 1
        %v7044 = vsel %vm7042, %v7043, %v7039
        %v7045 = vadd.s32 %v7040, %v7044
        %v7046 = vadd.s32 %v7045, 536870912
        %v7047 = vshrl.u32 %v7046, 30
        %v7048 = vshll.u32 %v7047, 30
        %v7049 = vsub.s32 %v7045, %v7048
        %vm7050 = vcmp.lt.s32.totalorder %v7049, 0
        %v7051 = vsub.s32 0, %v7049
        %v7052 = vsel %vm7050, %v7051, %v7049
        %v7053 = vclz %v7052
        %v7054 = vsub.s32 %v7053, 2
        %vm7055 = vcmp.gt.s32.totalorder 0, %v7054
        %v7056 = vsel %vm7055, 0, %v7054
        %v7057 = vsub.s32 32, %v7056
        %v7058 = vshll.u32 %v7049, %v7056
        %v7059 = vshrl.u32 %v7041, %v7057
        %v7060 = vor.u32 %v7058, %v7059
        %v7061 = vsub.s32 4294967266, %v7056
        %v7062 = vadd.s32 %v7061, 127
        %v7063 = vshll.u32 %v7062, 23
        %v7064 = vor.u32 4788187, %v7063
        %v7065 = vand.u32 2147483647, %v7064
        %v7067 = vcvt.s32.f32 %v7060
        %v7068 = vmul.f32 %v7067, %v7065
        %v7069 = vxor.u32 %v7068, 2147483648
        %v7070 = vsel %vm6987, %v7069, %v7068
        %v7071 = vsub.s32 4, %v7047
        %v7072 = vsel %vm6987, %v7071, %v7047
        %v7073 = vsel %vm6986, %v1072, %v7070
        %v7074 = vsel %vm6986, 0, %v7072
        %v7075 = vcosq.f32.pop %v7073
        %v7076 = vsinq.f32.pop %v7073
        %vm7077 = vweird.f32 %v1072
        %v7078 = vadd.s32 %v7074, 3
        %v7079 = vand.u32 %v7078, 3
        %vm7080 = vcmp.lt.s32.totalorder %v7079, 2
        %vm7081 = vcmp.eq.s32.totalorder %v7079, 0
        %v7082 = vxor.u32 %v7076, 2147483648
        %v7083 = vsel %vm7081, %v7075, %v7082
        %vm7084 = vcmp.eq.s32.totalorder %v7079, 2
        %v7085 = vxor.u32 %v7075, 2147483648
        %v7086 = vsel %vm7084, %v7085, %v7076
        %v7087 = vsel %vm7080, %v7083, %v7086
        %v7088 = vsel %vm7077, nan, %v7087
        %v7089 = vand.u32 2147483647, %v1074
        %vm7090 = vcmp.le.f32.partialorder %v7089, 0.7853982
        %vm7091 = vcmp.lt.s32.totalorder %v1074, 0
        %v7092 = vand.u32 %v1074, 2139095040
        %v7093 = vshrl.u32 %v7092, 23
        %v7094 = vsub.s32 %v7093, 127
        %v7095 = vand.u32 2147483647, %v1074
        %v7096 = vand.u32 %v7095, 8388607
        %v7097 = vor.u32 %v7096, 8388608
        %v7098 = vsub.s32 0, %v7097
        %v7099 = vadd.s32 %v7094, 1
        %vm7100 = vcmp.gt.s32.totalorder %v7099, 0
        %v7101 = vsel %vm7100, %v7099, 0
        %v7102 = vshrl.u32 %v7101, 5
        %v7103 = vand.u32 %v7101, 31
        %v7104 = vsub.s32 32, %v7103
        %v7105 = vshrl.u32 683565275, %v7104
        %v7106 = vshll.u32 683565275, %v7103
        %v7107 = vshrl.u32 2475754826, %v7104
        %v7108 = vor.u32 %v7106, %v7107
        %v7109 = vshll.u32 2475754826, %v7103
        %v7110 = vshrl.u32 2131351028, %v7104
        %v7111 = vor.u32 %v7109, %v7110
        %v7112 = vshll.u32 2131351028, %v7103
        %v7113 = vshrl.u32 2102212464, %v7104
        %v7114 = vor.u32 %v7112, %v7113
        %v7115 = vshll.u32 2102212464, %v7103
        %v7116 = vshrl.u32 920167782, %v7104
        %v7117 = vor.u32 %v7115, %v7116
        %v7118 = vshll.u32 920167782, %v7103
        %v7119 = vshrl.u32 1326507024, %v7104
        %v7120 = vor.u32 %v7118, %v7119
        %vm7121 = vcmp.lt.s32.totalorder %v7102, 1
        %vm7122 = vcmp.lt.s32.totalorder %v7102, 2
        %vm7123 = vcmp.lt.s32.totalorder %v7102, 3
        %vm7124 = vcmp.lt.s32.totalorder %v7102, 4
        %v7125 = vsel %vm7121, %v7105, %v7108
        %v7126 = vsel %vm7124, %v7114, 2102212464
        %v7127 = vsel %vm7123, %v7111, %v7126
        %v7128 = vsel %vm7122, %v7125, %v7127
        %v7129 = vsel %vm7121, %v7108, %v7111
        %v7130 = vsel %vm7124, %v7117, 920167782
        %v7131 = vsel %vm7123, %v7114, %v7130
        %v7132 = vsel %vm7122, %v7129, %v7131
        %v7133 = vsel %vm7121, %v7111, %v7114
        %v7134 = vsel %vm7124, %v7120, 1326507024
        %v7135 = vsel %vm7123, %v7117, %v7134
        %v7136 = vsel %vm7122, %v7133, %v7135
        %v7137 = vshll.u32 %v7097, 8
        %v7138 = vmul.u32.u64.compose %v7137, %v7136
        %v7139 = vextract.low.u32 %v7138
        %v7140 = vextract.high.u32 %v7138
        %v7141 = vmul.u32.u64.compose %v7137, %v7132
        %v7142 = vextract.low.u32 %v7141
        %v7143 = vextract.high.u32 %v7141
        %v7144 = vmul.u32 %v7137, %v7128
        %v7145 = vadd.s32 %v7140, %v7142
        %vm7146 = vc.u32 %v7140, %v7142
        %v7147 = vadd.s32 %v7143, 1
        %v7148 = vsel %vm7146, %v7147, %v7143
        %v7149 = vadd.s32 %v7144, %v7148
        %v7150 = vadd.s32 %v7149, 536870912
        %v7151 = vshrl.u32 %v7150, 30
        %v7152 = vshll.u32 %v7151, 30
        %v7153 = vsub.s32 %v7149, %v7152
        %vm7154 = vcmp.lt.s32.totalorder %v7153, 0
        %v7155 = vsub.s32 0, %v7153
        %v7156 = vsel %vm7154, %v7155, %v7153
        %v7157 = vclz %v7156
        %v7158 = vsub.s32 %v7157, 2
        %vm7159 = vcmp.gt.s32.totalorder 0, %v7158
        %v7160 = vsel %vm7159, 0, %v7158
        %v7161 = vsub.s32 32, %v7160
        %v7162 = vshll.u32 %v7153, %v7160
        %v7163 = vshrl.u32 %v7145, %v7161
        %v7164 = vor.u32 %v7162, %v7163
        %v7165 = vsub.s32 4294967266, %v7160
        %v7166 = vadd.s32 %v7165, 127
        %v7167 = vshll.u32 %v7166, 23
        %v7168 = vor.u32 4788187, %v7167
        %v7169 = vand.u32 2147483647, %v7168
        %v7171 = vcvt.s32.f32 %v7164
        %v7172 = vmul.f32 %v7171, %v7169
        %v7173 = vxor.u32 %v7172, 2147483648
        %v7174 = vsel %vm7091, %v7173, %v7172
        %v7175 = vsub.s32 4, %v7151
        %v7176 = vsel %vm7091, %v7175, %v7151
        %v7177 = vsel %vm7090, %v1074, %v7174
        %v7178 = vsel %vm7090, 0, %v7176
        %v7179 = vcosq.f32.pop %v7177
        %v7180 = vsinq.f32.pop %v7177
        %vm7181 = vweird.f32 %v1074
        %v7182 = vadd.s32 %v7178, 3
        %v7183 = vand.u32 %v7182, 3
        %vm7184 = vcmp.lt.s32.totalorder %v7183, 2
        %vm7185 = vcmp.eq.s32.totalorder %v7183, 0
        %v7186 = vxor.u32 %v7180, 2147483648
        %v7187 = vsel %vm7185, %v7179, %v7186
        %vm7188 = vcmp.eq.s32.totalorder %v7183, 2
        %v7189 = vxor.u32 %v7179, 2147483648
        %v7190 = vsel %vm7188, %v7189, %v7180
        %v7191 = vsel %vm7184, %v7187, %v7190
        %v7192 = vsel %vm7181, nan, %v7191
        %v7193 = vand.u32 2147483647, %v1078
        %vm7194 = vcmp.le.f32.partialorder %v7193, 0.7853982
        %vm7195 = vcmp.lt.s32.totalorder %v1078, 0
        %v7196 = vand.u32 %v1078, 2139095040
        %v7197 = vshrl.u32 %v7196, 23
        %v7198 = vsub.s32 %v7197, 127
        %v7199 = vand.u32 2147483647, %v1078
        %v7200 = vand.u32 %v7199, 8388607
        %v7201 = vor.u32 %v7200, 8388608
        %v7202 = vsub.s32 0, %v7201
        %v7203 = vadd.s32 %v7198, 1
        %vm7204 = vcmp.gt.s32.totalorder %v7203, 0
        %v7205 = vsel %vm7204, %v7203, 0
        %v7206 = vshrl.u32 %v7205, 5
        %v7207 = vand.u32 %v7205, 31
        %v7208 = vsub.s32 32, %v7207
        %v7209 = vshrl.u32 683565275, %v7208
        %v7210 = vshll.u32 683565275, %v7207
        %v7211 = vshrl.u32 2475754826, %v7208
        %v7212 = vor.u32 %v7210, %v7211
        %v7213 = vshll.u32 2475754826, %v7207
        %v7214 = vshrl.u32 2131351028, %v7208
        %v7215 = vor.u32 %v7213, %v7214
        %v7216 = vshll.u32 2131351028, %v7207
        %v7217 = vshrl.u32 2102212464, %v7208
        %v7218 = vor.u32 %v7216, %v7217
        %v7219 = vshll.u32 2102212464, %v7207
        %v7220 = vshrl.u32 920167782, %v7208
        %v7221 = vor.u32 %v7219, %v7220
        %v7222 = vshll.u32 920167782, %v7207
        %v7223 = vshrl.u32 1326507024, %v7208
        %v7224 = vor.u32 %v7222, %v7223
        %vm7225 = vcmp.lt.s32.totalorder %v7206, 1
        %vm7226 = vcmp.lt.s32.totalorder %v7206, 2
        %vm7227 = vcmp.lt.s32.totalorder %v7206, 3
        %vm7228 = vcmp.lt.s32.totalorder %v7206, 4
        %v7229 = vsel %vm7225, %v7209, %v7212
        %v7230 = vsel %vm7228, %v7218, 2102212464
        %v7231 = vsel %vm7227, %v7215, %v7230
        %v7232 = vsel %vm7226, %v7229, %v7231
        %v7233 = vsel %vm7225, %v7212, %v7215
        %v7234 = vsel %vm7228, %v7221, 920167782
        %v7235 = vsel %vm7227, %v7218, %v7234
        %v7236 = vsel %vm7226, %v7233, %v7235
        %v7237 = vsel %vm7225, %v7215, %v7218
        %v7238 = vsel %vm7228, %v7224, 1326507024
        %v7239 = vsel %vm7227, %v7221, %v7238
        %v7240 = vsel %vm7226, %v7237, %v7239
        %v7241 = vshll.u32 %v7201, 8
        %v7242 = vmul.u32.u64.compose %v7241, %v7240
        %v7243 = vextract.low.u32 %v7242
        %v7244 = vextract.high.u32 %v7242
        %v7245 = vmul.u32.u64.compose %v7241, %v7236
        %v7246 = vextract.low.u32 %v7245
        %v7247 = vextract.high.u32 %v7245
        %v7248 = vmul.u32 %v7241, %v7232
        %v7249 = vadd.s32 %v7244, %v7246
        %vm7250 = vc.u32 %v7244, %v7246
        %v7251 = vadd.s32 %v7247, 1
        %v7252 = vsel %vm7250, %v7251, %v7247
        %v7253 = vadd.s32 %v7248, %v7252
        %v7254 = vadd.s32 %v7253, 536870912
        %v7255 = vshrl.u32 %v7254, 30
        %v7256 = vshll.u32 %v7255, 30
        %v7257 = vsub.s32 %v7253, %v7256
        %vm7258 = vcmp.lt.s32.totalorder %v7257, 0
        %v7259 = vsub.s32 0, %v7257
        %v7260 = vsel %vm7258, %v7259, %v7257
        %v7261 = vclz %v7260
        %v7262 = vsub.s32 %v7261, 2
        %vm7263 = vcmp.gt.s32.totalorder 0, %v7262
        %v7264 = vsel %vm7263, 0, %v7262
        %v7265 = vsub.s32 32, %v7264
        %v7266 = vshll.u32 %v7257, %v7264
        %v7267 = vshrl.u32 %v7249, %v7265
        %v7268 = vor.u32 %v7266, %v7267
        %v7269 = vsub.s32 4294967266, %v7264
        %v7270 = vadd.s32 %v7269, 127
        %v7271 = vshll.u32 %v7270, 23
        %v7272 = vor.u32 4788187, %v7271
        %v7273 = vand.u32 2147483647, %v7272
        %v7275 = vcvt.s32.f32 %v7268
        %v7276 = vmul.f32 %v7275, %v7273
        %v7277 = vxor.u32 %v7276, 2147483648
        %v7278 = vsel %vm7195, %v7277, %v7276
        %v7279 = vsub.s32 4, %v7255
        %v7280 = vsel %vm7195, %v7279, %v7255
        %v7281 = vsel %vm7194, %v1078, %v7278
        %v7282 = vsel %vm7194, 0, %v7280
        %v7283 = vcosq.f32.pop %v7281
        %v7284 = vsinq.f32.pop %v7281
        %vm7285 = vweird.f32 %v1078
        %v7286 = vadd.s32 %v7282, 3
        %v7287 = vand.u32 %v7286, 3
        %vm7288 = vcmp.lt.s32.totalorder %v7287, 2
        %vm7289 = vcmp.eq.s32.totalorder %v7287, 0
        %v7290 = vxor.u32 %v7284, 2147483648
        %v7291 = vsel %vm7289, %v7283, %v7290
        %vm7292 = vcmp.eq.s32.totalorder %v7287, 2
        %v7293 = vxor.u32 %v7283, 2147483648
        %v7294 = vsel %vm7292, %v7293, %v7284
        %v7295 = vsel %vm7288, %v7291, %v7294
        %v7296 = vsel %vm7285, nan, %v7295
        %v7297 = vand.u32 2147483647, %v1080
        %vm7298 = vcmp.le.f32.partialorder %v7297, 0.7853982
        %vm7299 = vcmp.lt.s32.totalorder %v1080, 0
        %v7300 = vand.u32 %v1080, 2139095040
        %v7301 = vshrl.u32 %v7300, 23
        %v7302 = vsub.s32 %v7301, 127
        %v7303 = vand.u32 2147483647, %v1080
        %v7304 = vand.u32 %v7303, 8388607
        %v7305 = vor.u32 %v7304, 8388608
        %v7306 = vsub.s32 0, %v7305
        %v7307 = vadd.s32 %v7302, 1
        %vm7308 = vcmp.gt.s32.totalorder %v7307, 0
        %v7309 = vsel %vm7308, %v7307, 0
        %v7310 = vshrl.u32 %v7309, 5
        %v7311 = vand.u32 %v7309, 31
        %v7312 = vsub.s32 32, %v7311
        %v7313 = vshrl.u32 683565275, %v7312
        %v7314 = vshll.u32 683565275, %v7311
        %v7315 = vshrl.u32 2475754826, %v7312
        %v7316 = vor.u32 %v7314, %v7315
        %v7317 = vshll.u32 2475754826, %v7311
        %v7318 = vshrl.u32 2131351028, %v7312
        %v7319 = vor.u32 %v7317, %v7318
        %v7320 = vshll.u32 2131351028, %v7311
        %v7321 = vshrl.u32 2102212464, %v7312
        %v7322 = vor.u32 %v7320, %v7321
        %v7323 = vshll.u32 2102212464, %v7311
        %v7324 = vshrl.u32 920167782, %v7312
        %v7325 = vor.u32 %v7323, %v7324
        %v7326 = vshll.u32 920167782, %v7311
        %v7327 = vshrl.u32 1326507024, %v7312
        %v7328 = vor.u32 %v7326, %v7327
        %vm7329 = vcmp.lt.s32.totalorder %v7310, 1
        %vm7330 = vcmp.lt.s32.totalorder %v7310, 2
        %vm7331 = vcmp.lt.s32.totalorder %v7310, 3
        %vm7332 = vcmp.lt.s32.totalorder %v7310, 4
        %v7333 = vsel %vm7329, %v7313, %v7316
        %v7334 = vsel %vm7332, %v7322, 2102212464
        %v7335 = vsel %vm7331, %v7319, %v7334
        %v7336 = vsel %vm7330, %v7333, %v7335
        %v7337 = vsel %vm7329, %v7316, %v7319
        %v7338 = vsel %vm7332, %v7325, 920167782
        %v7339 = vsel %vm7331, %v7322, %v7338
        %v7340 = vsel %vm7330, %v7337, %v7339
        %v7341 = vsel %vm7329, %v7319, %v7322
        %v7342 = vsel %vm7332, %v7328, 1326507024
        %v7343 = vsel %vm7331, %v7325, %v7342
        %v7344 = vsel %vm7330, %v7341, %v7343
        %v7345 = vshll.u32 %v7305, 8
        %v7346 = vmul.u32.u64.compose %v7345, %v7344
        %v7347 = vextract.low.u32 %v7346
        %v7348 = vextract.high.u32 %v7346
        %v7349 = vmul.u32.u64.compose %v7345, %v7340
        %v7350 = vextract.low.u32 %v7349
        %v7351 = vextract.high.u32 %v7349
        %v7352 = vmul.u32 %v7345, %v7336
        %v7353 = vadd.s32 %v7348, %v7350
        %vm7354 = vc.u32 %v7348, %v7350
        %v7355 = vadd.s32 %v7351, 1
        %v7356 = vsel %vm7354, %v7355, %v7351
        %v7357 = vadd.s32 %v7352, %v7356
        %v7358 = vadd.s32 %v7357, 536870912
        %v7359 = vshrl.u32 %v7358, 30
        %v7360 = vshll.u32 %v7359, 30
        %v7361 = vsub.s32 %v7357, %v7360
        %vm7362 = vcmp.lt.s32.totalorder %v7361, 0
        %v7363 = vsub.s32 0, %v7361
        %v7364 = vsel %vm7362, %v7363, %v7361
        %v7365 = vclz %v7364
        %v7366 = vsub.s32 %v7365, 2
        %vm7367 = vcmp.gt.s32.totalorder 0, %v7366
        %v7368 = vsel %vm7367, 0, %v7366
        %v7369 = vsub.s32 32, %v7368
        %v7370 = vshll.u32 %v7361, %v7368
        %v7371 = vshrl.u32 %v7353, %v7369
        %v7372 = vor.u32 %v7370, %v7371
        %v7373 = vsub.s32 4294967266, %v7368
        %v7374 = vadd.s32 %v7373, 127
        %v7375 = vshll.u32 %v7374, 23
        %v7376 = vor.u32 4788187, %v7375
        %v7377 = vand.u32 2147483647, %v7376
        %v7379 = vcvt.s32.f32 %v7372
        %v7380 = vmul.f32 %v7379, %v7377
        %v7381 = vxor.u32 %v7380, 2147483648
        %v7382 = vsel %vm7299, %v7381, %v7380
        %v7383 = vsub.s32 4, %v7359
        %v7384 = vsel %vm7299, %v7383, %v7359
        %v7385 = vsel %vm7298, %v1080, %v7382
        %v7386 = vsel %vm7298, 0, %v7384
        %v7387 = vcosq.f32.pop %v7385
        %v7388 = vsinq.f32.pop %v7385
        %vm7389 = vweird.f32 %v1080
        %v7390 = vadd.s32 %v7386, 3
        %v7391 = vand.u32 %v7390, 3
        %vm7392 = vcmp.lt.s32.totalorder %v7391, 2
        %vm7393 = vcmp.eq.s32.totalorder %v7391, 0
        %v7394 = vxor.u32 %v7388, 2147483648
        %v7395 = vsel %vm7393, %v7387, %v7394
        %vm7396 = vcmp.eq.s32.totalorder %v7391, 2
        %v7397 = vxor.u32 %v7387, 2147483648
        %v7398 = vsel %vm7396, %v7397, %v7388
        %v7399 = vsel %vm7392, %v7395, %v7398
        %v7400 = vsel %vm7389, nan, %v7399
        %v7401 = vand.u32 2147483647, %v1084
        %vm7402 = vcmp.le.f32.partialorder %v7401, 0.7853982
        %vm7403 = vcmp.lt.s32.totalorder %v1084, 0
        %v7404 = vand.u32 %v1084, 2139095040
        %v7405 = vshrl.u32 %v7404, 23
        %v7406 = vsub.s32 %v7405, 127
        %v7407 = vand.u32 2147483647, %v1084
        %v7408 = vand.u32 %v7407, 8388607
        %v7409 = vor.u32 %v7408, 8388608
        %v7410 = vsub.s32 0, %v7409
        %v7411 = vadd.s32 %v7406, 1
        %vm7412 = vcmp.gt.s32.totalorder %v7411, 0
        %v7413 = vsel %vm7412, %v7411, 0
        %v7414 = vshrl.u32 %v7413, 5
        %v7415 = vand.u32 %v7413, 31
        %v7416 = vsub.s32 32, %v7415
        %v7417 = vshrl.u32 683565275, %v7416
        %v7418 = vshll.u32 683565275, %v7415
        %v7419 = vshrl.u32 2475754826, %v7416
        %v7420 = vor.u32 %v7418, %v7419
        %v7421 = vshll.u32 2475754826, %v7415
        %v7422 = vshrl.u32 2131351028, %v7416
        %v7423 = vor.u32 %v7421, %v7422
        %v7424 = vshll.u32 2131351028, %v7415
        %v7425 = vshrl.u32 2102212464, %v7416
        %v7426 = vor.u32 %v7424, %v7425
        %v7427 = vshll.u32 2102212464, %v7415
        %v7428 = vshrl.u32 920167782, %v7416
        %v7429 = vor.u32 %v7427, %v7428
        %v7430 = vshll.u32 920167782, %v7415
        %v7431 = vshrl.u32 1326507024, %v7416
        %v7432 = vor.u32 %v7430, %v7431
        %vm7433 = vcmp.lt.s32.totalorder %v7414, 1
        %vm7434 = vcmp.lt.s32.totalorder %v7414, 2
        %vm7435 = vcmp.lt.s32.totalorder %v7414, 3
        %vm7436 = vcmp.lt.s32.totalorder %v7414, 4
        %v7437 = vsel %vm7433, %v7417, %v7420
        %v7438 = vsel %vm7436, %v7426, 2102212464
        %v7439 = vsel %vm7435, %v7423, %v7438
        %v7440 = vsel %vm7434, %v7437, %v7439
        %v7441 = vsel %vm7433, %v7420, %v7423
        %v7442 = vsel %vm7436, %v7429, 920167782
        %v7443 = vsel %vm7435, %v7426, %v7442
        %v7444 = vsel %vm7434, %v7441, %v7443
        %v7445 = vsel %vm7433, %v7423, %v7426
        %v7446 = vsel %vm7436, %v7432, 1326507024
        %v7447 = vsel %vm7435, %v7429, %v7446
        %v7448 = vsel %vm7434, %v7445, %v7447
        %v7449 = vshll.u32 %v7409, 8
        %v7450 = vmul.u32.u64.compose %v7449, %v7448
        %v7451 = vextract.low.u32 %v7450
        %v7452 = vextract.high.u32 %v7450
        %v7453 = vmul.u32.u64.compose %v7449, %v7444
        %v7454 = vextract.low.u32 %v7453
        %v7455 = vextract.high.u32 %v7453
        %v7456 = vmul.u32 %v7449, %v7440
        %v7457 = vadd.s32 %v7452, %v7454
        %vm7458 = vc.u32 %v7452, %v7454
        %v7459 = vadd.s32 %v7455, 1
        %v7460 = vsel %vm7458, %v7459, %v7455
        %v7461 = vadd.s32 %v7456, %v7460
        %v7462 = vadd.s32 %v7461, 536870912
        %v7463 = vshrl.u32 %v7462, 30
        %v7464 = vshll.u32 %v7463, 30
        %v7465 = vsub.s32 %v7461, %v7464
        %vm7466 = vcmp.lt.s32.totalorder %v7465, 0
        %v7467 = vsub.s32 0, %v7465
        %v7468 = vsel %vm7466, %v7467, %v7465
        %v7469 = vclz %v7468
        %v7470 = vsub.s32 %v7469, 2
        %vm7471 = vcmp.gt.s32.totalorder 0, %v7470
        %v7472 = vsel %vm7471, 0, %v7470
        %v7473 = vsub.s32 32, %v7472
        %v7474 = vshll.u32 %v7465, %v7472
        %v7475 = vshrl.u32 %v7457, %v7473
        %v7476 = vor.u32 %v7474, %v7475
        %v7477 = vsub.s32 4294967266, %v7472
        %v7478 = vadd.s32 %v7477, 127
        %v7479 = vshll.u32 %v7478, 23
        %v7480 = vor.u32 4788187, %v7479
        %v7481 = vand.u32 2147483647, %v7480
        %v7483 = vcvt.s32.f32 %v7476
        %v7484 = vmul.f32 %v7483, %v7481
        %v7485 = vxor.u32 %v7484, 2147483648
        %v7486 = vsel %vm7403, %v7485, %v7484
        %v7487 = vsub.s32 4, %v7463
        %v7488 = vsel %vm7403, %v7487, %v7463
        %v7489 = vsel %vm7402, %v1084, %v7486
        %v7490 = vsel %vm7402, 0, %v7488
        %v7491 = vcosq.f32.pop %v7489
        %v7492 = vsinq.f32.pop %v7489
        %vm7493 = vweird.f32 %v1084
        %v7494 = vadd.s32 %v7490, 3
        %v7495 = vand.u32 %v7494, 3
        %vm7496 = vcmp.lt.s32.totalorder %v7495, 2
        %vm7497 = vcmp.eq.s32.totalorder %v7495, 0
        %v7498 = vxor.u32 %v7492, 2147483648
        %v7499 = vsel %vm7497, %v7491, %v7498
        %vm7500 = vcmp.eq.s32.totalorder %v7495, 2
        %v7501 = vxor.u32 %v7491, 2147483648
        %v7502 = vsel %vm7500, %v7501, %v7492
        %v7503 = vsel %vm7496, %v7499, %v7502
        %v7504 = vsel %vm7493, nan, %v7503
        %v7505 = vand.u32 2147483647, %v1086
        %vm7506 = vcmp.le.f32.partialorder %v7505, 0.7853982
        %vm7507 = vcmp.lt.s32.totalorder %v1086, 0
        %v7508 = vand.u32 %v1086, 2139095040
        %v7509 = vshrl.u32 %v7508, 23
        %v7510 = vsub.s32 %v7509, 127
        %v7511 = vand.u32 2147483647, %v1086
        %v7512 = vand.u32 %v7511, 8388607
        %v7513 = vor.u32 %v7512, 8388608
        %v7514 = vsub.s32 0, %v7513
        %v7515 = vadd.s32 %v7510, 1
        %vm7516 = vcmp.gt.s32.totalorder %v7515, 0
        %v7517 = vsel %vm7516, %v7515, 0
        %v7518 = vshrl.u32 %v7517, 5
        %v7519 = vand.u32 %v7517, 31
        %v7520 = vsub.s32 32, %v7519
        %v7521 = vshrl.u32 683565275, %v7520
        %v7522 = vshll.u32 683565275, %v7519
        %v7523 = vshrl.u32 2475754826, %v7520
        %v7524 = vor.u32 %v7522, %v7523
        %v7525 = vshll.u32 2475754826, %v7519
        %v7526 = vshrl.u32 2131351028, %v7520
        %v7527 = vor.u32 %v7525, %v7526
        %v7528 = vshll.u32 2131351028, %v7519
        %v7529 = vshrl.u32 2102212464, %v7520
        %v7530 = vor.u32 %v7528, %v7529
        %v7531 = vshll.u32 2102212464, %v7519
        %v7532 = vshrl.u32 920167782, %v7520
        %v7533 = vor.u32 %v7531, %v7532
        %v7534 = vshll.u32 920167782, %v7519
        %v7535 = vshrl.u32 1326507024, %v7520
        %v7536 = vor.u32 %v7534, %v7535
        %vm7537 = vcmp.lt.s32.totalorder %v7518, 1
        %vm7538 = vcmp.lt.s32.totalorder %v7518, 2
        %vm7539 = vcmp.lt.s32.totalorder %v7518, 3
        %vm7540 = vcmp.lt.s32.totalorder %v7518, 4
        %v7541 = vsel %vm7537, %v7521, %v7524
        %v7542 = vsel %vm7540, %v7530, 2102212464
        %v7543 = vsel %vm7539, %v7527, %v7542
        %v7544 = vsel %vm7538, %v7541, %v7543
        %v7545 = vsel %vm7537, %v7524, %v7527
        %v7546 = vsel %vm7540, %v7533, 920167782
        %v7547 = vsel %vm7539, %v7530, %v7546
        %v7548 = vsel %vm7538, %v7545, %v7547
        %v7549 = vsel %vm7537, %v7527, %v7530
        %v7550 = vsel %vm7540, %v7536, 1326507024
        %v7551 = vsel %vm7539, %v7533, %v7550
        %v7552 = vsel %vm7538, %v7549, %v7551
        %v7553 = vshll.u32 %v7513, 8
        %v7554 = vmul.u32.u64.compose %v7553, %v7552
        %v7555 = vextract.low.u32 %v7554
        %v7556 = vextract.high.u32 %v7554
        %v7557 = vmul.u32.u64.compose %v7553, %v7548
        %v7558 = vextract.low.u32 %v7557
        %v7559 = vextract.high.u32 %v7557
        %v7560 = vmul.u32 %v7553, %v7544
        %v7561 = vadd.s32 %v7556, %v7558
        %vm7562 = vc.u32 %v7556, %v7558
        %v7563 = vadd.s32 %v7559, 1
        %v7564 = vsel %vm7562, %v7563, %v7559
        %v7565 = vadd.s32 %v7560, %v7564
        %v7566 = vadd.s32 %v7565, 536870912
        %v7567 = vshrl.u32 %v7566, 30
        %v7568 = vshll.u32 %v7567, 30
        %v7569 = vsub.s32 %v7565, %v7568
        %vm7570 = vcmp.lt.s32.totalorder %v7569, 0
        %v7571 = vsub.s32 0, %v7569
        %v7572 = vsel %vm7570, %v7571, %v7569
        %v7573 = vclz %v7572
        %v7574 = vsub.s32 %v7573, 2
        %vm7575 = vcmp.gt.s32.totalorder 0, %v7574
        %v7576 = vsel %vm7575, 0, %v7574
        %v7577 = vsub.s32 32, %v7576
        %v7578 = vshll.u32 %v7569, %v7576
        %v7579 = vshrl.u32 %v7561, %v7577
        %v7580 = vor.u32 %v7578, %v7579
        %v7581 = vsub.s32 4294967266, %v7576
        %v7582 = vadd.s32 %v7581, 127
        %v7583 = vshll.u32 %v7582, 23
        %v7584 = vor.u32 4788187, %v7583
        %v7585 = vand.u32 2147483647, %v7584
        %v7587 = vcvt.s32.f32 %v7580
        %v7588 = vmul.f32 %v7587, %v7585
        %v7589 = vxor.u32 %v7588, 2147483648
        %v7590 = vsel %vm7507, %v7589, %v7588
        %v7591 = vsub.s32 4, %v7567
        %v7592 = vsel %vm7507, %v7591, %v7567
        %v7593 = vsel %vm7506, %v1086, %v7590
        %v7594 = vsel %vm7506, 0, %v7592
        %v7595 = vcosq.f32.pop %v7593
        %v7596 = vsinq.f32.pop %v7593
        %vm7597 = vweird.f32 %v1086
        %v7598 = vadd.s32 %v7594, 3
        %v7599 = vand.u32 %v7598, 3
        %vm7600 = vcmp.lt.s32.totalorder %v7599, 2
        %vm7601 = vcmp.eq.s32.totalorder %v7599, 0
        %v7602 = vxor.u32 %v7596, 2147483648
        %v7603 = vsel %vm7601, %v7595, %v7602
        %vm7604 = vcmp.eq.s32.totalorder %v7599, 2
        %v7605 = vxor.u32 %v7595, 2147483648
        %v7606 = vsel %vm7604, %v7605, %v7596
        %v7607 = vsel %vm7600, %v7603, %v7606
        %v7608 = vsel %vm7597, nan, %v7607
        %v7609 = vand.u32 2147483647, %v1090
        %vm7610 = vcmp.le.f32.partialorder %v7609, 0.7853982
        %vm7611 = vcmp.lt.s32.totalorder %v1090, 0
        %v7612 = vand.u32 %v1090, 2139095040
        %v7613 = vshrl.u32 %v7612, 23
        %v7614 = vsub.s32 %v7613, 127
        %v7615 = vand.u32 2147483647, %v1090
        %v7616 = vand.u32 %v7615, 8388607
        %v7617 = vor.u32 %v7616, 8388608
        %v7618 = vsub.s32 0, %v7617
        %v7619 = vadd.s32 %v7614, 1
        %vm7620 = vcmp.gt.s32.totalorder %v7619, 0
        %v7621 = vsel %vm7620, %v7619, 0
        %v7622 = vshrl.u32 %v7621, 5
        %v7623 = vand.u32 %v7621, 31
        %v7624 = vsub.s32 32, %v7623
        %v7625 = vshrl.u32 683565275, %v7624
        %v7626 = vshll.u32 683565275, %v7623
        %v7627 = vshrl.u32 2475754826, %v7624
        %v7628 = vor.u32 %v7626, %v7627
        %v7629 = vshll.u32 2475754826, %v7623
        %v7630 = vshrl.u32 2131351028, %v7624
        %v7631 = vor.u32 %v7629, %v7630
        %v7632 = vshll.u32 2131351028, %v7623
        %v7633 = vshrl.u32 2102212464, %v7624
        %v7634 = vor.u32 %v7632, %v7633
        %v7635 = vshll.u32 2102212464, %v7623
        %v7636 = vshrl.u32 920167782, %v7624
        %v7637 = vor.u32 %v7635, %v7636
        %v7638 = vshll.u32 920167782, %v7623
        %v7639 = vshrl.u32 1326507024, %v7624
        %v7640 = vor.u32 %v7638, %v7639
        %vm7641 = vcmp.lt.s32.totalorder %v7622, 1
        %vm7642 = vcmp.lt.s32.totalorder %v7622, 2
        %vm7643 = vcmp.lt.s32.totalorder %v7622, 3
        %vm7644 = vcmp.lt.s32.totalorder %v7622, 4
        %v7645 = vsel %vm7641, %v7625, %v7628
        %v7646 = vsel %vm7644, %v7634, 2102212464
        %v7647 = vsel %vm7643, %v7631, %v7646
        %v7648 = vsel %vm7642, %v7645, %v7647
        %v7649 = vsel %vm7641, %v7628, %v7631
        %v7650 = vsel %vm7644, %v7637, 920167782
        %v7651 = vsel %vm7643, %v7634, %v7650
        %v7652 = vsel %vm7642, %v7649, %v7651
        %v7653 = vsel %vm7641, %v7631, %v7634
        %v7654 = vsel %vm7644, %v7640, 1326507024
        %v7655 = vsel %vm7643, %v7637, %v7654
        %v7656 = vsel %vm7642, %v7653, %v7655
        %v7657 = vshll.u32 %v7617, 8
        %v7658 = vmul.u32.u64.compose %v7657, %v7656
        %v7659 = vextract.low.u32 %v7658
        %v7660 = vextract.high.u32 %v7658
        %v7661 = vmul.u32.u64.compose %v7657, %v7652
        %v7662 = vextract.low.u32 %v7661
        %v7663 = vextract.high.u32 %v7661
        %v7664 = vmul.u32 %v7657, %v7648
        %v7665 = vadd.s32 %v7660, %v7662
        %vm7666 = vc.u32 %v7660, %v7662
        %v7667 = vadd.s32 %v7663, 1
        %v7668 = vsel %vm7666, %v7667, %v7663
        %v7669 = vadd.s32 %v7664, %v7668
        %v7670 = vadd.s32 %v7669, 536870912
        %v7671 = vshrl.u32 %v7670, 30
        %v7672 = vshll.u32 %v7671, 30
        %v7673 = vsub.s32 %v7669, %v7672
        %vm7674 = vcmp.lt.s32.totalorder %v7673, 0
        %v7675 = vsub.s32 0, %v7673
        %v7676 = vsel %vm7674, %v7675, %v7673
        %v7677 = vclz %v7676
        %v7678 = vsub.s32 %v7677, 2
        %vm7679 = vcmp.gt.s32.totalorder 0, %v7678
        %v7680 = vsel %vm7679, 0, %v7678
        %v7681 = vsub.s32 32, %v7680
        %v7682 = vshll.u32 %v7673, %v7680
        %v7683 = vshrl.u32 %v7665, %v7681
        %v7684 = vor.u32 %v7682, %v7683
        %v7685 = vsub.s32 4294967266, %v7680
        %v7686 = vadd.s32 %v7685, 127
        %v7687 = vshll.u32 %v7686, 23
        %v7688 = vor.u32 4788187, %v7687
        %v7689 = vand.u32 2147483647, %v7688
        %v7691 = vcvt.s32.f32 %v7684
        %v7692 = vmul.f32 %v7691, %v7689
        %v7693 = vxor.u32 %v7692, 2147483648
        %v7694 = vsel %vm7611, %v7693, %v7692
        %v7695 = vsub.s32 4, %v7671
        %v7696 = vsel %vm7611, %v7695, %v7671
        %v7697 = vsel %vm7610, %v1090, %v7694
        %v7698 = vsel %vm7610, 0, %v7696
        %v7699 = vcosq.f32.pop %v7697
        %v7700 = vsinq.f32.pop %v7697
        %vm7701 = vweird.f32 %v1090
        %v7702 = vadd.s32 %v7698, 3
        %v7703 = vand.u32 %v7702, 3
        %vm7704 = vcmp.lt.s32.totalorder %v7703, 2
        %vm7705 = vcmp.eq.s32.totalorder %v7703, 0
        %v7706 = vxor.u32 %v7700, 2147483648
        %v7707 = vsel %vm7705, %v7699, %v7706
        %vm7708 = vcmp.eq.s32.totalorder %v7703, 2
        %v7709 = vxor.u32 %v7699, 2147483648
        %v7710 = vsel %vm7708, %v7709, %v7700
        %v7711 = vsel %vm7704, %v7707, %v7710
        %v7712 = vsel %vm7701, nan, %v7711
        %v7713 = vand.u32 2147483647, %v1092
        %vm7714 = vcmp.le.f32.partialorder %v7713, 0.7853982
        %vm7715 = vcmp.lt.s32.totalorder %v1092, 0
        %v7716 = vand.u32 %v1092, 2139095040
        %v7717 = vshrl.u32 %v7716, 23
        %v7718 = vsub.s32 %v7717, 127
        %v7719 = vand.u32 2147483647, %v1092
        %v7720 = vand.u32 %v7719, 8388607
        %v7721 = vor.u32 %v7720, 8388608
        %v7722 = vsub.s32 0, %v7721
        %v7723 = vadd.s32 %v7718, 1
        %vm7724 = vcmp.gt.s32.totalorder %v7723, 0
        %v7725 = vsel %vm7724, %v7723, 0
        %v7726 = vshrl.u32 %v7725, 5
        %v7727 = vand.u32 %v7725, 31
        %v7728 = vsub.s32 32, %v7727
        %v7729 = vshrl.u32 683565275, %v7728
        %v7730 = vshll.u32 683565275, %v7727
        %v7731 = vshrl.u32 2475754826, %v7728
        %v7732 = vor.u32 %v7730, %v7731
        %v7733 = vshll.u32 2475754826, %v7727
        %v7734 = vshrl.u32 2131351028, %v7728
        %v7735 = vor.u32 %v7733, %v7734
        %v7736 = vshll.u32 2131351028, %v7727
        %v7737 = vshrl.u32 2102212464, %v7728
        %v7738 = vor.u32 %v7736, %v7737
        %v7739 = vshll.u32 2102212464, %v7727
        %v7740 = vshrl.u32 920167782, %v7728
        %v7741 = vor.u32 %v7739, %v7740
        %v7742 = vshll.u32 920167782, %v7727
        %v7743 = vshrl.u32 1326507024, %v7728
        %v7744 = vor.u32 %v7742, %v7743
        %vm7745 = vcmp.lt.s32.totalorder %v7726, 1
        %vm7746 = vcmp.lt.s32.totalorder %v7726, 2
        %vm7747 = vcmp.lt.s32.totalorder %v7726, 3
        %vm7748 = vcmp.lt.s32.totalorder %v7726, 4
        %v7749 = vsel %vm7745, %v7729, %v7732
        %v7750 = vsel %vm7748, %v7738, 2102212464
        %v7751 = vsel %vm7747, %v7735, %v7750
        %v7752 = vsel %vm7746, %v7749, %v7751
        %v7753 = vsel %vm7745, %v7732, %v7735
        %v7754 = vsel %vm7748, %v7741, 920167782
        %v7755 = vsel %vm7747, %v7738, %v7754
        %v7756 = vsel %vm7746, %v7753, %v7755
        %v7757 = vsel %vm7745, %v7735, %v7738
        %v7758 = vsel %vm7748, %v7744, 1326507024
        %v7759 = vsel %vm7747, %v7741, %v7758
        %v7760 = vsel %vm7746, %v7757, %v7759
        %v7761 = vshll.u32 %v7721, 8
        %v7762 = vmul.u32.u64.compose %v7761, %v7760
        %v7763 = vextract.low.u32 %v7762
        %v7764 = vextract.high.u32 %v7762
        %v7765 = vmul.u32.u64.compose %v7761, %v7756
        %v7766 = vextract.low.u32 %v7765
        %v7767 = vextract.high.u32 %v7765
        %v7768 = vmul.u32 %v7761, %v7752
        %v7769 = vadd.s32 %v7764, %v7766
        %vm7770 = vc.u32 %v7764, %v7766
        %v7771 = vadd.s32 %v7767, 1
        %v7772 = vsel %vm7770, %v7771, %v7767
        %v7773 = vadd.s32 %v7768, %v7772
        %v7774 = vadd.s32 %v7773, 536870912
        %v7775 = vshrl.u32 %v7774, 30
        %v7776 = vshll.u32 %v7775, 30
        %v7777 = vsub.s32 %v7773, %v7776
        %vm7778 = vcmp.lt.s32.totalorder %v7777, 0
        %v7779 = vsub.s32 0, %v7777
        %v7780 = vsel %vm7778, %v7779, %v7777
        %v7781 = vclz %v7780
        %v7782 = vsub.s32 %v7781, 2
        %vm7783 = vcmp.gt.s32.totalorder 0, %v7782
        %v7784 = vsel %vm7783, 0, %v7782
        %v7785 = vsub.s32 32, %v7784
        %v7786 = vshll.u32 %v7777, %v7784
        %v7787 = vshrl.u32 %v7769, %v7785
        %v7788 = vor.u32 %v7786, %v7787
        %v7789 = vsub.s32 4294967266, %v7784
        %v7790 = vadd.s32 %v7789, 127
        %v7791 = vshll.u32 %v7790, 23
        %v7792 = vor.u32 4788187, %v7791
        %v7793 = vand.u32 2147483647, %v7792
        %v7795 = vcvt.s32.f32 %v7788
        %v7796 = vmul.f32 %v7795, %v7793
        %v7797 = vxor.u32 %v7796, 2147483648
        %v7798 = vsel %vm7715, %v7797, %v7796
        %v7799 = vsub.s32 4, %v7775
        %v7800 = vsel %vm7715, %v7799, %v7775
        %v7801 = vsel %vm7714, %v1092, %v7798
        %v7802 = vsel %vm7714, 0, %v7800
        %v7803 = vcosq.f32.pop %v7801
        %v7804 = vsinq.f32.pop %v7801
        %vm7805 = vweird.f32 %v1092
        %v7806 = vadd.s32 %v7802, 3
        %v7807 = vand.u32 %v7806, 3
        %vm7808 = vcmp.lt.s32.totalorder %v7807, 2
        %vm7809 = vcmp.eq.s32.totalorder %v7807, 0
        %v7810 = vxor.u32 %v7804, 2147483648
        %v7811 = vsel %vm7809, %v7803, %v7810
        %vm7812 = vcmp.eq.s32.totalorder %v7807, 2
        %v7813 = vxor.u32 %v7803, 2147483648
        %v7814 = vsel %vm7812, %v7813, %v7804
        %v7815 = vsel %vm7808, %v7811, %v7814
        %v7816 = vsel %vm7805, nan, %v7815
        %7817 = vmatprep.subr.mxu0 %v4696
        %7818 = vmatpush1.msra.mxu0 %v4592
        %7819 = vmatprep.subr.mxu0 %v4904
        %7820 = vmatpush1.msra.mxu0 %v4800
        %7821 = vmatprep.subr.mxu0 %v5112
        %7822 = vmatpush1.msra.mxu0 %v5008
        %7823 = vmatprep.subr.mxu0 %v5320
        %7824 = vmatpush1.msra.mxu0 %v5216
        %7825 = vmatprep.subr.mxu0 %v5528
        %7826 = vmatpush1.msra.mxu0 %v5424
        %7827 = vmatprep.subr.mxu0 %v5736
        %7828 = vmatpush1.msra.mxu0 %v5632
        %7829 = vmatprep.subr.mxu0 %v5944
        %7830 = vmatpush1.msra.mxu0 %v5840
        %7831 = vmatprep.subr.mxu0 %v6152
        %7832 = vmatpush1.msra.mxu0 %v6048
        %7833 = vmatprep.subr.mxu0 %v6360
        %7834 = vmatpush1.msra.mxu0 %v6256
        %7835 = vmatprep.subr.mxu0 %v6568
        %7836 = vmatpush1.msra.mxu0 %v6464
        %7837 = vmatprep.subr.mxu0 %v6776
        %7838 = vmatpush1.msra.mxu0 %v6672
        %7839 = vmatprep.subr.mxu0 %v6984
        %7840 = vmatpush1.msra.mxu0 %v6880
        %7841 = vmatprep.subr.mxu0 %v7192
        %7842 = vmatpush1.msra.mxu0 %v7088
        %7843 = vmatprep.subr.mxu0 %v7400
        %7844 = vmatpush1.msra.mxu0 %v7296
        %7845 = vmatprep.subr.mxu0 %v7608
        %7846 = vmatpush1.msra.mxu0 %v7504
        %7847 = vmatprep.subr.mxu0 %v7816
        %7848 = vmatpush1.msra.mxu0 %v7712
        %7849 = vmatprep.subr.mxu0 0.0
        %7850 = vmatpush1.msra.mxu0 0.0
        %7851 = vmatprep.subr.mxu0 0.0
        %7852 = vmatpush1.msra.mxu0 0.0
        %7853 = vmatprep.subr.mxu0 0.0
        %7854 = vmatpush1.msra.mxu0 0.0
        %7855 = vmatprep.subr.mxu0 0.0
        %7856 = vmatpush1.msra.mxu0 0.0
        %7857 = vmatprep.subr.mxu0 0.0
        %7858 = vmatpush1.msra.mxu0 0.0
        %7859 = vmatprep.subr.mxu0 0.0
        %7860 = vmatpush1.msra.mxu0 0.0
        %7861 = vmatprep.subr.mxu0 0.0
        %7862 = vmatpush1.msra.mxu0 0.0
        %7863 = vmatprep.subr.mxu0 0.0
        %7864 = vmatpush1.msra.mxu0 0.0
        %7865 = vmatprep.subr.mxu0 0.0
        %7866 = vmatpush1.msra.mxu0 0.0
        %7867 = vmatprep.subr.mxu0 0.0
        %7868 = vmatpush1.msra.mxu0 0.0
        %7869 = vmatprep.subr.mxu0 0.0
        %7870 = vmatpush1.msra.mxu0 0.0
        %7871 = vmatprep.subr.mxu0 0.0
        %7872 = vmatpush1.msra.mxu0 0.0
        %7873 = vmatprep.subr.mxu0 0.0
        %7874 = vmatpush1.msra.mxu0 0.0
        %7875 = vmatprep.subr.mxu0 0.0
        %7876 = vmatpush1.msra.mxu0 0.0
        %7877 = vmatprep.subr.mxu0 0.0
        %7878 = vmatpush1.msra.mxu0 0.0
        %7879 = vmatprep.subr.mxu0 0.0
        %7880 = vmatpush1.msra.mxu0 0.0
        %7881 = vmatprep.mubr.f32.mxu0 0.0
        %7882 = vmatmul.mubr.f32.gmra.mrb[0].mxu0 %v4485
        %v7883 = vpop.f32.mrb[0].mxu0
        %v7884 = vadd.f32 0.0, %v7883
        %v7885 = vpop.f32.mrb[0].mxu0
        %v7886 = vadd.f32 0.0, %v7885
        %7887 = vmatprep.mubr.f32.mxu0 0.0
        %7888 = vmatmul.mubr.f32.gmra.mrb[0].mxu0 %v4486
        %v7889 = vpop.f32.mrb[0].mxu0
        %v7890 = vadd.f32 0.0, %v7889
        %v7891 = vpop.f32.mrb[0].mxu0
        %v7892 = vadd.f32 0.0, %v7891
        %7893 = vmatprep.mubr.f32.mxu0 0.0
        %7894 = vmatmul.mubr.f32.gmra.mrb[0].mxu0 %v4487
        %v7895 = vpop.f32.mrb[0].mxu0
        %v7896 = vadd.f32 0.0, %v7895
        %v7897 = vpop.f32.mrb[0].mxu0
        %v7898 = vadd.f32 0.0, %v7897
        %7899 = vmatprep.mubr.f32.mxu0 0.0
        %7900 = vmatmul.mubr.f32.gmra.mrb[0].mxu0 %v4488
        %v7901 = vpop.f32.mrb[0].mxu0
        %v7902 = vadd.f32 0.0, %v7901
        %v7903 = vpop.f32.mrb[0].mxu0
        %v7904 = vadd.f32 0.0, %v7903
        %7905 = vdwg.mxu0
        %v7906 = vmul.f32 %v7884, %v748
        %v7907 = vmul.f32 %v7886, %v749
        %v7908 = vmul.f32 %v7890, %v750
        %v7909 = vmul.f32 %v7892, %v751
        %v7910 = vmul.f32 %v7896, %v752
        %v7911 = vmul.f32 %v7898, %v753
        %v7912 = vmul.f32 %v7902, %v754
        %v7913 = vmul.f32 %v7904, %v755
        %v7914 = vmul.f32 %v591, %v591
        %v7915 = vmul.f32 %v592, %v592
        %v7916 = vmul.f32 %v593, %v593
        %v7917 = vmul.f32 %v594, %v594
        %v7918 = vmul.f32 %v595, %v595
        %v7919 = vmul.f32 %v596, %v596
        %v7920 = vmul.f32 %v597, %v597
        %v7921 = vmul.f32 %v598, %v598
        %v7922 = vsub.f32 1.0, %v7914
        %v7923 = vsub.f32 1.0, %v7915
        %v7924 = vsub.f32 1.0, %v7916
        %v7925 = vsub.f32 1.0, %v7917
        %v7926 = vsub.f32 1.0, %v7918
        %v7927 = vsub.f32 1.0, %v7919
        %v7928 = vsub.f32 1.0, %v7920
        %v7929 = vsub.f32 1.0, %v7921
        %v7930 = vmul.f32 %v7906, %v7922
        %v7931 = vmul.f32 %v7907, %v7923
        %v7932 = vmul.f32 %v7908, %v7924
        %v7933 = vmul.f32 %v7909, %v7925
        %v7934 = vmul.f32 %v7910, %v7926
        %v7935 = vmul.f32 %v7911, %v7927
        %v7936 = vmul.f32 %v7912, %v7928
        %v7937 = vmul.f32 %v7913, %v7929
        %v7938 = vld [vmem:[%s2] sm:$0x7]
        %v7940 = vsel %vm884, %v7938, 0
        %7942 = vmatprep.subr.mxu0 %v7931
        %7943 = vmatpush1.msra.mxu0 %v7930
        %7944 = vmatprep.subr.mxu0 %v7933
        %7945 = vmatpush1.msra.mxu0 %v7932
        %7946 = vmatprep.subr.mxu0 %v7935
        %7947 = vmatpush1.msra.mxu0 %v7934
        %7948 = vmatprep.subr.mxu0 %v7937
        %7949 = vmatpush1.msra.mxu0 %v7936
        %7950 = vmatprep.subr.mxu0 0.0
        %7951 = vmatpush1.msra.mxu0 0.0
        %7952 = vmatprep.subr.mxu0 0.0
        %7953 = vmatpush1.msra.mxu0 0.0
        %7954 = vmatprep.subr.mxu0 0.0
        %7955 = vmatpush1.msra.mxu0 0.0
        %7956 = vmatprep.subr.mxu0 0.0
        %7957 = vmatpush1.msra.mxu0 0.0
        %7958 = vmatprep.subr.mxu0 0.0
        %7959 = vmatpush1.msra.mxu0 0.0
        %7960 = vmatprep.subr.mxu0 0.0
        %7961 = vmatpush1.msra.mxu0 0.0
        %7962 = vmatprep.subr.mxu0 0.0
        %7963 = vmatpush1.msra.mxu0 0.0
        %7964 = vmatprep.subr.mxu0 0.0
        %7965 = vmatpush1.msra.mxu0 0.0
        %7966 = vmatprep.subr.mxu0 0.0
        %7967 = vmatpush1.msra.mxu0 0.0
        %7968 = vmatprep.subr.mxu0 0.0
        %7969 = vmatpush1.msra.mxu0 0.0
        %7970 = vmatprep.subr.mxu0 0.0
        %7971 = vmatpush1.msra.mxu0 0.0
        %7972 = vmatprep.subr.mxu0 0.0
        %7973 = vmatpush1.msra.mxu0 0.0
        %7974 = vmatprep.subr.mxu0 0.0
        %7975 = vmatpush1.msra.mxu0 0.0
        %7976 = vmatprep.subr.mxu0 0.0
        %7977 = vmatpush1.msra.mxu0 0.0
        %7978 = vmatprep.subr.mxu0 0.0
        %7979 = vmatpush1.msra.mxu0 0.0
        %7980 = vmatprep.subr.mxu0 0.0
        %7981 = vmatpush1.msra.mxu0 0.0
        %7982 = vmatprep.subr.mxu0 0.0
        %7983 = vmatpush1.msra.mxu0 0.0
        %7984 = vmatprep.subr.mxu0 0.0
        %7985 = vmatpush1.msra.mxu0 0.0
        %7986 = vmatprep.subr.mxu0 0.0
        %7987 = vmatpush1.msra.mxu0 0.0
        %7988 = vmatprep.subr.mxu0 0.0
        %7989 = vmatpush1.msra.mxu0 0.0
        %7990 = vmatprep.subr.mxu0 0.0
        %7991 = vmatpush1.msra.mxu0 0.0
        %7992 = vmatprep.subr.mxu0 0.0
        %7993 = vmatpush1.msra.mxu0 0.0
        %7994 = vmatprep.subr.mxu0 0.0
        %7995 = vmatpush1.msra.mxu0 0.0
        %7996 = vmatprep.subr.mxu0 0.0
        %7997 = vmatpush1.msra.mxu0 0.0
        %7998 = vmatprep.subr.mxu0 0.0
        %7999 = vmatpush1.msra.mxu0 0.0
        %8000 = vmatprep.subr.mxu0 0.0
        %8001 = vmatpush1.msra.mxu0 0.0
        %8002 = vmatprep.subr.mxu0 0.0
        %8003 = vmatpush1.msra.mxu0 0.0
        %8004 = vmatprep.subr.mxu0 0.0
        %8005 = vmatpush1.msra.mxu0 0.0
        %8006 = vmatprep.mubr.f32.mxu0 0.0
        %8007 = vmatmul.mubr.f32.gmra.mrb[0].mxu0 %v7940
        %v8008 = vpop.f32.mrb[0].mxu0
        %v8009 = vadd.f32 0.0, %v8008
        %v8010 = vpop.f32.mrb[0].mxu0
        %v8011 = vadd.f32 0.0, %v8010
        %8012 = vdwg.mxu0
        %v8013 = vsub.f32 0.0, %v8009
        %v8014 = vsub.f32 0.0, %v8011
        %v8017 = vcombine.low %v8013, %v8014
        %v8018 = vrot.slane %v8017, 7
        %8020 = vst [vmem:[%s394] sm:$0xee] %v8018
        %s8021 = sand.u32 %s274, 1
        %s8022 = scalar_lea.sflag [#allocation3], %s8021
        %s8023 = sand.u32 %s274, 1
        %s8024 = smul.addr %s8023, 8
        %s8025 = scalar_lea.vmem [#allocation2], %s8024
        // Predicated region
        $region65: #{tpu_custom_call.1} parent=63 // pred_check
          %p8026 = pneg %p284
        $region66: #{tpu_custom_call.1} parent=63 // pred_check_branch
          %8028 = sbr.rel (%p8026) target = $region68
        $region67: #{tpu_custom_call.1} parent=63 // pred_region
          %s8029 = smul.u32 2, %s25
          %s8031 = ssub.s32 128, 128
          %8032 = vsyncadd %s8022, %s8031
          %s8033 = smul.addr %s8029, 64
          %s8034 = scalar_lea.hbm %s11, %s8033
          %s8036 = sshll.u32 %s8025, 4
          %s8037 = int_to_ptr.vmem [resolvable:$true] %s8036
          %8039 = dma.vmem_to_hbm [thread:$0]  %s8037, 128, %s8034, %s8022
        $region68: #{tpu_custom_call.1} parent=63 // pred_fallthru
          _
      $region64: #{tpu_custom_call.1} parent=5 // pred_fallthru
        _
      %p8040 = scmp.le.s32.totalorder 2, %s20
      // Predicated region
      $region69: #{tpu_custom_call.1} parent=5 // pred_check
        %p8041 = pneg %p8040
      $region70: #{tpu_custom_call.1} parent=5 // pred_check_branch
        %8043 = sbr.rel (%p8041) target = $region72
      $region71: #{tpu_custom_call.1} parent=5 // pred_region
        %s8044 = ssub.s32 %s20, 2
        // Predicated region
        $region73: #{tpu_custom_call.1} parent=71 // pred_check
          %p8045 = pneg %p290
        $region74: #{tpu_custom_call.1} parent=71 // pred_check_branch
          %8047 = sbr.rel (%p8045) target = $region76
        $region75: #{tpu_custom_call.1} parent=71 // pred_region
          %s8048 = sand.u32 %s275, 1
          %s8049 = scalar_lea.sflag [#allocation3], %s8048
          %s8050 = sand.u32 %s275, 1
          %s8051 = smul.addr %s8050, 8
          %s8052 = scalar_lea.vmem [#allocation2], %s8051
          %8053 = dma.done %s8049, 128
        $region76: #{tpu_custom_call.1} parent=71 // pred_fallthru
          _
      $region72: #{tpu_custom_call.1} parent=5 // pred_fallthru
        _
    $region6: #{tpu_custom_call.1} parent=1 // loop_footer
      %s24 = sadd.s32 1, %s20
    $region7: #{tpu_custom_call.1} parent=1 // loop_footer_branch
      %19 = sbr.rel target = $region3
    $region8: #{tpu_custom_call.1} parent=1 // loop_exit
      _
    %8054 = vsyncpa [#allocation3], 1
    %s8055 = scalar_lea.sflag [#allocation3], 1
    %8056 = vsyncpa %s8055, 1

</llo_original>
